<compile_context>
chip_gen: v7x
topology: tpu7x:2x2x1
jax: 0.10.0
libtpu: 0.0.40
codegen_flags: <defaults>
</compile_context>

<pallas_src>
import jax
import jax.numpy as jnp
from jax import lax
from jax.experimental import pallas as pl
from jax.experimental.pallas import tpu as pltpu

# ----- model dimensions (small synthetic config) -----------------------------
B = 2          # batch
S = 8          # source sequence length
V = 32         # vocab size
E = 32         # embedding dim
H = 32         # hidden dim
SOS_IDX = 1
EOS_IDX = 2
MAX_SEQ_LEN = 10

_VMEM = pl.BlockSpec(memory_space=pltpu.MemorySpace.VMEM)


# ----- fused Pallas kernel ----------------------------------------------------
def seq2seq_kernel(src_flat_ref,
                   enc_tab_ref, enc_w_hh_ref, enc_b_hh_ref,
                   dec_tab_ref, dec_w_hh_ref, dec_b_hh_ref,
                   w_out_h_ref, w_out_c_ref, b_out_ref,
                   seq_ref, len_ref,
                   enc_scr):
    """Fused forward: (folded) embedding -> GRU encoder -> greedy GRU+attn decoder."""
    bsz, max_len = seq_ref.shape
    vocab = enc_tab_ref.shape[0]
    hid = enc_w_hh_ref.shape[0]
    src_len = src_flat_ref.shape[0] // bsz

    # Weights arrive pre-cast to bf16 (MXU operands); biases are f32.
    enc_w_hh = enc_w_hh_ref[...]          # [H, 3H] bf16
    enc_b_hh = enc_b_hh_ref[...]          # [1, 3H] f32
    dec_tab = dec_tab_ref[...]            # [V, 3H] bf16  (emb@W_ih + b_ih folded)
    dec_w_hh = dec_w_hh_ref[...]          # [H, 3H] bf16
    dec_b_hh = dec_b_hh_ref[...]          # [1, 3H] f32
    w_out_h = w_out_h_ref[...]            # [H, V]  bf16
    w_out_c = w_out_c_ref[...]            # [H, V]  bf16
    b_out = b_out_ref[...]                # [1, V]  f32

    def gru_gates(gi, gh, h):
        # nn.GRUCell semantics, PyTorch gate order (r, z, n); gate math in f32.
        r = jax.nn.sigmoid(gi[:, 0 * hid:1 * hid] + gh[:, 0 * hid:1 * hid])
        z = jax.nn.sigmoid(gi[:, 1 * hid:2 * hid] + gh[:, 1 * hid:2 * hid])
        n = jnp.tanh(gi[:, 2 * hid:3 * hid] + r * gh[:, 2 * hid:3 * hid])
        return (1.0 - z) * n + z * h

    # ----- encoder ------------------------------------------------------------
    # Whole input path (embedding + input-gate projection + bias) in ONE matmul:
    # one-hot over all S*B source tokens (exact 0/1 in bf16) against the fused
    # [V, 3H] table.  Per step only a static sublane slice remains on the chain.
    sb_iota = lax.broadcasted_iota(jnp.int32, (src_len * bsz, vocab), 1)
    src_oh = (src_flat_ref[...] == sb_iota).astype(jnp.bfloat16)       # [S*B, V]
    gi_all = jnp.dot(src_oh, enc_tab_ref[...],
                     preferred_element_type=jnp.float32)               # [S*B, 3H]

    h = jnp.zeros((bsz, hid), jnp.float32)
    for t in range(src_len):   # tiny static trip count -> fully unrolled
        gi = gi_all[t * bsz:(t + 1) * bsz, :]                          # [B, 3H]
        gh = jnp.dot(h.astype(jnp.bfloat16), enc_w_hh,
                     preferred_element_type=jnp.float32) + enc_b_hh    # [B, 3H]
        h = gru_gates(gi, gh, h)
        enc_scr[:, t:t + 1, :] = h[:, None, :]                         # column t
    enc_out = enc_scr[...]                                             # [B, S, H] f32

    # ----- greedy decoder: GRU + Luong attention + projection + argmax --------
    v_iota = lax.broadcasted_iota(jnp.int32, (bsz, vocab), 1)

    tok = jnp.full((bsz, 1), SOS_IDX, jnp.int32)
    finished = jnp.zeros((bsz, 1), jnp.bool_)
    length = jnp.zeros((bsz, 1), jnp.int32)
    for t in range(max_len):   # fully unrolled; hard sequential dependency
        # Folded embedding + input gates: onehot(bf16, exact) @ dec_tab.
        oh = (tok == v_iota).astype(jnp.bfloat16)                      # [B, V]
        gi = jnp.dot(oh, dec_tab, preferred_element_type=jnp.float32)  # [B, 3H]
        gh = jnp.dot(h.astype(jnp.bfloat16), dec_w_hh,
                     preferred_element_type=jnp.float32) + dec_b_hh
        h = gru_gates(gi, gh, h)                                       # [B, H]

        # Luong dot attention (S=8/H=32: VPU+XLU; exact softmax divide — the
        # denominator is [B,1] so an exact reciprocal is essentially free and
        # avoids flipping near-tie argmax decisions).
        scores = jnp.sum(h[:, None, :] * enc_out, axis=-1)             # [B, S]
        scores = scores - jnp.max(scores, axis=-1, keepdims=True)
        e = jnp.exp(scores)
        attn = e / jnp.sum(e, axis=-1, keepdims=True)
        ctx = jnp.sum(attn[:, :, None] * enc_out, axis=1)              # [B, H]

        # Split projection: no per-step [h ; ctx] lane concat.
        logits = (jnp.dot(h.astype(jnp.bfloat16), w_out_h,
                          preferred_element_type=jnp.float32)
                  + jnp.dot(ctx.astype(jnp.bfloat16), w_out_c,
                            preferred_element_type=jnp.float32)
                  + b_out)                                             # [B, V]

        # argmax over lanes (first-max tie-break, same as jnp.argmax).
        mx = jnp.max(logits, axis=-1, keepdims=True)
        next_tok = jnp.min(jnp.where(logits == mx, v_iota, jnp.int32(vocab)),
                           axis=-1, keepdims=True)                     # [B, 1]
        next_tok = jnp.where(finished, jnp.int32(EOS_IDX), next_tok)

        length = jnp.where(finished, length, length + 1)
        finished = finished | (next_tok == jnp.int32(EOS_IDX))
        seq_ref[:, t:t + 1] = next_tok                                 # column t
        tok = next_tok

    len_ref[...] = length


# ----- wrapper ----------------------------------------------------------------
@jax.jit
def seq2seq_predict(question_tokens, params):
    """Numeric core of Seq2SeqPredict.forward (sampling_strategy='greedy')."""
    bsz, src_len = question_tokens.shape
    hid = params['enc_w_hh'].shape[0]

    # Fold embedding + input-gate weights + input bias into [V, 3H] tables.
    # Computed in f32, cast to bf16 ONCE (single rounding), outside the kernel.
    emb = params['embedding']
    enc_tab = (jnp.dot(emb, params['enc_w_ih']) + params['enc_b_ih']).astype(jnp.bfloat16)
    dec_tab = (jnp.dot(emb, params['dec_w_ih']) + params['dec_b_ih']).astype(jnp.bfloat16)
    enc_w_hh = params['enc_w_hh'].astype(jnp.bfloat16)
    dec_w_hh = params['dec_w_hh'].astype(jnp.bfloat16)
    # Split fused projection so the kernel never concatenates [h ; ctx].
    w_out_h = params['w_out'][:hid, :].astype(jnp.bfloat16)
    w_out_c = params['w_out'][hid:, :].astype(jnp.bfloat16)

    # Source tokens flattened to (time-major, batch-minor) rows: row = t*B + b.
    src_flat = question_tokens.T.reshape(src_len * bsz, 1)

    seqs, lengths = pl.pallas_call(
        seq2seq_kernel,
        out_shape=(jax.ShapeDtypeStruct((bsz, MAX_SEQ_LEN), jnp.int32),
                   jax.ShapeDtypeStruct((bsz, 1), jnp.int32)),
        in_specs=[_VMEM] * 10,
        out_specs=(_VMEM, _VMEM),
        scratch_shapes=[pltpu.VMEM((bsz, src_len, hid), jnp.float32)],
    )(src_flat,
      enc_tab, enc_w_hh, params['enc_b_hh'],
      dec_tab, dec_w_hh, params['dec_b_hh'],
      w_out_h, w_out_c, params['b_out'])
    return seqs, lengths[:, 0]
    # TODO(synk): 'random' and 'beam_search' samplers and the string-side
    # field.process / decode_sequence glue have no Pallas equivalent.


# ----- deterministic parameter init ------------------------------------------
def init_params(key):
    keys = jax.random.split(key, 8)

    def init(k, shape, scale=0.1):
        return jax.random.normal(k, shape, jnp.float32) * scale

    return {
        'embedding': init(keys[0], (V, E)),
        # GRU gate weights packed along the lane axis in PyTorch order (r, z, n),
        # right-multiply convention (transpose of nn.GRU weights).
        'enc_w_ih': init(keys[1], (E, 3 * H)),
        'enc_w_hh': init(keys[2], (H, 3 * H)),
        'enc_b_ih': jnp.zeros((1, 3 * H), jnp.float32),
        'enc_b_hh': jnp.zeros((1, 3 * H), jnp.float32),
        'dec_w_ih': init(keys[3], (E, 3 * H)),
        'dec_w_hh': init(keys[4], (H, 3 * H)),
        'dec_b_ih': jnp.zeros((1, 3 * H), jnp.float32),
        'dec_b_hh': jnp.zeros((1, 3 * H), jnp.float32),
        # Output projection on [h ; ctx]: logits = h@w_out[:H] + ctx@w_out[H:] + b.
        'w_out': init(keys[5], (2 * H, V)),
        'b_out': jnp.zeros((1, V), jnp.float32),
    }


if __name__ == "__main__":
    key = jax.random.PRNGKey(0)
    pkey, dkey = jax.random.split(key)
    params = init_params(pkey)

    # "questions" already numericalized (field.process is string-side glue).
    questions = jax.random.randint(dkey, (B, S), 3, V, dtype=jnp.int32)

    sequences, lengths = seq2seq_predict(questions, params)
    jax.block_until_ready((sequences, lengths))

    assert sequences.shape == (B, MAX_SEQ_LEN)
    assert lengths.shape == (B,)
    print("KERNEL_OK")
</pallas_src>

<mosaic_0001>
module attributes {stable_mosaic.version = 11 : i64} {
  func.func @seq2seq_kernel(%arg0: memref<16x1xi32, #tpu.memory_space<vmem>>, %arg1: memref<32x96xbf16, #tpu.memory_space<vmem>>, %arg2: memref<32x96xbf16, #tpu.memory_space<vmem>>, %arg3: memref<1x96xf32, #tpu.memory_space<vmem>>, %arg4: memref<32x96xbf16, #tpu.memory_space<vmem>>, %arg5: memref<32x96xbf16, #tpu.memory_space<vmem>>, %arg6: memref<1x96xf32, #tpu.memory_space<vmem>>, %arg7: memref<32x32xbf16, #tpu.memory_space<vmem>>, %arg8: memref<32x32xbf16, #tpu.memory_space<vmem>>, %arg9: memref<1x32xf32, #tpu.memory_space<vmem>>, %arg10: memref<2x10xi32, #tpu.memory_space<vmem>>, %arg11: memref<2x1xi32, #tpu.memory_space<vmem>>, %arg12: memref<2x8x32xf32, #tpu.memory_space<vmem>>) attributes {dimension_semantics = [], scalar_prefetch = 0 : i64, scratch_operands = 1 : i64, tpu.core_type = #tpu.core_type<tc>} {
    %c0 = arith.constant 0 : index
    %c0_0 = arith.constant 0 : index
    %0 = vector.load %arg2[%c0, %c0_0] : memref<32x96xbf16, #tpu.memory_space<vmem>>, vector<32x96xbf16>
    %c0_1 = arith.constant 0 : index
    %c0_2 = arith.constant 0 : index
    %1 = vector.load %arg3[%c0_1, %c0_2] : memref<1x96xf32, #tpu.memory_space<vmem>>, vector<1x96xf32>
    %c0_3 = arith.constant 0 : index
    %c0_4 = arith.constant 0 : index
    %2 = vector.load %arg4[%c0_3, %c0_4] : memref<32x96xbf16, #tpu.memory_space<vmem>>, vector<32x96xbf16>
    %c0_5 = arith.constant 0 : index
    %c0_6 = arith.constant 0 : index
    %3 = vector.load %arg5[%c0_5, %c0_6] : memref<32x96xbf16, #tpu.memory_space<vmem>>, vector<32x96xbf16>
    %c0_7 = arith.constant 0 : index
    %c0_8 = arith.constant 0 : index
    %4 = vector.load %arg6[%c0_7, %c0_8] : memref<1x96xf32, #tpu.memory_space<vmem>>, vector<1x96xf32>
    %c0_9 = arith.constant 0 : index
    %c0_10 = arith.constant 0 : index
    %5 = vector.load %arg7[%c0_9, %c0_10] : memref<32x32xbf16, #tpu.memory_space<vmem>>, vector<32x32xbf16>
    %c0_11 = arith.constant 0 : index
    %c0_12 = arith.constant 0 : index
    %6 = vector.load %arg8[%c0_11, %c0_12] : memref<32x32xbf16, #tpu.memory_space<vmem>>, vector<32x32xbf16>
    %c0_13 = arith.constant 0 : index
    %c0_14 = arith.constant 0 : index
    %7 = vector.load %arg9[%c0_13, %c0_14] : memref<1x32xf32, #tpu.memory_space<vmem>>, vector<1x32xf32>
    %8 = tpu.iota {dimensions = array<i32: 1>} : vector<16x32xi32>
    %c0_15 = arith.constant 0 : index
    %c0_16 = arith.constant 0 : index
    %9 = vector.load %arg0[%c0_15, %c0_16] : memref<16x1xi32, #tpu.memory_space<vmem>>, vector<16x1xi32>
    %10 = vector.broadcast %9 : vector<16x1xi32> to vector<16x32xi32>
    %11 = arith.cmpi eq, %10, %8 : vector<16x32xi32>
    %12 = arith.extui %11 : vector<16x32xi1> to vector<16x32xi32>
    %13 = arith.sitofp %12 : vector<16x32xi32> to vector<16x32xf32>
    %14 = arith.truncf %13 : vector<16x32xf32> to vector<16x32xbf16>
    %c0_17 = arith.constant 0 : index
    %c0_18 = arith.constant 0 : index
    %15 = vector.load %arg1[%c0_17, %c0_18] : memref<32x96xbf16, #tpu.memory_space<vmem>>, vector<32x96xbf16>
    %cst = arith.constant dense<0.000000e+00> : vector<16x96xf32>
    %16 = tpu.matmul %14, %15, %cst {dimension_numbers = #tpu.dot_dimension_numbers<[1], [0], [0], [1], [0, 0, 1, 1], [], []>} : vector<16x32xbf16>, vector<32x96xbf16>, vector<16x96xf32> -> vector<16x96xf32>
    %cst_19 = arith.constant 0.000000e+00 : f32
    %17 = vector.broadcast %cst_19 : f32 to vector<2x32xf32>
    %18 = vector.extract_strided_slice %16 {offsets = [0, 0], sizes = [2, 96], strides = [1, 1]} : vector<16x96xf32> to vector<2x96xf32>
    %19 = arith.truncf %17 : vector<2x32xf32> to vector<2x32xbf16>
    %cst_20 = arith.constant dense<0.000000e+00> : vector<2x96xf32>
    %20 = tpu.matmul %19, %0, %cst_20 {dimension_numbers = #tpu.dot_dimension_numbers<[1], [0], [0], [1], [0, 0, 1, 1], [], []>} : vector<2x32xbf16>, vector<32x96xbf16>, vector<2x96xf32> -> vector<2x96xf32>
    %21 = vector.broadcast %1 : vector<1x96xf32> to vector<2x96xf32>
    %22 = arith.addf %20, %21 : vector<2x96xf32>
    %23 = vector.extract_strided_slice %18 {offsets = [0, 0], sizes = [2, 32], strides = [1, 1]} : vector<2x96xf32> to vector<2x32xf32>
    %24 = vector.extract_strided_slice %22 {offsets = [0, 0], sizes = [2, 32], strides = [1, 1]} : vector<2x96xf32> to vector<2x32xf32>
    %25 = arith.addf %23, %24 : vector<2x32xf32>
    %26 = arith.negf %25 : vector<2x32xf32>
    %27 = math.exp %26 : vector<2x32xf32>
    %cst_21 = arith.constant 1.000000e+00 : f32
    %28 = vector.broadcast %cst_21 : f32 to vector<2x32xf32>
    %29 = arith.addf %28, %27 : vector<2x32xf32>
    %30 = arith.divf %28, %29 : vector<2x32xf32>
    %31 = vector.extract_strided_slice %18 {offsets = [0, 32], sizes = [2, 32], strides = [1, 1]} : vector<2x96xf32> to vector<2x32xf32>
    %32 = vector.extract_strided_slice %22 {offsets = [0, 32], sizes = [2, 32], strides = [1, 1]} : vector<2x96xf32> to vector<2x32xf32>
    %33 = arith.addf %31, %32 : vector<2x32xf32>
    %34 = arith.negf %33 : vector<2x32xf32>
    %35 = math.exp %34 : vector<2x32xf32>
    %cst_22 = arith.constant 1.000000e+00 : f32
    %36 = vector.broadcast %cst_22 : f32 to vector<2x32xf32>
    %37 = arith.addf %36, %35 : vector<2x32xf32>
    %38 = arith.divf %36, %37 : vector<2x32xf32>
    %39 = vector.extract_strided_slice %18 {offsets = [0, 64], sizes = [2, 32], strides = [1, 1]} : vector<2x96xf32> to vector<2x32xf32>
    %40 = vector.extract_strided_slice %22 {offsets = [0, 64], sizes = [2, 32], strides = [1, 1]} : vector<2x96xf32> to vector<2x32xf32>
    %41 = arith.mulf %30, %40 : vector<2x32xf32>
    %42 = arith.addf %39, %41 : vector<2x32xf32>
    %43 = math.tanh %42 : vector<2x32xf32>
    %cst_23 = arith.constant 1.000000e+00 : f32
    %44 = vector.broadcast %cst_23 : f32 to vector<2x32xf32>
    %45 = arith.subf %44, %38 : vector<2x32xf32>
    %46 = arith.mulf %45, %43 : vector<2x32xf32>
    %47 = arith.mulf %38, %17 : vector<2x32xf32>
    %48 = arith.addf %46, %47 : vector<2x32xf32>
    %49 = vector.shape_cast %48 : vector<2x32xf32> to vector<2x1x32xf32>
    %c0_24 = arith.constant 0 : index
    %c0_25 = arith.constant 0 : index
    %c0_26 = arith.constant 0 : index
    %50 = vector.load %arg12[%c0_24, %c0_25, %c0_26] : memref<2x8x32xf32, #tpu.memory_space<vmem>>, vector<2x1x32xf32>
    tpu.vector_store %arg12[%c0_24, %c0_25, %c0_26], %49 {strides = array<i32>} : memref<2x8x32xf32, #tpu.memory_space<vmem>>, vector<2x1x32xf32>,
    %51 = vector.extract_strided_slice %16 {offsets = [2, 0], sizes = [2, 96], strides = [1, 1]} : vector<16x96xf32> to vector<2x96xf32>
    %52 = arith.truncf %48 : vector<2x32xf32> to vector<2x32xbf16>
    %cst_27 = arith.constant dense<0.000000e+00> : vector<2x96xf32>
    %53 = tpu.matmul %52, %0, %cst_27 {dimension_numbers = #tpu.dot_dimension_numbers<[1], [0], [0], [1], [0, 0, 1, 1], [], []>} : vector<2x32xbf16>, vector<32x96xbf16>, vector<2x96xf32> -> vector<2x96xf32>
    %54 = vector.broadcast %1 : vector<1x96xf32> to vector<2x96xf32>
    %55 = arith.addf %53, %54 : vector<2x96xf32>
    %56 = vector.extract_strided_slice %51 {offsets = [0, 0], sizes = [2, 32], strides = [1, 1]} : vector<2x96xf32> to vector<2x32xf32>
    %57 = vector.extract_strided_slice %55 {offsets = [0, 0], sizes = [2, 32], strides = [1, 1]} : vector<2x96xf32> to vector<2x32xf32>
    %58 = arith.addf %56, %57 : vector<2x32xf32>
    %59 = arith.negf %58 : vector<2x32xf32>
    %60 = math.exp %59 : vector<2x32xf32>
    %cst_28 = arith.constant 1.000000e+00 : f32
    %61 = vector.broadcast %cst_28 : f32 to vector<2x32xf32>
    %62 = arith.addf %61, %60 : vector<2x32xf32>
    %63 = arith.divf %61, %62 : vector<2x32xf32>
    %64 = vector.extract_strided_slice %51 {offsets = [0, 32], sizes = [2, 32], strides = [1, 1]} : vector<2x96xf32> to vector<2x32xf32>
    %65 = vector.extract_strided_slice %55 {offsets = [0, 32], sizes = [2, 32], strides = [1, 1]} : vector<2x96xf32> to vector<2x32xf32>
    %66 = arith.addf %64, %65 : vector<2x32xf32>
    %67 = arith.negf %66 : vector<2x32xf32>
    %68 = math.exp %67 : vector<2x32xf32>
    %cst_29 = arith.constant 1.000000e+00 : f32
    %69 = vector.broadcast %cst_29 : f32 to vector<2x32xf32>
    %70 = arith.addf %69, %68 : vector<2x32xf32>
    %71 = arith.divf %69, %70 : vector<2x32xf32>
    %72 = vector.extract_strided_slice %51 {offsets = [0, 64], sizes = [2, 32], strides = [1, 1]} : vector<2x96xf32> to vector<2x32xf32>
    %73 = vector.extract_strided_slice %55 {offsets = [0, 64], sizes = [2, 32], strides = [1, 1]} : vector<2x96xf32> to vector<2x32xf32>
    %74 = arith.mulf %63, %73 : vector<2x32xf32>
    %75 = arith.addf %72, %74 : vector<2x32xf32>
    %76 = math.tanh %75 : vector<2x32xf32>
    %cst_30 = arith.constant 1.000000e+00 : f32
    %77 = vector.broadcast %cst_30 : f32 to vector<2x32xf32>
    %78 = arith.subf %77, %71 : vector<2x32xf32>
    %79 = arith.mulf %78, %76 : vector<2x32xf32>
    %80 = arith.mulf %71, %48 : vector<2x32xf32>
    %81 = arith.addf %79, %80 : vector<2x32xf32>
    %82 = vector.shape_cast %81 : vector<2x32xf32> to vector<2x1x32xf32>
    %c0_31 = arith.constant 0 : index
    %c1 = arith.constant 1 : index
    %c0_32 = arith.constant 0 : index
    %83 = vector.load %arg12[%c0_31, %c1, %c0_32] : memref<2x8x32xf32, #tpu.memory_space<vmem>>, vector<2x1x32xf32>
    tpu.vector_store %arg12[%c0_31, %c1, %c0_32], %82 {strides = array<i32>} : memref<2x8x32xf32, #tpu.memory_space<vmem>>, vector<2x1x32xf32>,
    %84 = vector.extract_strided_slice %16 {offsets = [4, 0], sizes = [2, 96], strides = [1, 1]} : vector<16x96xf32> to vector<2x96xf32>
    %85 = arith.truncf %81 : vector<2x32xf32> to vector<2x32xbf16>
    %cst_33 = arith.constant dense<0.000000e+00> : vector<2x96xf32>
    %86 = tpu.matmul %85, %0, %cst_33 {dimension_numbers = #tpu.dot_dimension_numbers<[1], [0], [0], [1], [0, 0, 1, 1], [], []>} : vector<2x32xbf16>, vector<32x96xbf16>, vector<2x96xf32> -> vector<2x96xf32>
    %87 = vector.broadcast %1 : vector<1x96xf32> to vector<2x96xf32>
    %88 = arith.addf %86, %87 : vector<2x96xf32>
    %89 = vector.extract_strided_slice %84 {offsets = [0, 0], sizes = [2, 32], strides = [1, 1]} : vector<2x96xf32> to vector<2x32xf32>
    %90 = vector.extract_strided_slice %88 {offsets = [0, 0], sizes = [2, 32], strides = [1, 1]} : vector<2x96xf32> to vector<2x32xf32>
    %91 = arith.addf %89, %90 : vector<2x32xf32>
    %92 = arith.negf %91 : vector<2x32xf32>
    %93 = math.exp %92 : vector<2x32xf32>
    %cst_34 = arith.constant 1.000000e+00 : f32
    %94 = vector.broadcast %cst_34 : f32 to vector<2x32xf32>
    %95 = arith.addf %94, %93 : vector<2x32xf32>
    %96 = arith.divf %94, %95 : vector<2x32xf32>
    %97 = vector.extract_strided_slice %84 {offsets = [0, 32], sizes = [2, 32], strides = [1, 1]} : vector<2x96xf32> to vector<2x32xf32>
    %98 = vector.extract_strided_slice %88 {offsets = [0, 32], sizes = [2, 32], strides = [1, 1]} : vector<2x96xf32> to vector<2x32xf32>
    %99 = arith.addf %97, %98 : vector<2x32xf32>
    %100 = arith.negf %99 : vector<2x32xf32>
    %101 = math.exp %100 : vector<2x32xf32>
    %cst_35 = arith.constant 1.000000e+00 : f32
    %102 = vector.broadcast %cst_35 : f32 to vector<2x32xf32>
    %103 = arith.addf %102, %101 : vector<2x32xf32>
    %104 = arith.divf %102, %103 : vector<2x32xf32>
    %105 = vector.extract_strided_slice %84 {offsets = [0, 64], sizes = [2, 32], strides = [1, 1]} : vector<2x96xf32> to vector<2x32xf32>
    %106 = vector.extract_strided_slice %88 {offsets = [0, 64], sizes = [2, 32], strides = [1, 1]} : vector<2x96xf32> to vector<2x32xf32>
    %107 = arith.mulf %96, %106 : vector<2x32xf32>
    %108 = arith.addf %105, %107 : vector<2x32xf32>
    %109 = math.tanh %108 : vector<2x32xf32>
    %cst_36 = arith.constant 1.000000e+00 : f32
    %110 = vector.broadcast %cst_36 : f32 to vector<2x32xf32>
    %111 = arith.subf %110, %104 : vector<2x32xf32>
    %112 = arith.mulf %111, %109 : vector<2x32xf32>
    %113 = arith.mulf %104, %81 : vector<2x32xf32>
    %114 = arith.addf %112, %113 : vector<2x32xf32>
    %115 = vector.shape_cast %114 : vector<2x32xf32> to vector<2x1x32xf32>
    %c0_37 = arith.constant 0 : index
    %c2 = arith.constant 2 : index
    %c0_38 = arith.constant 0 : index
    %116 = vector.load %arg12[%c0_37, %c2, %c0_38] : memref<2x8x32xf32, #tpu.memory_space<vmem>>, vector<2x1x32xf32>
    tpu.vector_store %arg12[%c0_37, %c2, %c0_38], %115 {strides = array<i32>} : memref<2x8x32xf32, #tpu.memory_space<vmem>>, vector<2x1x32xf32>,
    %117 = vector.extract_strided_slice %16 {offsets = [6, 0], sizes = [2, 96], strides = [1, 1]} : vector<16x96xf32> to vector<2x96xf32>
    %118 = arith.truncf %114 : vector<2x32xf32> to vector<2x32xbf16>
    %cst_39 = arith.constant dense<0.000000e+00> : vector<2x96xf32>
    %119 = tpu.matmul %118, %0, %cst_39 {dimension_numbers = #tpu.dot_dimension_numbers<[1], [0], [0], [1], [0, 0, 1, 1], [], []>} : vector<2x32xbf16>, vector<32x96xbf16>, vector<2x96xf32> -> vector<2x96xf32>
    %120 = vector.broadcast %1 : vector<1x96xf32> to vector<2x96xf32>
    %121 = arith.addf %119, %120 : vector<2x96xf32>
    %122 = vector.extract_strided_slice %117 {offsets = [0, 0], sizes = [2, 32], strides = [1, 1]} : vector<2x96xf32> to vector<2x32xf32>
    %123 = vector.extract_strided_slice %121 {offsets = [0, 0], sizes = [2, 32], strides = [1, 1]} : vector<2x96xf32> to vector<2x32xf32>
    %124 = arith.addf %122, %123 : vector<2x32xf32>
    %125 = arith.negf %124 : vector<2x32xf32>
    %126 = math.exp %125 : vector<2x32xf32>
    %cst_40 = arith.constant 1.000000e+00 : f32
    %127 = vector.broadcast %cst_40 : f32 to vector<2x32xf32>
    %128 = arith.addf %127, %126 : vector<2x32xf32>
    %129 = arith.divf %127, %128 : vector<2x32xf32>
    %130 = vector.extract_strided_slice %117 {offsets = [0, 32], sizes = [2, 32], strides = [1, 1]} : vector<2x96xf32> to vector<2x32xf32>
    %131 = vector.extract_strided_slice %121 {offsets = [0, 32], sizes = [2, 32], strides = [1, 1]} : vector<2x96xf32> to vector<2x32xf32>
    %132 = arith.addf %130, %131 : vector<2x32xf32>
    %133 = arith.negf %132 : vector<2x32xf32>
    %134 = math.exp %133 : vector<2x32xf32>
    %cst_41 = arith.constant 1.000000e+00 : f32
    %135 = vector.broadcast %cst_41 : f32 to vector<2x32xf32>
    %136 = arith.addf %135, %134 : vector<2x32xf32>
    %137 = arith.divf %135, %136 : vector<2x32xf32>
    %138 = vector.extract_strided_slice %117 {offsets = [0, 64], sizes = [2, 32], strides = [1, 1]} : vector<2x96xf32> to vector<2x32xf32>
    %139 = vector.extract_strided_slice %121 {offsets = [0, 64], sizes = [2, 32], strides = [1, 1]} : vector<2x96xf32> to vector<2x32xf32>
    %140 = arith.mulf %129, %139 : vector<2x32xf32>
    %141 = arith.addf %138, %140 : vector<2x32xf32>
    %142 = math.tanh %141 : vector<2x32xf32>
    %cst_42 = arith.constant 1.000000e+00 : f32
    %143 = vector.broadcast %cst_42 : f32 to vector<2x32xf32>
    %144 = arith.subf %143, %137 : vector<2x32xf32>
    %145 = arith.mulf %144, %142 : vector<2x32xf32>
    %146 = arith.mulf %137, %114 : vector<2x32xf32>
    %147 = arith.addf %145, %146 : vector<2x32xf32>
    %148 = vector.shape_cast %147 : vector<2x32xf32> to vector<2x1x32xf32>
    %c0_43 = arith.constant 0 : index
    %c3 = arith.constant 3 : index
    %c0_44 = arith.constant 0 : index
    %149 = vector.load %arg12[%c0_43, %c3, %c0_44] : memref<2x8x32xf32, #tpu.memory_space<vmem>>, vector<2x1x32xf32>
    tpu.vector_store %arg12[%c0_43, %c3, %c0_44], %148 {strides = array<i32>} : memref<2x8x32xf32, #tpu.memory_space<vmem>>, vector<2x1x32xf32>,
    %150 = vector.extract_strided_slice %16 {offsets = [8, 0], sizes = [2, 96], strides = [1, 1]} : vector<16x96xf32> to vector<2x96xf32>
    %151 = arith.truncf %147 : vector<2x32xf32> to vector<2x32xbf16>
    %cst_45 = arith.constant dense<0.000000e+00> : vector<2x96xf32>
    %152 = tpu.matmul %151, %0, %cst_45 {dimension_numbers = #tpu.dot_dimension_numbers<[1], [0], [0], [1], [0, 0, 1, 1], [], []>} : vector<2x32xbf16>, vector<32x96xbf16>, vector<2x96xf32> -> vector<2x96xf32>
    %153 = vector.broadcast %1 : vector<1x96xf32> to vector<2x96xf32>
    %154 = arith.addf %152, %153 : vector<2x96xf32>
    %155 = vector.extract_strided_slice %150 {offsets = [0, 0], sizes = [2, 32], strides = [1, 1]} : vector<2x96xf32> to vector<2x32xf32>
    %156 = vector.extract_strided_slice %154 {offsets = [0, 0], sizes = [2, 32], strides = [1, 1]} : vector<2x96xf32> to vector<2x32xf32>
    %157 = arith.addf %155, %156 : vector<2x32xf32>
    %158 = arith.negf %157 : vector<2x32xf32>
    %159 = math.exp %158 : vector<2x32xf32>
    %cst_46 = arith.constant 1.000000e+00 : f32
    %160 = vector.broadcast %cst_46 : f32 to vector<2x32xf32>
    %161 = arith.addf %160, %159 : vector<2x32xf32>
    %162 = arith.divf %160, %161 : vector<2x32xf32>
    %163 = vector.extract_strided_slice %150 {offsets = [0, 32], sizes = [2, 32], strides = [1, 1]} : vector<2x96xf32> to vector<2x32xf32>
    %164 = vector.extract_strided_slice %154 {offsets = [0, 32], sizes = [2, 32], strides = [1, 1]} : vector<2x96xf32> to vector<2x32xf32>
    %165 = arith.addf %163, %164 : vector<2x32xf32>
    %166 = arith.negf %165 : vector<2x32xf32>
    %167 = math.exp %166 : vector<2x32xf32>
    %cst_47 = arith.constant 1.000000e+00 : f32
    %168 = vector.broadcast %cst_47 : f32 to vector<2x32xf32>
    %169 = arith.addf %168, %167 : vector<2x32xf32>
    %170 = arith.divf %168, %169 : vector<2x32xf32>
    %171 = vector.extract_strided_slice %150 {offsets = [0, 64], sizes = [2, 32], strides = [1, 1]} : vector<2x96xf32> to vector<2x32xf32>
    %172 = vector.extract_strided_slice %154 {offsets = [0, 64], sizes = [2, 32], strides = [1, 1]} : vector<2x96xf32> to vector<2x32xf32>
    %173 = arith.mulf %162, %172 : vector<2x32xf32>
    %174 = arith.addf %171, %173 : vector<2x32xf32>
    %175 = math.tanh %174 : vector<2x32xf32>
    %cst_48 = arith.constant 1.000000e+00 : f32
    %176 = vector.broadcast %cst_48 : f32 to vector<2x32xf32>
    %177 = arith.subf %176, %170 : vector<2x32xf32>
    %178 = arith.mulf %177, %175 : vector<2x32xf32>
    %179 = arith.mulf %170, %147 : vector<2x32xf32>
    %180 = arith.addf %178, %179 : vector<2x32xf32>
    %181 = vector.shape_cast %180 : vector<2x32xf32> to vector<2x1x32xf32>
    %c0_49 = arith.constant 0 : index
    %c4 = arith.constant 4 : index
    %c0_50 = arith.constant 0 : index
    %182 = vector.load %arg12[%c0_49, %c4, %c0_50] : memref<2x8x32xf32, #tpu.memory_space<vmem>>, vector<2x1x32xf32>
    tpu.vector_store %arg12[%c0_49, %c4, %c0_50], %181 {strides = array<i32>} : memref<2x8x32xf32, #tpu.memory_space<vmem>>, vector<2x1x32xf32>,
    %183 = vector.extract_strided_slice %16 {offsets = [10, 0], sizes = [2, 96], strides = [1, 1]} : vector<16x96xf32> to vector<2x96xf32>
    %184 = arith.truncf %180 : vector<2x32xf32> to vector<2x32xbf16>
    %cst_51 = arith.constant dense<0.000000e+00> : vector<2x96xf32>
    %185 = tpu.matmul %184, %0, %cst_51 {dimension_numbers = #tpu.dot_dimension_numbers<[1], [0], [0], [1], [0, 0, 1, 1], [], []>} : vector<2x32xbf16>, vector<32x96xbf16>, vector<2x96xf32> -> vector<2x96xf32>
    %186 = vector.broadcast %1 : vector<1x96xf32> to vector<2x96xf32>
    %187 = arith.addf %185, %186 : vector<2x96xf32>
    %188 = vector.extract_strided_slice %183 {offsets = [0, 0], sizes = [2, 32], strides = [1, 1]} : vector<2x96xf32> to vector<2x32xf32>
    %189 = vector.extract_strided_slice %187 {offsets = [0, 0], sizes = [2, 32], strides = [1, 1]} : vector<2x96xf32> to vector<2x32xf32>
    %190 = arith.addf %188, %189 : vector<2x32xf32>
    %191 = arith.negf %190 : vector<2x32xf32>
    %192 = math.exp %191 : vector<2x32xf32>
    %cst_52 = arith.constant 1.000000e+00 : f32
    %193 = vector.broadcast %cst_52 : f32 to vector<2x32xf32>
    %194 = arith.addf %193, %192 : vector<2x32xf32>
    %195 = arith.divf %193, %194 : vector<2x32xf32>
    %196 = vector.extract_strided_slice %183 {offsets = [0, 32], sizes = [2, 32], strides = [1, 1]} : vector<2x96xf32> to vector<2x32xf32>
    %197 = vector.extract_strided_slice %187 {offsets = [0, 32], sizes = [2, 32], strides = [1, 1]} : vector<2x96xf32> to vector<2x32xf32>
    %198 = arith.addf %196, %197 : vector<2x32xf32>
    %199 = arith.negf %198 : vector<2x32xf32>
    %200 = math.exp %199 : vector<2x32xf32>
    %cst_53 = arith.constant 1.000000e+00 : f32
    %201 = vector.broadcast %cst_53 : f32 to vector<2x32xf32>
    %202 = arith.addf %201, %200 : vector<2x32xf32>
    %203 = arith.divf %201, %202 : vector<2x32xf32>
    %204 = vector.extract_strided_slice %183 {offsets = [0, 64], sizes = [2, 32], strides = [1, 1]} : vector<2x96xf32> to vector<2x32xf32>
    %205 = vector.extract_strided_slice %187 {offsets = [0, 64], sizes = [2, 32], strides = [1, 1]} : vector<2x96xf32> to vector<2x32xf32>
    %206 = arith.mulf %195, %205 : vector<2x32xf32>
    %207 = arith.addf %204, %206 : vector<2x32xf32>
    %208 = math.tanh %207 : vector<2x32xf32>
    %cst_54 = arith.constant 1.000000e+00 : f32
    %209 = vector.broadcast %cst_54 : f32 to vector<2x32xf32>
    %210 = arith.subf %209, %203 : vector<2x32xf32>
    %211 = arith.mulf %210, %208 : vector<2x32xf32>
    %212 = arith.mulf %203, %180 : vector<2x32xf32>
    %213 = arith.addf %211, %212 : vector<2x32xf32>
    %214 = vector.shape_cast %213 : vector<2x32xf32> to vector<2x1x32xf32>
    %c0_55 = arith.constant 0 : index
    %c5 = arith.constant 5 : index
    %c0_56 = arith.constant 0 : index
    %215 = vector.load %arg12[%c0_55, %c5, %c0_56] : memref<2x8x32xf32, #tpu.memory_space<vmem>>, vector<2x1x32xf32>
    tpu.vector_store %arg12[%c0_55, %c5, %c0_56], %214 {strides = array<i32>} : memref<2x8x32xf32, #tpu.memory_space<vmem>>, vector<2x1x32xf32>,
    %216 = vector.extract_strided_slice %16 {offsets = [12, 0], sizes = [2, 96], strides = [1, 1]} : vector<16x96xf32> to vector<2x96xf32>
    %217 = arith.truncf %213 : vector<2x32xf32> to vector<2x32xbf16>
    %cst_57 = arith.constant dense<0.000000e+00> : vector<2x96xf32>
    %218 = tpu.matmul %217, %0, %cst_57 {dimension_numbers = #tpu.dot_dimension_numbers<[1], [0], [0], [1], [0, 0, 1, 1], [], []>} : vector<2x32xbf16>, vector<32x96xbf16>, vector<2x96xf32> -> vector<2x96xf32>
    %219 = vector.broadcast %1 : vector<1x96xf32> to vector<2x96xf32>
    %220 = arith.addf %218, %219 : vector<2x96xf32>
    %221 = vector.extract_strided_slice %216 {offsets = [0, 0], sizes = [2, 32], strides = [1, 1]} : vector<2x96xf32> to vector<2x32xf32>
    %222 = vector.extract_strided_slice %220 {offsets = [0, 0], sizes = [2, 32], strides = [1, 1]} : vector<2x96xf32> to vector<2x32xf32>
    %223 = arith.addf %221, %222 : vector<2x32xf32>
    %224 = arith.negf %223 : vector<2x32xf32>
    %225 = math.exp %224 : vector<2x32xf32>
    %cst_58 = arith.constant 1.000000e+00 : f32
    %226 = vector.broadcast %cst_58 : f32 to vector<2x32xf32>
    %227 = arith.addf %226, %225 : vector<2x32xf32>
    %228 = arith.divf %226, %227 : vector<2x32xf32>
    %229 = vector.extract_strided_slice %216 {offsets = [0, 32], sizes = [2, 32], strides = [1, 1]} : vector<2x96xf32> to vector<2x32xf32>
    %230 = vector.extract_strided_slice %220 {offsets = [0, 32], sizes = [2, 32], strides = [1, 1]} : vector<2x96xf32> to vector<2x32xf32>
    %231 = arith.addf %229, %230 : vector<2x32xf32>
    %232 = arith.negf %231 : vector<2x32xf32>
    %233 = math.exp %232 : vector<2x32xf32>
    %cst_59 = arith.constant 1.000000e+00 : f32
    %234 = vector.broadcast %cst_59 : f32 to vector<2x32xf32>
    %235 = arith.addf %234, %233 : vector<2x32xf32>
    %236 = arith.divf %234, %235 : vector<2x32xf32>
    %237 = vector.extract_strided_slice %216 {offsets = [0, 64], sizes = [2, 32], strides = [1, 1]} : vector<2x96xf32> to vector<2x32xf32>
    %238 = vector.extract_strided_slice %220 {offsets = [0, 64], sizes = [2, 32], strides = [1, 1]} : vector<2x96xf32> to vector<2x32xf32>
    %239 = arith.mulf %228, %238 : vector<2x32xf32>
    %240 = arith.addf %237, %239 : vector<2x32xf32>
    %241 = math.tanh %240 : vector<2x32xf32>
    %cst_60 = arith.constant 1.000000e+00 : f32
    %242 = vector.broadcast %cst_60 : f32 to vector<2x32xf32>
    %243 = arith.subf %242, %236 : vector<2x32xf32>
    %244 = arith.mulf %243, %241 : vector<2x32xf32>
    %245 = arith.mulf %236, %213 : vector<2x32xf32>
    %246 = arith.addf %244, %245 : vector<2x32xf32>
    %247 = vector.shape_cast %246 : vector<2x32xf32> to vector<2x1x32xf32>
    %c0_61 = arith.constant 0 : index
    %c6 = arith.constant 6 : index
    %c0_62 = arith.constant 0 : index
    %248 = vector.load %arg12[%c0_61, %c6, %c0_62] : memref<2x8x32xf32, #tpu.memory_space<vmem>>, vector<2x1x32xf32>
    tpu.vector_store %arg12[%c0_61, %c6, %c0_62], %247 {strides = array<i32>} : memref<2x8x32xf32, #tpu.memory_space<vmem>>, vector<2x1x32xf32>,
    %249 = vector.extract_strided_slice %16 {offsets = [14, 0], sizes = [2, 96], strides = [1, 1]} : vector<16x96xf32> to vector<2x96xf32>
    %250 = arith.truncf %246 : vector<2x32xf32> to vector<2x32xbf16>
    %cst_63 = arith.constant dense<0.000000e+00> : vector<2x96xf32>
    %251 = tpu.matmul %250, %0, %cst_63 {dimension_numbers = #tpu.dot_dimension_numbers<[1], [0], [0], [1], [0, 0, 1, 1], [], []>} : vector<2x32xbf16>, vector<32x96xbf16>, vector<2x96xf32> -> vector<2x96xf32>
    %252 = vector.broadcast %1 : vector<1x96xf32> to vector<2x96xf32>
    %253 = arith.addf %251, %252 : vector<2x96xf32>
    %254 = vector.extract_strided_slice %249 {offsets = [0, 0], sizes = [2, 32], strides = [1, 1]} : vector<2x96xf32> to vector<2x32xf32>
    %255 = vector.extract_strided_slice %253 {offsets = [0, 0], sizes = [2, 32], strides = [1, 1]} : vector<2x96xf32> to vector<2x32xf32>
    %256 = arith.addf %254, %255 : vector<2x32xf32>
    %257 = arith.negf %256 : vector<2x32xf32>
    %258 = math.exp %257 : vector<2x32xf32>
    %cst_64 = arith.constant 1.000000e+00 : f32
    %259 = vector.broadcast %cst_64 : f32 to vector<2x32xf32>
    %260 = arith.addf %259, %258 : vector<2x32xf32>
    %261 = arith.divf %259, %260 : vector<2x32xf32>
    %262 = vector.extract_strided_slice %249 {offsets = [0, 32], sizes = [2, 32], strides = [1, 1]} : vector<2x96xf32> to vector<2x32xf32>
    %263 = vector.extract_strided_slice %253 {offsets = [0, 32], sizes = [2, 32], strides = [1, 1]} : vector<2x96xf32> to vector<2x32xf32>
    %264 = arith.addf %262, %263 : vector<2x32xf32>
    %265 = arith.negf %264 : vector<2x32xf32>
    %266 = math.exp %265 : vector<2x32xf32>
    %cst_65 = arith.constant 1.000000e+00 : f32
    %267 = vector.broadcast %cst_65 : f32 to vector<2x32xf32>
    %268 = arith.addf %267, %266 : vector<2x32xf32>
    %269 = arith.divf %267, %268 : vector<2x32xf32>
    %270 = vector.extract_strided_slice %249 {offsets = [0, 64], sizes = [2, 32], strides = [1, 1]} : vector<2x96xf32> to vector<2x32xf32>
    %271 = vector.extract_strided_slice %253 {offsets = [0, 64], sizes = [2, 32], strides = [1, 1]} : vector<2x96xf32> to vector<2x32xf32>
    %272 = arith.mulf %261, %271 : vector<2x32xf32>
    %273 = arith.addf %270, %272 : vector<2x32xf32>
    %274 = math.tanh %273 : vector<2x32xf32>
    %cst_66 = arith.constant 1.000000e+00 : f32
    %275 = vector.broadcast %cst_66 : f32 to vector<2x32xf32>
    %276 = arith.subf %275, %269 : vector<2x32xf32>
    %277 = arith.mulf %276, %274 : vector<2x32xf32>
    %278 = arith.mulf %269, %246 : vector<2x32xf32>
    %279 = arith.addf %277, %278 : vector<2x32xf32>
    %280 = vector.shape_cast %279 : vector<2x32xf32> to vector<2x1x32xf32>
    %c0_67 = arith.constant 0 : index
    %c7 = arith.constant 7 : index
    %c0_68 = arith.constant 0 : index
    %281 = vector.load %arg12[%c0_67, %c7, %c0_68] : memref<2x8x32xf32, #tpu.memory_space<vmem>>, vector<2x1x32xf32>
    tpu.vector_store %arg12[%c0_67, %c7, %c0_68], %280 {strides = array<i32>} : memref<2x8x32xf32, #tpu.memory_space<vmem>>, vector<2x1x32xf32>,
    %c0_69 = arith.constant 0 : index
    %c0_70 = arith.constant 0 : index
    %c0_71 = arith.constant 0 : index
    %282 = vector.load %arg12[%c0_69, %c0_70, %c0_71] : memref<2x8x32xf32, #tpu.memory_space<vmem>>, vector<2x8x32xf32>
    %283 = tpu.iota {dimensions = array<i32: 1>} : vector<2x32xi32>
    %c1_i32 = arith.constant 1 : i32
    %284 = vector.broadcast %c1_i32 : i32 to vector<2x1xi32>
    %false = arith.constant false
    %285 = vector.broadcast %false : i1 to vector<2x1xi1>
    %c0_i32 = arith.constant 0 : i32
    %286 = vector.broadcast %c0_i32 : i32 to vector<2x1xi32>
    %287 = vector.broadcast %284 : vector<2x1xi32> to vector<2x32xi32>
    %288 = arith.cmpi eq, %287, %283 : vector<2x32xi32>
    %289 = arith.extui %288 : vector<2x32xi1> to vector<2x32xi32>
    %290 = arith.sitofp %289 : vector<2x32xi32> to vector<2x32xf32>
    %291 = arith.truncf %290 : vector<2x32xf32> to vector<2x32xbf16>
    %cst_72 = arith.constant dense<0.000000e+00> : vector<2x96xf32>
    %292 = tpu.matmul %291, %2, %cst_72 {dimension_numbers = #tpu.dot_dimension_numbers<[1], [0], [0], [1], [0, 0, 1, 1], [], []>} : vector<2x32xbf16>, vector<32x96xbf16>, vector<2x96xf32> -> vector<2x96xf32>
    %293 = arith.truncf %279 : vector<2x32xf32> to vector<2x32xbf16>
    %cst_73 = arith.constant dense<0.000000e+00> : vector<2x96xf32>
    %294 = tpu.matmul %293, %3, %cst_73 {dimension_numbers = #tpu.dot_dimension_numbers<[1], [0], [0], [1], [0, 0, 1, 1], [], []>} : vector<2x32xbf16>, vector<32x96xbf16>, vector<2x96xf32> -> vector<2x96xf32>
    %295 = vector.broadcast %4 : vector<1x96xf32> to vector<2x96xf32>
    %296 = arith.addf %294, %295 : vector<2x96xf32>
    %297 = vector.extract_strided_slice %292 {offsets = [0, 0], sizes = [2, 32], strides = [1, 1]} : vector<2x96xf32> to vector<2x32xf32>
    %298 = vector.extract_strided_slice %296 {offsets = [0, 0], sizes = [2, 32], strides = [1, 1]} : vector<2x96xf32> to vector<2x32xf32>
    %299 = arith.addf %297, %298 : vector<2x32xf32>
    %300 = arith.negf %299 : vector<2x32xf32>
    %301 = math.exp %300 : vector<2x32xf32>
    %cst_74 = arith.constant 1.000000e+00 : f32
    %302 = vector.broadcast %cst_74 : f32 to vector<2x32xf32>
    %303 = arith.addf %302, %301 : vector<2x32xf32>
    %304 = arith.divf %302, %303 : vector<2x32xf32>
    %305 = vector.extract_strided_slice %292 {offsets = [0, 32], sizes = [2, 32], strides = [1, 1]} : vector<2x96xf32> to vector<2x32xf32>
    %306 = vector.extract_strided_slice %296 {offsets = [0, 32], sizes = [2, 32], strides = [1, 1]} : vector<2x96xf32> to vector<2x32xf32>
    %307 = arith.addf %305, %306 : vector<2x32xf32>
    %308 = arith.negf %307 : vector<2x32xf32>
    %309 = math.exp %308 : vector<2x32xf32>
    %cst_75 = arith.constant 1.000000e+00 : f32
    %310 = vector.broadcast %cst_75 : f32 to vector<2x32xf32>
    %311 = arith.addf %310, %309 : vector<2x32xf32>
    %312 = arith.divf %310, %311 : vector<2x32xf32>
    %313 = vector.extract_strided_slice %292 {offsets = [0, 64], sizes = [2, 32], strides = [1, 1]} : vector<2x96xf32> to vector<2x32xf32>
    %314 = vector.extract_strided_slice %296 {offsets = [0, 64], sizes = [2, 32], strides = [1, 1]} : vector<2x96xf32> to vector<2x32xf32>
    %315 = arith.mulf %304, %314 : vector<2x32xf32>
    %316 = arith.addf %313, %315 : vector<2x32xf32>
    %317 = math.tanh %316 : vector<2x32xf32>
    %cst_76 = arith.constant 1.000000e+00 : f32
    %318 = vector.broadcast %cst_76 : f32 to vector<2x32xf32>
    %319 = arith.subf %318, %312 : vector<2x32xf32>
    %320 = arith.mulf %319, %317 : vector<2x32xf32>
    %321 = arith.mulf %312, %279 : vector<2x32xf32>
    %322 = arith.addf %320, %321 : vector<2x32xf32>
    %323 = vector.shape_cast %322 : vector<2x32xf32> to vector<2x1x32xf32>
    %324 = vector.broadcast %323 : vector<2x1x32xf32> to vector<2x8x32xf32>
    %325 = arith.mulf %324, %282 : vector<2x8x32xf32>
    %cst_77 = arith.constant dense<0.000000e+00> : vector<2x8xf32>
    %326 = vector.multi_reduction <add>, %325, %cst_77 [2] : vector<2x8x32xf32> to vector<2x8xf32>
    %cst_78 = arith.constant dense<0xFF800000> : vector<2xf32>
    %327 = vector.multi_reduction <maximumf>, %326, %cst_78 [1] : vector<2x8xf32> to vector<2xf32>
    %328 = vector.shape_cast %327 : vector<2xf32> to vector<2x1xf32>
    %329 = vector.broadcast %328 : vector<2x1xf32> to vector<2x8xf32>
    %330 = arith.subf %326, %329 : vector<2x8xf32>
    %331 = math.exp %330 : vector<2x8xf32>
    %cst_79 = arith.constant dense<0.000000e+00> : vector<2xf32>
    %332 = vector.multi_reduction <add>, %331, %cst_79 [1] : vector<2x8xf32> to vector<2xf32>
    %333 = vector.shape_cast %332 : vector<2xf32> to vector<2x1xf32>
    %334 = vector.broadcast %333 : vector<2x1xf32> to vector<2x8xf32>
    %335 = arith.divf %331, %334 : vector<2x8xf32>
    %336 = vector.shape_cast %335 : vector<2x8xf32> to vector<2x8x1xf32>
    %337 = vector.broadcast %336 : vector<2x8x1xf32> to vector<2x8x32xf32>
    %338 = arith.mulf %337, %282 : vector<2x8x32xf32>
    %cst_80 = arith.constant dense<0.000000e+00> : vector<2x32xf32>
    %339 = vector.multi_reduction <add>, %338, %cst_80 [1] : vector<2x8x32xf32> to vector<2x32xf32>
    %340 = arith.truncf %322 : vector<2x32xf32> to vector<2x32xbf16>
    %cst_81 = arith.constant dense<0.000000e+00> : vector<2x32xf32>
    %341 = tpu.matmul %340, %5, %cst_81 {dimension_numbers = #tpu.dot_dimension_numbers<[1], [0], [0], [1], [0, 0, 1, 1], [], []>} : vector<2x32xbf16>, vector<32x32xbf16>, vector<2x32xf32> -> vector<2x32xf32>
    %342 = arith.truncf %339 : vector<2x32xf32> to vector<2x32xbf16>
    %cst_82 = arith.constant dense<0.000000e+00> : vector<2x32xf32>
    %343 = tpu.matmul %342, %6, %cst_82 {dimension_numbers = #tpu.dot_dimension_numbers<[1], [0], [0], [1], [0, 0, 1, 1], [], []>} : vector<2x32xbf16>, vector<32x32xbf16>, vector<2x32xf32> -> vector<2x32xf32>
    %344 = arith.addf %341, %343 : vector<2x32xf32>
    %345 = vector.broadcast %7 : vector<1x32xf32> to vector<2x32xf32>
    %346 = arith.addf %344, %345 : vector<2x32xf32>
    %cst_83 = arith.constant dense<0xFF800000> : vector<2xf32>
    %347 = vector.multi_reduction <maximumf>, %346, %cst_83 [1] : vector<2x32xf32> to vector<2xf32>
    %348 = vector.shape_cast %347 : vector<2xf32> to vector<2x1xf32>
    %349 = vector.broadcast %348 : vector<2x1xf32> to vector<2x32xf32>
    %350 = arith.cmpf oeq, %346, %349 : vector<2x32xf32>
    %c32_i32 = arith.constant 32 : i32
    %351 = vector.broadcast %c32_i32 : i32 to vector<2x32xi32>
    %352 = arith.select %350, %283, %351 : vector<2x32xi1>, vector<2x32xi32>
    %cst_84 = arith.constant dense<2147483647> : vector<2xi32>
    %353 = vector.multi_reduction <minsi>, %352, %cst_84 [1] : vector<2x32xi32> to vector<2xi32>
    %354 = vector.shape_cast %353 : vector<2xi32> to vector<2x1xi32>
    %c2_i32 = arith.constant 2 : i32
    %355 = vector.broadcast %c2_i32 : i32 to vector<2x1xi32>
    %356 = arith.select %285, %355, %354 : vector<2x1xi1>, vector<2x1xi32>
    %c1_i32_85 = arith.constant 1 : i32
    %357 = vector.broadcast %c1_i32_85 : i32 to vector<2x1xi32>
    %358 = arith.addi %286, %357 : vector<2x1xi32>
    %359 = arith.select %285, %286, %358 : vector<2x1xi1>, vector<2x1xi32>
    %c2_i32_86 = arith.constant 2 : i32
    %360 = vector.broadcast %c2_i32_86 : i32 to vector<2x1xi32>
    %361 = arith.cmpi eq, %356, %360 : vector<2x1xi32>
    %362 = arith.ori %285, %361 : vector<2x1xi1>
    %c0_87 = arith.constant 0 : index
    %c0_88 = arith.constant 0 : index
    %363 = vector.load %arg10[%c0_87, %c0_88] : memref<2x10xi32, #tpu.memory_space<vmem>>, vector<2x1xi32>
    tpu.vector_store %arg10[%c0_87, %c0_88], %356 {strides = array<i32>} : memref<2x10xi32, #tpu.memory_space<vmem>>, vector<2x1xi32>,
    %364 = vector.broadcast %356 : vector<2x1xi32> to vector<2x32xi32>
    %365 = arith.cmpi eq, %364, %283 : vector<2x32xi32>
    %366 = arith.extui %365 : vector<2x32xi1> to vector<2x32xi32>
    %367 = arith.sitofp %366 : vector<2x32xi32> to vector<2x32xf32>
    %368 = arith.truncf %367 : vector<2x32xf32> to vector<2x32xbf16>
    %cst_89 = arith.constant dense<0.000000e+00> : vector<2x96xf32>
    %369 = tpu.matmul %368, %2, %cst_89 {dimension_numbers = #tpu.dot_dimension_numbers<[1], [0], [0], [1], [0, 0, 1, 1], [], []>} : vector<2x32xbf16>, vector<32x96xbf16>, vector<2x96xf32> -> vector<2x96xf32>
    %370 = arith.truncf %322 : vector<2x32xf32> to vector<2x32xbf16>
    %cst_90 = arith.constant dense<0.000000e+00> : vector<2x96xf32>
    %371 = tpu.matmul %370, %3, %cst_90 {dimension_numbers = #tpu.dot_dimension_numbers<[1], [0], [0], [1], [0, 0, 1, 1], [], []>} : vector<2x32xbf16>, vector<32x96xbf16>, vector<2x96xf32> -> vector<2x96xf32>
    %372 = vector.broadcast %4 : vector<1x96xf32> to vector<2x96xf32>
    %373 = arith.addf %371, %372 : vector<2x96xf32>
    %374 = vector.extract_strided_slice %369 {offsets = [0, 0], sizes = [2, 32], strides = [1, 1]} : vector<2x96xf32> to vector<2x32xf32>
    %375 = vector.extract_strided_slice %373 {offsets = [0, 0], sizes = [2, 32], strides = [1, 1]} : vector<2x96xf32> to vector<2x32xf32>
    %376 = arith.addf %374, %375 : vector<2x32xf32>
    %377 = arith.negf %376 : vector<2x32xf32>
    %378 = math.exp %377 : vector<2x32xf32>
    %cst_91 = arith.constant 1.000000e+00 : f32
    %379 = vector.broadcast %cst_91 : f32 to vector<2x32xf32>
    %380 = arith.addf %379, %378 : vector<2x32xf32>
    %381 = arith.divf %379, %380 : vector<2x32xf32>
    %382 = vector.extract_strided_slice %369 {offsets = [0, 32], sizes = [2, 32], strides = [1, 1]} : vector<2x96xf32> to vector<2x32xf32>
    %383 = vector.extract_strided_slice %373 {offsets = [0, 32], sizes = [2, 32], strides = [1, 1]} : vector<2x96xf32> to vector<2x32xf32>
    %384 = arith.addf %382, %383 : vector<2x32xf32>
    %385 = arith.negf %384 : vector<2x32xf32>
    %386 = math.exp %385 : vector<2x32xf32>
    %cst_92 = arith.constant 1.000000e+00 : f32
    %387 = vector.broadcast %cst_92 : f32 to vector<2x32xf32>
    %388 = arith.addf %387, %386 : vector<2x32xf32>
    %389 = arith.divf %387, %388 : vector<2x32xf32>
    %390 = vector.extract_strided_slice %369 {offsets = [0, 64], sizes = [2, 32], strides = [1, 1]} : vector<2x96xf32> to vector<2x32xf32>
    %391 = vector.extract_strided_slice %373 {offsets = [0, 64], sizes = [2, 32], strides = [1, 1]} : vector<2x96xf32> to vector<2x32xf32>
    %392 = arith.mulf %381, %391 : vector<2x32xf32>
    %393 = arith.addf %390, %392 : vector<2x32xf32>
    %394 = math.tanh %393 : vector<2x32xf32>
    %cst_93 = arith.constant 1.000000e+00 : f32
    %395 = vector.broadcast %cst_93 : f32 to vector<2x32xf32>
    %396 = arith.subf %395, %389 : vector<2x32xf32>
    %397 = arith.mulf %396, %394 : vector<2x32xf32>
    %398 = arith.mulf %389, %322 : vector<2x32xf32>
    %399 = arith.addf %397, %398 : vector<2x32xf32>
    %400 = vector.shape_cast %399 : vector<2x32xf32> to vector<2x1x32xf32>
    %401 = vector.broadcast %400 : vector<2x1x32xf32> to vector<2x8x32xf32>
    %402 = arith.mulf %401, %282 : vector<2x8x32xf32>
    %cst_94 = arith.constant dense<0.000000e+00> : vector<2x8xf32>
    %403 = vector.multi_reduction <add>, %402, %cst_94 [2] : vector<2x8x32xf32> to vector<2x8xf32>
    %cst_95 = arith.constant dense<0xFF800000> : vector<2xf32>
    %404 = vector.multi_reduction <maximumf>, %403, %cst_95 [1] : vector<2x8xf32> to vector<2xf32>
    %405 = vector.shape_cast %404 : vector<2xf32> to vector<2x1xf32>
    %406 = vector.broadcast %405 : vector<2x1xf32> to vector<2x8xf32>
    %407 = arith.subf %403, %406 : vector<2x8xf32>
    %408 = math.exp %407 : vector<2x8xf32>
    %cst_96 = arith.constant dense<0.000000e+00> : vector<2xf32>
    %409 = vector.multi_reduction <add>, %408, %cst_96 [1] : vector<2x8xf32> to vector<2xf32>
    %410 = vector.shape_cast %409 : vector<2xf32> to vector<2x1xf32>
    %411 = vector.broadcast %410 : vector<2x1xf32> to vector<2x8xf32>
    %412 = arith.divf %408, %411 : vector<2x8xf32>
    %413 = vector.shape_cast %412 : vector<2x8xf32> to vector<2x8x1xf32>
    %414 = vector.broadcast %413 : vector<2x8x1xf32> to vector<2x8x32xf32>
    %415 = arith.mulf %414, %282 : vector<2x8x32xf32>
    %cst_97 = arith.constant dense<0.000000e+00> : vector<2x32xf32>
    %416 = vector.multi_reduction <add>, %415, %cst_97 [1] : vector<2x8x32xf32> to vector<2x32xf32>
    %417 = arith.truncf %399 : vector<2x32xf32> to vector<2x32xbf16>
    %cst_98 = arith.constant dense<0.000000e+00> : vector<2x32xf32>
    %418 = tpu.matmul %417, %5, %cst_98 {dimension_numbers = #tpu.dot_dimension_numbers<[1], [0], [0], [1], [0, 0, 1, 1], [], []>} : vector<2x32xbf16>, vector<32x32xbf16>, vector<2x32xf32> -> vector<2x32xf32>
    %419 = arith.truncf %416 : vector<2x32xf32> to vector<2x32xbf16>
    %cst_99 = arith.constant dense<0.000000e+00> : vector<2x32xf32>
    %420 = tpu.matmul %419, %6, %cst_99 {dimension_numbers = #tpu.dot_dimension_numbers<[1], [0], [0], [1], [0, 0, 1, 1], [], []>} : vector<2x32xbf16>, vector<32x32xbf16>, vector<2x32xf32> -> vector<2x32xf32>
    %421 = arith.addf %418, %420 : vector<2x32xf32>
    %422 = vector.broadcast %7 : vector<1x32xf32> to vector<2x32xf32>
    %423 = arith.addf %421, %422 : vector<2x32xf32>
    %cst_100 = arith.constant dense<0xFF800000> : vector<2xf32>
    %424 = vector.multi_reduction <maximumf>, %423, %cst_100 [1] : vector<2x32xf32> to vector<2xf32>
    %425 = vector.shape_cast %424 : vector<2xf32> to vector<2x1xf32>
    %426 = vector.broadcast %425 : vector<2x1xf32> to vector<2x32xf32>
    %427 = arith.cmpf oeq, %423, %426 : vector<2x32xf32>
    %c32_i32_101 = arith.constant 32 : i32
    %428 = vector.broadcast %c32_i32_101 : i32 to vector<2x32xi32>
    %429 = arith.select %427, %283, %428 : vector<2x32xi1>, vector<2x32xi32>
    %cst_102 = arith.constant dense<2147483647> : vector<2xi32>
    %430 = vector.multi_reduction <minsi>, %429, %cst_102 [1] : vector<2x32xi32> to vector<2xi32>
    %431 = vector.shape_cast %430 : vector<2xi32> to vector<2x1xi32>
    %c2_i32_103 = arith.constant 2 : i32
    %432 = vector.broadcast %c2_i32_103 : i32 to vector<2x1xi32>
    %433 = arith.select %362, %432, %431 : vector<2x1xi1>, vector<2x1xi32>
    %c1_i32_104 = arith.constant 1 : i32
    %434 = vector.broadcast %c1_i32_104 : i32 to vector<2x1xi32>
    %435 = arith.addi %359, %434 : vector<2x1xi32>
    %436 = arith.select %362, %359, %435 : vector<2x1xi1>, vector<2x1xi32>
    %c2_i32_105 = arith.constant 2 : i32
    %437 = vector.broadcast %c2_i32_105 : i32 to vector<2x1xi32>
    %438 = arith.cmpi eq, %433, %437 : vector<2x1xi32>
    %439 = arith.ori %362, %438 : vector<2x1xi1>
    %c0_106 = arith.constant 0 : index
    %c1_107 = arith.constant 1 : index
    %440 = vector.load %arg10[%c0_106, %c1_107] : memref<2x10xi32, #tpu.memory_space<vmem>>, vector<2x1xi32>
    tpu.vector_store %arg10[%c0_106, %c1_107], %433 {strides = array<i32>} : memref<2x10xi32, #tpu.memory_space<vmem>>, vector<2x1xi32>,
    %441 = vector.broadcast %433 : vector<2x1xi32> to vector<2x32xi32>
    %442 = arith.cmpi eq, %441, %283 : vector<2x32xi32>
    %443 = arith.extui %442 : vector<2x32xi1> to vector<2x32xi32>
    %444 = arith.sitofp %443 : vector<2x32xi32> to vector<2x32xf32>
    %445 = arith.truncf %444 : vector<2x32xf32> to vector<2x32xbf16>
    %cst_108 = arith.constant dense<0.000000e+00> : vector<2x96xf32>
    %446 = tpu.matmul %445, %2, %cst_108 {dimension_numbers = #tpu.dot_dimension_numbers<[1], [0], [0], [1], [0, 0, 1, 1], [], []>} : vector<2x32xbf16>, vector<32x96xbf16>, vector<2x96xf32> -> vector<2x96xf32>
    %447 = arith.truncf %399 : vector<2x32xf32> to vector<2x32xbf16>
    %cst_109 = arith.constant dense<0.000000e+00> : vector<2x96xf32>
    %448 = tpu.matmul %447, %3, %cst_109 {dimension_numbers = #tpu.dot_dimension_numbers<[1], [0], [0], [1], [0, 0, 1, 1], [], []>} : vector<2x32xbf16>, vector<32x96xbf16>, vector<2x96xf32> -> vector<2x96xf32>
    %449 = vector.broadcast %4 : vector<1x96xf32> to vector<2x96xf32>
    %450 = arith.addf %448, %449 : vector<2x96xf32>
    %451 = vector.extract_strided_slice %446 {offsets = [0, 0], sizes = [2, 32], strides = [1, 1]} : vector<2x96xf32> to vector<2x32xf32>
    %452 = vector.extract_strided_slice %450 {offsets = [0, 0], sizes = [2, 32], strides = [1, 1]} : vector<2x96xf32> to vector<2x32xf32>
    %453 = arith.addf %451, %452 : vector<2x32xf32>
    %454 = arith.negf %453 : vector<2x32xf32>
    %455 = math.exp %454 : vector<2x32xf32>
    %cst_110 = arith.constant 1.000000e+00 : f32
    %456 = vector.broadcast %cst_110 : f32 to vector<2x32xf32>
    %457 = arith.addf %456, %455 : vector<2x32xf32>
    %458 = arith.divf %456, %457 : vector<2x32xf32>
    %459 = vector.extract_strided_slice %446 {offsets = [0, 32], sizes = [2, 32], strides = [1, 1]} : vector<2x96xf32> to vector<2x32xf32>
    %460 = vector.extract_strided_slice %450 {offsets = [0, 32], sizes = [2, 32], strides = [1, 1]} : vector<2x96xf32> to vector<2x32xf32>
    %461 = arith.addf %459, %460 : vector<2x32xf32>
    %462 = arith.negf %461 : vector<2x32xf32>
    %463 = math.exp %462 : vector<2x32xf32>
    %cst_111 = arith.constant 1.000000e+00 : f32
    %464 = vector.broadcast %cst_111 : f32 to vector<2x32xf32>
    %465 = arith.addf %464, %463 : vector<2x32xf32>
    %466 = arith.divf %464, %465 : vector<2x32xf32>
    %467 = vector.extract_strided_slice %446 {offsets = [0, 64], sizes = [2, 32], strides = [1, 1]} : vector<2x96xf32> to vector<2x32xf32>
    %468 = vector.extract_strided_slice %450 {offsets = [0, 64], sizes = [2, 32], strides = [1, 1]} : vector<2x96xf32> to vector<2x32xf32>
    %469 = arith.mulf %458, %468 : vector<2x32xf32>
    %470 = arith.addf %467, %469 : vector<2x32xf32>
    %471 = math.tanh %470 : vector<2x32xf32>
    %cst_112 = arith.constant 1.000000e+00 : f32
    %472 = vector.broadcast %cst_112 : f32 to vector<2x32xf32>
    %473 = arith.subf %472, %466 : vector<2x32xf32>
    %474 = arith.mulf %473, %471 : vector<2x32xf32>
    %475 = arith.mulf %466, %399 : vector<2x32xf32>
    %476 = arith.addf %474, %475 : vector<2x32xf32>
    %477 = vector.shape_cast %476 : vector<2x32xf32> to vector<2x1x32xf32>
    %478 = vector.broadcast %477 : vector<2x1x32xf32> to vector<2x8x32xf32>
    %479 = arith.mulf %478, %282 : vector<2x8x32xf32>
    %cst_113 = arith.constant dense<0.000000e+00> : vector<2x8xf32>
    %480 = vector.multi_reduction <add>, %479, %cst_113 [2] : vector<2x8x32xf32> to vector<2x8xf32>
    %cst_114 = arith.constant dense<0xFF800000> : vector<2xf32>
    %481 = vector.multi_reduction <maximumf>, %480, %cst_114 [1] : vector<2x8xf32> to vector<2xf32>
    %482 = vector.shape_cast %481 : vector<2xf32> to vector<2x1xf32>
    %483 = vector.broadcast %482 : vector<2x1xf32> to vector<2x8xf32>
    %484 = arith.subf %480, %483 : vector<2x8xf32>
    %485 = math.exp %484 : vector<2x8xf32>
    %cst_115 = arith.constant dense<0.000000e+00> : vector<2xf32>
    %486 = vector.multi_reduction <add>, %485, %cst_115 [1] : vector<2x8xf32> to vector<2xf32>
    %487 = vector.shape_cast %486 : vector<2xf32> to vector<2x1xf32>
    %488 = vector.broadcast %487 : vector<2x1xf32> to vector<2x8xf32>
    %489 = arith.divf %485, %488 : vector<2x8xf32>
    %490 = vector.shape_cast %489 : vector<2x8xf32> to vector<2x8x1xf32>
    %491 = vector.broadcast %490 : vector<2x8x1xf32> to vector<2x8x32xf32>
    %492 = arith.mulf %491, %282 : vector<2x8x32xf32>
    %cst_116 = arith.constant dense<0.000000e+00> : vector<2x32xf32>
    %493 = vector.multi_reduction <add>, %492, %cst_116 [1] : vector<2x8x32xf32> to vector<2x32xf32>
    %494 = arith.truncf %476 : vector<2x32xf32> to vector<2x32xbf16>
    %cst_117 = arith.constant dense<0.000000e+00> : vector<2x32xf32>
    %495 = tpu.matmul %494, %5, %cst_117 {dimension_numbers = #tpu.dot_dimension_numbers<[1], [0], [0], [1], [0, 0, 1, 1], [], []>} : vector<2x32xbf16>, vector<32x32xbf16>, vector<2x32xf32> -> vector<2x32xf32>
    %496 = arith.truncf %493 : vector<2x32xf32> to vector<2x32xbf16>
    %cst_118 = arith.constant dense<0.000000e+00> : vector<2x32xf32>
    %497 = tpu.matmul %496, %6, %cst_118 {dimension_numbers = #tpu.dot_dimension_numbers<[1], [0], [0], [1], [0, 0, 1, 1], [], []>} : vector<2x32xbf16>, vector<32x32xbf16>, vector<2x32xf32> -> vector<2x32xf32>
    %498 = arith.addf %495, %497 : vector<2x32xf32>
    %499 = vector.broadcast %7 : vector<1x32xf32> to vector<2x32xf32>
    %500 = arith.addf %498, %499 : vector<2x32xf32>
    %cst_119 = arith.constant dense<0xFF800000> : vector<2xf32>
    %501 = vector.multi_reduction <maximumf>, %500, %cst_119 [1] : vector<2x32xf32> to vector<2xf32>
    %502 = vector.shape_cast %501 : vector<2xf32> to vector<2x1xf32>
    %503 = vector.broadcast %502 : vector<2x1xf32> to vector<2x32xf32>
    %504 = arith.cmpf oeq, %500, %503 : vector<2x32xf32>
    %c32_i32_120 = arith.constant 32 : i32
    %505 = vector.broadcast %c32_i32_120 : i32 to vector<2x32xi32>
    %506 = arith.select %504, %283, %505 : vector<2x32xi1>, vector<2x32xi32>
    %cst_121 = arith.constant dense<2147483647> : vector<2xi32>
    %507 = vector.multi_reduction <minsi>, %506, %cst_121 [1] : vector<2x32xi32> to vector<2xi32>
    %508 = vector.shape_cast %507 : vector<2xi32> to vector<2x1xi32>
    %c2_i32_122 = arith.constant 2 : i32
    %509 = vector.broadcast %c2_i32_122 : i32 to vector<2x1xi32>
    %510 = arith.select %439, %509, %508 : vector<2x1xi1>, vector<2x1xi32>
    %c1_i32_123 = arith.constant 1 : i32
    %511 = vector.broadcast %c1_i32_123 : i32 to vector<2x1xi32>
    %512 = arith.addi %436, %511 : vector<2x1xi32>
    %513 = arith.select %439, %436, %512 : vector<2x1xi1>, vector<2x1xi32>
    %c2_i32_124 = arith.constant 2 : i32
    %514 = vector.broadcast %c2_i32_124 : i32 to vector<2x1xi32>
    %515 = arith.cmpi eq, %510, %514 : vector<2x1xi32>
    %516 = arith.ori %439, %515 : vector<2x1xi1>
    %c0_125 = arith.constant 0 : index
    %c2_126 = arith.constant 2 : index
    %517 = vector.load %arg10[%c0_125, %c2_126] : memref<2x10xi32, #tpu.memory_space<vmem>>, vector<2x1xi32>
    tpu.vector_store %arg10[%c0_125, %c2_126], %510 {strides = array<i32>} : memref<2x10xi32, #tpu.memory_space<vmem>>, vector<2x1xi32>,
    %518 = vector.broadcast %510 : vector<2x1xi32> to vector<2x32xi32>
    %519 = arith.cmpi eq, %518, %283 : vector<2x32xi32>
    %520 = arith.extui %519 : vector<2x32xi1> to vector<2x32xi32>
    %521 = arith.sitofp %520 : vector<2x32xi32> to vector<2x32xf32>
    %522 = arith.truncf %521 : vector<2x32xf32> to vector<2x32xbf16>
    %cst_127 = arith.constant dense<0.000000e+00> : vector<2x96xf32>
    %523 = tpu.matmul %522, %2, %cst_127 {dimension_numbers = #tpu.dot_dimension_numbers<[1], [0], [0], [1], [0, 0, 1, 1], [], []>} : vector<2x32xbf16>, vector<32x96xbf16>, vector<2x96xf32> -> vector<2x96xf32>
    %524 = arith.truncf %476 : vector<2x32xf32> to vector<2x32xbf16>
    %cst_128 = arith.constant dense<0.000000e+00> : vector<2x96xf32>
    %525 = tpu.matmul %524, %3, %cst_128 {dimension_numbers = #tpu.dot_dimension_numbers<[1], [0], [0], [1], [0, 0, 1, 1], [], []>} : vector<2x32xbf16>, vector<32x96xbf16>, vector<2x96xf32> -> vector<2x96xf32>
    %526 = vector.broadcast %4 : vector<1x96xf32> to vector<2x96xf32>
    %527 = arith.addf %525, %526 : vector<2x96xf32>
    %528 = vector.extract_strided_slice %523 {offsets = [0, 0], sizes = [2, 32], strides = [1, 1]} : vector<2x96xf32> to vector<2x32xf32>
    %529 = vector.extract_strided_slice %527 {offsets = [0, 0], sizes = [2, 32], strides = [1, 1]} : vector<2x96xf32> to vector<2x32xf32>
    %530 = arith.addf %528, %529 : vector<2x32xf32>
    %531 = arith.negf %530 : vector<2x32xf32>
    %532 = math.exp %531 : vector<2x32xf32>
    %cst_129 = arith.constant 1.000000e+00 : f32
    %533 = vector.broadcast %cst_129 : f32 to vector<2x32xf32>
    %534 = arith.addf %533, %532 : vector<2x32xf32>
    %535 = arith.divf %533, %534 : vector<2x32xf32>
    %536 = vector.extract_strided_slice %523 {offsets = [0, 32], sizes = [2, 32], strides = [1, 1]} : vector<2x96xf32> to vector<2x32xf32>
    %537 = vector.extract_strided_slice %527 {offsets = [0, 32], sizes = [2, 32], strides = [1, 1]} : vector<2x96xf32> to vector<2x32xf32>
    %538 = arith.addf %536, %537 : vector<2x32xf32>
    %539 = arith.negf %538 : vector<2x32xf32>
    %540 = math.exp %539 : vector<2x32xf32>
    %cst_130 = arith.constant 1.000000e+00 : f32
    %541 = vector.broadcast %cst_130 : f32 to vector<2x32xf32>
    %542 = arith.addf %541, %540 : vector<2x32xf32>
    %543 = arith.divf %541, %542 : vector<2x32xf32>
    %544 = vector.extract_strided_slice %523 {offsets = [0, 64], sizes = [2, 32], strides = [1, 1]} : vector<2x96xf32> to vector<2x32xf32>
    %545 = vector.extract_strided_slice %527 {offsets = [0, 64], sizes = [2, 32], strides = [1, 1]} : vector<2x96xf32> to vector<2x32xf32>
    %546 = arith.mulf %535, %545 : vector<2x32xf32>
    %547 = arith.addf %544, %546 : vector<2x32xf32>
    %548 = math.tanh %547 : vector<2x32xf32>
    %cst_131 = arith.constant 1.000000e+00 : f32
    %549 = vector.broadcast %cst_131 : f32 to vector<2x32xf32>
    %550 = arith.subf %549, %543 : vector<2x32xf32>
    %551 = arith.mulf %550, %548 : vector<2x32xf32>
    %552 = arith.mulf %543, %476 : vector<2x32xf32>
    %553 = arith.addf %551, %552 : vector<2x32xf32>
    %554 = vector.shape_cast %553 : vector<2x32xf32> to vector<2x1x32xf32>
    %555 = vector.broadcast %554 : vector<2x1x32xf32> to vector<2x8x32xf32>
    %556 = arith.mulf %555, %282 : vector<2x8x32xf32>
    %cst_132 = arith.constant dense<0.000000e+00> : vector<2x8xf32>
    %557 = vector.multi_reduction <add>, %556, %cst_132 [2] : vector<2x8x32xf32> to vector<2x8xf32>
    %cst_133 = arith.constant dense<0xFF800000> : vector<2xf32>
    %558 = vector.multi_reduction <maximumf>, %557, %cst_133 [1] : vector<2x8xf32> to vector<2xf32>
    %559 = vector.shape_cast %558 : vector<2xf32> to vector<2x1xf32>
    %560 = vector.broadcast %559 : vector<2x1xf32> to vector<2x8xf32>
    %561 = arith.subf %557, %560 : vector<2x8xf32>
    %562 = math.exp %561 : vector<2x8xf32>
    %cst_134 = arith.constant dense<0.000000e+00> : vector<2xf32>
    %563 = vector.multi_reduction <add>, %562, %cst_134 [1] : vector<2x8xf32> to vector<2xf32>
    %564 = vector.shape_cast %563 : vector<2xf32> to vector<2x1xf32>
    %565 = vector.broadcast %564 : vector<2x1xf32> to vector<2x8xf32>
    %566 = arith.divf %562, %565 : vector<2x8xf32>
    %567 = vector.shape_cast %566 : vector<2x8xf32> to vector<2x8x1xf32>
    %568 = vector.broadcast %567 : vector<2x8x1xf32> to vector<2x8x32xf32>
    %569 = arith.mulf %568, %282 : vector<2x8x32xf32>
    %cst_135 = arith.constant dense<0.000000e+00> : vector<2x32xf32>
    %570 = vector.multi_reduction <add>, %569, %cst_135 [1] : vector<2x8x32xf32> to vector<2x32xf32>
    %571 = arith.truncf %553 : vector<2x32xf32> to vector<2x32xbf16>
    %cst_136 = arith.constant dense<0.000000e+00> : vector<2x32xf32>
    %572 = tpu.matmul %571, %5, %cst_136 {dimension_numbers = #tpu.dot_dimension_numbers<[1], [0], [0], [1], [0, 0, 1, 1], [], []>} : vector<2x32xbf16>, vector<32x32xbf16>, vector<2x32xf32> -> vector<2x32xf32>
    %573 = arith.truncf %570 : vector<2x32xf32> to vector<2x32xbf16>
    %cst_137 = arith.constant dense<0.000000e+00> : vector<2x32xf32>
    %574 = tpu.matmul %573, %6, %cst_137 {dimension_numbers = #tpu.dot_dimension_numbers<[1], [0], [0], [1], [0, 0, 1, 1], [], []>} : vector<2x32xbf16>, vector<32x32xbf16>, vector<2x32xf32> -> vector<2x32xf32>
    %575 = arith.addf %572, %574 : vector<2x32xf32>
    %576 = vector.broadcast %7 : vector<1x32xf32> to vector<2x32xf32>
    %577 = arith.addf %575, %576 : vector<2x32xf32>
    %cst_138 = arith.constant dense<0xFF800000> : vector<2xf32>
    %578 = vector.multi_reduction <maximumf>, %577, %cst_138 [1] : vector<2x32xf32> to vector<2xf32>
    %579 = vector.shape_cast %578 : vector<2xf32> to vector<2x1xf32>
    %580 = vector.broadcast %579 : vector<2x1xf32> to vector<2x32xf32>
    %581 = arith.cmpf oeq, %577, %580 : vector<2x32xf32>
    %c32_i32_139 = arith.constant 32 : i32
    %582 = vector.broadcast %c32_i32_139 : i32 to vector<2x32xi32>
    %583 = arith.select %581, %283, %582 : vector<2x32xi1>, vector<2x32xi32>
    %cst_140 = arith.constant dense<2147483647> : vector<2xi32>
    %584 = vector.multi_reduction <minsi>, %583, %cst_140 [1] : vector<2x32xi32> to vector<2xi32>
    %585 = vector.shape_cast %584 : vector<2xi32> to vector<2x1xi32>
    %c2_i32_141 = arith.constant 2 : i32
    %586 = vector.broadcast %c2_i32_141 : i32 to vector<2x1xi32>
    %587 = arith.select %516, %586, %585 : vector<2x1xi1>, vector<2x1xi32>
    %c1_i32_142 = arith.constant 1 : i32
    %588 = vector.broadcast %c1_i32_142 : i32 to vector<2x1xi32>
    %589 = arith.addi %513, %588 : vector<2x1xi32>
    %590 = arith.select %516, %513, %589 : vector<2x1xi1>, vector<2x1xi32>
    %c2_i32_143 = arith.constant 2 : i32
    %591 = vector.broadcast %c2_i32_143 : i32 to vector<2x1xi32>
    %592 = arith.cmpi eq, %587, %591 : vector<2x1xi32>
    %593 = arith.ori %516, %592 : vector<2x1xi1>
    %c0_144 = arith.constant 0 : index
    %c3_145 = arith.constant 3 : index
    %594 = vector.load %arg10[%c0_144, %c3_145] : memref<2x10xi32, #tpu.memory_space<vmem>>, vector<2x1xi32>
    tpu.vector_store %arg10[%c0_144, %c3_145], %587 {strides = array<i32>} : memref<2x10xi32, #tpu.memory_space<vmem>>, vector<2x1xi32>,
    %595 = vector.broadcast %587 : vector<2x1xi32> to vector<2x32xi32>
    %596 = arith.cmpi eq, %595, %283 : vector<2x32xi32>
    %597 = arith.extui %596 : vector<2x32xi1> to vector<2x32xi32>
    %598 = arith.sitofp %597 : vector<2x32xi32> to vector<2x32xf32>
    %599 = arith.truncf %598 : vector<2x32xf32> to vector<2x32xbf16>
    %cst_146 = arith.constant dense<0.000000e+00> : vector<2x96xf32>
    %600 = tpu.matmul %599, %2, %cst_146 {dimension_numbers = #tpu.dot_dimension_numbers<[1], [0], [0], [1], [0, 0, 1, 1], [], []>} : vector<2x32xbf16>, vector<32x96xbf16>, vector<2x96xf32> -> vector<2x96xf32>
    %601 = arith.truncf %553 : vector<2x32xf32> to vector<2x32xbf16>
    %cst_147 = arith.constant dense<0.000000e+00> : vector<2x96xf32>
    %602 = tpu.matmul %601, %3, %cst_147 {dimension_numbers = #tpu.dot_dimension_numbers<[1], [0], [0], [1], [0, 0, 1, 1], [], []>} : vector<2x32xbf16>, vector<32x96xbf16>, vector<2x96xf32> -> vector<2x96xf32>
    %603 = vector.broadcast %4 : vector<1x96xf32> to vector<2x96xf32>
    %604 = arith.addf %602, %603 : vector<2x96xf32>
    %605 = vector.extract_strided_slice %600 {offsets = [0, 0], sizes = [2, 32], strides = [1, 1]} : vector<2x96xf32> to vector<2x32xf32>
    %606 = vector.extract_strided_slice %604 {offsets = [0, 0], sizes = [2, 32], strides = [1, 1]} : vector<2x96xf32> to vector<2x32xf32>
    %607 = arith.addf %605, %606 : vector<2x32xf32>
    %608 = arith.negf %607 : vector<2x32xf32>
    %609 = math.exp %608 : vector<2x32xf32>
    %cst_148 = arith.constant 1.000000e+00 : f32
    %610 = vector.broadcast %cst_148 : f32 to vector<2x32xf32>
    %611 = arith.addf %610, %609 : vector<2x32xf32>
    %612 = arith.divf %610, %611 : vector<2x32xf32>
    %613 = vector.extract_strided_slice %600 {offsets = [0, 32], sizes = [2, 32], strides = [1, 1]} : vector<2x96xf32> to vector<2x32xf32>
    %614 = vector.extract_strided_slice %604 {offsets = [0, 32], sizes = [2, 32], strides = [1, 1]} : vector<2x96xf32> to vector<2x32xf32>
    %615 = arith.addf %613, %614 : vector<2x32xf32>
    %616 = arith.negf %615 : vector<2x32xf32>
    %617 = math.exp %616 : vector<2x32xf32>
    %cst_149 = arith.constant 1.000000e+00 : f32
    %618 = vector.broadcast %cst_149 : f32 to vector<2x32xf32>
    %619 = arith.addf %618, %617 : vector<2x32xf32>
    %620 = arith.divf %618, %619 : vector<2x32xf32>
    %621 = vector.extract_strided_slice %600 {offsets = [0, 64], sizes = [2, 32], strides = [1, 1]} : vector<2x96xf32> to vector<2x32xf32>
    %622 = vector.extract_strided_slice %604 {offsets = [0, 64], sizes = [2, 32], strides = [1, 1]} : vector<2x96xf32> to vector<2x32xf32>
    %623 = arith.mulf %612, %622 : vector<2x32xf32>
    %624 = arith.addf %621, %623 : vector<2x32xf32>
    %625 = math.tanh %624 : vector<2x32xf32>
    %cst_150 = arith.constant 1.000000e+00 : f32
    %626 = vector.broadcast %cst_150 : f32 to vector<2x32xf32>
    %627 = arith.subf %626, %620 : vector<2x32xf32>
    %628 = arith.mulf %627, %625 : vector<2x32xf32>
    %629 = arith.mulf %620, %553 : vector<2x32xf32>
    %630 = arith.addf %628, %629 : vector<2x32xf32>
    %631 = vector.shape_cast %630 : vector<2x32xf32> to vector<2x1x32xf32>
    %632 = vector.broadcast %631 : vector<2x1x32xf32> to vector<2x8x32xf32>
    %633 = arith.mulf %632, %282 : vector<2x8x32xf32>
    %cst_151 = arith.constant dense<0.000000e+00> : vector<2x8xf32>
    %634 = vector.multi_reduction <add>, %633, %cst_151 [2] : vector<2x8x32xf32> to vector<2x8xf32>
    %cst_152 = arith.constant dense<0xFF800000> : vector<2xf32>
    %635 = vector.multi_reduction <maximumf>, %634, %cst_152 [1] : vector<2x8xf32> to vector<2xf32>
    %636 = vector.shape_cast %635 : vector<2xf32> to vector<2x1xf32>
    %637 = vector.broadcast %636 : vector<2x1xf32> to vector<2x8xf32>
    %638 = arith.subf %634, %637 : vector<2x8xf32>
    %639 = math.exp %638 : vector<2x8xf32>
    %cst_153 = arith.constant dense<0.000000e+00> : vector<2xf32>
    %640 = vector.multi_reduction <add>, %639, %cst_153 [1] : vector<2x8xf32> to vector<2xf32>
    %641 = vector.shape_cast %640 : vector<2xf32> to vector<2x1xf32>
    %642 = vector.broadcast %641 : vector<2x1xf32> to vector<2x8xf32>
    %643 = arith.divf %639, %642 : vector<2x8xf32>
    %644 = vector.shape_cast %643 : vector<2x8xf32> to vector<2x8x1xf32>
    %645 = vector.broadcast %644 : vector<2x8x1xf32> to vector<2x8x32xf32>
    %646 = arith.mulf %645, %282 : vector<2x8x32xf32>
    %cst_154 = arith.constant dense<0.000000e+00> : vector<2x32xf32>
    %647 = vector.multi_reduction <add>, %646, %cst_154 [1] : vector<2x8x32xf32> to vector<2x32xf32>
    %648 = arith.truncf %630 : vector<2x32xf32> to vector<2x32xbf16>
    %cst_155 = arith.constant dense<0.000000e+00> : vector<2x32xf32>
    %649 = tpu.matmul %648, %5, %cst_155 {dimension_numbers = #tpu.dot_dimension_numbers<[1], [0], [0], [1], [0, 0, 1, 1], [], []>} : vector<2x32xbf16>, vector<32x32xbf16>, vector<2x32xf32> -> vector<2x32xf32>
    %650 = arith.truncf %647 : vector<2x32xf32> to vector<2x32xbf16>
    %cst_156 = arith.constant dense<0.000000e+00> : vector<2x32xf32>
    %651 = tpu.matmul %650, %6, %cst_156 {dimension_numbers = #tpu.dot_dimension_numbers<[1], [0], [0], [1], [0, 0, 1, 1], [], []>} : vector<2x32xbf16>, vector<32x32xbf16>, vector<2x32xf32> -> vector<2x32xf32>
    %652 = arith.addf %649, %651 : vector<2x32xf32>
    %653 = vector.broadcast %7 : vector<1x32xf32> to vector<2x32xf32>
    %654 = arith.addf %652, %653 : vector<2x32xf32>
    %cst_157 = arith.constant dense<0xFF800000> : vector<2xf32>
    %655 = vector.multi_reduction <maximumf>, %654, %cst_157 [1] : vector<2x32xf32> to vector<2xf32>
    %656 = vector.shape_cast %655 : vector<2xf32> to vector<2x1xf32>
    %657 = vector.broadcast %656 : vector<2x1xf32> to vector<2x32xf32>
    %658 = arith.cmpf oeq, %654, %657 : vector<2x32xf32>
    %c32_i32_158 = arith.constant 32 : i32
    %659 = vector.broadcast %c32_i32_158 : i32 to vector<2x32xi32>
    %660 = arith.select %658, %283, %659 : vector<2x32xi1>, vector<2x32xi32>
    %cst_159 = arith.constant dense<2147483647> : vector<2xi32>
    %661 = vector.multi_reduction <minsi>, %660, %cst_159 [1] : vector<2x32xi32> to vector<2xi32>
    %662 = vector.shape_cast %661 : vector<2xi32> to vector<2x1xi32>
    %c2_i32_160 = arith.constant 2 : i32
    %663 = vector.broadcast %c2_i32_160 : i32 to vector<2x1xi32>
    %664 = arith.select %593, %663, %662 : vector<2x1xi1>, vector<2x1xi32>
    %c1_i32_161 = arith.constant 1 : i32
    %665 = vector.broadcast %c1_i32_161 : i32 to vector<2x1xi32>
    %666 = arith.addi %590, %665 : vector<2x1xi32>
    %667 = arith.select %593, %590, %666 : vector<2x1xi1>, vector<2x1xi32>
    %c2_i32_162 = arith.constant 2 : i32
    %668 = vector.broadcast %c2_i32_162 : i32 to vector<2x1xi32>
    %669 = arith.cmpi eq, %664, %668 : vector<2x1xi32>
    %670 = arith.ori %593, %669 : vector<2x1xi1>
    %c0_163 = arith.constant 0 : index
    %c4_164 = arith.constant 4 : index
    %671 = vector.load %arg10[%c0_163, %c4_164] : memref<2x10xi32, #tpu.memory_space<vmem>>, vector<2x1xi32>
    tpu.vector_store %arg10[%c0_163, %c4_164], %664 {strides = array<i32>} : memref<2x10xi32, #tpu.memory_space<vmem>>, vector<2x1xi32>,
    %672 = vector.broadcast %664 : vector<2x1xi32> to vector<2x32xi32>
    %673 = arith.cmpi eq, %672, %283 : vector<2x32xi32>
    %674 = arith.extui %673 : vector<2x32xi1> to vector<2x32xi32>
    %675 = arith.sitofp %674 : vector<2x32xi32> to vector<2x32xf32>
    %676 = arith.truncf %675 : vector<2x32xf32> to vector<2x32xbf16>
    %cst_165 = arith.constant dense<0.000000e+00> : vector<2x96xf32>
    %677 = tpu.matmul %676, %2, %cst_165 {dimension_numbers = #tpu.dot_dimension_numbers<[1], [0], [0], [1], [0, 0, 1, 1], [], []>} : vector<2x32xbf16>, vector<32x96xbf16>, vector<2x96xf32> -> vector<2x96xf32>
    %678 = arith.truncf %630 : vector<2x32xf32> to vector<2x32xbf16>
    %cst_166 = arith.constant dense<0.000000e+00> : vector<2x96xf32>
    %679 = tpu.matmul %678, %3, %cst_166 {dimension_numbers = #tpu.dot_dimension_numbers<[1], [0], [0], [1], [0, 0, 1, 1], [], []>} : vector<2x32xbf16>, vector<32x96xbf16>, vector<2x96xf32> -> vector<2x96xf32>
    %680 = vector.broadcast %4 : vector<1x96xf32> to vector<2x96xf32>
    %681 = arith.addf %679, %680 : vector<2x96xf32>
    %682 = vector.extract_strided_slice %677 {offsets = [0, 0], sizes = [2, 32], strides = [1, 1]} : vector<2x96xf32> to vector<2x32xf32>
    %683 = vector.extract_strided_slice %681 {offsets = [0, 0], sizes = [2, 32], strides = [1, 1]} : vector<2x96xf32> to vector<2x32xf32>
    %684 = arith.addf %682, %683 : vector<2x32xf32>
    %685 = arith.negf %684 : vector<2x32xf32>
    %686 = math.exp %685 : vector<2x32xf32>
    %cst_167 = arith.constant 1.000000e+00 : f32
    %687 = vector.broadcast %cst_167 : f32 to vector<2x32xf32>
    %688 = arith.addf %687, %686 : vector<2x32xf32>
    %689 = arith.divf %687, %688 : vector<2x32xf32>
    %690 = vector.extract_strided_slice %677 {offsets = [0, 32], sizes = [2, 32], strides = [1, 1]} : vector<2x96xf32> to vector<2x32xf32>
    %691 = vector.extract_strided_slice %681 {offsets = [0, 32], sizes = [2, 32], strides = [1, 1]} : vector<2x96xf32> to vector<2x32xf32>
    %692 = arith.addf %690, %691 : vector<2x32xf32>
    %693 = arith.negf %692 : vector<2x32xf32>
    %694 = math.exp %693 : vector<2x32xf32>
    %cst_168 = arith.constant 1.000000e+00 : f32
    %695 = vector.broadcast %cst_168 : f32 to vector<2x32xf32>
    %696 = arith.addf %695, %694 : vector<2x32xf32>
    %697 = arith.divf %695, %696 : vector<2x32xf32>
    %698 = vector.extract_strided_slice %677 {offsets = [0, 64], sizes = [2, 32], strides = [1, 1]} : vector<2x96xf32> to vector<2x32xf32>
    %699 = vector.extract_strided_slice %681 {offsets = [0, 64], sizes = [2, 32], strides = [1, 1]} : vector<2x96xf32> to vector<2x32xf32>
    %700 = arith.mulf %689, %699 : vector<2x32xf32>
    %701 = arith.addf %698, %700 : vector<2x32xf32>
    %702 = math.tanh %701 : vector<2x32xf32>
    %cst_169 = arith.constant 1.000000e+00 : f32
    %703 = vector.broadcast %cst_169 : f32 to vector<2x32xf32>
    %704 = arith.subf %703, %697 : vector<2x32xf32>
    %705 = arith.mulf %704, %702 : vector<2x32xf32>
    %706 = arith.mulf %697, %630 : vector<2x32xf32>
    %707 = arith.addf %705, %706 : vector<2x32xf32>
    %708 = vector.shape_cast %707 : vector<2x32xf32> to vector<2x1x32xf32>
    %709 = vector.broadcast %708 : vector<2x1x32xf32> to vector<2x8x32xf32>
    %710 = arith.mulf %709, %282 : vector<2x8x32xf32>
    %cst_170 = arith.constant dense<0.000000e+00> : vector<2x8xf32>
    %711 = vector.multi_reduction <add>, %710, %cst_170 [2] : vector<2x8x32xf32> to vector<2x8xf32>
    %cst_171 = arith.constant dense<0xFF800000> : vector<2xf32>
    %712 = vector.multi_reduction <maximumf>, %711, %cst_171 [1] : vector<2x8xf32> to vector<2xf32>
    %713 = vector.shape_cast %712 : vector<2xf32> to vector<2x1xf32>
    %714 = vector.broadcast %713 : vector<2x1xf32> to vector<2x8xf32>
    %715 = arith.subf %711, %714 : vector<2x8xf32>
    %716 = math.exp %715 : vector<2x8xf32>
    %cst_172 = arith.constant dense<0.000000e+00> : vector<2xf32>
    %717 = vector.multi_reduction <add>, %716, %cst_172 [1] : vector<2x8xf32> to vector<2xf32>
    %718 = vector.shape_cast %717 : vector<2xf32> to vector<2x1xf32>
    %719 = vector.broadcast %718 : vector<2x1xf32> to vector<2x8xf32>
    %720 = arith.divf %716, %719 : vector<2x8xf32>
    %721 = vector.shape_cast %720 : vector<2x8xf32> to vector<2x8x1xf32>
    %722 = vector.broadcast %721 : vector<2x8x1xf32> to vector<2x8x32xf32>
    %723 = arith.mulf %722, %282 : vector<2x8x32xf32>
    %cst_173 = arith.constant dense<0.000000e+00> : vector<2x32xf32>
    %724 = vector.multi_reduction <add>, %723, %cst_173 [1] : vector<2x8x32xf32> to vector<2x32xf32>
    %725 = arith.truncf %707 : vector<2x32xf32> to vector<2x32xbf16>
    %cst_174 = arith.constant dense<0.000000e+00> : vector<2x32xf32>
    %726 = tpu.matmul %725, %5, %cst_174 {dimension_numbers = #tpu.dot_dimension_numbers<[1], [0], [0], [1], [0, 0, 1, 1], [], []>} : vector<2x32xbf16>, vector<32x32xbf16>, vector<2x32xf32> -> vector<2x32xf32>
    %727 = arith.truncf %724 : vector<2x32xf32> to vector<2x32xbf16>
    %cst_175 = arith.constant dense<0.000000e+00> : vector<2x32xf32>
    %728 = tpu.matmul %727, %6, %cst_175 {dimension_numbers = #tpu.dot_dimension_numbers<[1], [0], [0], [1], [0, 0, 1, 1], [], []>} : vector<2x32xbf16>, vector<32x32xbf16>, vector<2x32xf32> -> vector<2x32xf32>
    %729 = arith.addf %726, %728 : vector<2x32xf32>
    %730 = vector.broadcast %7 : vector<1x32xf32> to vector<2x32xf32>
    %731 = arith.addf %729, %730 : vector<2x32xf32>
    %cst_176 = arith.constant dense<0xFF800000> : vector<2xf32>
    %732 = vector.multi_reduction <maximumf>, %731, %cst_176 [1] : vector<2x32xf32> to vector<2xf32>
    %733 = vector.shape_cast %732 : vector<2xf32> to vector<2x1xf32>
    %734 = vector.broadcast %733 : vector<2x1xf32> to vector<2x32xf32>
    %735 = arith.cmpf oeq, %731, %734 : vector<2x32xf32>
    %c32_i32_177 = arith.constant 32 : i32
    %736 = vector.broadcast %c32_i32_177 : i32 to vector<2x32xi32>
    %737 = arith.select %735, %283, %736 : vector<2x32xi1>, vector<2x32xi32>
    %cst_178 = arith.constant dense<2147483647> : vector<2xi32>
    %738 = vector.multi_reduction <minsi>, %737, %cst_178 [1] : vector<2x32xi32> to vector<2xi32>
    %739 = vector.shape_cast %738 : vector<2xi32> to vector<2x1xi32>
    %c2_i32_179 = arith.constant 2 : i32
    %740 = vector.broadcast %c2_i32_179 : i32 to vector<2x1xi32>
    %741 = arith.select %670, %740, %739 : vector<2x1xi1>, vector<2x1xi32>
    %c1_i32_180 = arith.constant 1 : i32
    %742 = vector.broadcast %c1_i32_180 : i32 to vector<2x1xi32>
    %743 = arith.addi %667, %742 : vector<2x1xi32>
    %744 = arith.select %670, %667, %743 : vector<2x1xi1>, vector<2x1xi32>
    %c2_i32_181 = arith.constant 2 : i32
    %745 = vector.broadcast %c2_i32_181 : i32 to vector<2x1xi32>
    %746 = arith.cmpi eq, %741, %745 : vector<2x1xi32>
    %747 = arith.ori %670, %746 : vector<2x1xi1>
    %c0_182 = arith.constant 0 : index
    %c5_183 = arith.constant 5 : index
    %748 = vector.load %arg10[%c0_182, %c5_183] : memref<2x10xi32, #tpu.memory_space<vmem>>, vector<2x1xi32>
    tpu.vector_store %arg10[%c0_182, %c5_183], %741 {strides = array<i32>} : memref<2x10xi32, #tpu.memory_space<vmem>>, vector<2x1xi32>,
    %749 = vector.broadcast %741 : vector<2x1xi32> to vector<2x32xi32>
    %750 = arith.cmpi eq, %749, %283 : vector<2x32xi32>
    %751 = arith.extui %750 : vector<2x32xi1> to vector<2x32xi32>
    %752 = arith.sitofp %751 : vector<2x32xi32> to vector<2x32xf32>
    %753 = arith.truncf %752 : vector<2x32xf32> to vector<2x32xbf16>
    %cst_184 = arith.constant dense<0.000000e+00> : vector<2x96xf32>
    %754 = tpu.matmul %753, %2, %cst_184 {dimension_numbers = #tpu.dot_dimension_numbers<[1], [0], [0], [1], [0, 0, 1, 1], [], []>} : vector<2x32xbf16>, vector<32x96xbf16>, vector<2x96xf32> -> vector<2x96xf32>
    %755 = arith.truncf %707 : vector<2x32xf32> to vector<2x32xbf16>
    %cst_185 = arith.constant dense<0.000000e+00> : vector<2x96xf32>
    %756 = tpu.matmul %755, %3, %cst_185 {dimension_numbers = #tpu.dot_dimension_numbers<[1], [0], [0], [1], [0, 0, 1, 1], [], []>} : vector<2x32xbf16>, vector<32x96xbf16>, vector<2x96xf32> -> vector<2x96xf32>
    %757 = vector.broadcast %4 : vector<1x96xf32> to vector<2x96xf32>
    %758 = arith.addf %756, %757 : vector<2x96xf32>
    %759 = vector.extract_strided_slice %754 {offsets = [0, 0], sizes = [2, 32], strides = [1, 1]} : vector<2x96xf32> to vector<2x32xf32>
    %760 = vector.extract_strided_slice %758 {offsets = [0, 0], sizes = [2, 32], strides = [1, 1]} : vector<2x96xf32> to vector<2x32xf32>
    %761 = arith.addf %759, %760 : vector<2x32xf32>
    %762 = arith.negf %761 : vector<2x32xf32>
    %763 = math.exp %762 : vector<2x32xf32>
    %cst_186 = arith.constant 1.000000e+00 : f32
    %764 = vector.broadcast %cst_186 : f32 to vector<2x32xf32>
    %765 = arith.addf %764, %763 : vector<2x32xf32>
    %766 = arith.divf %764, %765 : vector<2x32xf32>
    %767 = vector.extract_strided_slice %754 {offsets = [0, 32], sizes = [2, 32], strides = [1, 1]} : vector<2x96xf32> to vector<2x32xf32>
    %768 = vector.extract_strided_slice %758 {offsets = [0, 32], sizes = [2, 32], strides = [1, 1]} : vector<2x96xf32> to vector<2x32xf32>
    %769 = arith.addf %767, %768 : vector<2x32xf32>
    %770 = arith.negf %769 : vector<2x32xf32>
    %771 = math.exp %770 : vector<2x32xf32>
    %cst_187 = arith.constant 1.000000e+00 : f32
    %772 = vector.broadcast %cst_187 : f32 to vector<2x32xf32>
    %773 = arith.addf %772, %771 : vector<2x32xf32>
    %774 = arith.divf %772, %773 : vector<2x32xf32>
    %775 = vector.extract_strided_slice %754 {offsets = [0, 64], sizes = [2, 32], strides = [1, 1]} : vector<2x96xf32> to vector<2x32xf32>
    %776 = vector.extract_strided_slice %758 {offsets = [0, 64], sizes = [2, 32], strides = [1, 1]} : vector<2x96xf32> to vector<2x32xf32>
    %777 = arith.mulf %766, %776 : vector<2x32xf32>
    %778 = arith.addf %775, %777 : vector<2x32xf32>
    %779 = math.tanh %778 : vector<2x32xf32>
    %cst_188 = arith.constant 1.000000e+00 : f32
    %780 = vector.broadcast %cst_188 : f32 to vector<2x32xf32>
    %781 = arith.subf %780, %774 : vector<2x32xf32>
    %782 = arith.mulf %781, %779 : vector<2x32xf32>
    %783 = arith.mulf %774, %707 : vector<2x32xf32>
    %784 = arith.addf %782, %783 : vector<2x32xf32>
    %785 = vector.shape_cast %784 : vector<2x32xf32> to vector<2x1x32xf32>
    %786 = vector.broadcast %785 : vector<2x1x32xf32> to vector<2x8x32xf32>
    %787 = arith.mulf %786, %282 : vector<2x8x32xf32>
    %cst_189 = arith.constant dense<0.000000e+00> : vector<2x8xf32>
    %788 = vector.multi_reduction <add>, %787, %cst_189 [2] : vector<2x8x32xf32> to vector<2x8xf32>
    %cst_190 = arith.constant dense<0xFF800000> : vector<2xf32>
    %789 = vector.multi_reduction <maximumf>, %788, %cst_190 [1] : vector<2x8xf32> to vector<2xf32>
    %790 = vector.shape_cast %789 : vector<2xf32> to vector<2x1xf32>
    %791 = vector.broadcast %790 : vector<2x1xf32> to vector<2x8xf32>
    %792 = arith.subf %788, %791 : vector<2x8xf32>
    %793 = math.exp %792 : vector<2x8xf32>
    %cst_191 = arith.constant dense<0.000000e+00> : vector<2xf32>
    %794 = vector.multi_reduction <add>, %793, %cst_191 [1] : vector<2x8xf32> to vector<2xf32>
    %795 = vector.shape_cast %794 : vector<2xf32> to vector<2x1xf32>
    %796 = vector.broadcast %795 : vector<2x1xf32> to vector<2x8xf32>
    %797 = arith.divf %793, %796 : vector<2x8xf32>
    %798 = vector.shape_cast %797 : vector<2x8xf32> to vector<2x8x1xf32>
    %799 = vector.broadcast %798 : vector<2x8x1xf32> to vector<2x8x32xf32>
    %800 = arith.mulf %799, %282 : vector<2x8x32xf32>
    %cst_192 = arith.constant dense<0.000000e+00> : vector<2x32xf32>
    %801 = vector.multi_reduction <add>, %800, %cst_192 [1] : vector<2x8x32xf32> to vector<2x32xf32>
    %802 = arith.truncf %784 : vector<2x32xf32> to vector<2x32xbf16>
    %cst_193 = arith.constant dense<0.000000e+00> : vector<2x32xf32>
    %803 = tpu.matmul %802, %5, %cst_193 {dimension_numbers = #tpu.dot_dimension_numbers<[1], [0], [0], [1], [0, 0, 1, 1], [], []>} : vector<2x32xbf16>, vector<32x32xbf16>, vector<2x32xf32> -> vector<2x32xf32>
    %804 = arith.truncf %801 : vector<2x32xf32> to vector<2x32xbf16>
    %cst_194 = arith.constant dense<0.000000e+00> : vector<2x32xf32>
    %805 = tpu.matmul %804, %6, %cst_194 {dimension_numbers = #tpu.dot_dimension_numbers<[1], [0], [0], [1], [0, 0, 1, 1], [], []>} : vector<2x32xbf16>, vector<32x32xbf16>, vector<2x32xf32> -> vector<2x32xf32>
    %806 = arith.addf %803, %805 : vector<2x32xf32>
    %807 = vector.broadcast %7 : vector<1x32xf32> to vector<2x32xf32>
    %808 = arith.addf %806, %807 : vector<2x32xf32>
    %cst_195 = arith.constant dense<0xFF800000> : vector<2xf32>
    %809 = vector.multi_reduction <maximumf>, %808, %cst_195 [1] : vector<2x32xf32> to vector<2xf32>
    %810 = vector.shape_cast %809 : vector<2xf32> to vector<2x1xf32>
    %811 = vector.broadcast %810 : vector<2x1xf32> to vector<2x32xf32>
    %812 = arith.cmpf oeq, %808, %811 : vector<2x32xf32>
    %c32_i32_196 = arith.constant 32 : i32
    %813 = vector.broadcast %c32_i32_196 : i32 to vector<2x32xi32>
    %814 = arith.select %812, %283, %813 : vector<2x32xi1>, vector<2x32xi32>
    %cst_197 = arith.constant dense<2147483647> : vector<2xi32>
    %815 = vector.multi_reduction <minsi>, %814, %cst_197 [1] : vector<2x32xi32> to vector<2xi32>
    %816 = vector.shape_cast %815 : vector<2xi32> to vector<2x1xi32>
    %c2_i32_198 = arith.constant 2 : i32
    %817 = vector.broadcast %c2_i32_198 : i32 to vector<2x1xi32>
    %818 = arith.select %747, %817, %816 : vector<2x1xi1>, vector<2x1xi32>
    %c1_i32_199 = arith.constant 1 : i32
    %819 = vector.broadcast %c1_i32_199 : i32 to vector<2x1xi32>
    %820 = arith.addi %744, %819 : vector<2x1xi32>
    %821 = arith.select %747, %744, %820 : vector<2x1xi1>, vector<2x1xi32>
    %c2_i32_200 = arith.constant 2 : i32
    %822 = vector.broadcast %c2_i32_200 : i32 to vector<2x1xi32>
    %823 = arith.cmpi eq, %818, %822 : vector<2x1xi32>
    %824 = arith.ori %747, %823 : vector<2x1xi1>
    %c0_201 = arith.constant 0 : index
    %c6_202 = arith.constant 6 : index
    %825 = vector.load %arg10[%c0_201, %c6_202] : memref<2x10xi32, #tpu.memory_space<vmem>>, vector<2x1xi32>
    tpu.vector_store %arg10[%c0_201, %c6_202], %818 {strides = array<i32>} : memref<2x10xi32, #tpu.memory_space<vmem>>, vector<2x1xi32>,
    %826 = vector.broadcast %818 : vector<2x1xi32> to vector<2x32xi32>
    %827 = arith.cmpi eq, %826, %283 : vector<2x32xi32>
    %828 = arith.extui %827 : vector<2x32xi1> to vector<2x32xi32>
    %829 = arith.sitofp %828 : vector<2x32xi32> to vector<2x32xf32>
    %830 = arith.truncf %829 : vector<2x32xf32> to vector<2x32xbf16>
    %cst_203 = arith.constant dense<0.000000e+00> : vector<2x96xf32>
    %831 = tpu.matmul %830, %2, %cst_203 {dimension_numbers = #tpu.dot_dimension_numbers<[1], [0], [0], [1], [0, 0, 1, 1], [], []>} : vector<2x32xbf16>, vector<32x96xbf16>, vector<2x96xf32> -> vector<2x96xf32>
    %832 = arith.truncf %784 : vector<2x32xf32> to vector<2x32xbf16>
    %cst_204 = arith.constant dense<0.000000e+00> : vector<2x96xf32>
    %833 = tpu.matmul %832, %3, %cst_204 {dimension_numbers = #tpu.dot_dimension_numbers<[1], [0], [0], [1], [0, 0, 1, 1], [], []>} : vector<2x32xbf16>, vector<32x96xbf16>, vector<2x96xf32> -> vector<2x96xf32>
    %834 = vector.broadcast %4 : vector<1x96xf32> to vector<2x96xf32>
    %835 = arith.addf %833, %834 : vector<2x96xf32>
    %836 = vector.extract_strided_slice %831 {offsets = [0, 0], sizes = [2, 32], strides = [1, 1]} : vector<2x96xf32> to vector<2x32xf32>
    %837 = vector.extract_strided_slice %835 {offsets = [0, 0], sizes = [2, 32], strides = [1, 1]} : vector<2x96xf32> to vector<2x32xf32>
    %838 = arith.addf %836, %837 : vector<2x32xf32>
    %839 = arith.negf %838 : vector<2x32xf32>
    %840 = math.exp %839 : vector<2x32xf32>
    %cst_205 = arith.constant 1.000000e+00 : f32
    %841 = vector.broadcast %cst_205 : f32 to vector<2x32xf32>
    %842 = arith.addf %841, %840 : vector<2x32xf32>
    %843 = arith.divf %841, %842 : vector<2x32xf32>
    %844 = vector.extract_strided_slice %831 {offsets = [0, 32], sizes = [2, 32], strides = [1, 1]} : vector<2x96xf32> to vector<2x32xf32>
    %845 = vector.extract_strided_slice %835 {offsets = [0, 32], sizes = [2, 32], strides = [1, 1]} : vector<2x96xf32> to vector<2x32xf32>
    %846 = arith.addf %844, %845 : vector<2x32xf32>
    %847 = arith.negf %846 : vector<2x32xf32>
    %848 = math.exp %847 : vector<2x32xf32>
    %cst_206 = arith.constant 1.000000e+00 : f32
    %849 = vector.broadcast %cst_206 : f32 to vector<2x32xf32>
    %850 = arith.addf %849, %848 : vector<2x32xf32>
    %851 = arith.divf %849, %850 : vector<2x32xf32>
    %852 = vector.extract_strided_slice %831 {offsets = [0, 64], sizes = [2, 32], strides = [1, 1]} : vector<2x96xf32> to vector<2x32xf32>
    %853 = vector.extract_strided_slice %835 {offsets = [0, 64], sizes = [2, 32], strides = [1, 1]} : vector<2x96xf32> to vector<2x32xf32>
    %854 = arith.mulf %843, %853 : vector<2x32xf32>
    %855 = arith.addf %852, %854 : vector<2x32xf32>
    %856 = math.tanh %855 : vector<2x32xf32>
    %cst_207 = arith.constant 1.000000e+00 : f32
    %857 = vector.broadcast %cst_207 : f32 to vector<2x32xf32>
    %858 = arith.subf %857, %851 : vector<2x32xf32>
    %859 = arith.mulf %858, %856 : vector<2x32xf32>
    %860 = arith.mulf %851, %784 : vector<2x32xf32>
    %861 = arith.addf %859, %860 : vector<2x32xf32>
    %862 = vector.shape_cast %861 : vector<2x32xf32> to vector<2x1x32xf32>
    %863 = vector.broadcast %862 : vector<2x1x32xf32> to vector<2x8x32xf32>
    %864 = arith.mulf %863, %282 : vector<2x8x32xf32>
    %cst_208 = arith.constant dense<0.000000e+00> : vector<2x8xf32>
    %865 = vector.multi_reduction <add>, %864, %cst_208 [2] : vector<2x8x32xf32> to vector<2x8xf32>
    %cst_209 = arith.constant dense<0xFF800000> : vector<2xf32>
    %866 = vector.multi_reduction <maximumf>, %865, %cst_209 [1] : vector<2x8xf32> to vector<2xf32>
    %867 = vector.shape_cast %866 : vector<2xf32> to vector<2x1xf32>
    %868 = vector.broadcast %867 : vector<2x1xf32> to vector<2x8xf32>
    %869 = arith.subf %865, %868 : vector<2x8xf32>
    %870 = math.exp %869 : vector<2x8xf32>
    %cst_210 = arith.constant dense<0.000000e+00> : vector<2xf32>
    %871 = vector.multi_reduction <add>, %870, %cst_210 [1] : vector<2x8xf32> to vector<2xf32>
    %872 = vector.shape_cast %871 : vector<2xf32> to vector<2x1xf32>
    %873 = vector.broadcast %872 : vector<2x1xf32> to vector<2x8xf32>
    %874 = arith.divf %870, %873 : vector<2x8xf32>
    %875 = vector.shape_cast %874 : vector<2x8xf32> to vector<2x8x1xf32>
    %876 = vector.broadcast %875 : vector<2x8x1xf32> to vector<2x8x32xf32>
    %877 = arith.mulf %876, %282 : vector<2x8x32xf32>
    %cst_211 = arith.constant dense<0.000000e+00> : vector<2x32xf32>
    %878 = vector.multi_reduction <add>, %877, %cst_211 [1] : vector<2x8x32xf32> to vector<2x32xf32>
    %879 = arith.truncf %861 : vector<2x32xf32> to vector<2x32xbf16>
    %cst_212 = arith.constant dense<0.000000e+00> : vector<2x32xf32>
    %880 = tpu.matmul %879, %5, %cst_212 {dimension_numbers = #tpu.dot_dimension_numbers<[1], [0], [0], [1], [0, 0, 1, 1], [], []>} : vector<2x32xbf16>, vector<32x32xbf16>, vector<2x32xf32> -> vector<2x32xf32>
    %881 = arith.truncf %878 : vector<2x32xf32> to vector<2x32xbf16>
    %cst_213 = arith.constant dense<0.000000e+00> : vector<2x32xf32>
    %882 = tpu.matmul %881, %6, %cst_213 {dimension_numbers = #tpu.dot_dimension_numbers<[1], [0], [0], [1], [0, 0, 1, 1], [], []>} : vector<2x32xbf16>, vector<32x32xbf16>, vector<2x32xf32> -> vector<2x32xf32>
    %883 = arith.addf %880, %882 : vector<2x32xf32>
    %884 = vector.broadcast %7 : vector<1x32xf32> to vector<2x32xf32>
    %885 = arith.addf %883, %884 : vector<2x32xf32>
    %cst_214 = arith.constant dense<0xFF800000> : vector<2xf32>
    %886 = vector.multi_reduction <maximumf>, %885, %cst_214 [1] : vector<2x32xf32> to vector<2xf32>
    %887 = vector.shape_cast %886 : vector<2xf32> to vector<2x1xf32>
    %888 = vector.broadcast %887 : vector<2x1xf32> to vector<2x32xf32>
    %889 = arith.cmpf oeq, %885, %888 : vector<2x32xf32>
    %c32_i32_215 = arith.constant 32 : i32
    %890 = vector.broadcast %c32_i32_215 : i32 to vector<2x32xi32>
    %891 = arith.select %889, %283, %890 : vector<2x32xi1>, vector<2x32xi32>
    %cst_216 = arith.constant dense<2147483647> : vector<2xi32>
    %892 = vector.multi_reduction <minsi>, %891, %cst_216 [1] : vector<2x32xi32> to vector<2xi32>
    %893 = vector.shape_cast %892 : vector<2xi32> to vector<2x1xi32>
    %c2_i32_217 = arith.constant 2 : i32
    %894 = vector.broadcast %c2_i32_217 : i32 to vector<2x1xi32>
    %895 = arith.select %824, %894, %893 : vector<2x1xi1>, vector<2x1xi32>
    %c1_i32_218 = arith.constant 1 : i32
    %896 = vector.broadcast %c1_i32_218 : i32 to vector<2x1xi32>
    %897 = arith.addi %821, %896 : vector<2x1xi32>
    %898 = arith.select %824, %821, %897 : vector<2x1xi1>, vector<2x1xi32>
    %c2_i32_219 = arith.constant 2 : i32
    %899 = vector.broadcast %c2_i32_219 : i32 to vector<2x1xi32>
    %900 = arith.cmpi eq, %895, %899 : vector<2x1xi32>
    %901 = arith.ori %824, %900 : vector<2x1xi1>
    %c0_220 = arith.constant 0 : index
    %c7_221 = arith.constant 7 : index
    %902 = vector.load %arg10[%c0_220, %c7_221] : memref<2x10xi32, #tpu.memory_space<vmem>>, vector<2x1xi32>
    tpu.vector_store %arg10[%c0_220, %c7_221], %895 {strides = array<i32>} : memref<2x10xi32, #tpu.memory_space<vmem>>, vector<2x1xi32>,
    %903 = vector.broadcast %895 : vector<2x1xi32> to vector<2x32xi32>
    %904 = arith.cmpi eq, %903, %283 : vector<2x32xi32>
    %905 = arith.extui %904 : vector<2x32xi1> to vector<2x32xi32>
    %906 = arith.sitofp %905 : vector<2x32xi32> to vector<2x32xf32>
    %907 = arith.truncf %906 : vector<2x32xf32> to vector<2x32xbf16>
    %cst_222 = arith.constant dense<0.000000e+00> : vector<2x96xf32>
    %908 = tpu.matmul %907, %2, %cst_222 {dimension_numbers = #tpu.dot_dimension_numbers<[1], [0], [0], [1], [0, 0, 1, 1], [], []>} : vector<2x32xbf16>, vector<32x96xbf16>, vector<2x96xf32> -> vector<2x96xf32>
    %909 = arith.truncf %861 : vector<2x32xf32> to vector<2x32xbf16>
    %cst_223 = arith.constant dense<0.000000e+00> : vector<2x96xf32>
    %910 = tpu.matmul %909, %3, %cst_223 {dimension_numbers = #tpu.dot_dimension_numbers<[1], [0], [0], [1], [0, 0, 1, 1], [], []>} : vector<2x32xbf16>, vector<32x96xbf16>, vector<2x96xf32> -> vector<2x96xf32>
    %911 = vector.broadcast %4 : vector<1x96xf32> to vector<2x96xf32>
    %912 = arith.addf %910, %911 : vector<2x96xf32>
    %913 = vector.extract_strided_slice %908 {offsets = [0, 0], sizes = [2, 32], strides = [1, 1]} : vector<2x96xf32> to vector<2x32xf32>
    %914 = vector.extract_strided_slice %912 {offsets = [0, 0], sizes = [2, 32], strides = [1, 1]} : vector<2x96xf32> to vector<2x32xf32>
    %915 = arith.addf %913, %914 : vector<2x32xf32>
    %916 = arith.negf %915 : vector<2x32xf32>
    %917 = math.exp %916 : vector<2x32xf32>
    %cst_224 = arith.constant 1.000000e+00 : f32
    %918 = vector.broadcast %cst_224 : f32 to vector<2x32xf32>
    %919 = arith.addf %918, %917 : vector<2x32xf32>
    %920 = arith.divf %918, %919 : vector<2x32xf32>
    %921 = vector.extract_strided_slice %908 {offsets = [0, 32], sizes = [2, 32], strides = [1, 1]} : vector<2x96xf32> to vector<2x32xf32>
    %922 = vector.extract_strided_slice %912 {offsets = [0, 32], sizes = [2, 32], strides = [1, 1]} : vector<2x96xf32> to vector<2x32xf32>
    %923 = arith.addf %921, %922 : vector<2x32xf32>
    %924 = arith.negf %923 : vector<2x32xf32>
    %925 = math.exp %924 : vector<2x32xf32>
    %cst_225 = arith.constant 1.000000e+00 : f32
    %926 = vector.broadcast %cst_225 : f32 to vector<2x32xf32>
    %927 = arith.addf %926, %925 : vector<2x32xf32>
    %928 = arith.divf %926, %927 : vector<2x32xf32>
    %929 = vector.extract_strided_slice %908 {offsets = [0, 64], sizes = [2, 32], strides = [1, 1]} : vector<2x96xf32> to vector<2x32xf32>
    %930 = vector.extract_strided_slice %912 {offsets = [0, 64], sizes = [2, 32], strides = [1, 1]} : vector<2x96xf32> to vector<2x32xf32>
    %931 = arith.mulf %920, %930 : vector<2x32xf32>
    %932 = arith.addf %929, %931 : vector<2x32xf32>
    %933 = math.tanh %932 : vector<2x32xf32>
    %cst_226 = arith.constant 1.000000e+00 : f32
    %934 = vector.broadcast %cst_226 : f32 to vector<2x32xf32>
    %935 = arith.subf %934, %928 : vector<2x32xf32>
    %936 = arith.mulf %935, %933 : vector<2x32xf32>
    %937 = arith.mulf %928, %861 : vector<2x32xf32>
    %938 = arith.addf %936, %937 : vector<2x32xf32>
    %939 = vector.shape_cast %938 : vector<2x32xf32> to vector<2x1x32xf32>
    %940 = vector.broadcast %939 : vector<2x1x32xf32> to vector<2x8x32xf32>
    %941 = arith.mulf %940, %282 : vector<2x8x32xf32>
    %cst_227 = arith.constant dense<0.000000e+00> : vector<2x8xf32>
    %942 = vector.multi_reduction <add>, %941, %cst_227 [2] : vector<2x8x32xf32> to vector<2x8xf32>
    %cst_228 = arith.constant dense<0xFF800000> : vector<2xf32>
    %943 = vector.multi_reduction <maximumf>, %942, %cst_228 [1] : vector<2x8xf32> to vector<2xf32>
    %944 = vector.shape_cast %943 : vector<2xf32> to vector<2x1xf32>
    %945 = vector.broadcast %944 : vector<2x1xf32> to vector<2x8xf32>
    %946 = arith.subf %942, %945 : vector<2x8xf32>
    %947 = math.exp %946 : vector<2x8xf32>
    %cst_229 = arith.constant dense<0.000000e+00> : vector<2xf32>
    %948 = vector.multi_reduction <add>, %947, %cst_229 [1] : vector<2x8xf32> to vector<2xf32>
    %949 = vector.shape_cast %948 : vector<2xf32> to vector<2x1xf32>
    %950 = vector.broadcast %949 : vector<2x1xf32> to vector<2x8xf32>
    %951 = arith.divf %947, %950 : vector<2x8xf32>
    %952 = vector.shape_cast %951 : vector<2x8xf32> to vector<2x8x1xf32>
    %953 = vector.broadcast %952 : vector<2x8x1xf32> to vector<2x8x32xf32>
    %954 = arith.mulf %953, %282 : vector<2x8x32xf32>
    %cst_230 = arith.constant dense<0.000000e+00> : vector<2x32xf32>
    %955 = vector.multi_reduction <add>, %954, %cst_230 [1] : vector<2x8x32xf32> to vector<2x32xf32>
    %956 = arith.truncf %938 : vector<2x32xf32> to vector<2x32xbf16>
    %cst_231 = arith.constant dense<0.000000e+00> : vector<2x32xf32>
    %957 = tpu.matmul %956, %5, %cst_231 {dimension_numbers = #tpu.dot_dimension_numbers<[1], [0], [0], [1], [0, 0, 1, 1], [], []>} : vector<2x32xbf16>, vector<32x32xbf16>, vector<2x32xf32> -> vector<2x32xf32>
    %958 = arith.truncf %955 : vector<2x32xf32> to vector<2x32xbf16>
    %cst_232 = arith.constant dense<0.000000e+00> : vector<2x32xf32>
    %959 = tpu.matmul %958, %6, %cst_232 {dimension_numbers = #tpu.dot_dimension_numbers<[1], [0], [0], [1], [0, 0, 1, 1], [], []>} : vector<2x32xbf16>, vector<32x32xbf16>, vector<2x32xf32> -> vector<2x32xf32>
    %960 = arith.addf %957, %959 : vector<2x32xf32>
    %961 = vector.broadcast %7 : vector<1x32xf32> to vector<2x32xf32>
    %962 = arith.addf %960, %961 : vector<2x32xf32>
    %cst_233 = arith.constant dense<0xFF800000> : vector<2xf32>
    %963 = vector.multi_reduction <maximumf>, %962, %cst_233 [1] : vector<2x32xf32> to vector<2xf32>
    %964 = vector.shape_cast %963 : vector<2xf32> to vector<2x1xf32>
    %965 = vector.broadcast %964 : vector<2x1xf32> to vector<2x32xf32>
    %966 = arith.cmpf oeq, %962, %965 : vector<2x32xf32>
    %c32_i32_234 = arith.constant 32 : i32
    %967 = vector.broadcast %c32_i32_234 : i32 to vector<2x32xi32>
    %968 = arith.select %966, %283, %967 : vector<2x32xi1>, vector<2x32xi32>
    %cst_235 = arith.constant dense<2147483647> : vector<2xi32>
    %969 = vector.multi_reduction <minsi>, %968, %cst_235 [1] : vector<2x32xi32> to vector<2xi32>
    %970 = vector.shape_cast %969 : vector<2xi32> to vector<2x1xi32>
    %c2_i32_236 = arith.constant 2 : i32
    %971 = vector.broadcast %c2_i32_236 : i32 to vector<2x1xi32>
    %972 = arith.select %901, %971, %970 : vector<2x1xi1>, vector<2x1xi32>
    %c1_i32_237 = arith.constant 1 : i32
    %973 = vector.broadcast %c1_i32_237 : i32 to vector<2x1xi32>
    %974 = arith.addi %898, %973 : vector<2x1xi32>
    %975 = arith.select %901, %898, %974 : vector<2x1xi1>, vector<2x1xi32>
    %c2_i32_238 = arith.constant 2 : i32
    %976 = vector.broadcast %c2_i32_238 : i32 to vector<2x1xi32>
    %977 = arith.cmpi eq, %972, %976 : vector<2x1xi32>
    %978 = arith.ori %901, %977 : vector<2x1xi1>
    %c0_239 = arith.constant 0 : index
    %c8 = arith.constant 8 : index
    %979 = vector.load %arg10[%c0_239, %c8] : memref<2x10xi32, #tpu.memory_space<vmem>>, vector<2x1xi32>
    tpu.vector_store %arg10[%c0_239, %c8], %972 {strides = array<i32>} : memref<2x10xi32, #tpu.memory_space<vmem>>, vector<2x1xi32>,
    %980 = vector.broadcast %972 : vector<2x1xi32> to vector<2x32xi32>
    %981 = arith.cmpi eq, %980, %283 : vector<2x32xi32>
    %982 = arith.extui %981 : vector<2x32xi1> to vector<2x32xi32>
    %983 = arith.sitofp %982 : vector<2x32xi32> to vector<2x32xf32>
    %984 = arith.truncf %983 : vector<2x32xf32> to vector<2x32xbf16>
    %cst_240 = arith.constant dense<0.000000e+00> : vector<2x96xf32>
    %985 = tpu.matmul %984, %2, %cst_240 {dimension_numbers = #tpu.dot_dimension_numbers<[1], [0], [0], [1], [0, 0, 1, 1], [], []>} : vector<2x32xbf16>, vector<32x96xbf16>, vector<2x96xf32> -> vector<2x96xf32>
    %986 = arith.truncf %938 : vector<2x32xf32> to vector<2x32xbf16>
    %cst_241 = arith.constant dense<0.000000e+00> : vector<2x96xf32>
    %987 = tpu.matmul %986, %3, %cst_241 {dimension_numbers = #tpu.dot_dimension_numbers<[1], [0], [0], [1], [0, 0, 1, 1], [], []>} : vector<2x32xbf16>, vector<32x96xbf16>, vector<2x96xf32> -> vector<2x96xf32>
    %988 = vector.broadcast %4 : vector<1x96xf32> to vector<2x96xf32>
    %989 = arith.addf %987, %988 : vector<2x96xf32>
    %990 = vector.extract_strided_slice %985 {offsets = [0, 0], sizes = [2, 32], strides = [1, 1]} : vector<2x96xf32> to vector<2x32xf32>
    %991 = vector.extract_strided_slice %989 {offsets = [0, 0], sizes = [2, 32], strides = [1, 1]} : vector<2x96xf32> to vector<2x32xf32>
    %992 = arith.addf %990, %991 : vector<2x32xf32>
    %993 = arith.negf %992 : vector<2x32xf32>
    %994 = math.exp %993 : vector<2x32xf32>
    %cst_242 = arith.constant 1.000000e+00 : f32
    %995 = vector.broadcast %cst_242 : f32 to vector<2x32xf32>
    %996 = arith.addf %995, %994 : vector<2x32xf32>
    %997 = arith.divf %995, %996 : vector<2x32xf32>
    %998 = vector.extract_strided_slice %985 {offsets = [0, 32], sizes = [2, 32], strides = [1, 1]} : vector<2x96xf32> to vector<2x32xf32>
    %999 = vector.extract_strided_slice %989 {offsets = [0, 32], sizes = [2, 32], strides = [1, 1]} : vector<2x96xf32> to vector<2x32xf32>
    %1000 = arith.addf %998, %999 : vector<2x32xf32>
    %1001 = arith.negf %1000 : vector<2x32xf32>
    %1002 = math.exp %1001 : vector<2x32xf32>
    %cst_243 = arith.constant 1.000000e+00 : f32
    %1003 = vector.broadcast %cst_243 : f32 to vector<2x32xf32>
    %1004 = arith.addf %1003, %1002 : vector<2x32xf32>
    %1005 = arith.divf %1003, %1004 : vector<2x32xf32>
    %1006 = vector.extract_strided_slice %985 {offsets = [0, 64], sizes = [2, 32], strides = [1, 1]} : vector<2x96xf32> to vector<2x32xf32>
    %1007 = vector.extract_strided_slice %989 {offsets = [0, 64], sizes = [2, 32], strides = [1, 1]} : vector<2x96xf32> to vector<2x32xf32>
    %1008 = arith.mulf %997, %1007 : vector<2x32xf32>
    %1009 = arith.addf %1006, %1008 : vector<2x32xf32>
    %1010 = math.tanh %1009 : vector<2x32xf32>
    %cst_244 = arith.constant 1.000000e+00 : f32
    %1011 = vector.broadcast %cst_244 : f32 to vector<2x32xf32>
    %1012 = arith.subf %1011, %1005 : vector<2x32xf32>
    %1013 = arith.mulf %1012, %1010 : vector<2x32xf32>
    %1014 = arith.mulf %1005, %938 : vector<2x32xf32>
    %1015 = arith.addf %1013, %1014 : vector<2x32xf32>
    %1016 = vector.shape_cast %1015 : vector<2x32xf32> to vector<2x1x32xf32>
    %1017 = vector.broadcast %1016 : vector<2x1x32xf32> to vector<2x8x32xf32>
    %1018 = arith.mulf %1017, %282 : vector<2x8x32xf32>
    %cst_245 = arith.constant dense<0.000000e+00> : vector<2x8xf32>
    %1019 = vector.multi_reduction <add>, %1018, %cst_245 [2] : vector<2x8x32xf32> to vector<2x8xf32>
    %cst_246 = arith.constant dense<0xFF800000> : vector<2xf32>
    %1020 = vector.multi_reduction <maximumf>, %1019, %cst_246 [1] : vector<2x8xf32> to vector<2xf32>
    %1021 = vector.shape_cast %1020 : vector<2xf32> to vector<2x1xf32>
    %1022 = vector.broadcast %1021 : vector<2x1xf32> to vector<2x8xf32>
    %1023 = arith.subf %1019, %1022 : vector<2x8xf32>
    %1024 = math.exp %1023 : vector<2x8xf32>
    %cst_247 = arith.constant dense<0.000000e+00> : vector<2xf32>
    %1025 = vector.multi_reduction <add>, %1024, %cst_247 [1] : vector<2x8xf32> to vector<2xf32>
    %1026 = vector.shape_cast %1025 : vector<2xf32> to vector<2x1xf32>
    %1027 = vector.broadcast %1026 : vector<2x1xf32> to vector<2x8xf32>
    %1028 = arith.divf %1024, %1027 : vector<2x8xf32>
    %1029 = vector.shape_cast %1028 : vector<2x8xf32> to vector<2x8x1xf32>
    %1030 = vector.broadcast %1029 : vector<2x8x1xf32> to vector<2x8x32xf32>
    %1031 = arith.mulf %1030, %282 : vector<2x8x32xf32>
    %cst_248 = arith.constant dense<0.000000e+00> : vector<2x32xf32>
    %1032 = vector.multi_reduction <add>, %1031, %cst_248 [1] : vector<2x8x32xf32> to vector<2x32xf32>
    %1033 = arith.truncf %1015 : vector<2x32xf32> to vector<2x32xbf16>
    %cst_249 = arith.constant dense<0.000000e+00> : vector<2x32xf32>
    %1034 = tpu.matmul %1033, %5, %cst_249 {dimension_numbers = #tpu.dot_dimension_numbers<[1], [0], [0], [1], [0, 0, 1, 1], [], []>} : vector<2x32xbf16>, vector<32x32xbf16>, vector<2x32xf32> -> vector<2x32xf32>
    %1035 = arith.truncf %1032 : vector<2x32xf32> to vector<2x32xbf16>
    %cst_250 = arith.constant dense<0.000000e+00> : vector<2x32xf32>
    %1036 = tpu.matmul %1035, %6, %cst_250 {dimension_numbers = #tpu.dot_dimension_numbers<[1], [0], [0], [1], [0, 0, 1, 1], [], []>} : vector<2x32xbf16>, vector<32x32xbf16>, vector<2x32xf32> -> vector<2x32xf32>
    %1037 = arith.addf %1034, %1036 : vector<2x32xf32>
    %1038 = vector.broadcast %7 : vector<1x32xf32> to vector<2x32xf32>
    %1039 = arith.addf %1037, %1038 : vector<2x32xf32>
    %cst_251 = arith.constant dense<0xFF800000> : vector<2xf32>
    %1040 = vector.multi_reduction <maximumf>, %1039, %cst_251 [1] : vector<2x32xf32> to vector<2xf32>
    %1041 = vector.shape_cast %1040 : vector<2xf32> to vector<2x1xf32>
    %1042 = vector.broadcast %1041 : vector<2x1xf32> to vector<2x32xf32>
    %1043 = arith.cmpf oeq, %1039, %1042 : vector<2x32xf32>
    %c32_i32_252 = arith.constant 32 : i32
    %1044 = vector.broadcast %c32_i32_252 : i32 to vector<2x32xi32>
    %1045 = arith.select %1043, %283, %1044 : vector<2x32xi1>, vector<2x32xi32>
    %cst_253 = arith.constant dense<2147483647> : vector<2xi32>
    %1046 = vector.multi_reduction <minsi>, %1045, %cst_253 [1] : vector<2x32xi32> to vector<2xi32>
    %1047 = vector.shape_cast %1046 : vector<2xi32> to vector<2x1xi32>
    %c2_i32_254 = arith.constant 2 : i32
    %1048 = vector.broadcast %c2_i32_254 : i32 to vector<2x1xi32>
    %1049 = arith.select %978, %1048, %1047 : vector<2x1xi1>, vector<2x1xi32>
    %c1_i32_255 = arith.constant 1 : i32
    %1050 = vector.broadcast %c1_i32_255 : i32 to vector<2x1xi32>
    %1051 = arith.addi %975, %1050 : vector<2x1xi32>
    %1052 = arith.select %978, %975, %1051 : vector<2x1xi1>, vector<2x1xi32>
    %c0_256 = arith.constant 0 : index
    %c9 = arith.constant 9 : index
    %1053 = vector.load %arg10[%c0_256, %c9] : memref<2x10xi32, #tpu.memory_space<vmem>>, vector<2x1xi32>
    tpu.vector_store %arg10[%c0_256, %c9], %1049 {strides = array<i32>} : memref<2x10xi32, #tpu.memory_space<vmem>>, vector<2x1xi32>,
    %c0_257 = arith.constant 0 : index
    %c0_258 = arith.constant 0 : index
    %1054 = vector.load %arg11[%c0_257, %c0_258] : memref<2x1xi32, #tpu.memory_space<vmem>>, vector<2x1xi32>
    tpu.vector_store %arg11[%c0_257, %c0_258], %1052 {strides = array<i32>} : memref<2x1xi32, #tpu.memory_space<vmem>>, vector<2x1xi32>,
    return
  }
}

</mosaic_0001>

<llo_original>
// kernel: seq2seq_predict.1
$region0: #{seq2seq_predict.1}
  #allocation0 [shape = 'u32[]', space=smem, size = 0x4, offset = 0x4, fixed_abs, tag = 'smem constant byte address 0x4 - core index']
  #allocation1 [shape = 'u32[144,128]{1,0:T(1,128)}', space=vmem, size = 0x12000, scoped, tag = 'internal scratch']
  #allocation2 [shape = 'f32[2,8,32]{2,1,0:T(8,128)}', space=vmem, size = 0x2000, scoped, tag = 'scratch operand']
  %s0 = inlined_call_operand.vmem [shape: s32[16,1], index: 0, kind: input, shape index: {}]
  %s1 = inlined_call_operand.vmem [shape: bf16[32,96], index: 1, kind: input, shape index: {}]
  %s2 = inlined_call_operand.vmem [shape: bf16[32,96], index: 2, kind: input, shape index: {}]
  %s3 = inlined_call_operand.vmem [shape: f32[1,96], index: 3, kind: input, shape index: {}]
  %s4 = inlined_call_operand.vmem [shape: bf16[32,96], index: 4, kind: input, shape index: {}]
  %s5 = inlined_call_operand.vmem [shape: bf16[32,96], index: 5, kind: input, shape index: {}]
  %s6 = inlined_call_operand.vmem [shape: f32[1,96], index: 6, kind: input, shape index: {}]
  %s7 = inlined_call_operand.vmem [shape: bf16[32,32], index: 7, kind: input, shape index: {}]
  %s8 = inlined_call_operand.vmem [shape: bf16[32,32], index: 8, kind: input, shape index: {}]
  %s9 = inlined_call_operand.vmem [shape: f32[1,32], index: 9, kind: input, shape index: {}]
  %s10 = inlined_call_operand.hbm [shape: s32[2,10], index: 10, kind: output, shape index: {0}]
  %s11 = inlined_call_operand.vmem [shape: s32[2,1], index: 11, kind: output, shape index: {1}]
  %12 = xla_tuple %s10, %s11
  %s13 = sld [smem:[#allocation0]]
  $region58: #{seq2seq_predict.1} parent=0
    _
  %s15 = ssub.s32 1, %s13
  %s16 = scalar_select 0, %s15, %s13
  $region1: #{seq2seq_predict.1} parent=0
    #allocation3 [shape = 'u8[1024]{0}', space=vmem, size = 0x400, scoped, tag = 'output window, operand 0, single buffered']
    #allocation4 [shape = 's32[1]{0}', space=sflag, size = 0x4, scoped, tag = 'scoped memory for seq2seq_predict.1']
    %17 = vsyncpa [#allocation4], 0
    // Predicated region
    $region2: #{seq2seq_predict.1} parent=1 // pred_check
      _
    $region3: #{seq2seq_predict.1} parent=1 // pred_check_branch
      %19 = sbr.rel (0) target = $region5
    $region4: #{seq2seq_predict.1} parent=1 // pred_region
      _
    $region5: #{seq2seq_predict.1} parent=1 // pred_fallthru
      _
    // Predicated region
    $region6: #{seq2seq_predict.1} parent=1 // pred_check
      _
    $region7: #{seq2seq_predict.1} parent=1 // pred_check_branch
      %21 = sbr.rel (0) target = $region9
    $region8: #{seq2seq_predict.1} parent=1 // pred_region
      _
    $region9: #{seq2seq_predict.1} parent=1 // pred_fallthru
      _
    // Predicated region
    $region10: #{seq2seq_predict.1} parent=1 // pred_check
      _
    $region11: #{seq2seq_predict.1} parent=1 // pred_check_branch
      %23 = sbr.rel (0) target = $region13
    $region12: #{seq2seq_predict.1} parent=1 // pred_region
      _
    $region13: #{seq2seq_predict.1} parent=1 // pred_fallthru
      _
    // Predicated region
    $region14: #{seq2seq_predict.1} parent=1 // pred_check
      _
    $region15: #{seq2seq_predict.1} parent=1 // pred_check_branch
      %25 = sbr.rel (0) target = $region17
    $region16: #{seq2seq_predict.1} parent=1 // pred_region
      _
    $region17: #{seq2seq_predict.1} parent=1 // pred_fallthru
      _
    // Predicated region
    $region18: #{seq2seq_predict.1} parent=1 // pred_check
      _
    $region19: #{seq2seq_predict.1} parent=1 // pred_check_branch
      %27 = sbr.rel (0) target = $region21
    $region20: #{seq2seq_predict.1} parent=1 // pred_region
      _
    $region21: #{seq2seq_predict.1} parent=1 // pred_fallthru
      _
    // Predicated region
    $region22: #{seq2seq_predict.1} parent=1 // pred_check
      _
    $region23: #{seq2seq_predict.1} parent=1 // pred_check_branch
      %29 = sbr.rel (0) target = $region25
    $region24: #{seq2seq_predict.1} parent=1 // pred_region
      _
    $region25: #{seq2seq_predict.1} parent=1 // pred_fallthru
      _
    // Predicated region
    $region26: #{seq2seq_predict.1} parent=1 // pred_check
      _
    $region27: #{seq2seq_predict.1} parent=1 // pred_check_branch
      %31 = sbr.rel (0) target = $region29
    $region28: #{seq2seq_predict.1} parent=1 // pred_region
      _
    $region29: #{seq2seq_predict.1} parent=1 // pred_fallthru
      _
    // Predicated region
    $region30: #{seq2seq_predict.1} parent=1 // pred_check
      _
    $region31: #{seq2seq_predict.1} parent=1 // pred_check_branch
      %33 = sbr.rel (0) target = $region33
    $region32: #{seq2seq_predict.1} parent=1 // pred_region
      _
    $region33: #{seq2seq_predict.1} parent=1 // pred_fallthru
      _
    // Predicated region
    $region34: #{seq2seq_predict.1} parent=1 // pred_check
      _
    $region35: #{seq2seq_predict.1} parent=1 // pred_check_branch
      %35 = sbr.rel (0) target = $region37
    $region36: #{seq2seq_predict.1} parent=1 // pred_region
      _
    $region37: #{seq2seq_predict.1} parent=1 // pred_fallthru
      _
    // Predicated region
    $region38: #{seq2seq_predict.1} parent=1 // pred_check
      _
    $region39: #{seq2seq_predict.1} parent=1 // pred_check_branch
      %37 = sbr.rel (0) target = $region41
    $region40: #{seq2seq_predict.1} parent=1 // pred_region
      _
    $region41: #{seq2seq_predict.1} parent=1 // pred_fallthru
      _
    %v39 = vld [vmem:[%s2] sm:$0xf]
    %v40 = vld [vmem:[%s2 + $0x4] sm:$0xf]
    %v41 = vld [vmem:[%s2 + $0x8] sm:$0xf]
    %v42 = vld [vmem:[%s2 + $0xc] sm:$0xf]
    %v43 = vld [vmem:[%s3] sm:$0x1]
    %v44 = vld [vmem:[%s4] sm:$0xf]
    %v45 = vld [vmem:[%s4 + $0x4] sm:$0xf]
    %v46 = vld [vmem:[%s4 + $0x8] sm:$0xf]
    %v47 = vld [vmem:[%s4 + $0xc] sm:$0xf]
    %v48 = vld [vmem:[%s5] sm:$0xf]
    %v49 = vld [vmem:[%s5 + $0x4] sm:$0xf]
    %v50 = vld [vmem:[%s5 + $0x8] sm:$0xf]
    %v51 = vld [vmem:[%s5 + $0xc] sm:$0xf]
    %v52 = vld [vmem:[%s6] sm:$0x1]
    %v53 = vld [vmem:[%s7] sm:$0xf]
    %v54 = vld [vmem:[%s7 + $0x4] sm:$0xf]
    %v55 = vld [vmem:[%s7 + $0x8] sm:$0xf]
    %v56 = vld [vmem:[%s7 + $0xc] sm:$0xf]
    %v57 = vld [vmem:[%s8] sm:$0xf]
    %v58 = vld [vmem:[%s8 + $0x4] sm:$0xf]
    %v59 = vld [vmem:[%s8 + $0x8] sm:$0xf]
    %v60 = vld [vmem:[%s8 + $0xc] sm:$0xf]
    %v61 = vld [vmem:[%s9] sm:$0x1]
    %v62 = vlaneseq
    %v63 = vand.u32 %v62, 127
    %v64 = vld [vmem:[%s0] sm:$0xff]
    %v65 = vld [vmem:[%s0 + $0x8] sm:$0xff]
    %66 = vset.pattern.permute.xlu0 0
    %67 = vperm.xlu0 %66, %v64
    %v68 = vpop.permute.xlu0 %67
    %69 = vset.pattern.permute.xlu0 0
    %70 = vperm.xlu0 %69, %v65
    %v71 = vpop.permute.xlu0 %70
    %vm72 = vcmp.eq.s32.totalorder %v68, %v63
    %vm73 = vcmp.eq.s32.totalorder %v71, %v63
    %v74 = vsel %vm72, 1, 0
    %v75 = vsel %vm73, 1, 0
    %v76 = vcvt.s32.f32 %v74
    %v77 = vcvt.s32.f32 %v75
    %v78 = vpack.c.bf16 %v77, %v76
    %v79 = vld [vmem:[%s1] sm:$0xf]
    %v80 = vld [vmem:[%s1 + $0x4] sm:$0xf]
    %v81 = vld [vmem:[%s1 + $0x8] sm:$0xf]
    %v82 = vld [vmem:[%s1 + $0xc] sm:$0xf]
    %v87 = vunpack.c.l.b16 %v79
    %v88 = vunpack.c.l.b16 %v80
    %v89 = vunpack.c.l.b16 %v81
    %v90 = vunpack.c.l.b16 %v82
    %v91 = vpack.c.b16 %v88, %v87
    %v92 = vpack.c.b16 %v90, %v89
    %vm95 = vcmask 261120
    %v97 = vsel %vm95, %v78, 0
    %99 = vmatprep.subr.bf16.mxu0 0
    %100 = vmatpush1.bf16.msra.mxu0 %v91
    %101 = vmatprep.subr.bf16.mxu0 0
    %102 = vmatpush1.bf16.msra.mxu0 %v92
    %103 = vmatprep.subr.bf16.mxu0 0
    %104 = vmatpush1.bf16.msra.mxu0 0
    %105 = vmatprep.subr.bf16.mxu0 0
    %106 = vmatpush1.bf16.msra.mxu0 0
    %107 = vmatprep.subr.bf16.mxu0 0
    %108 = vmatpush1.bf16.msra.mxu0 0
    %109 = vmatprep.subr.bf16.mxu0 0
    %110 = vmatpush1.bf16.msra.mxu0 0
    %111 = vmatprep.subr.bf16.mxu0 0
    %112 = vmatpush1.bf16.msra.mxu0 0
    %113 = vmatprep.subr.bf16.mxu0 0
    %114 = vmatpush1.bf16.msra.mxu0 0
    %115 = vmatprep.subr.bf16.mxu0 0
    %116 = vmatpush1.bf16.msra.mxu0 0
    %117 = vmatprep.subr.bf16.mxu0 0
    %118 = vmatpush1.bf16.msra.mxu0 0
    %119 = vmatprep.subr.bf16.mxu0 0
    %120 = vmatpush1.bf16.msra.mxu0 0
    %121 = vmatprep.subr.bf16.mxu0 0
    %122 = vmatpush1.bf16.msra.mxu0 0
    %123 = vmatprep.subr.bf16.mxu0 0
    %124 = vmatpush1.bf16.msra.mxu0 0
    %125 = vmatprep.subr.bf16.mxu0 0
    %126 = vmatpush1.bf16.msra.mxu0 0
    %127 = vmatprep.subr.bf16.mxu0 0
    %128 = vmatpush1.bf16.msra.mxu0 0
    %129 = vmatprep.subr.bf16.mxu0 0
    %130 = vmatpush1.bf16.msra.mxu0 0
    %131 = vmatprep.mubr.bf16.mxu0 0
    %132 = vmatmul.mubr.bf16.gmra.mrb[0].mxu0 %v97
    %v133 = vpop.f32.mrb[0].mxu0
    %v134 = vadd.f32 0.0, %v133
    %v135 = vpop.f32.mrb[0].mxu0
    %v136 = vpop.f32.mrb[0].mxu0
    %v137 = vadd.f32 0.0, %v136
    %v138 = vpop.f32.mrb[0].mxu0
    %139 = vdwg.mxu0
    %v141 = vlaneseq
    %v142 = vshrl.u32 %v141, 7
    %v143 = vsub.s32 0, %v142
    %v144 = vrot.slane %v43, %v143
    %v150 = vunpack.c.l.b16 %v39
    %v151 = vunpack.c.l.b16 %v40
    %v152 = vunpack.c.l.b16 %v41
    %v153 = vunpack.c.l.b16 %v42
    %v154 = vpack.c.b16 %v151, %v150
    %v155 = vpack.c.b16 %v153, %v152
    %v159 = vsel %vm95, 0, 0
    %161 = vmatprep.subr.bf16.mxu0 0
    %162 = vmatpush1.bf16.msra.mxu0 %v154
    %163 = vmatprep.subr.bf16.mxu0 0
    %164 = vmatpush1.bf16.msra.mxu0 %v155
    %165 = vmatprep.subr.bf16.mxu0 0
    %166 = vmatpush1.bf16.msra.mxu0 0
    %167 = vmatprep.subr.bf16.mxu0 0
    %168 = vmatpush1.bf16.msra.mxu0 0
    %169 = vmatprep.subr.bf16.mxu0 0
    %170 = vmatpush1.bf16.msra.mxu0 0
    %171 = vmatprep.subr.bf16.mxu0 0
    %172 = vmatpush1.bf16.msra.mxu0 0
    %173 = vmatprep.subr.bf16.mxu0 0
    %174 = vmatpush1.bf16.msra.mxu0 0
    %175 = vmatprep.subr.bf16.mxu0 0
    %176 = vmatpush1.bf16.msra.mxu0 0
    %177 = vmatprep.subr.bf16.mxu0 0
    %178 = vmatpush1.bf16.msra.mxu0 0
    %179 = vmatprep.subr.bf16.mxu0 0
    %180 = vmatpush1.bf16.msra.mxu0 0
    %181 = vmatprep.subr.bf16.mxu0 0
    %182 = vmatpush1.bf16.msra.mxu0 0
    %183 = vmatprep.subr.bf16.mxu0 0
    %184 = vmatpush1.bf16.msra.mxu0 0
    %185 = vmatprep.subr.bf16.mxu0 0
    %186 = vmatpush1.bf16.msra.mxu0 0
    %187 = vmatprep.subr.bf16.mxu0 0
    %188 = vmatpush1.bf16.msra.mxu0 0
    %189 = vmatprep.subr.bf16.mxu0 0
    %190 = vmatpush1.bf16.msra.mxu0 0
    %191 = vmatprep.subr.bf16.mxu0 0
    %192 = vmatpush1.bf16.msra.mxu0 0
    %193 = vmatprep.mubr.bf16.mxu0 0
    %194 = vmatmul.mubr.bf16.gmra.mrb[0].mxu0 %v159
    %v195 = vpop.f32.mrb[0].mxu0
    %v196 = vadd.f32 %v144, %v195
    %v197 = vpop.f32.mrb[0].mxu0
    %v198 = vpop.f32.mrb[0].mxu0
    %v199 = vpop.f32.mrb[0].mxu0
    %200 = vdwg.mxu0
    %v201 = vadd.f32 %v134, %v196
    %v202 = vxor.u32 %v201, 2147483648
    %v203 = vmul.f32 %v202, 1.442695
    %v204 = vpow.pop %v203
    %v205 = vadd.f32 %v204, 1.0
    %v206 = vrcp.pop %v205
    %v207 = vmul.f32 1.0, %v206
    %209 = vrot.lane.b32.xlu0 %v196, 64
    %v210 = vpop.permute.xlu0 %209
    %v212 = vmul.f32 %v207, %v210
    %214 = vrot.lane.b32.xlu0 %v212, 64
    %v215 = vpop.permute.xlu0 %214
    %v217 = vadd.f32 %v134, %v215
    %v218 = vtanh.pop %v217
    %v219 = vsub.f32 1.0, %v207
    %221 = vrot.lane.b32.xlu0 %v218, 96
    %v222 = vpop.permute.xlu0 %221
    %v224 = vmul.f32 %v219, %v222
    %v225 = vmul.f32 %v207, 0.0
    %v226 = vadd.f32 %v224, %v225
    %v229 = vunpack.c.l.s4 1966171168
    %v230 = vunpack.c.0.s8 %v229
    %v231 = vlaneseq
    %v232 = vshrl.u32 %v231, 7
    %v233 = vsub.s32 %v230, %v232
    %v234 = vrot.slane %v226, %v233
    %v235 = vcombine.high %v234, %v234
    %v237 = vunpack.c.l.s4 1966171168
    %v238 = vunpack.c.0.s8 %v237
    %v239 = vlaneseq
    %v240 = vshrl.u32 %v239, 7
    %v241 = vsub.s32 %v238, %v240
    %v242 = vrot.slane %v234, %v241
    %v244 = vunpack.c.l.s4 1966171168
    %v245 = vunpack.c.0.s8 %v244
    %v246 = vlaneseq
    %v247 = vshrl.u32 %v246, 7
    %v248 = vsub.s32 %v245, %v247
    %v249 = vrot.slane %v235, %v248
    %v250 = vlaneseq
    %v251 = vshrl.u32 %v250, 7
    %v252 = vsub.s32 0, %v251
    %v253 = vrot.slane %v242, %v252
    %v254 = vlaneseq
    %v255 = vshrl.u32 %v254, 7
    %v256 = vsub.s32 0, %v255
    %v257 = vrot.slane %v249, %v256
    %258 = vrot.lane.b32.xlu0 %v253, 96
    %v259 = vpop.permute.xlu0 %258
    %260 = vrot.lane.b32.xlu0 %v257, 96
    %v261 = vpop.permute.xlu0 %260
    %vm264 = vcmask 253952
    %265 = vst.msk [vmem:[#allocation2] sm:$0x1] %vm264, %v259
    %266 = vst.msk [vmem:[#allocation2 + $0x8] sm:$0x1] %vm264, %v261
    %v267 = vpack.c.bf16 %v226, %v226
    %269 = vrot.lane.b32.xlu0 %v267, 96
    %v270 = vpop.permute.xlu0 %269
    %v272 = vsel %vm95, %v270, 0
    %274 = vmatprep.subr.bf16.mxu0 0
    %275 = vmatpush1.bf16.msra.mxu0 %v154
    %276 = vmatprep.subr.bf16.mxu0 0
    %277 = vmatpush1.bf16.msra.mxu0 %v155
    %278 = vmatprep.subr.bf16.mxu0 0
    %279 = vmatpush1.bf16.msra.mxu0 0
    %280 = vmatprep.subr.bf16.mxu0 0
    %281 = vmatpush1.bf16.msra.mxu0 0
    %282 = vmatprep.subr.bf16.mxu0 0
    %283 = vmatpush1.bf16.msra.mxu0 0
    %284 = vmatprep.subr.bf16.mxu0 0
    %285 = vmatpush1.bf16.msra.mxu0 0
    %286 = vmatprep.subr.bf16.mxu0 0
    %287 = vmatpush1.bf16.msra.mxu0 0
    %288 = vmatprep.subr.bf16.mxu0 0
    %289 = vmatpush1.bf16.msra.mxu0 0
    %290 = vmatprep.subr.bf16.mxu0 0
    %291 = vmatpush1.bf16.msra.mxu0 0
    %292 = vmatprep.subr.bf16.mxu0 0
    %293 = vmatpush1.bf16.msra.mxu0 0
    %294 = vmatprep.subr.bf16.mxu0 0
    %295 = vmatpush1.bf16.msra.mxu0 0
    %296 = vmatprep.subr.bf16.mxu0 0
    %297 = vmatpush1.bf16.msra.mxu0 0
    %298 = vmatprep.subr.bf16.mxu0 0
    %299 = vmatpush1.bf16.msra.mxu0 0
    %300 = vmatprep.subr.bf16.mxu0 0
    %301 = vmatpush1.bf16.msra.mxu0 0
    %302 = vmatprep.subr.bf16.mxu0 0
    %303 = vmatpush1.bf16.msra.mxu0 0
    %304 = vmatprep.subr.bf16.mxu0 0
    %305 = vmatpush1.bf16.msra.mxu0 0
    %306 = vmatprep.mubr.bf16.mxu0 0
    %307 = vmatmul.mubr.bf16.gmra.mrb[0].mxu0 %v272
    %v308 = vpop.f32.mrb[0].mxu0
    %v309 = vadd.f32 %v144, %v308
    %v310 = vpop.f32.mrb[0].mxu0
    %v311 = vpop.f32.mrb[0].mxu0
    %v312 = vpop.f32.mrb[0].mxu0
    %313 = vdwg.mxu0
    %v315 = vrot.slane %v309, 6
    %v317 = vadd.f32 %v134, %v315
    %v318 = vxor.u32 %v317, 2147483648
    %v319 = vmul.f32 %v318, 1.442695
    %v320 = vpow.pop %v319
    %v321 = vadd.f32 %v320, 1.0
    %v322 = vrcp.pop %v321
    %v323 = vmul.f32 1.0, %v322
    %324 = vrot.lane.b32.xlu0 %v315, 64
    %v325 = vpop.permute.xlu0 %324
    %v327 = vmul.f32 %v323, %v325
    %329 = vrot.lane.b32.xlu0 %v327, 64
    %v330 = vpop.permute.xlu0 %329
    %v332 = vadd.f32 %v134, %v330
    %v333 = vtanh.pop %v332
    %v334 = vsub.f32 1.0, %v323
    %336 = vrot.lane.b32.xlu0 %v333, 96
    %v337 = vpop.permute.xlu0 %336
    %v339 = vmul.f32 %v334, %v337
    %v340 = vrot.slane %v226, 6
    %v342 = vmul.f32 %v323, %v340
    %v343 = vadd.f32 %v339, %v342
    %v346 = vunpack.c.l.s4 1966171168
    %v347 = vunpack.c.0.s8 %v346
    %v348 = vlaneseq
    %v349 = vshrl.u32 %v348, 7
    %v350 = vsub.s32 %v347, %v349
    %v351 = vrot.slane %v343, %v350
    %v352 = vcombine.high %v351, %v351
    %v354 = vunpack.c.l.s4 1966171168
    %v355 = vunpack.c.0.s8 %v354
    %v356 = vlaneseq
    %v357 = vshrl.u32 %v356, 7
    %v358 = vsub.s32 %v355, %v357
    %v359 = vrot.slane %v351, %v358
    %v361 = vunpack.c.l.s4 1966171168
    %v362 = vunpack.c.0.s8 %v361
    %v363 = vlaneseq
    %v364 = vshrl.u32 %v363, 7
    %v365 = vsub.s32 %v362, %v364
    %v366 = vrot.slane %v352, %v365
    %v367 = vcombine.high %v359, %v359
    %v368 = vcombine.high %v366, %v366
    %v369 = vlaneseq
    %v370 = vshrl.u32 %v369, 7
    %v371 = vsub.s32 0, %v370
    %v372 = vrot.slane %v367, %v371
    %v373 = vlaneseq
    %v374 = vshrl.u32 %v373, 7
    %v375 = vsub.s32 0, %v374
    %v376 = vrot.slane %v368, %v375
    %377 = vrot.lane.b32.xlu0 %v372, 96
    %v378 = vpop.permute.xlu0 %377
    %379 = vrot.lane.b32.xlu0 %v376, 96
    %v380 = vpop.permute.xlu0 %379
    %383 = vst.msk [vmem:[#allocation2 + $0x1] sm:$0x1] %vm264, %v378
    %384 = vst.msk [vmem:[#allocation2 + $0x9] sm:$0x1] %vm264, %v380
    %v385 = vpack.c.bf16 %v343, %v343
    %v387 = vrot.slane %v385, 1
    %388 = vrot.lane.b32.xlu0 %v387, 96
    %v389 = vpop.permute.xlu0 %388
    %v391 = vsel %vm95, %v389, 0
    %393 = vmatprep.subr.bf16.mxu0 0
    %394 = vmatpush1.bf16.msra.mxu0 %v154
    %395 = vmatprep.subr.bf16.mxu0 0
    %396 = vmatpush1.bf16.msra.mxu0 %v155
    %397 = vmatprep.subr.bf16.mxu0 0
    %398 = vmatpush1.bf16.msra.mxu0 0
    %399 = vmatprep.subr.bf16.mxu0 0
    %400 = vmatpush1.bf16.msra.mxu0 0
    %401 = vmatprep.subr.bf16.mxu0 0
    %402 = vmatpush1.bf16.msra.mxu0 0
    %403 = vmatprep.subr.bf16.mxu0 0
    %404 = vmatpush1.bf16.msra.mxu0 0
    %405 = vmatprep.subr.bf16.mxu0 0
    %406 = vmatpush1.bf16.msra.mxu0 0
    %407 = vmatprep.subr.bf16.mxu0 0
    %408 = vmatpush1.bf16.msra.mxu0 0
    %409 = vmatprep.subr.bf16.mxu0 0
    %410 = vmatpush1.bf16.msra.mxu0 0
    %411 = vmatprep.subr.bf16.mxu0 0
    %412 = vmatpush1.bf16.msra.mxu0 0
    %413 = vmatprep.subr.bf16.mxu0 0
    %414 = vmatpush1.bf16.msra.mxu0 0
    %415 = vmatprep.subr.bf16.mxu0 0
    %416 = vmatpush1.bf16.msra.mxu0 0
    %417 = vmatprep.subr.bf16.mxu0 0
    %418 = vmatpush1.bf16.msra.mxu0 0
    %419 = vmatprep.subr.bf16.mxu0 0
    %420 = vmatpush1.bf16.msra.mxu0 0
    %421 = vmatprep.subr.bf16.mxu0 0
    %422 = vmatpush1.bf16.msra.mxu0 0
    %423 = vmatprep.subr.bf16.mxu0 0
    %424 = vmatpush1.bf16.msra.mxu0 0
    %425 = vmatprep.mubr.bf16.mxu0 0
    %426 = vmatmul.mubr.bf16.gmra.mrb[0].mxu0 %v391
    %v427 = vpop.f32.mrb[0].mxu0
    %v428 = vadd.f32 %v144, %v427
    %v429 = vpop.f32.mrb[0].mxu0
    %v430 = vpop.f32.mrb[0].mxu0
    %v431 = vpop.f32.mrb[0].mxu0
    %432 = vdwg.mxu0
    %v434 = vrot.slane %v428, 4
    %v436 = vadd.f32 %v134, %v434
    %v437 = vxor.u32 %v436, 2147483648
    %v438 = vmul.f32 %v437, 1.442695
    %v439 = vpow.pop %v438
    %v440 = vadd.f32 %v439, 1.0
    %v441 = vrcp.pop %v440
    %v442 = vmul.f32 1.0, %v441
    %443 = vrot.lane.b32.xlu0 %v434, 64
    %v444 = vpop.permute.xlu0 %443
    %v446 = vmul.f32 %v442, %v444
    %448 = vrot.lane.b32.xlu0 %v446, 64
    %v449 = vpop.permute.xlu0 %448
    %v451 = vadd.f32 %v134, %v449
    %v452 = vtanh.pop %v451
    %v453 = vsub.f32 1.0, %v442
    %455 = vrot.lane.b32.xlu0 %v452, 96
    %v456 = vpop.permute.xlu0 %455
    %v458 = vmul.f32 %v453, %v456
    %v459 = vrot.slane %v343, 6
    %v461 = vmul.f32 %v442, %v459
    %v462 = vadd.f32 %v458, %v461
    %v464 = vcombine.high %v462, %v462
    %v466 = vunpack.c.l.s4 1966171168
    %v467 = vunpack.c.0.s8 %v466
    %v468 = vlaneseq
    %v469 = vshrl.u32 %v468, 7
    %v470 = vsub.s32 %v467, %v469
    %v471 = vrot.slane %v464, %v470
    %v472 = vcombine.high %v471, %v471
    %v474 = vunpack.c.l.s4 1966171168
    %v475 = vunpack.c.0.s8 %v474
    %v476 = vlaneseq
    %v477 = vshrl.u32 %v476, 7
    %v478 = vsub.s32 %v475, %v477
    %v479 = vrot.slane %v471, %v478
    %v481 = vunpack.c.l.s4 1966171168
    %v482 = vunpack.c.0.s8 %v481
    %v483 = vlaneseq
    %v484 = vshrl.u32 %v483, 7
    %v485 = vsub.s32 %v482, %v484
    %v486 = vrot.slane %v472, %v485
    %v487 = vlaneseq
    %v488 = vshrl.u32 %v487, 7
    %v489 = vsub.s32 0, %v488
    %v490 = vrot.slane %v479, %v489
    %v491 = vlaneseq
    %v492 = vshrl.u32 %v491, 7
    %v493 = vsub.s32 0, %v492
    %v494 = vrot.slane %v486, %v493
    %495 = vrot.lane.b32.xlu0 %v490, 96
    %v496 = vpop.permute.xlu0 %495
    %497 = vrot.lane.b32.xlu0 %v494, 96
    %v498 = vpop.permute.xlu0 %497
    %501 = vst.msk [vmem:[#allocation2 + $0x2] sm:$0x1] %vm264, %v496
    %502 = vst.msk [vmem:[#allocation2 + $0xa] sm:$0x1] %vm264, %v498
    %v503 = vpack.c.bf16 %v462, %v462
    %v505 = vrot.slane %v503, 2
    %506 = vrot.lane.b32.xlu0 %v505, 96
    %v507 = vpop.permute.xlu0 %506
    %v509 = vsel %vm95, %v507, 0
    %511 = vmatprep.subr.bf16.mxu0 0
    %512 = vmatpush1.bf16.msra.mxu0 %v154
    %513 = vmatprep.subr.bf16.mxu0 0
    %514 = vmatpush1.bf16.msra.mxu0 %v155
    %515 = vmatprep.subr.bf16.mxu0 0
    %516 = vmatpush1.bf16.msra.mxu0 0
    %517 = vmatprep.subr.bf16.mxu0 0
    %518 = vmatpush1.bf16.msra.mxu0 0
    %519 = vmatprep.subr.bf16.mxu0 0
    %520 = vmatpush1.bf16.msra.mxu0 0
    %521 = vmatprep.subr.bf16.mxu0 0
    %522 = vmatpush1.bf16.msra.mxu0 0
    %523 = vmatprep.subr.bf16.mxu0 0
    %524 = vmatpush1.bf16.msra.mxu0 0
    %525 = vmatprep.subr.bf16.mxu0 0
    %526 = vmatpush1.bf16.msra.mxu0 0
    %527 = vmatprep.subr.bf16.mxu0 0
    %528 = vmatpush1.bf16.msra.mxu0 0
    %529 = vmatprep.subr.bf16.mxu0 0
    %530 = vmatpush1.bf16.msra.mxu0 0
    %531 = vmatprep.subr.bf16.mxu0 0
    %532 = vmatpush1.bf16.msra.mxu0 0
    %533 = vmatprep.subr.bf16.mxu0 0
    %534 = vmatpush1.bf16.msra.mxu0 0
    %535 = vmatprep.subr.bf16.mxu0 0
    %536 = vmatpush1.bf16.msra.mxu0 0
    %537 = vmatprep.subr.bf16.mxu0 0
    %538 = vmatpush1.bf16.msra.mxu0 0
    %539 = vmatprep.subr.bf16.mxu0 0
    %540 = vmatpush1.bf16.msra.mxu0 0
    %541 = vmatprep.subr.bf16.mxu0 0
    %542 = vmatpush1.bf16.msra.mxu0 0
    %543 = vmatprep.mubr.bf16.mxu0 0
    %544 = vmatmul.mubr.bf16.gmra.mrb[0].mxu0 %v509
    %v545 = vpop.f32.mrb[0].mxu0
    %v546 = vadd.f32 %v144, %v545
    %v547 = vpop.f32.mrb[0].mxu0
    %v548 = vpop.f32.mrb[0].mxu0
    %v549 = vpop.f32.mrb[0].mxu0
    %550 = vdwg.mxu0
    %v552 = vrot.slane %v546, 2
    %v554 = vadd.f32 %v134, %v552
    %v555 = vxor.u32 %v554, 2147483648
    %v556 = vmul.f32 %v555, 1.442695
    %v557 = vpow.pop %v556
    %v558 = vadd.f32 %v557, 1.0
    %v559 = vrcp.pop %v558
    %v560 = vmul.f32 1.0, %v559
    %561 = vrot.lane.b32.xlu0 %v552, 64
    %v562 = vpop.permute.xlu0 %561
    %v564 = vmul.f32 %v560, %v562
    %566 = vrot.lane.b32.xlu0 %v564, 64
    %v567 = vpop.permute.xlu0 %566
    %v569 = vadd.f32 %v134, %v567
    %v570 = vtanh.pop %v569
    %v571 = vsub.f32 1.0, %v560
    %573 = vrot.lane.b32.xlu0 %v570, 96
    %v574 = vpop.permute.xlu0 %573
    %v576 = vmul.f32 %v571, %v574
    %v577 = vrot.slane %v462, 6
    %v579 = vmul.f32 %v560, %v577
    %v580 = vadd.f32 %v576, %v579
    %v582 = vcombine.high %v580, %v580
    %v584 = vunpack.c.l.s4 1966171168
    %v585 = vunpack.c.0.s8 %v584
    %v586 = vlaneseq
    %v587 = vshrl.u32 %v586, 7
    %v588 = vsub.s32 %v585, %v587
    %v589 = vrot.slane %v582, %v588
    %v590 = vcombine.high %v589, %v589
    %v592 = vunpack.c.l.s4 1966171168
    %v593 = vunpack.c.0.s8 %v592
    %v594 = vlaneseq
    %v595 = vshrl.u32 %v594, 7
    %v596 = vsub.s32 %v593, %v595
    %v597 = vrot.slane %v589, %v596
    %v599 = vunpack.c.l.s4 1966171168
    %v600 = vunpack.c.0.s8 %v599
    %v601 = vlaneseq
    %v602 = vshrl.u32 %v601, 7
    %v603 = vsub.s32 %v600, %v602
    %v604 = vrot.slane %v590, %v603
    %v605 = vcombine.high %v597, %v597
    %v606 = vcombine.high %v604, %v604
    %v607 = vlaneseq
    %v608 = vshrl.u32 %v607, 7
    %v609 = vsub.s32 0, %v608
    %v610 = vrot.slane %v605, %v609
    %v611 = vlaneseq
    %v612 = vshrl.u32 %v611, 7
    %v613 = vsub.s32 0, %v612
    %v614 = vrot.slane %v606, %v613
    %615 = vrot.lane.b32.xlu0 %v610, 96
    %v616 = vpop.permute.xlu0 %615
    %617 = vrot.lane.b32.xlu0 %v614, 96
    %v618 = vpop.permute.xlu0 %617
    %621 = vst.msk [vmem:[#allocation2 + $0x3] sm:$0x1] %vm264, %v616
    %622 = vst.msk [vmem:[#allocation2 + $0xb] sm:$0x1] %vm264, %v618
    %v623 = vpack.c.bf16 %v580, %v580
    %v625 = vrot.slane %v623, 3
    %626 = vrot.lane.b32.xlu0 %v625, 96
    %v627 = vpop.permute.xlu0 %626
    %v629 = vsel %vm95, %v627, 0
    %631 = vmatprep.subr.bf16.mxu0 0
    %632 = vmatpush1.bf16.msra.mxu0 %v154
    %633 = vmatprep.subr.bf16.mxu0 0
    %634 = vmatpush1.bf16.msra.mxu0 %v155
    %635 = vmatprep.subr.bf16.mxu0 0
    %636 = vmatpush1.bf16.msra.mxu0 0
    %637 = vmatprep.subr.bf16.mxu0 0
    %638 = vmatpush1.bf16.msra.mxu0 0
    %639 = vmatprep.subr.bf16.mxu0 0
    %640 = vmatpush1.bf16.msra.mxu0 0
    %641 = vmatprep.subr.bf16.mxu0 0
    %642 = vmatpush1.bf16.msra.mxu0 0
    %643 = vmatprep.subr.bf16.mxu0 0
    %644 = vmatpush1.bf16.msra.mxu0 0
    %645 = vmatprep.subr.bf16.mxu0 0
    %646 = vmatpush1.bf16.msra.mxu0 0
    %647 = vmatprep.subr.bf16.mxu0 0
    %648 = vmatpush1.bf16.msra.mxu0 0
    %649 = vmatprep.subr.bf16.mxu0 0
    %650 = vmatpush1.bf16.msra.mxu0 0
    %651 = vmatprep.subr.bf16.mxu0 0
    %652 = vmatpush1.bf16.msra.mxu0 0
    %653 = vmatprep.subr.bf16.mxu0 0
    %654 = vmatpush1.bf16.msra.mxu0 0
    %655 = vmatprep.subr.bf16.mxu0 0
    %656 = vmatpush1.bf16.msra.mxu0 0
    %657 = vmatprep.subr.bf16.mxu0 0
    %658 = vmatpush1.bf16.msra.mxu0 0
    %659 = vmatprep.subr.bf16.mxu0 0
    %660 = vmatpush1.bf16.msra.mxu0 0
    %661 = vmatprep.subr.bf16.mxu0 0
    %662 = vmatpush1.bf16.msra.mxu0 0
    %663 = vmatprep.mubr.bf16.mxu0 0
    %664 = vmatmul.mubr.bf16.gmra.mrb[0].mxu0 %v629
    %v665 = vpop.f32.mrb[0].mxu0
    %v666 = vadd.f32 %v144, %v665
    %v667 = vpop.f32.mrb[0].mxu0
    %v668 = vpop.f32.mrb[0].mxu0
    %v669 = vpop.f32.mrb[0].mxu0
    %670 = vdwg.mxu0
    %v671 = vadd.f32 %v137, %v666
    %v672 = vxor.u32 %v671, 2147483648
    %v673 = vmul.f32 %v672, 1.442695
    %v674 = vpow.pop %v673
    %v675 = vadd.f32 %v674, 1.0
    %v676 = vrcp.pop %v675
    %v677 = vmul.f32 1.0, %v676
    %679 = vrot.lane.b32.xlu0 %v666, 64
    %v680 = vpop.permute.xlu0 %679
    %v682 = vmul.f32 %v677, %v680
    %684 = vrot.lane.b32.xlu0 %v682, 64
    %v685 = vpop.permute.xlu0 %684
    %v687 = vadd.f32 %v137, %v685
    %v688 = vtanh.pop %v687
    %v689 = vsub.f32 1.0, %v677
    %691 = vrot.lane.b32.xlu0 %v688, 96
    %v692 = vpop.permute.xlu0 %691
    %v694 = vmul.f32 %v689, %v692
    %v695 = vrot.slane %v580, 6
    %v697 = vmul.f32 %v677, %v695
    %v698 = vadd.f32 %v694, %v697
    %v701 = vunpack.c.l.s4 1966171168
    %v702 = vunpack.c.0.s8 %v701
    %v703 = vlaneseq
    %v704 = vshrl.u32 %v703, 7
    %v705 = vsub.s32 %v702, %v704
    %v706 = vrot.slane %v698, %v705
    %v707 = vcombine.high %v706, %v706
    %v709 = vunpack.c.l.s4 1966171168
    %v710 = vunpack.c.0.s8 %v709
    %v711 = vlaneseq
    %v712 = vshrl.u32 %v711, 7
    %v713 = vsub.s32 %v710, %v712
    %v714 = vrot.slane %v706, %v713
    %v716 = vunpack.c.l.s4 1966171168
    %v717 = vunpack.c.0.s8 %v716
    %v718 = vlaneseq
    %v719 = vshrl.u32 %v718, 7
    %v720 = vsub.s32 %v717, %v719
    %v721 = vrot.slane %v707, %v720
    %v722 = vlaneseq
    %v723 = vshrl.u32 %v722, 7
    %v724 = vsub.s32 0, %v723
    %v725 = vrot.slane %v714, %v724
    %v726 = vlaneseq
    %v727 = vshrl.u32 %v726, 7
    %v728 = vsub.s32 0, %v727
    %v729 = vrot.slane %v721, %v728
    %730 = vrot.lane.b32.xlu0 %v725, 96
    %v731 = vpop.permute.xlu0 %730
    %732 = vrot.lane.b32.xlu0 %v729, 96
    %v733 = vpop.permute.xlu0 %732
    %736 = vst.msk [vmem:[#allocation2 + $0x4] sm:$0x1] %vm264, %v731
    %737 = vst.msk [vmem:[#allocation2 + $0xc] sm:$0x1] %vm264, %v733
    %v738 = vpack.c.bf16 %v698, %v698
    %740 = vrot.lane.b32.xlu0 %v738, 96
    %v741 = vpop.permute.xlu0 %740
    %v743 = vsel %vm95, %v741, 0
    %745 = vmatprep.subr.bf16.mxu0 0
    %746 = vmatpush1.bf16.msra.mxu0 %v154
    %747 = vmatprep.subr.bf16.mxu0 0
    %748 = vmatpush1.bf16.msra.mxu0 %v155
    %749 = vmatprep.subr.bf16.mxu0 0
    %750 = vmatpush1.bf16.msra.mxu0 0
    %751 = vmatprep.subr.bf16.mxu0 0
    %752 = vmatpush1.bf16.msra.mxu0 0
    %753 = vmatprep.subr.bf16.mxu0 0
    %754 = vmatpush1.bf16.msra.mxu0 0
    %755 = vmatprep.subr.bf16.mxu0 0
    %756 = vmatpush1.bf16.msra.mxu0 0
    %757 = vmatprep.subr.bf16.mxu0 0
    %758 = vmatpush1.bf16.msra.mxu0 0
    %759 = vmatprep.subr.bf16.mxu0 0
    %760 = vmatpush1.bf16.msra.mxu0 0
    %761 = vmatprep.subr.bf16.mxu0 0
    %762 = vmatpush1.bf16.msra.mxu0 0
    %763 = vmatprep.subr.bf16.mxu0 0
    %764 = vmatpush1.bf16.msra.mxu0 0
    %765 = vmatprep.subr.bf16.mxu0 0
    %766 = vmatpush1.bf16.msra.mxu0 0
    %767 = vmatprep.subr.bf16.mxu0 0
    %768 = vmatpush1.bf16.msra.mxu0 0
    %769 = vmatprep.subr.bf16.mxu0 0
    %770 = vmatpush1.bf16.msra.mxu0 0
    %771 = vmatprep.subr.bf16.mxu0 0
    %772 = vmatpush1.bf16.msra.mxu0 0
    %773 = vmatprep.subr.bf16.mxu0 0
    %774 = vmatpush1.bf16.msra.mxu0 0
    %775 = vmatprep.subr.bf16.mxu0 0
    %776 = vmatpush1.bf16.msra.mxu0 0
    %777 = vmatprep.mubr.bf16.mxu0 0
    %778 = vmatmul.mubr.bf16.gmra.mrb[0].mxu0 %v743
    %v779 = vpop.f32.mrb[0].mxu0
    %v780 = vadd.f32 %v144, %v779
    %v781 = vpop.f32.mrb[0].mxu0
    %v782 = vpop.f32.mrb[0].mxu0
    %v783 = vpop.f32.mrb[0].mxu0
    %784 = vdwg.mxu0
    %v786 = vrot.slane %v780, 6
    %v788 = vadd.f32 %v137, %v786
    %v789 = vxor.u32 %v788, 2147483648
    %v790 = vmul.f32 %v789, 1.442695
    %v791 = vpow.pop %v790
    %v792 = vadd.f32 %v791, 1.0
    %v793 = vrcp.pop %v792
    %v794 = vmul.f32 1.0, %v793
    %795 = vrot.lane.b32.xlu0 %v786, 64
    %v796 = vpop.permute.xlu0 %795
    %v798 = vmul.f32 %v794, %v796
    %800 = vrot.lane.b32.xlu0 %v798, 64
    %v801 = vpop.permute.xlu0 %800
    %v803 = vadd.f32 %v137, %v801
    %v804 = vtanh.pop %v803
    %v805 = vsub.f32 1.0, %v794
    %807 = vrot.lane.b32.xlu0 %v804, 96
    %v808 = vpop.permute.xlu0 %807
    %v810 = vmul.f32 %v805, %v808
    %v811 = vrot.slane %v698, 6
    %v813 = vmul.f32 %v794, %v811
    %v814 = vadd.f32 %v810, %v813
    %v817 = vunpack.c.l.s4 1966171168
    %v818 = vunpack.c.0.s8 %v817
    %v819 = vlaneseq
    %v820 = vshrl.u32 %v819, 7
    %v821 = vsub.s32 %v818, %v820
    %v822 = vrot.slane %v814, %v821
    %v823 = vcombine.high %v822, %v822
    %v825 = vunpack.c.l.s4 1966171168
    %v826 = vunpack.c.0.s8 %v825
    %v827 = vlaneseq
    %v828 = vshrl.u32 %v827, 7
    %v829 = vsub.s32 %v826, %v828
    %v830 = vrot.slane %v822, %v829
    %v832 = vunpack.c.l.s4 1966171168
    %v833 = vunpack.c.0.s8 %v832
    %v834 = vlaneseq
    %v835 = vshrl.u32 %v834, 7
    %v836 = vsub.s32 %v833, %v835
    %v837 = vrot.slane %v823, %v836
    %v838 = vcombine.high %v830, %v830
    %v839 = vcombine.high %v837, %v837
    %v840 = vlaneseq
    %v841 = vshrl.u32 %v840, 7
    %v842 = vsub.s32 0, %v841
    %v843 = vrot.slane %v838, %v842
    %v844 = vlaneseq
    %v845 = vshrl.u32 %v844, 7
    %v846 = vsub.s32 0, %v845
    %v847 = vrot.slane %v839, %v846
    %848 = vrot.lane.b32.xlu0 %v843, 96
    %v849 = vpop.permute.xlu0 %848
    %850 = vrot.lane.b32.xlu0 %v847, 96
    %v851 = vpop.permute.xlu0 %850
    %854 = vst.msk [vmem:[#allocation2 + $0x5] sm:$0x1] %vm264, %v849
    %855 = vst.msk [vmem:[#allocation2 + $0xd] sm:$0x1] %vm264, %v851
    %v856 = vpack.c.bf16 %v814, %v814
    %v858 = vrot.slane %v856, 1
    %859 = vrot.lane.b32.xlu0 %v858, 96
    %v860 = vpop.permute.xlu0 %859
    %v862 = vsel %vm95, %v860, 0
    %864 = vmatprep.subr.bf16.mxu0 0
    %865 = vmatpush1.bf16.msra.mxu0 %v154
    %866 = vmatprep.subr.bf16.mxu0 0
    %867 = vmatpush1.bf16.msra.mxu0 %v155
    %868 = vmatprep.subr.bf16.mxu0 0
    %869 = vmatpush1.bf16.msra.mxu0 0
    %870 = vmatprep.subr.bf16.mxu0 0
    %871 = vmatpush1.bf16.msra.mxu0 0
    %872 = vmatprep.subr.bf16.mxu0 0
    %873 = vmatpush1.bf16.msra.mxu0 0
    %874 = vmatprep.subr.bf16.mxu0 0
    %875 = vmatpush1.bf16.msra.mxu0 0
    %876 = vmatprep.subr.bf16.mxu0 0
    %877 = vmatpush1.bf16.msra.mxu0 0
    %878 = vmatprep.subr.bf16.mxu0 0
    %879 = vmatpush1.bf16.msra.mxu0 0
    %880 = vmatprep.subr.bf16.mxu0 0
    %881 = vmatpush1.bf16.msra.mxu0 0
    %882 = vmatprep.subr.bf16.mxu0 0
    %883 = vmatpush1.bf16.msra.mxu0 0
    %884 = vmatprep.subr.bf16.mxu0 0
    %885 = vmatpush1.bf16.msra.mxu0 0
    %886 = vmatprep.subr.bf16.mxu0 0
    %887 = vmatpush1.bf16.msra.mxu0 0
    %888 = vmatprep.subr.bf16.mxu0 0
    %889 = vmatpush1.bf16.msra.mxu0 0
    %890 = vmatprep.subr.bf16.mxu0 0
    %891 = vmatpush1.bf16.msra.mxu0 0
    %892 = vmatprep.subr.bf16.mxu0 0
    %893 = vmatpush1.bf16.msra.mxu0 0
    %894 = vmatprep.subr.bf16.mxu0 0
    %895 = vmatpush1.bf16.msra.mxu0 0
    %896 = vmatprep.mubr.bf16.mxu0 0
    %897 = vmatmul.mubr.bf16.gmra.mrb[0].mxu0 %v862
    %v898 = vpop.f32.mrb[0].mxu0
    %v899 = vadd.f32 %v144, %v898
    %v900 = vpop.f32.mrb[0].mxu0
    %v901 = vpop.f32.mrb[0].mxu0
    %v902 = vpop.f32.mrb[0].mxu0
    %903 = vdwg.mxu0
    %v905 = vrot.slane %v899, 4
    %v907 = vadd.f32 %v137, %v905
    %v908 = vxor.u32 %v907, 2147483648
    %v909 = vmul.f32 %v908, 1.442695
    %v910 = vpow.pop %v909
    %v911 = vadd.f32 %v910, 1.0
    %v912 = vrcp.pop %v911
    %v913 = vmul.f32 1.0, %v912
    %914 = vrot.lane.b32.xlu0 %v905, 64
    %v915 = vpop.permute.xlu0 %914
    %v917 = vmul.f32 %v913, %v915
    %919 = vrot.lane.b32.xlu0 %v917, 64
    %v920 = vpop.permute.xlu0 %919
    %v922 = vadd.f32 %v137, %v920
    %v923 = vtanh.pop %v922
    %v924 = vsub.f32 1.0, %v913
    %926 = vrot.lane.b32.xlu0 %v923, 96
    %v927 = vpop.permute.xlu0 %926
    %v929 = vmul.f32 %v924, %v927
    %v930 = vrot.slane %v814, 6
    %v932 = vmul.f32 %v913, %v930
    %v933 = vadd.f32 %v929, %v932
    %v935 = vcombine.high %v933, %v933
    %v937 = vunpack.c.l.s4 1966171168
    %v938 = vunpack.c.0.s8 %v937
    %v939 = vlaneseq
    %v940 = vshrl.u32 %v939, 7
    %v941 = vsub.s32 %v938, %v940
    %v942 = vrot.slane %v935, %v941
    %v943 = vcombine.high %v942, %v942
    %v945 = vunpack.c.l.s4 1966171168
    %v946 = vunpack.c.0.s8 %v945
    %v947 = vlaneseq
    %v948 = vshrl.u32 %v947, 7
    %v949 = vsub.s32 %v946, %v948
    %v950 = vrot.slane %v942, %v949
    %v952 = vunpack.c.l.s4 1966171168
    %v953 = vunpack.c.0.s8 %v952
    %v954 = vlaneseq
    %v955 = vshrl.u32 %v954, 7
    %v956 = vsub.s32 %v953, %v955
    %v957 = vrot.slane %v943, %v956
    %v958 = vlaneseq
    %v959 = vshrl.u32 %v958, 7
    %v960 = vsub.s32 0, %v959
    %v961 = vrot.slane %v950, %v960
    %v962 = vlaneseq
    %v963 = vshrl.u32 %v962, 7
    %v964 = vsub.s32 0, %v963
    %v965 = vrot.slane %v957, %v964
    %966 = vrot.lane.b32.xlu0 %v961, 96
    %v967 = vpop.permute.xlu0 %966
    %968 = vrot.lane.b32.xlu0 %v965, 96
    %v969 = vpop.permute.xlu0 %968
    %972 = vst.msk [vmem:[#allocation2 + $0x6] sm:$0x1] %vm264, %v967
    %973 = vst.msk [vmem:[#allocation2 + $0xe] sm:$0x1] %vm264, %v969
    %v974 = vpack.c.bf16 %v933, %v933
    %v976 = vrot.slane %v974, 2
    %977 = vrot.lane.b32.xlu0 %v976, 96
    %v978 = vpop.permute.xlu0 %977
    %v980 = vsel %vm95, %v978, 0
    %982 = vmatprep.subr.bf16.mxu0 0
    %983 = vmatpush1.bf16.msra.mxu0 %v154
    %984 = vmatprep.subr.bf16.mxu0 0
    %985 = vmatpush1.bf16.msra.mxu0 %v155
    %986 = vmatprep.subr.bf16.mxu0 0
    %987 = vmatpush1.bf16.msra.mxu0 0
    %988 = vmatprep.subr.bf16.mxu0 0
    %989 = vmatpush1.bf16.msra.mxu0 0
    %990 = vmatprep.subr.bf16.mxu0 0
    %991 = vmatpush1.bf16.msra.mxu0 0
    %992 = vmatprep.subr.bf16.mxu0 0
    %993 = vmatpush1.bf16.msra.mxu0 0
    %994 = vmatprep.subr.bf16.mxu0 0
    %995 = vmatpush1.bf16.msra.mxu0 0
    %996 = vmatprep.subr.bf16.mxu0 0
    %997 = vmatpush1.bf16.msra.mxu0 0
    %998 = vmatprep.subr.bf16.mxu0 0
    %999 = vmatpush1.bf16.msra.mxu0 0
    %1000 = vmatprep.subr.bf16.mxu0 0
    %1001 = vmatpush1.bf16.msra.mxu0 0
    %1002 = vmatprep.subr.bf16.mxu0 0
    %1003 = vmatpush1.bf16.msra.mxu0 0
    %1004 = vmatprep.subr.bf16.mxu0 0
    %1005 = vmatpush1.bf16.msra.mxu0 0
    %1006 = vmatprep.subr.bf16.mxu0 0
    %1007 = vmatpush1.bf16.msra.mxu0 0
    %1008 = vmatprep.subr.bf16.mxu0 0
    %1009 = vmatpush1.bf16.msra.mxu0 0
    %1010 = vmatprep.subr.bf16.mxu0 0
    %1011 = vmatpush1.bf16.msra.mxu0 0
    %1012 = vmatprep.subr.bf16.mxu0 0
    %1013 = vmatpush1.bf16.msra.mxu0 0
    %1014 = vmatprep.mubr.bf16.mxu0 0
    %1015 = vmatmul.mubr.bf16.gmra.mrb[0].mxu0 %v980
    %v1016 = vpop.f32.mrb[0].mxu0
    %v1017 = vadd.f32 %v144, %v1016
    %v1018 = vpop.f32.mrb[0].mxu0
    %v1019 = vpop.f32.mrb[0].mxu0
    %v1020 = vpop.f32.mrb[0].mxu0
    %1021 = vdwg.mxu0
    %v1023 = vrot.slane %v1017, 2
    %v1025 = vadd.f32 %v137, %v1023
    %v1026 = vxor.u32 %v1025, 2147483648
    %v1027 = vmul.f32 %v1026, 1.442695
    %v1028 = vpow.pop %v1027
    %v1029 = vadd.f32 %v1028, 1.0
    %v1030 = vrcp.pop %v1029
    %v1031 = vmul.f32 1.0, %v1030
    %1032 = vrot.lane.b32.xlu0 %v1023, 64
    %v1033 = vpop.permute.xlu0 %1032
    %v1035 = vmul.f32 %v1031, %v1033
    %1037 = vrot.lane.b32.xlu0 %v1035, 64
    %v1038 = vpop.permute.xlu0 %1037
    %v1040 = vadd.f32 %v137, %v1038
    %v1041 = vtanh.pop %v1040
    %v1042 = vsub.f32 1.0, %v1031
    %1044 = vrot.lane.b32.xlu0 %v1041, 96
    %v1045 = vpop.permute.xlu0 %1044
    %v1047 = vmul.f32 %v1042, %v1045
    %v1048 = vrot.slane %v933, 6
    %v1050 = vmul.f32 %v1031, %v1048
    %v1051 = vadd.f32 %v1047, %v1050
    %v1053 = vcombine.high %v1051, %v1051
    %v1055 = vunpack.c.l.s4 1966171168
    %v1056 = vunpack.c.0.s8 %v1055
    %v1057 = vlaneseq
    %v1058 = vshrl.u32 %v1057, 7
    %v1059 = vsub.s32 %v1056, %v1058
    %v1060 = vrot.slane %v1053, %v1059
    %v1061 = vcombine.high %v1060, %v1060
    %v1063 = vunpack.c.l.s4 1966171168
    %v1064 = vunpack.c.0.s8 %v1063
    %v1065 = vlaneseq
    %v1066 = vshrl.u32 %v1065, 7
    %v1067 = vsub.s32 %v1064, %v1066
    %v1068 = vrot.slane %v1060, %v1067
    %v1070 = vunpack.c.l.s4 1966171168
    %v1071 = vunpack.c.0.s8 %v1070
    %v1072 = vlaneseq
    %v1073 = vshrl.u32 %v1072, 7
    %v1074 = vsub.s32 %v1071, %v1073
    %v1075 = vrot.slane %v1061, %v1074
    %v1076 = vcombine.high %v1068, %v1068
    %v1077 = vcombine.high %v1075, %v1075
    %v1078 = vlaneseq
    %v1079 = vshrl.u32 %v1078, 7
    %v1080 = vsub.s32 0, %v1079
    %v1081 = vrot.slane %v1076, %v1080
    %v1082 = vlaneseq
    %v1083 = vshrl.u32 %v1082, 7
    %v1084 = vsub.s32 0, %v1083
    %v1085 = vrot.slane %v1077, %v1084
    %1086 = vrot.lane.b32.xlu0 %v1081, 96
    %v1087 = vpop.permute.xlu0 %1086
    %1088 = vrot.lane.b32.xlu0 %v1085, 96
    %v1089 = vpop.permute.xlu0 %1088
    %1092 = vst.msk [vmem:[#allocation2 + $0x7] sm:$0x1] %vm264, %v1087
    %1093 = vst.msk [vmem:[#allocation2 + $0xf] sm:$0x1] %vm264, %v1089
    %v1094 = vld [vmem:[#allocation2] sm:$0xff]
    %v1095 = vld [vmem:[#allocation2 + $0x8] sm:$0xff]
    %vm1096 = vcmp.eq.s32.totalorder %v63, 1
    %v1097 = vsel %vm1096, 1, 0
    %v1098 = vcvt.s32.f32 %v1097
    %v1099 = vpack.c.bf16 %v1098, %v1098
    %v1104 = vunpack.c.l.b16 %v44
    %v1105 = vunpack.c.l.b16 %v45
    %v1106 = vunpack.c.l.b16 %v46
    %v1107 = vunpack.c.l.b16 %v47
    %v1108 = vpack.c.b16 %v1105, %v1104
    %v1109 = vpack.c.b16 %v1107, %v1106
    %v1113 = vsel %vm95, %v1099, 0
    %1115 = vmatprep.subr.bf16.mxu0 0
    %1116 = vmatpush1.bf16.msra.mxu0 %v1108
    %1117 = vmatprep.subr.bf16.mxu0 0
    %1118 = vmatpush1.bf16.msra.mxu0 %v1109
    %1119 = vmatprep.subr.bf16.mxu0 0
    %1120 = vmatpush1.bf16.msra.mxu0 0
    %1121 = vmatprep.subr.bf16.mxu0 0
    %1122 = vmatpush1.bf16.msra.mxu0 0
    %1123 = vmatprep.subr.bf16.mxu0 0
    %1124 = vmatpush1.bf16.msra.mxu0 0
    %1125 = vmatprep.subr.bf16.mxu0 0
    %1126 = vmatpush1.bf16.msra.mxu0 0
    %1127 = vmatprep.subr.bf16.mxu0 0
    %1128 = vmatpush1.bf16.msra.mxu0 0
    %1129 = vmatprep.subr.bf16.mxu0 0
    %1130 = vmatpush1.bf16.msra.mxu0 0
    %1131 = vmatprep.subr.bf16.mxu0 0
    %1132 = vmatpush1.bf16.msra.mxu0 0
    %1133 = vmatprep.subr.bf16.mxu0 0
    %1134 = vmatpush1.bf16.msra.mxu0 0
    %1135 = vmatprep.subr.bf16.mxu0 0
    %1136 = vmatpush1.bf16.msra.mxu0 0
    %1137 = vmatprep.subr.bf16.mxu0 0
    %1138 = vmatpush1.bf16.msra.mxu0 0
    %1139 = vmatprep.subr.bf16.mxu0 0
    %1140 = vmatpush1.bf16.msra.mxu0 0
    %1141 = vmatprep.subr.bf16.mxu0 0
    %1142 = vmatpush1.bf16.msra.mxu0 0
    %1143 = vmatprep.subr.bf16.mxu0 0
    %1144 = vmatpush1.bf16.msra.mxu0 0
    %1145 = vmatprep.subr.bf16.mxu0 0
    %1146 = vmatpush1.bf16.msra.mxu0 0
    %1147 = vmatprep.mubr.bf16.mxu0 0
    %1148 = vmatmul.mubr.bf16.gmra.mrb[0].mxu0 %v1113
    %v1149 = vpop.f32.mrb[0].mxu0
    %v1150 = vadd.f32 0.0, %v1149
    %v1151 = vpop.f32.mrb[0].mxu0
    %v1152 = vpop.f32.mrb[0].mxu0
    %v1153 = vpop.f32.mrb[0].mxu0
    %1154 = vdwg.mxu0
    %v1155 = vpack.c.bf16 %v1051, %v1051
    %v1157 = vlaneseq
    %v1158 = vshrl.u32 %v1157, 7
    %v1159 = vsub.s32 0, %v1158
    %v1160 = vrot.slane %v52, %v1159
    %v1163 = vrot.slane %v1155, 3
    %1164 = vrot.lane.b32.xlu0 %v1163, 96
    %v1165 = vpop.permute.xlu0 %1164
    %v1170 = vunpack.c.l.b16 %v48
    %v1171 = vunpack.c.l.b16 %v49
    %v1172 = vunpack.c.l.b16 %v50
    %v1173 = vunpack.c.l.b16 %v51
    %v1174 = vpack.c.b16 %v1171, %v1170
    %v1175 = vpack.c.b16 %v1173, %v1172
    %v1179 = vsel %vm95, %v1165, 0
    %1181 = vmatprep.subr.bf16.mxu0 0
    %1182 = vmatpush1.bf16.msra.mxu0 %v1174
    %1183 = vmatprep.subr.bf16.mxu0 0
    %1184 = vmatpush1.bf16.msra.mxu0 %v1175
    %1185 = vmatprep.subr.bf16.mxu0 0
    %1186 = vmatpush1.bf16.msra.mxu0 0
    %1187 = vmatprep.subr.bf16.mxu0 0
    %1188 = vmatpush1.bf16.msra.mxu0 0
    %1189 = vmatprep.subr.bf16.mxu0 0
    %1190 = vmatpush1.bf16.msra.mxu0 0
    %1191 = vmatprep.subr.bf16.mxu0 0
    %1192 = vmatpush1.bf16.msra.mxu0 0
    %1193 = vmatprep.subr.bf16.mxu0 0
    %1194 = vmatpush1.bf16.msra.mxu0 0
    %1195 = vmatprep.subr.bf16.mxu0 0
    %1196 = vmatpush1.bf16.msra.mxu0 0
    %1197 = vmatprep.subr.bf16.mxu0 0
    %1198 = vmatpush1.bf16.msra.mxu0 0
    %1199 = vmatprep.subr.bf16.mxu0 0
    %1200 = vmatpush1.bf16.msra.mxu0 0
    %1201 = vmatprep.subr.bf16.mxu0 0
    %1202 = vmatpush1.bf16.msra.mxu0 0
    %1203 = vmatprep.subr.bf16.mxu0 0
    %1204 = vmatpush1.bf16.msra.mxu0 0
    %1205 = vmatprep.subr.bf16.mxu0 0
    %1206 = vmatpush1.bf16.msra.mxu0 0
    %1207 = vmatprep.subr.bf16.mxu0 0
    %1208 = vmatpush1.bf16.msra.mxu0 0
    %1209 = vmatprep.subr.bf16.mxu0 0
    %1210 = vmatpush1.bf16.msra.mxu0 0
    %1211 = vmatprep.subr.bf16.mxu0 0
    %1212 = vmatpush1.bf16.msra.mxu0 0
    %1213 = vmatprep.mubr.bf16.mxu0 0
    %1214 = vmatmul.mubr.bf16.gmra.mrb[0].mxu0 %v1179
    %v1215 = vpop.f32.mrb[0].mxu0
    %v1216 = vadd.f32 %v1160, %v1215
    %v1217 = vpop.f32.mrb[0].mxu0
    %v1218 = vpop.f32.mrb[0].mxu0
    %v1219 = vpop.f32.mrb[0].mxu0
    %1220 = vdwg.mxu0
    %v1221 = vadd.f32 %v1150, %v1216
    %v1222 = vxor.u32 %v1221, 2147483648
    %v1223 = vmul.f32 %v1222, 1.442695
    %v1224 = vpow.pop %v1223
    %v1225 = vadd.f32 %v1224, 1.0
    %v1226 = vrcp.pop %v1225
    %v1227 = vmul.f32 1.0, %v1226
    %1229 = vrot.lane.b32.xlu0 %v1216, 64
    %v1230 = vpop.permute.xlu0 %1229
    %v1232 = vmul.f32 %v1227, %v1230
    %1234 = vrot.lane.b32.xlu0 %v1232, 64
    %v1235 = vpop.permute.xlu0 %1234
    %v1237 = vadd.f32 %v1150, %v1235
    %v1238 = vtanh.pop %v1237
    %v1239 = vsub.f32 1.0, %v1227
    %1241 = vrot.lane.b32.xlu0 %v1238, 96
    %v1242 = vpop.permute.xlu0 %1241
    %v1244 = vmul.f32 %v1239, %v1242
    %v1245 = vrot.slane %v1051, 6
    %v1247 = vmul.f32 %v1227, %v1245
    %v1248 = vadd.f32 %v1244, %v1247
    %v1251 = vunpack.c.l.s4 1966171168
    %v1252 = vunpack.c.0.s8 %v1251
    %v1253 = vlaneseq
    %v1254 = vshrl.u32 %v1253, 7
    %v1255 = vsub.s32 %v1252, %v1254
    %v1256 = vrot.slane %v1248, %v1255
    %v1257 = vcombine.high %v1256, %v1256
    %v1259 = vunpack.c.l.s4 1966171168
    %v1260 = vunpack.c.0.s8 %v1259
    %v1261 = vlaneseq
    %v1262 = vshrl.u32 %v1261, 7
    %v1263 = vsub.s32 %v1260, %v1262
    %v1264 = vrot.slane %v1256, %v1263
    %v1266 = vunpack.c.l.s4 1966171168
    %v1267 = vunpack.c.0.s8 %v1266
    %v1268 = vlaneseq
    %v1269 = vshrl.u32 %v1268, 7
    %v1270 = vsub.s32 %v1267, %v1269
    %v1271 = vrot.slane %v1257, %v1270
    %v1272 = vlaneseq
    %v1273 = vshrl.u32 %v1272, 7
    %v1274 = vsub.s32 0, %v1273
    %v1275 = vrot.slane %v1264, %v1274
    %v1276 = vlaneseq
    %v1277 = vshrl.u32 %v1276, 7
    %v1278 = vsub.s32 0, %v1277
    %v1279 = vrot.slane %v1271, %v1278
    %1284 = vrot.lane.b32.xlu0 %v1094, 32
    %v1285 = vpop.permute.xlu0 %1284
    %1286 = vrot.lane.b32.xlu0 %v1095, 32
    %v1287 = vpop.permute.xlu0 %1286
    %v1290 = vmul.f32 %v1275, %v1285
    %v1291 = vmul.f32 %v1279, %v1287
    %1294 = vrot.lane.b32.xlu0 %v1290, 96
    %v1295 = vpop.permute.xlu0 %1294
    %1296 = vrot.lane.b32.xlu0 %v1291, 96
    %v1297 = vpop.permute.xlu0 %1296
    %v1300 = vsel %vm95, %v1295, 0.0
    %1301 = vadd.xlane.f32.xlu0 %v1300
    %v1302 = vpop.xlane.xlu0 %1301
    %v1303 = vsel %vm95, %v1297, 0.0
    %1304 = vadd.xlane.f32.xlu0 %v1303
    %v1305 = vpop.xlane.xlu0 %1304
    %v1308 = vlaneseq
    %v1309 = vshrl.u32 %v1308, 7
    %v1310 = vsub.s32 %v63, %v1309
    %v1311 = vrot.slane %v1302, %v1310
    %v1312 = vlaneseq
    %v1313 = vshrl.u32 %v1312, 7
    %v1314 = vsub.s32 %v63, %v1313
    %v1315 = vrot.slane %v1305, %v1314
    %vm1316 = vcmask 1041409
    %v1317 = vsel %vm1316, %v1315, %v1311
    %vm1319 = vcmask 58368
    %v1320 = vsel %vm1319, %v1317, -inf
    %1321 = vmax.xlane.f32.xlu0 %v1320
    %v1322 = vpop.xlane.xlu0 %1321
    %v1324 = vlaneseq
    %v1325 = vshrl.u32 %v1324, 7
    %v1326 = vsub.s32 0, %v1325
    %v1327 = vrot.slane %v1322, %v1326
    %v1328 = vlaneseq
    %v1329 = vshrl.u32 %v1328, 7
    %v1330 = vsub.s32 1, %v1329
    %v1331 = vrot.slane %v1322, %v1330
    %v1334 = vsub.f32 %v1302, %v1327
    %v1335 = vsub.f32 %v1305, %v1331
    %v1336 = vmul.f32 %v1334, 1.442695
    %v1337 = vpow.pop %v1336
    %v1338 = vmul.f32 %v1335, 1.442695
    %v1339 = vpow.pop %v1338
    %1342 = vset.pattern.permute.xlu0 0
    %1343 = vperm.xlu0 %1342, %v1337
    %v1344 = vpop.permute.xlu0 %1343
    %1345 = vset.pattern.permute.xlu0 0
    %1346 = vperm.xlu0 %1345, %v1339
    %v1347 = vpop.permute.xlu0 %1346
    %v1348 = vlaneseq
    %v1349 = vshrl.u32 %v1348, 7
    %v1350 = vsub.s32 %v63, %v1349
    %v1351 = vrot.slane %v1344, %v1350
    %v1352 = vlaneseq
    %v1353 = vshrl.u32 %v1352, 7
    %v1354 = vsub.s32 %v63, %v1353
    %v1355 = vrot.slane %v1347, %v1354
    %v1356 = vsel %vm1316, %v1355, %v1351
    %v1358 = vsel %vm1319, %v1356, 0.0
    %1359 = vadd.xlane.f32.xlu0 %v1358
    %v1360 = vpop.xlane.xlu0 %1359
    %v1362 = vlaneseq
    %v1363 = vshrl.u32 %v1362, 7
    %v1364 = vsub.s32 0, %v1363
    %v1365 = vrot.slane %v1360, %v1364
    %v1366 = vlaneseq
    %v1367 = vshrl.u32 %v1366, 7
    %v1368 = vsub.s32 1, %v1367
    %v1369 = vrot.slane %v1360, %v1368
    %v1372 = vrcp.pop %v1365
    %v1373 = vmul.f32 %v1337, %v1372
    %v1374 = vrcp.pop %v1369
    %v1375 = vmul.f32 %v1339, %v1374
    %1377 = vset.pattern.permute.xlu0 0
    %1378 = vperm.xlu0 %1377, %v1373
    %v1379 = vpop.permute.xlu0 %1378
    %1382 = vset.pattern.permute.xlu0 0
    %1383 = vperm.xlu0 %1382, %v1375
    %v1384 = vpop.permute.xlu0 %1383
    %v1386 = vmul.f32 %v1379, %v1094
    %v1387 = vmul.f32 %v1384, %v1095
    %v1388 = vsel %vm95, %v1386, 0.0
    %v1389 = vrot.slane %v1388, 4
    %v1390 = vadd.f32 %v1388, %v1389
    %v1391 = vrot.slane %v1390, 2
    %v1392 = vadd.f32 %v1390, %v1391
    %v1393 = vrot.slane %v1392, 1
    %v1394 = vadd.f32 %v1392, %v1393
    %v1395 = vsel %vm95, %v1387, 0.0
    %v1396 = vrot.slane %v1395, 4
    %v1397 = vadd.f32 %v1395, %v1396
    %v1398 = vrot.slane %v1397, 2
    %v1399 = vadd.f32 %v1397, %v1398
    %v1400 = vrot.slane %v1399, 1
    %v1401 = vadd.f32 %v1399, %v1400
    %v1402 = vpack.c.bf16 %v1248, %v1248
    %v1403 = vpack.c.bf16 %v1394, %v1394
    %v1404 = vpack.c.bf16 %v1401, %v1401
    %v1407 = vunpack.c.l.b16 %v1403
    %v1408 = vunpack.c.l.b16 %v1404
    %v1409 = vsel %vm1316, %v1408, %v1407
    %v1410 = vpack.c.b16 %v1409, %v1409
    %v1415 = vunpack.c.l.b16 %v57
    %v1416 = vunpack.c.l.b16 %v58
    %v1417 = vunpack.c.l.b16 %v59
    %v1418 = vunpack.c.l.b16 %v60
    %v1419 = vpack.c.b16 %v1416, %v1415
    %v1420 = vpack.c.b16 %v1418, %v1417
    %v1424 = vsel %vm95, %v1410, 0
    %1426 = vmatprep.subr.bf16.mxu0 0
    %1427 = vmatpush1.bf16.msra.mxu0 %v1419
    %1428 = vmatprep.subr.bf16.mxu0 0
    %1429 = vmatpush1.bf16.msra.mxu0 %v1420
    %1430 = vmatprep.subr.bf16.mxu0 0
    %1431 = vmatpush1.bf16.msra.mxu0 0
    %1432 = vmatprep.subr.bf16.mxu0 0
    %1433 = vmatpush1.bf16.msra.mxu0 0
    %1434 = vmatprep.subr.bf16.mxu0 0
    %1435 = vmatpush1.bf16.msra.mxu0 0
    %1436 = vmatprep.subr.bf16.mxu0 0
    %1437 = vmatpush1.bf16.msra.mxu0 0
    %1438 = vmatprep.subr.bf16.mxu0 0
    %1439 = vmatpush1.bf16.msra.mxu0 0
    %1440 = vmatprep.subr.bf16.mxu0 0
    %1441 = vmatpush1.bf16.msra.mxu0 0
    %1442 = vmatprep.subr.bf16.mxu0 0
    %1443 = vmatpush1.bf16.msra.mxu0 0
    %1444 = vmatprep.subr.bf16.mxu0 0
    %1445 = vmatpush1.bf16.msra.mxu0 0
    %1446 = vmatprep.subr.bf16.mxu0 0
    %1447 = vmatpush1.bf16.msra.mxu0 0
    %1448 = vmatprep.subr.bf16.mxu0 0
    %1449 = vmatpush1.bf16.msra.mxu0 0
    %1450 = vmatprep.subr.bf16.mxu0 0
    %1451 = vmatpush1.bf16.msra.mxu0 0
    %1452 = vmatprep.subr.bf16.mxu0 0
    %1453 = vmatpush1.bf16.msra.mxu0 0
    %1454 = vmatprep.subr.bf16.mxu0 0
    %1455 = vmatpush1.bf16.msra.mxu0 0
    %1456 = vmatprep.subr.bf16.mxu0 0
    %1457 = vmatpush1.bf16.msra.mxu0 0
    %1458 = vmatprep.mubr.bf16.mxu0 0
    %1459 = vmatmul.mubr.bf16.gmra.mrb[0].mxu0 %v1424
    %v1460 = vpop.f32.mrb[0].mxu0
    %v1461 = vadd.f32 0.0, %v1460
    %v1462 = vpop.f32.mrb[0].mxu0
    %v1463 = vpop.f32.mrb[0].mxu0
    %v1464 = vpop.f32.mrb[0].mxu0
    %1465 = vdwg.mxu0
    %1467 = vrot.lane.b32.xlu0 %v1402, 96
    %v1468 = vpop.permute.xlu0 %1467
    %v1473 = vunpack.c.l.b16 %v53
    %v1474 = vunpack.c.l.b16 %v54
    %v1475 = vunpack.c.l.b16 %v55
    %v1476 = vunpack.c.l.b16 %v56
    %v1477 = vpack.c.b16 %v1474, %v1473
    %v1478 = vpack.c.b16 %v1476, %v1475
    %v1482 = vsel %vm95, %v1468, 0
    %1484 = vmatprep.subr.bf16.mxu0 0
    %1485 = vmatpush1.bf16.msra.mxu0 %v1477
    %1486 = vmatprep.subr.bf16.mxu0 0
    %1487 = vmatpush1.bf16.msra.mxu0 %v1478
    %1488 = vmatprep.subr.bf16.mxu0 0
    %1489 = vmatpush1.bf16.msra.mxu0 0
    %1490 = vmatprep.subr.bf16.mxu0 0
    %1491 = vmatpush1.bf16.msra.mxu0 0
    %1492 = vmatprep.subr.bf16.mxu0 0
    %1493 = vmatpush1.bf16.msra.mxu0 0
    %1494 = vmatprep.subr.bf16.mxu0 0
    %1495 = vmatpush1.bf16.msra.mxu0 0
    %1496 = vmatprep.subr.bf16.mxu0 0
    %1497 = vmatpush1.bf16.msra.mxu0 0
    %1498 = vmatprep.subr.bf16.mxu0 0
    %1499 = vmatpush1.bf16.msra.mxu0 0
    %1500 = vmatprep.subr.bf16.mxu0 0
    %1501 = vmatpush1.bf16.msra.mxu0 0
    %1502 = vmatprep.subr.bf16.mxu0 0
    %1503 = vmatpush1.bf16.msra.mxu0 0
    %1504 = vmatprep.subr.bf16.mxu0 0
    %1505 = vmatpush1.bf16.msra.mxu0 0
    %1506 = vmatprep.subr.bf16.mxu0 0
    %1507 = vmatpush1.bf16.msra.mxu0 0
    %1508 = vmatprep.subr.bf16.mxu0 0
    %1509 = vmatpush1.bf16.msra.mxu0 0
    %1510 = vmatprep.subr.bf16.mxu0 0
    %1511 = vmatpush1.bf16.msra.mxu0 0
    %1512 = vmatprep.subr.bf16.mxu0 0
    %1513 = vmatpush1.bf16.msra.mxu0 0
    %1514 = vmatprep.subr.bf16.mxu0 0
    %1515 = vmatpush1.bf16.msra.mxu0 0
    %1516 = vmatprep.mubr.bf16.mxu0 0
    %1517 = vmatmul.mubr.bf16.gmra.mrb[0].mxu0 %v1482
    %v1518 = vpop.f32.mrb[0].mxu0
    %v1519 = vadd.f32 %v1461, %v1518
    %v1520 = vpop.f32.mrb[0].mxu0
    %v1521 = vpop.f32.mrb[0].mxu0
    %v1522 = vpop.f32.mrb[0].mxu0
    %1523 = vdwg.mxu0
    %v1525 = vlaneseq
    %v1526 = vshrl.u32 %v1525, 7
    %v1527 = vsub.s32 0, %v1526
    %v1528 = vrot.slane %v61, %v1527
    %v1530 = vadd.f32 %v1519, %v1528
    %vm1531 = vcmask 254976
    %v1532 = vsel %vm1531, %v1530, -inf
    %1533 = vmax.xlane.f32.xlu0 %v1532
    %v1534 = vpop.xlane.xlu0 %1533
    %vm1535 = vcmp.eq.f32.partialorder %v1530, %v1534
    %v1536 = vsel %vm1535, %v63, 32
    %v1537 = vsel %vm1531, %v1536, 2147483647
    %v1538 = vand.u32 %v1537, 65535
    %v1539 = vshra.s32 %v1537, 16
    %v1540 = vcvt.s32.f32 %v1538
    %v1541 = vcvt.s32.f32 %v1539
    %1542 = vmin.xlane.f32.xlu0 %v1541
    %v1543 = vpop.xlane.xlu0 %1542
    %vm1544 = vcmp.eq.f32.partialorder %v1541, %v1543
    %v1545 = vsel %vm1544, %v1540, inf
    %1546 = vmin.xlane.f32.xlu0 %v1545
    %v1547 = vpop.xlane.xlu0 %1546
    %v1548 = vcvt.f32.s32 %v1547
    %v1549 = vcvt.f32.s32 %v1543
    %v1550 = vshll.u32 %v1549, 16
    %v1551 = vadd.s32 %v1550, %v1548
    %vm1552 = vcmp.eq.s32.totalorder %v1551, 2
    %vm1553 = vcmask 1024
    %1554 = vst.msk [vmem:[#allocation3] sm:$0x3] %vm1553, %v1551
    %vm1555 = vcmp.eq.s32.totalorder %v1551, %v63
    %v1556 = vsel %vm1555, 1, 0
    %v1557 = vcvt.s32.f32 %v1556
    %v1558 = vpack.c.bf16 %v1557, %v1557
    %v1560 = vsel %vm95, %v1558, 0
    %1562 = vmatprep.subr.bf16.mxu0 0
    %1563 = vmatpush1.bf16.msra.mxu0 %v1108
    %1564 = vmatprep.subr.bf16.mxu0 0
    %1565 = vmatpush1.bf16.msra.mxu0 %v1109
    %1566 = vmatprep.subr.bf16.mxu0 0
    %1567 = vmatpush1.bf16.msra.mxu0 0
    %1568 = vmatprep.subr.bf16.mxu0 0
    %1569 = vmatpush1.bf16.msra.mxu0 0
    %1570 = vmatprep.subr.bf16.mxu0 0
    %1571 = vmatpush1.bf16.msra.mxu0 0
    %1572 = vmatprep.subr.bf16.mxu0 0
    %1573 = vmatpush1.bf16.msra.mxu0 0
    %1574 = vmatprep.subr.bf16.mxu0 0
    %1575 = vmatpush1.bf16.msra.mxu0 0
    %1576 = vmatprep.subr.bf16.mxu0 0
    %1577 = vmatpush1.bf16.msra.mxu0 0
    %1578 = vmatprep.subr.bf16.mxu0 0
    %1579 = vmatpush1.bf16.msra.mxu0 0
    %1580 = vmatprep.subr.bf16.mxu0 0
    %1581 = vmatpush1.bf16.msra.mxu0 0
    %1582 = vmatprep.subr.bf16.mxu0 0
    %1583 = vmatpush1.bf16.msra.mxu0 0
    %1584 = vmatprep.subr.bf16.mxu0 0
    %1585 = vmatpush1.bf16.msra.mxu0 0
    %1586 = vmatprep.subr.bf16.mxu0 0
    %1587 = vmatpush1.bf16.msra.mxu0 0
    %1588 = vmatprep.subr.bf16.mxu0 0
    %1589 = vmatpush1.bf16.msra.mxu0 0
    %1590 = vmatprep.subr.bf16.mxu0 0
    %1591 = vmatpush1.bf16.msra.mxu0 0
    %1592 = vmatprep.subr.bf16.mxu0 0
    %1593 = vmatpush1.bf16.msra.mxu0 0
    %1594 = vmatprep.mubr.bf16.mxu0 0
    %1595 = vmatmul.mubr.bf16.gmra.mrb[0].mxu0 %v1560
    %v1596 = vpop.f32.mrb[0].mxu0
    %v1597 = vadd.f32 0.0, %v1596
    %v1598 = vpop.f32.mrb[0].mxu0
    %v1599 = vpop.f32.mrb[0].mxu0
    %v1600 = vpop.f32.mrb[0].mxu0
    %1601 = vdwg.mxu0
    %1602 = vmatprep.subr.bf16.mxu0 0
    %1603 = vmatpush1.bf16.msra.mxu0 %v1174
    %1604 = vmatprep.subr.bf16.mxu0 0
    %1605 = vmatpush1.bf16.msra.mxu0 %v1175
    %1606 = vmatprep.subr.bf16.mxu0 0
    %1607 = vmatpush1.bf16.msra.mxu0 0
    %1608 = vmatprep.subr.bf16.mxu0 0
    %1609 = vmatpush1.bf16.msra.mxu0 0
    %1610 = vmatprep.subr.bf16.mxu0 0
    %1611 = vmatpush1.bf16.msra.mxu0 0
    %1612 = vmatprep.subr.bf16.mxu0 0
    %1613 = vmatpush1.bf16.msra.mxu0 0
    %1614 = vmatprep.subr.bf16.mxu0 0
    %1615 = vmatpush1.bf16.msra.mxu0 0
    %1616 = vmatprep.subr.bf16.mxu0 0
    %1617 = vmatpush1.bf16.msra.mxu0 0
    %1618 = vmatprep.subr.bf16.mxu0 0
    %1619 = vmatpush1.bf16.msra.mxu0 0
    %1620 = vmatprep.subr.bf16.mxu0 0
    %1621 = vmatpush1.bf16.msra.mxu0 0
    %1622 = vmatprep.subr.bf16.mxu0 0
    %1623 = vmatpush1.bf16.msra.mxu0 0
    %1624 = vmatprep.subr.bf16.mxu0 0
    %1625 = vmatpush1.bf16.msra.mxu0 0
    %1626 = vmatprep.subr.bf16.mxu0 0
    %1627 = vmatpush1.bf16.msra.mxu0 0
    %1628 = vmatprep.subr.bf16.mxu0 0
    %1629 = vmatpush1.bf16.msra.mxu0 0
    %1630 = vmatprep.subr.bf16.mxu0 0
    %1631 = vmatpush1.bf16.msra.mxu0 0
    %1632 = vmatprep.subr.bf16.mxu0 0
    %1633 = vmatpush1.bf16.msra.mxu0 0
    %1634 = vmatprep.mubr.bf16.mxu0 0
    %1635 = vmatmul.mubr.bf16.gmra.mrb[0].mxu0 %v1482
    %v1636 = vpop.f32.mrb[0].mxu0
    %v1637 = vadd.f32 %v1160, %v1636
    %v1638 = vpop.f32.mrb[0].mxu0
    %v1639 = vpop.f32.mrb[0].mxu0
    %v1640 = vpop.f32.mrb[0].mxu0
    %1641 = vdwg.mxu0
    %v1642 = vadd.f32 %v1597, %v1637
    %v1643 = vxor.u32 %v1642, 2147483648
    %v1644 = vmul.f32 %v1643, 1.442695
    %v1645 = vpow.pop %v1644
    %v1646 = vadd.f32 %v1645, 1.0
    %v1647 = vrcp.pop %v1646
    %v1648 = vmul.f32 1.0, %v1647
    %1650 = vrot.lane.b32.xlu0 %v1637, 64
    %v1651 = vpop.permute.xlu0 %1650
    %v1653 = vmul.f32 %v1648, %v1651
    %1655 = vrot.lane.b32.xlu0 %v1653, 64
    %v1656 = vpop.permute.xlu0 %1655
    %v1658 = vadd.f32 %v1597, %v1656
    %v1659 = vtanh.pop %v1658
    %v1660 = vsub.f32 1.0, %v1648
    %1662 = vrot.lane.b32.xlu0 %v1659, 96
    %v1663 = vpop.permute.xlu0 %1662
    %v1665 = vmul.f32 %v1660, %v1663
    %v1666 = vmul.f32 %v1648, %v1248
    %v1667 = vadd.f32 %v1665, %v1666
    %v1670 = vunpack.c.l.s4 1966171168
    %v1671 = vunpack.c.0.s8 %v1670
    %v1672 = vlaneseq
    %v1673 = vshrl.u32 %v1672, 7
    %v1674 = vsub.s32 %v1671, %v1673
    %v1675 = vrot.slane %v1667, %v1674
    %v1676 = vcombine.high %v1675, %v1675
    %v1678 = vunpack.c.l.s4 1966171168
    %v1679 = vunpack.c.0.s8 %v1678
    %v1680 = vlaneseq
    %v1681 = vshrl.u32 %v1680, 7
    %v1682 = vsub.s32 %v1679, %v1681
    %v1683 = vrot.slane %v1675, %v1682
    %v1685 = vunpack.c.l.s4 1966171168
    %v1686 = vunpack.c.0.s8 %v1685
    %v1687 = vlaneseq
    %v1688 = vshrl.u32 %v1687, 7
    %v1689 = vsub.s32 %v1686, %v1688
    %v1690 = vrot.slane %v1676, %v1689
    %v1691 = vlaneseq
    %v1692 = vshrl.u32 %v1691, 7
    %v1693 = vsub.s32 0, %v1692
    %v1694 = vrot.slane %v1683, %v1693
    %v1695 = vlaneseq
    %v1696 = vshrl.u32 %v1695, 7
    %v1697 = vsub.s32 0, %v1696
    %v1698 = vrot.slane %v1690, %v1697
    %v1701 = vmul.f32 %v1694, %v1285
    %v1702 = vmul.f32 %v1698, %v1287
    %1705 = vrot.lane.b32.xlu0 %v1701, 96
    %v1706 = vpop.permute.xlu0 %1705
    %1707 = vrot.lane.b32.xlu0 %v1702, 96
    %v1708 = vpop.permute.xlu0 %1707
    %v1711 = vsel %vm95, %v1706, 0.0
    %1712 = vadd.xlane.f32.xlu0 %v1711
    %v1713 = vpop.xlane.xlu0 %1712
    %v1714 = vsel %vm95, %v1708, 0.0
    %1715 = vadd.xlane.f32.xlu0 %v1714
    %v1716 = vpop.xlane.xlu0 %1715
    %v1719 = vlaneseq
    %v1720 = vshrl.u32 %v1719, 7
    %v1721 = vsub.s32 %v63, %v1720
    %v1722 = vrot.slane %v1713, %v1721
    %v1723 = vlaneseq
    %v1724 = vshrl.u32 %v1723, 7
    %v1725 = vsub.s32 %v63, %v1724
    %v1726 = vrot.slane %v1716, %v1725
    %v1727 = vsel %vm1316, %v1726, %v1722
    %v1729 = vsel %vm1319, %v1727, -inf
    %1730 = vmax.xlane.f32.xlu0 %v1729
    %v1731 = vpop.xlane.xlu0 %1730
    %v1733 = vlaneseq
    %v1734 = vshrl.u32 %v1733, 7
    %v1735 = vsub.s32 0, %v1734
    %v1736 = vrot.slane %v1731, %v1735
    %v1737 = vlaneseq
    %v1738 = vshrl.u32 %v1737, 7
    %v1739 = vsub.s32 1, %v1738
    %v1740 = vrot.slane %v1731, %v1739
    %v1743 = vsub.f32 %v1713, %v1736
    %v1744 = vsub.f32 %v1716, %v1740
    %v1745 = vmul.f32 %v1743, 1.442695
    %v1746 = vpow.pop %v1745
    %v1747 = vmul.f32 %v1744, 1.442695
    %v1748 = vpow.pop %v1747
    %1751 = vset.pattern.permute.xlu0 0
    %1752 = vperm.xlu0 %1751, %v1746
    %v1753 = vpop.permute.xlu0 %1752
    %1754 = vset.pattern.permute.xlu0 0
    %1755 = vperm.xlu0 %1754, %v1748
    %v1756 = vpop.permute.xlu0 %1755
    %v1757 = vlaneseq
    %v1758 = vshrl.u32 %v1757, 7
    %v1759 = vsub.s32 %v63, %v1758
    %v1760 = vrot.slane %v1753, %v1759
    %v1761 = vlaneseq
    %v1762 = vshrl.u32 %v1761, 7
    %v1763 = vsub.s32 %v63, %v1762
    %v1764 = vrot.slane %v1756, %v1763
    %v1765 = vsel %vm1316, %v1764, %v1760
    %v1767 = vsel %vm1319, %v1765, 0.0
    %1768 = vadd.xlane.f32.xlu0 %v1767
    %v1769 = vpop.xlane.xlu0 %1768
    %v1771 = vlaneseq
    %v1772 = vshrl.u32 %v1771, 7
    %v1773 = vsub.s32 0, %v1772
    %v1774 = vrot.slane %v1769, %v1773
    %v1775 = vlaneseq
    %v1776 = vshrl.u32 %v1775, 7
    %v1777 = vsub.s32 1, %v1776
    %v1778 = vrot.slane %v1769, %v1777
    %v1781 = vrcp.pop %v1774
    %v1782 = vmul.f32 %v1746, %v1781
    %v1783 = vrcp.pop %v1778
    %v1784 = vmul.f32 %v1748, %v1783
    %1786 = vset.pattern.permute.xlu0 0
    %1787 = vperm.xlu0 %1786, %v1782
    %v1788 = vpop.permute.xlu0 %1787
    %1791 = vset.pattern.permute.xlu0 0
    %1792 = vperm.xlu0 %1791, %v1784
    %v1793 = vpop.permute.xlu0 %1792
    %v1795 = vmul.f32 %v1788, %v1094
    %v1796 = vmul.f32 %v1793, %v1095
    %v1797 = vsel %vm95, %v1795, 0.0
    %v1798 = vrot.slane %v1797, 4
    %v1799 = vadd.f32 %v1797, %v1798
    %v1800 = vrot.slane %v1799, 2
    %v1801 = vadd.f32 %v1799, %v1800
    %v1802 = vrot.slane %v1801, 1
    %v1803 = vadd.f32 %v1801, %v1802
    %v1804 = vsel %vm95, %v1796, 0.0
    %v1805 = vrot.slane %v1804, 4
    %v1806 = vadd.f32 %v1804, %v1805
    %v1807 = vrot.slane %v1806, 2
    %v1808 = vadd.f32 %v1806, %v1807
    %v1809 = vrot.slane %v1808, 1
    %v1810 = vadd.f32 %v1808, %v1809
    %v1811 = vpack.c.bf16 %v1667, %v1667
    %v1812 = vpack.c.bf16 %v1803, %v1803
    %v1813 = vpack.c.bf16 %v1810, %v1810
    %v1816 = vunpack.c.l.b16 %v1812
    %v1817 = vunpack.c.l.b16 %v1813
    %v1818 = vsel %vm1316, %v1817, %v1816
    %v1819 = vpack.c.b16 %v1818, %v1818
    %v1821 = vsel %vm95, %v1819, 0
    %1823 = vmatprep.subr.bf16.mxu0 0
    %1824 = vmatpush1.bf16.msra.mxu0 %v1419
    %1825 = vmatprep.subr.bf16.mxu0 0
    %1826 = vmatpush1.bf16.msra.mxu0 %v1420
    %1827 = vmatprep.subr.bf16.mxu0 0
    %1828 = vmatpush1.bf16.msra.mxu0 0
    %1829 = vmatprep.subr.bf16.mxu0 0
    %1830 = vmatpush1.bf16.msra.mxu0 0
    %1831 = vmatprep.subr.bf16.mxu0 0
    %1832 = vmatpush1.bf16.msra.mxu0 0
    %1833 = vmatprep.subr.bf16.mxu0 0
    %1834 = vmatpush1.bf16.msra.mxu0 0
    %1835 = vmatprep.subr.bf16.mxu0 0
    %1836 = vmatpush1.bf16.msra.mxu0 0
    %1837 = vmatprep.subr.bf16.mxu0 0
    %1838 = vmatpush1.bf16.msra.mxu0 0
    %1839 = vmatprep.subr.bf16.mxu0 0
    %1840 = vmatpush1.bf16.msra.mxu0 0
    %1841 = vmatprep.subr.bf16.mxu0 0
    %1842 = vmatpush1.bf16.msra.mxu0 0
    %1843 = vmatprep.subr.bf16.mxu0 0
    %1844 = vmatpush1.bf16.msra.mxu0 0
    %1845 = vmatprep.subr.bf16.mxu0 0
    %1846 = vmatpush1.bf16.msra.mxu0 0
    %1847 = vmatprep.subr.bf16.mxu0 0
    %1848 = vmatpush1.bf16.msra.mxu0 0
    %1849 = vmatprep.subr.bf16.mxu0 0
    %1850 = vmatpush1.bf16.msra.mxu0 0
    %1851 = vmatprep.subr.bf16.mxu0 0
    %1852 = vmatpush1.bf16.msra.mxu0 0
    %1853 = vmatprep.subr.bf16.mxu0 0
    %1854 = vmatpush1.bf16.msra.mxu0 0
    %1855 = vmatprep.mubr.bf16.mxu0 0
    %1856 = vmatmul.mubr.bf16.gmra.mrb[0].mxu0 %v1821
    %v1857 = vpop.f32.mrb[0].mxu0
    %v1858 = vadd.f32 0.0, %v1857
    %v1859 = vpop.f32.mrb[0].mxu0
    %v1860 = vpop.f32.mrb[0].mxu0
    %v1861 = vpop.f32.mrb[0].mxu0
    %1862 = vdwg.mxu0
    %1864 = vrot.lane.b32.xlu0 %v1811, 96
    %v1865 = vpop.permute.xlu0 %1864
    %v1867 = vsel %vm95, %v1865, 0
    %1869 = vmatprep.subr.bf16.mxu0 0
    %1870 = vmatpush1.bf16.msra.mxu0 %v1477
    %1871 = vmatprep.subr.bf16.mxu0 0
    %1872 = vmatpush1.bf16.msra.mxu0 %v1478
    %1873 = vmatprep.subr.bf16.mxu0 0
    %1874 = vmatpush1.bf16.msra.mxu0 0
    %1875 = vmatprep.subr.bf16.mxu0 0
    %1876 = vmatpush1.bf16.msra.mxu0 0
    %1877 = vmatprep.subr.bf16.mxu0 0
    %1878 = vmatpush1.bf16.msra.mxu0 0
    %1879 = vmatprep.subr.bf16.mxu0 0
    %1880 = vmatpush1.bf16.msra.mxu0 0
    %1881 = vmatprep.subr.bf16.mxu0 0
    %1882 = vmatpush1.bf16.msra.mxu0 0
    %1883 = vmatprep.subr.bf16.mxu0 0
    %1884 = vmatpush1.bf16.msra.mxu0 0
    %1885 = vmatprep.subr.bf16.mxu0 0
    %1886 = vmatpush1.bf16.msra.mxu0 0
    %1887 = vmatprep.subr.bf16.mxu0 0
    %1888 = vmatpush1.bf16.msra.mxu0 0
    %1889 = vmatprep.subr.bf16.mxu0 0
    %1890 = vmatpush1.bf16.msra.mxu0 0
    %1891 = vmatprep.subr.bf16.mxu0 0
    %1892 = vmatpush1.bf16.msra.mxu0 0
    %1893 = vmatprep.subr.bf16.mxu0 0
    %1894 = vmatpush1.bf16.msra.mxu0 0
    %1895 = vmatprep.subr.bf16.mxu0 0
    %1896 = vmatpush1.bf16.msra.mxu0 0
    %1897 = vmatprep.subr.bf16.mxu0 0
    %1898 = vmatpush1.bf16.msra.mxu0 0
    %1899 = vmatprep.subr.bf16.mxu0 0
    %1900 = vmatpush1.bf16.msra.mxu0 0
    %1901 = vmatprep.mubr.bf16.mxu0 0
    %1902 = vmatmul.mubr.bf16.gmra.mrb[0].mxu0 %v1867
    %v1903 = vpop.f32.mrb[0].mxu0
    %v1904 = vadd.f32 %v1858, %v1903
    %v1905 = vpop.f32.mrb[0].mxu0
    %v1906 = vpop.f32.mrb[0].mxu0
    %v1907 = vpop.f32.mrb[0].mxu0
    %1908 = vdwg.mxu0
    %v1909 = vadd.f32 %v1904, %v1528
    %v1910 = vsel %vm1531, %v1909, -inf
    %1911 = vmax.xlane.f32.xlu0 %v1910
    %v1912 = vpop.xlane.xlu0 %1911
    %vm1913 = vcmp.eq.f32.partialorder %v1909, %v1912
    %v1914 = vsel %vm1913, %v63, 32
    %v1915 = vsel %vm1531, %v1914, 2147483647
    %v1916 = vand.u32 %v1915, 65535
    %v1917 = vshra.s32 %v1915, 16
    %v1918 = vcvt.s32.f32 %v1916
    %v1919 = vcvt.s32.f32 %v1917
    %1920 = vmin.xlane.f32.xlu0 %v1919
    %v1921 = vpop.xlane.xlu0 %1920
    %vm1922 = vcmp.eq.f32.partialorder %v1919, %v1921
    %v1923 = vsel %vm1922, %v1918, inf
    %1924 = vmin.xlane.f32.xlu0 %v1923
    %v1925 = vpop.xlane.xlu0 %1924
    %v1926 = vcvt.f32.s32 %v1925
    %v1927 = vcvt.f32.s32 %v1921
    %v1928 = vshll.u32 %v1927, 16
    %v1929 = vadd.s32 %v1928, %v1926
    %v1930 = vsel %vm1552, 2, %v1929
    %v1931 = vsel %vm1552, 1, 2
    %vm1932 = vcmp.eq.s32.totalorder %v1930, 2
    %vm1933 = vmor %vm1552, %vm1932
    %vm1934 = vcmask 9224
    %1935 = vst.msk [vmem:[#allocation3] sm:$0x3] %vm1934, %v1930
    %vm1936 = vcmp.eq.s32.totalorder %v1930, %v63
    %v1937 = vsel %vm1936, 1, 0
    %v1938 = vcvt.s32.f32 %v1937
    %v1939 = vpack.c.bf16 %v1938, %v1938
    %v1941 = vsel %vm95, %v1939, 0
    %1943 = vmatprep.subr.bf16.mxu0 0
    %1944 = vmatpush1.bf16.msra.mxu0 %v1108
    %1945 = vmatprep.subr.bf16.mxu0 0
    %1946 = vmatpush1.bf16.msra.mxu0 %v1109
    %1947 = vmatprep.subr.bf16.mxu0 0
    %1948 = vmatpush1.bf16.msra.mxu0 0
    %1949 = vmatprep.subr.bf16.mxu0 0
    %1950 = vmatpush1.bf16.msra.mxu0 0
    %1951 = vmatprep.subr.bf16.mxu0 0
    %1952 = vmatpush1.bf16.msra.mxu0 0
    %1953 = vmatprep.subr.bf16.mxu0 0
    %1954 = vmatpush1.bf16.msra.mxu0 0
    %1955 = vmatprep.subr.bf16.mxu0 0
    %1956 = vmatpush1.bf16.msra.mxu0 0
    %1957 = vmatprep.subr.bf16.mxu0 0
    %1958 = vmatpush1.bf16.msra.mxu0 0
    %1959 = vmatprep.subr.bf16.mxu0 0
    %1960 = vmatpush1.bf16.msra.mxu0 0
    %1961 = vmatprep.subr.bf16.mxu0 0
    %1962 = vmatpush1.bf16.msra.mxu0 0
    %1963 = vmatprep.subr.bf16.mxu0 0
    %1964 = vmatpush1.bf16.msra.mxu0 0
    %1965 = vmatprep.subr.bf16.mxu0 0
    %1966 = vmatpush1.bf16.msra.mxu0 0
    %1967 = vmatprep.subr.bf16.mxu0 0
    %1968 = vmatpush1.bf16.msra.mxu0 0
    %1969 = vmatprep.subr.bf16.mxu0 0
    %1970 = vmatpush1.bf16.msra.mxu0 0
    %1971 = vmatprep.subr.bf16.mxu0 0
    %1972 = vmatpush1.bf16.msra.mxu0 0
    %1973 = vmatprep.subr.bf16.mxu0 0
    %1974 = vmatpush1.bf16.msra.mxu0 0
    %1975 = vmatprep.mubr.bf16.mxu0 0
    %1976 = vmatmul.mubr.bf16.gmra.mrb[0].mxu0 %v1941
    %v1977 = vpop.f32.mrb[0].mxu0
    %v1978 = vadd.f32 0.0, %v1977
    %v1979 = vpop.f32.mrb[0].mxu0
    %v1980 = vpop.f32.mrb[0].mxu0
    %v1981 = vpop.f32.mrb[0].mxu0
    %1982 = vdwg.mxu0
    %1983 = vmatprep.subr.bf16.mxu0 0
    %1984 = vmatpush1.bf16.msra.mxu0 %v1174
    %1985 = vmatprep.subr.bf16.mxu0 0
    %1986 = vmatpush1.bf16.msra.mxu0 %v1175
    %1987 = vmatprep.subr.bf16.mxu0 0
    %1988 = vmatpush1.bf16.msra.mxu0 0
    %1989 = vmatprep.subr.bf16.mxu0 0
    %1990 = vmatpush1.bf16.msra.mxu0 0
    %1991 = vmatprep.subr.bf16.mxu0 0
    %1992 = vmatpush1.bf16.msra.mxu0 0
    %1993 = vmatprep.subr.bf16.mxu0 0
    %1994 = vmatpush1.bf16.msra.mxu0 0
    %1995 = vmatprep.subr.bf16.mxu0 0
    %1996 = vmatpush1.bf16.msra.mxu0 0
    %1997 = vmatprep.subr.bf16.mxu0 0
    %1998 = vmatpush1.bf16.msra.mxu0 0
    %1999 = vmatprep.subr.bf16.mxu0 0
    %2000 = vmatpush1.bf16.msra.mxu0 0
    %2001 = vmatprep.subr.bf16.mxu0 0
    %2002 = vmatpush1.bf16.msra.mxu0 0
    %2003 = vmatprep.subr.bf16.mxu0 0
    %2004 = vmatpush1.bf16.msra.mxu0 0
    %2005 = vmatprep.subr.bf16.mxu0 0
    %2006 = vmatpush1.bf16.msra.mxu0 0
    %2007 = vmatprep.subr.bf16.mxu0 0
    %2008 = vmatpush1.bf16.msra.mxu0 0
    %2009 = vmatprep.subr.bf16.mxu0 0
    %2010 = vmatpush1.bf16.msra.mxu0 0
    %2011 = vmatprep.subr.bf16.mxu0 0
    %2012 = vmatpush1.bf16.msra.mxu0 0
    %2013 = vmatprep.subr.bf16.mxu0 0
    %2014 = vmatpush1.bf16.msra.mxu0 0
    %2015 = vmatprep.mubr.bf16.mxu0 0
    %2016 = vmatmul.mubr.bf16.gmra.mrb[0].mxu0 %v1867
    %v2017 = vpop.f32.mrb[0].mxu0
    %v2018 = vadd.f32 %v1160, %v2017
    %v2019 = vpop.f32.mrb[0].mxu0
    %v2020 = vpop.f32.mrb[0].mxu0
    %v2021 = vpop.f32.mrb[0].mxu0
    %2022 = vdwg.mxu0
    %v2023 = vadd.f32 %v1978, %v2018
    %v2024 = vxor.u32 %v2023, 2147483648
    %v2025 = vmul.f32 %v2024, 1.442695
    %v2026 = vpow.pop %v2025
    %v2027 = vadd.f32 %v2026, 1.0
    %v2028 = vrcp.pop %v2027
    %v2029 = vmul.f32 1.0, %v2028
    %2031 = vrot.lane.b32.xlu0 %v2018, 64
    %v2032 = vpop.permute.xlu0 %2031
    %v2034 = vmul.f32 %v2029, %v2032
    %2036 = vrot.lane.b32.xlu0 %v2034, 64
    %v2037 = vpop.permute.xlu0 %2036
    %v2039 = vadd.f32 %v1978, %v2037
    %v2040 = vtanh.pop %v2039
    %v2041 = vsub.f32 1.0, %v2029
    %2043 = vrot.lane.b32.xlu0 %v2040, 96
    %v2044 = vpop.permute.xlu0 %2043
    %v2046 = vmul.f32 %v2041, %v2044
    %v2047 = vmul.f32 %v2029, %v1667
    %v2048 = vadd.f32 %v2046, %v2047
    %v2051 = vunpack.c.l.s4 1966171168
    %v2052 = vunpack.c.0.s8 %v2051
    %v2053 = vlaneseq
    %v2054 = vshrl.u32 %v2053, 7
    %v2055 = vsub.s32 %v2052, %v2054
    %v2056 = vrot.slane %v2048, %v2055
    %v2057 = vcombine.high %v2056, %v2056
    %v2059 = vunpack.c.l.s4 1966171168
    %v2060 = vunpack.c.0.s8 %v2059
    %v2061 = vlaneseq
    %v2062 = vshrl.u32 %v2061, 7
    %v2063 = vsub.s32 %v2060, %v2062
    %v2064 = vrot.slane %v2056, %v2063
    %v2066 = vunpack.c.l.s4 1966171168
    %v2067 = vunpack.c.0.s8 %v2066
    %v2068 = vlaneseq
    %v2069 = vshrl.u32 %v2068, 7
    %v2070 = vsub.s32 %v2067, %v2069
    %v2071 = vrot.slane %v2057, %v2070
    %v2072 = vlaneseq
    %v2073 = vshrl.u32 %v2072, 7
    %v2074 = vsub.s32 0, %v2073
    %v2075 = vrot.slane %v2064, %v2074
    %v2076 = vlaneseq
    %v2077 = vshrl.u32 %v2076, 7
    %v2078 = vsub.s32 0, %v2077
    %v2079 = vrot.slane %v2071, %v2078
    %v2082 = vmul.f32 %v2075, %v1285
    %v2083 = vmul.f32 %v2079, %v1287
    %2086 = vrot.lane.b32.xlu0 %v2082, 96
    %v2087 = vpop.permute.xlu0 %2086
    %2088 = vrot.lane.b32.xlu0 %v2083, 96
    %v2089 = vpop.permute.xlu0 %2088
    %v2092 = vsel %vm95, %v2087, 0.0
    %2093 = vadd.xlane.f32.xlu0 %v2092
    %v2094 = vpop.xlane.xlu0 %2093
    %v2095 = vsel %vm95, %v2089, 0.0
    %2096 = vadd.xlane.f32.xlu0 %v2095
    %v2097 = vpop.xlane.xlu0 %2096
    %v2100 = vlaneseq
    %v2101 = vshrl.u32 %v2100, 7
    %v2102 = vsub.s32 %v63, %v2101
    %v2103 = vrot.slane %v2094, %v2102
    %v2104 = vlaneseq
    %v2105 = vshrl.u32 %v2104, 7
    %v2106 = vsub.s32 %v63, %v2105
    %v2107 = vrot.slane %v2097, %v2106
    %v2108 = vsel %vm1316, %v2107, %v2103
    %v2110 = vsel %vm1319, %v2108, -inf
    %2111 = vmax.xlane.f32.xlu0 %v2110
    %v2112 = vpop.xlane.xlu0 %2111
    %v2114 = vlaneseq
    %v2115 = vshrl.u32 %v2114, 7
    %v2116 = vsub.s32 0, %v2115
    %v2117 = vrot.slane %v2112, %v2116
    %v2118 = vlaneseq
    %v2119 = vshrl.u32 %v2118, 7
    %v2120 = vsub.s32 1, %v2119
    %v2121 = vrot.slane %v2112, %v2120
    %v2124 = vsub.f32 %v2094, %v2117
    %v2125 = vsub.f32 %v2097, %v2121
    %v2126 = vmul.f32 %v2124, 1.442695
    %v2127 = vpow.pop %v2126
    %v2128 = vmul.f32 %v2125, 1.442695
    %v2129 = vpow.pop %v2128
    %2132 = vset.pattern.permute.xlu0 0
    %2133 = vperm.xlu0 %2132, %v2127
    %v2134 = vpop.permute.xlu0 %2133
    %2135 = vset.pattern.permute.xlu0 0
    %2136 = vperm.xlu0 %2135, %v2129
    %v2137 = vpop.permute.xlu0 %2136
    %v2138 = vlaneseq
    %v2139 = vshrl.u32 %v2138, 7
    %v2140 = vsub.s32 %v63, %v2139
    %v2141 = vrot.slane %v2134, %v2140
    %v2142 = vlaneseq
    %v2143 = vshrl.u32 %v2142, 7
    %v2144 = vsub.s32 %v63, %v2143
    %v2145 = vrot.slane %v2137, %v2144
    %v2146 = vsel %vm1316, %v2145, %v2141
    %v2148 = vsel %vm1319, %v2146, 0.0
    %2149 = vadd.xlane.f32.xlu0 %v2148
    %v2150 = vpop.xlane.xlu0 %2149
    %v2152 = vlaneseq
    %v2153 = vshrl.u32 %v2152, 7
    %v2154 = vsub.s32 0, %v2153
    %v2155 = vrot.slane %v2150, %v2154
    %v2156 = vlaneseq
    %v2157 = vshrl.u32 %v2156, 7
    %v2158 = vsub.s32 1, %v2157
    %v2159 = vrot.slane %v2150, %v2158
    %v2162 = vrcp.pop %v2155
    %v2163 = vmul.f32 %v2127, %v2162
    %v2164 = vrcp.pop %v2159
    %v2165 = vmul.f32 %v2129, %v2164
    %2167 = vset.pattern.permute.xlu0 0
    %2168 = vperm.xlu0 %2167, %v2163
    %v2169 = vpop.permute.xlu0 %2168
    %2172 = vset.pattern.permute.xlu0 0
    %2173 = vperm.xlu0 %2172, %v2165
    %v2174 = vpop.permute.xlu0 %2173
    %v2176 = vmul.f32 %v2169, %v1094
    %v2177 = vmul.f32 %v2174, %v1095
    %v2178 = vsel %vm95, %v2176, 0.0
    %v2179 = vrot.slane %v2178, 4
    %v2180 = vadd.f32 %v2178, %v2179
    %v2181 = vrot.slane %v2180, 2
    %v2182 = vadd.f32 %v2180, %v2181
    %v2183 = vrot.slane %v2182, 1
    %v2184 = vadd.f32 %v2182, %v2183
    %v2185 = vsel %vm95, %v2177, 0.0
    %v2186 = vrot.slane %v2185, 4
    %v2187 = vadd.f32 %v2185, %v2186
    %v2188 = vrot.slane %v2187, 2
    %v2189 = vadd.f32 %v2187, %v2188
    %v2190 = vrot.slane %v2189, 1
    %v2191 = vadd.f32 %v2189, %v2190
    %v2192 = vpack.c.bf16 %v2048, %v2048
    %v2193 = vpack.c.bf16 %v2184, %v2184
    %v2194 = vpack.c.bf16 %v2191, %v2191
    %v2197 = vunpack.c.l.b16 %v2193
    %v2198 = vunpack.c.l.b16 %v2194
    %v2199 = vsel %vm1316, %v2198, %v2197
    %v2200 = vpack.c.b16 %v2199, %v2199
    %v2202 = vsel %vm95, %v2200, 0
    %2204 = vmatprep.subr.bf16.mxu0 0
    %2205 = vmatpush1.bf16.msra.mxu0 %v1419
    %2206 = vmatprep.subr.bf16.mxu0 0
    %2207 = vmatpush1.bf16.msra.mxu0 %v1420
    %2208 = vmatprep.subr.bf16.mxu0 0
    %2209 = vmatpush1.bf16.msra.mxu0 0
    %2210 = vmatprep.subr.bf16.mxu0 0
    %2211 = vmatpush1.bf16.msra.mxu0 0
    %2212 = vmatprep.subr.bf16.mxu0 0
    %2213 = vmatpush1.bf16.msra.mxu0 0
    %2214 = vmatprep.subr.bf16.mxu0 0
    %2215 = vmatpush1.bf16.msra.mxu0 0
    %2216 = vmatprep.subr.bf16.mxu0 0
    %2217 = vmatpush1.bf16.msra.mxu0 0
    %2218 = vmatprep.subr.bf16.mxu0 0
    %2219 = vmatpush1.bf16.msra.mxu0 0
    %2220 = vmatprep.subr.bf16.mxu0 0
    %2221 = vmatpush1.bf16.msra.mxu0 0
    %2222 = vmatprep.subr.bf16.mxu0 0
    %2223 = vmatpush1.bf16.msra.mxu0 0
    %2224 = vmatprep.subr.bf16.mxu0 0
    %2225 = vmatpush1.bf16.msra.mxu0 0
    %2226 = vmatprep.subr.bf16.mxu0 0
    %2227 = vmatpush1.bf16.msra.mxu0 0
    %2228 = vmatprep.subr.bf16.mxu0 0
    %2229 = vmatpush1.bf16.msra.mxu0 0
    %2230 = vmatprep.subr.bf16.mxu0 0
    %2231 = vmatpush1.bf16.msra.mxu0 0
    %2232 = vmatprep.subr.bf16.mxu0 0
    %2233 = vmatpush1.bf16.msra.mxu0 0
    %2234 = vmatprep.subr.bf16.mxu0 0
    %2235 = vmatpush1.bf16.msra.mxu0 0
    %2236 = vmatprep.mubr.bf16.mxu0 0
    %2237 = vmatmul.mubr.bf16.gmra.mrb[0].mxu0 %v2202
    %v2238 = vpop.f32.mrb[0].mxu0
    %v2239 = vadd.f32 0.0, %v2238
    %v2240 = vpop.f32.mrb[0].mxu0
    %v2241 = vpop.f32.mrb[0].mxu0
    %v2242 = vpop.f32.mrb[0].mxu0
    %2243 = vdwg.mxu0
    %2245 = vrot.lane.b32.xlu0 %v2192, 96
    %v2246 = vpop.permute.xlu0 %2245
    %v2248 = vsel %vm95, %v2246, 0
    %2250 = vmatprep.subr.bf16.mxu0 0
    %2251 = vmatpush1.bf16.msra.mxu0 %v1477
    %2252 = vmatprep.subr.bf16.mxu0 0
    %2253 = vmatpush1.bf16.msra.mxu0 %v1478
    %2254 = vmatprep.subr.bf16.mxu0 0
    %2255 = vmatpush1.bf16.msra.mxu0 0
    %2256 = vmatprep.subr.bf16.mxu0 0
    %2257 = vmatpush1.bf16.msra.mxu0 0
    %2258 = vmatprep.subr.bf16.mxu0 0
    %2259 = vmatpush1.bf16.msra.mxu0 0
    %2260 = vmatprep.subr.bf16.mxu0 0
    %2261 = vmatpush1.bf16.msra.mxu0 0
    %2262 = vmatprep.subr.bf16.mxu0 0
    %2263 = vmatpush1.bf16.msra.mxu0 0
    %2264 = vmatprep.subr.bf16.mxu0 0
    %2265 = vmatpush1.bf16.msra.mxu0 0
    %2266 = vmatprep.subr.bf16.mxu0 0
    %2267 = vmatpush1.bf16.msra.mxu0 0
    %2268 = vmatprep.subr.bf16.mxu0 0
    %2269 = vmatpush1.bf16.msra.mxu0 0
    %2270 = vmatprep.subr.bf16.mxu0 0
    %2271 = vmatpush1.bf16.msra.mxu0 0
    %2272 = vmatprep.subr.bf16.mxu0 0
    %2273 = vmatpush1.bf16.msra.mxu0 0
    %2274 = vmatprep.subr.bf16.mxu0 0
    %2275 = vmatpush1.bf16.msra.mxu0 0
    %2276 = vmatprep.subr.bf16.mxu0 0
    %2277 = vmatpush1.bf16.msra.mxu0 0
    %2278 = vmatprep.subr.bf16.mxu0 0
    %2279 = vmatpush1.bf16.msra.mxu0 0
    %2280 = vmatprep.subr.bf16.mxu0 0
    %2281 = vmatpush1.bf16.msra.mxu0 0
    %2282 = vmatprep.mubr.bf16.mxu0 0
    %2283 = vmatmul.mubr.bf16.gmra.mrb[0].mxu0 %v2248
    %v2284 = vpop.f32.mrb[0].mxu0
    %v2285 = vadd.f32 %v2239, %v2284
    %v2286 = vpop.f32.mrb[0].mxu0
    %v2287 = vpop.f32.mrb[0].mxu0
    %v2288 = vpop.f32.mrb[0].mxu0
    %2289 = vdwg.mxu0
    %v2290 = vadd.f32 %v2285, %v1528
    %v2291 = vsel %vm1531, %v2290, -inf
    %2292 = vmax.xlane.f32.xlu0 %v2291
    %v2293 = vpop.xlane.xlu0 %2292
    %vm2294 = vcmp.eq.f32.partialorder %v2290, %v2293
    %v2295 = vsel %vm2294, %v63, 32
    %v2296 = vsel %vm1531, %v2295, 2147483647
    %v2297 = vand.u32 %v2296, 65535
    %v2298 = vshra.s32 %v2296, 16
    %v2299 = vcvt.s32.f32 %v2297
    %v2300 = vcvt.s32.f32 %v2298
    %2301 = vmin.xlane.f32.xlu0 %v2300
    %v2302 = vpop.xlane.xlu0 %2301
    %vm2303 = vcmp.eq.f32.partialorder %v2300, %v2302
    %v2304 = vsel %vm2303, %v2299, inf
    %2305 = vmin.xlane.f32.xlu0 %v2304
    %v2306 = vpop.xlane.xlu0 %2305
    %v2307 = vcvt.f32.s32 %v2306
    %v2308 = vcvt.f32.s32 %v2302
    %v2309 = vshll.u32 %v2308, 16
    %v2310 = vadd.s32 %v2309, %v2307
    %v2311 = vsel %vm1933, 2, %v2310
    %v2312 = vadd.s32 %v1931, 1
    %v2313 = vsel %vm1933, %v1931, %v2312
    %vm2314 = vcmp.eq.s32.totalorder %v2311, 2
    %vm2315 = vmor %vm1933, %vm2314
    %vm2316 = vcmask 17424
    %2317 = vst.msk [vmem:[#allocation3] sm:$0x3] %vm2316, %v2311
    %vm2318 = vcmp.eq.s32.totalorder %v2311, %v63
    %v2319 = vsel %vm2318, 1, 0
    %v2320 = vcvt.s32.f32 %v2319
    %v2321 = vpack.c.bf16 %v2320, %v2320
    %v2323 = vsel %vm95, %v2321, 0
    %2325 = vmatprep.subr.bf16.mxu0 0
    %2326 = vmatpush1.bf16.msra.mxu0 %v1108
    %2327 = vmatprep.subr.bf16.mxu0 0
    %2328 = vmatpush1.bf16.msra.mxu0 %v1109
    %2329 = vmatprep.subr.bf16.mxu0 0
    %2330 = vmatpush1.bf16.msra.mxu0 0
    %2331 = vmatprep.subr.bf16.mxu0 0
    %2332 = vmatpush1.bf16.msra.mxu0 0
    %2333 = vmatprep.subr.bf16.mxu0 0
    %2334 = vmatpush1.bf16.msra.mxu0 0
    %2335 = vmatprep.subr.bf16.mxu0 0
    %2336 = vmatpush1.bf16.msra.mxu0 0
    %2337 = vmatprep.subr.bf16.mxu0 0
    %2338 = vmatpush1.bf16.msra.mxu0 0
    %2339 = vmatprep.subr.bf16.mxu0 0
    %2340 = vmatpush1.bf16.msra.mxu0 0
    %2341 = vmatprep.subr.bf16.mxu0 0
    %2342 = vmatpush1.bf16.msra.mxu0 0
    %2343 = vmatprep.subr.bf16.mxu0 0
    %2344 = vmatpush1.bf16.msra.mxu0 0
    %2345 = vmatprep.subr.bf16.mxu0 0
    %2346 = vmatpush1.bf16.msra.mxu0 0
    %2347 = vmatprep.subr.bf16.mxu0 0
    %2348 = vmatpush1.bf16.msra.mxu0 0
    %2349 = vmatprep.subr.bf16.mxu0 0
    %2350 = vmatpush1.bf16.msra.mxu0 0
    %2351 = vmatprep.subr.bf16.mxu0 0
    %2352 = vmatpush1.bf16.msra.mxu0 0
    %2353 = vmatprep.subr.bf16.mxu0 0
    %2354 = vmatpush1.bf16.msra.mxu0 0
    %2355 = vmatprep.subr.bf16.mxu0 0
    %2356 = vmatpush1.bf16.msra.mxu0 0
    %2357 = vmatprep.mubr.bf16.mxu0 0
    %2358 = vmatmul.mubr.bf16.gmra.mrb[0].mxu0 %v2323
    %v2359 = vpop.f32.mrb[0].mxu0
    %v2360 = vadd.f32 0.0, %v2359
    %v2361 = vpop.f32.mrb[0].mxu0
    %v2362 = vpop.f32.mrb[0].mxu0
    %v2363 = vpop.f32.mrb[0].mxu0
    %2364 = vdwg.mxu0
    %2365 = vmatprep.subr.bf16.mxu0 0
    %2366 = vmatpush1.bf16.msra.mxu0 %v1174
    %2367 = vmatprep.subr.bf16.mxu0 0
    %2368 = vmatpush1.bf16.msra.mxu0 %v1175
    %2369 = vmatprep.subr.bf16.mxu0 0
    %2370 = vmatpush1.bf16.msra.mxu0 0
    %2371 = vmatprep.subr.bf16.mxu0 0
    %2372 = vmatpush1.bf16.msra.mxu0 0
    %2373 = vmatprep.subr.bf16.mxu0 0
    %2374 = vmatpush1.bf16.msra.mxu0 0
    %2375 = vmatprep.subr.bf16.mxu0 0
    %2376 = vmatpush1.bf16.msra.mxu0 0
    %2377 = vmatprep.subr.bf16.mxu0 0
    %2378 = vmatpush1.bf16.msra.mxu0 0
    %2379 = vmatprep.subr.bf16.mxu0 0
    %2380 = vmatpush1.bf16.msra.mxu0 0
    %2381 = vmatprep.subr.bf16.mxu0 0
    %2382 = vmatpush1.bf16.msra.mxu0 0
    %2383 = vmatprep.subr.bf16.mxu0 0
    %2384 = vmatpush1.bf16.msra.mxu0 0
    %2385 = vmatprep.subr.bf16.mxu0 0
    %2386 = vmatpush1.bf16.msra.mxu0 0
    %2387 = vmatprep.subr.bf16.mxu0 0
    %2388 = vmatpush1.bf16.msra.mxu0 0
    %2389 = vmatprep.subr.bf16.mxu0 0
    %2390 = vmatpush1.bf16.msra.mxu0 0
    %2391 = vmatprep.subr.bf16.mxu0 0
    %2392 = vmatpush1.bf16.msra.mxu0 0
    %2393 = vmatprep.subr.bf16.mxu0 0
    %2394 = vmatpush1.bf16.msra.mxu0 0
    %2395 = vmatprep.subr.bf16.mxu0 0
    %2396 = vmatpush1.bf16.msra.mxu0 0
    %2397 = vmatprep.mubr.bf16.mxu0 0
    %2398 = vmatmul.mubr.bf16.gmra.mrb[0].mxu0 %v2248
    %v2399 = vpop.f32.mrb[0].mxu0
    %v2400 = vadd.f32 %v1160, %v2399
    %v2401 = vpop.f32.mrb[0].mxu0
    %v2402 = vpop.f32.mrb[0].mxu0
    %v2403 = vpop.f32.mrb[0].mxu0
    %2404 = vdwg.mxu0
    %v2405 = vadd.f32 %v2360, %v2400
    %v2406 = vxor.u32 %v2405, 2147483648
    %v2407 = vmul.f32 %v2406, 1.442695
    %v2408 = vpow.pop %v2407
    %v2409 = vadd.f32 %v2408, 1.0
    %v2410 = vrcp.pop %v2409
    %v2411 = vmul.f32 1.0, %v2410
    %2413 = vrot.lane.b32.xlu0 %v2400, 64
    %v2414 = vpop.permute.xlu0 %2413
    %v2416 = vmul.f32 %v2411, %v2414
    %2418 = vrot.lane.b32.xlu0 %v2416, 64
    %v2419 = vpop.permute.xlu0 %2418
    %v2421 = vadd.f32 %v2360, %v2419
    %v2422 = vtanh.pop %v2421
    %v2423 = vsub.f32 1.0, %v2411
    %2425 = vrot.lane.b32.xlu0 %v2422, 96
    %v2426 = vpop.permute.xlu0 %2425
    %v2428 = vmul.f32 %v2423, %v2426
    %v2429 = vmul.f32 %v2411, %v2048
    %v2430 = vadd.f32 %v2428, %v2429
    %v2433 = vunpack.c.l.s4 1966171168
    %v2434 = vunpack.c.0.s8 %v2433
    %v2435 = vlaneseq
    %v2436 = vshrl.u32 %v2435, 7
    %v2437 = vsub.s32 %v2434, %v2436
    %v2438 = vrot.slane %v2430, %v2437
    %v2439 = vcombine.high %v2438, %v2438
    %v2441 = vunpack.c.l.s4 1966171168
    %v2442 = vunpack.c.0.s8 %v2441
    %v2443 = vlaneseq
    %v2444 = vshrl.u32 %v2443, 7
    %v2445 = vsub.s32 %v2442, %v2444
    %v2446 = vrot.slane %v2438, %v2445
    %v2448 = vunpack.c.l.s4 1966171168
    %v2449 = vunpack.c.0.s8 %v2448
    %v2450 = vlaneseq
    %v2451 = vshrl.u32 %v2450, 7
    %v2452 = vsub.s32 %v2449, %v2451
    %v2453 = vrot.slane %v2439, %v2452
    %v2454 = vlaneseq
    %v2455 = vshrl.u32 %v2454, 7
    %v2456 = vsub.s32 0, %v2455
    %v2457 = vrot.slane %v2446, %v2456
    %v2458 = vlaneseq
    %v2459 = vshrl.u32 %v2458, 7
    %v2460 = vsub.s32 0, %v2459
    %v2461 = vrot.slane %v2453, %v2460
    %v2464 = vmul.f32 %v2457, %v1285
    %v2465 = vmul.f32 %v2461, %v1287
    %2468 = vrot.lane.b32.xlu0 %v2464, 96
    %v2469 = vpop.permute.xlu0 %2468
    %2470 = vrot.lane.b32.xlu0 %v2465, 96
    %v2471 = vpop.permute.xlu0 %2470
    %v2474 = vsel %vm95, %v2469, 0.0
    %2475 = vadd.xlane.f32.xlu0 %v2474
    %v2476 = vpop.xlane.xlu0 %2475
    %v2477 = vsel %vm95, %v2471, 0.0
    %2478 = vadd.xlane.f32.xlu0 %v2477
    %v2479 = vpop.xlane.xlu0 %2478
    %v2482 = vlaneseq
    %v2483 = vshrl.u32 %v2482, 7
    %v2484 = vsub.s32 %v63, %v2483
    %v2485 = vrot.slane %v2476, %v2484
    %v2486 = vlaneseq
    %v2487 = vshrl.u32 %v2486, 7
    %v2488 = vsub.s32 %v63, %v2487
    %v2489 = vrot.slane %v2479, %v2488
    %v2490 = vsel %vm1316, %v2489, %v2485
    %v2492 = vsel %vm1319, %v2490, -inf
    %2493 = vmax.xlane.f32.xlu0 %v2492
    %v2494 = vpop.xlane.xlu0 %2493
    %v2496 = vlaneseq
    %v2497 = vshrl.u32 %v2496, 7
    %v2498 = vsub.s32 0, %v2497
    %v2499 = vrot.slane %v2494, %v2498
    %v2500 = vlaneseq
    %v2501 = vshrl.u32 %v2500, 7
    %v2502 = vsub.s32 1, %v2501
    %v2503 = vrot.slane %v2494, %v2502
    %v2506 = vsub.f32 %v2476, %v2499
    %v2507 = vsub.f32 %v2479, %v2503
    %v2508 = vmul.f32 %v2506, 1.442695
    %v2509 = vpow.pop %v2508
    %v2510 = vmul.f32 %v2507, 1.442695
    %v2511 = vpow.pop %v2510
    %2514 = vset.pattern.permute.xlu0 0
    %2515 = vperm.xlu0 %2514, %v2509
    %v2516 = vpop.permute.xlu0 %2515
    %2517 = vset.pattern.permute.xlu0 0
    %2518 = vperm.xlu0 %2517, %v2511
    %v2519 = vpop.permute.xlu0 %2518
    %v2520 = vlaneseq
    %v2521 = vshrl.u32 %v2520, 7
    %v2522 = vsub.s32 %v63, %v2521
    %v2523 = vrot.slane %v2516, %v2522
    %v2524 = vlaneseq
    %v2525 = vshrl.u32 %v2524, 7
    %v2526 = vsub.s32 %v63, %v2525
    %v2527 = vrot.slane %v2519, %v2526
    %v2528 = vsel %vm1316, %v2527, %v2523
    %v2530 = vsel %vm1319, %v2528, 0.0
    %2531 = vadd.xlane.f32.xlu0 %v2530
    %v2532 = vpop.xlane.xlu0 %2531
    %v2534 = vlaneseq
    %v2535 = vshrl.u32 %v2534, 7
    %v2536 = vsub.s32 0, %v2535
    %v2537 = vrot.slane %v2532, %v2536
    %v2538 = vlaneseq
    %v2539 = vshrl.u32 %v2538, 7
    %v2540 = vsub.s32 1, %v2539
    %v2541 = vrot.slane %v2532, %v2540
    %v2544 = vrcp.pop %v2537
    %v2545 = vmul.f32 %v2509, %v2544
    %v2546 = vrcp.pop %v2541
    %v2547 = vmul.f32 %v2511, %v2546
    %2549 = vset.pattern.permute.xlu0 0
    %2550 = vperm.xlu0 %2549, %v2545
    %v2551 = vpop.permute.xlu0 %2550
    %2554 = vset.pattern.permute.xlu0 0
    %2555 = vperm.xlu0 %2554, %v2547
    %v2556 = vpop.permute.xlu0 %2555
    %v2558 = vmul.f32 %v2551, %v1094
    %v2559 = vmul.f32 %v2556, %v1095
    %v2560 = vsel %vm95, %v2558, 0.0
    %v2561 = vrot.slane %v2560, 4
    %v2562 = vadd.f32 %v2560, %v2561
    %v2563 = vrot.slane %v2562, 2
    %v2564 = vadd.f32 %v2562, %v2563
    %v2565 = vrot.slane %v2564, 1
    %v2566 = vadd.f32 %v2564, %v2565
    %v2567 = vsel %vm95, %v2559, 0.0
    %v2568 = vrot.slane %v2567, 4
    %v2569 = vadd.f32 %v2567, %v2568
    %v2570 = vrot.slane %v2569, 2
    %v2571 = vadd.f32 %v2569, %v2570
    %v2572 = vrot.slane %v2571, 1
    %v2573 = vadd.f32 %v2571, %v2572
    %v2574 = vpack.c.bf16 %v2430, %v2430
    %v2575 = vpack.c.bf16 %v2566, %v2566
    %v2576 = vpack.c.bf16 %v2573, %v2573
    %v2579 = vunpack.c.l.b16 %v2575
    %v2580 = vunpack.c.l.b16 %v2576
    %v2581 = vsel %vm1316, %v2580, %v2579
    %v2582 = vpack.c.b16 %v2581, %v2581
    %v2584 = vsel %vm95, %v2582, 0
    %2586 = vmatprep.subr.bf16.mxu0 0
    %2587 = vmatpush1.bf16.msra.mxu0 %v1419
    %2588 = vmatprep.subr.bf16.mxu0 0
    %2589 = vmatpush1.bf16.msra.mxu0 %v1420
    %2590 = vmatprep.subr.bf16.mxu0 0
    %2591 = vmatpush1.bf16.msra.mxu0 0
    %2592 = vmatprep.subr.bf16.mxu0 0
    %2593 = vmatpush1.bf16.msra.mxu0 0
    %2594 = vmatprep.subr.bf16.mxu0 0
    %2595 = vmatpush1.bf16.msra.mxu0 0
    %2596 = vmatprep.subr.bf16.mxu0 0
    %2597 = vmatpush1.bf16.msra.mxu0 0
    %2598 = vmatprep.subr.bf16.mxu0 0
    %2599 = vmatpush1.bf16.msra.mxu0 0
    %2600 = vmatprep.subr.bf16.mxu0 0
    %2601 = vmatpush1.bf16.msra.mxu0 0
    %2602 = vmatprep.subr.bf16.mxu0 0
    %2603 = vmatpush1.bf16.msra.mxu0 0
    %2604 = vmatprep.subr.bf16.mxu0 0
    %2605 = vmatpush1.bf16.msra.mxu0 0
    %2606 = vmatprep.subr.bf16.mxu0 0
    %2607 = vmatpush1.bf16.msra.mxu0 0
    %2608 = vmatprep.subr.bf16.mxu0 0
    %2609 = vmatpush1.bf16.msra.mxu0 0
    %2610 = vmatprep.subr.bf16.mxu0 0
    %2611 = vmatpush1.bf16.msra.mxu0 0
    %2612 = vmatprep.subr.bf16.mxu0 0
    %2613 = vmatpush1.bf16.msra.mxu0 0
    %2614 = vmatprep.subr.bf16.mxu0 0
    %2615 = vmatpush1.bf16.msra.mxu0 0
    %2616 = vmatprep.subr.bf16.mxu0 0
    %2617 = vmatpush1.bf16.msra.mxu0 0
    %2618 = vmatprep.mubr.bf16.mxu0 0
    %2619 = vmatmul.mubr.bf16.gmra.mrb[0].mxu0 %v2584
    %v2620 = vpop.f32.mrb[0].mxu0
    %v2621 = vadd.f32 0.0, %v2620
    %v2622 = vpop.f32.mrb[0].mxu0
    %v2623 = vpop.f32.mrb[0].mxu0
    %v2624 = vpop.f32.mrb[0].mxu0
    %2625 = vdwg.mxu0
    %2627 = vrot.lane.b32.xlu0 %v2574, 96
    %v2628 = vpop.permute.xlu0 %2627
    %v2630 = vsel %vm95, %v2628, 0
    %2632 = vmatprep.subr.bf16.mxu0 0
    %2633 = vmatpush1.bf16.msra.mxu0 %v1477
    %2634 = vmatprep.subr.bf16.mxu0 0
    %2635 = vmatpush1.bf16.msra.mxu0 %v1478
    %2636 = vmatprep.subr.bf16.mxu0 0
    %2637 = vmatpush1.bf16.msra.mxu0 0
    %2638 = vmatprep.subr.bf16.mxu0 0
    %2639 = vmatpush1.bf16.msra.mxu0 0
    %2640 = vmatprep.subr.bf16.mxu0 0
    %2641 = vmatpush1.bf16.msra.mxu0 0
    %2642 = vmatprep.subr.bf16.mxu0 0
    %2643 = vmatpush1.bf16.msra.mxu0 0
    %2644 = vmatprep.subr.bf16.mxu0 0
    %2645 = vmatpush1.bf16.msra.mxu0 0
    %2646 = vmatprep.subr.bf16.mxu0 0
    %2647 = vmatpush1.bf16.msra.mxu0 0
    %2648 = vmatprep.subr.bf16.mxu0 0
    %2649 = vmatpush1.bf16.msra.mxu0 0
    %2650 = vmatprep.subr.bf16.mxu0 0
    %2651 = vmatpush1.bf16.msra.mxu0 0
    %2652 = vmatprep.subr.bf16.mxu0 0
    %2653 = vmatpush1.bf16.msra.mxu0 0
    %2654 = vmatprep.subr.bf16.mxu0 0
    %2655 = vmatpush1.bf16.msra.mxu0 0
    %2656 = vmatprep.subr.bf16.mxu0 0
    %2657 = vmatpush1.bf16.msra.mxu0 0
    %2658 = vmatprep.subr.bf16.mxu0 0
    %2659 = vmatpush1.bf16.msra.mxu0 0
    %2660 = vmatprep.subr.bf16.mxu0 0
    %2661 = vmatpush1.bf16.msra.mxu0 0
    %2662 = vmatprep.subr.bf16.mxu0 0
    %2663 = vmatpush1.bf16.msra.mxu0 0
    %2664 = vmatprep.mubr.bf16.mxu0 0
    %2665 = vmatmul.mubr.bf16.gmra.mrb[0].mxu0 %v2630
    %v2666 = vpop.f32.mrb[0].mxu0
    %v2667 = vadd.f32 %v2621, %v2666
    %v2668 = vpop.f32.mrb[0].mxu0
    %v2669 = vpop.f32.mrb[0].mxu0
    %v2670 = vpop.f32.mrb[0].mxu0
    %2671 = vdwg.mxu0
    %v2672 = vadd.f32 %v2667, %v1528
    %v2673 = vsel %vm1531, %v2672, -inf
    %2674 = vmax.xlane.f32.xlu0 %v2673
    %v2675 = vpop.xlane.xlu0 %2674
    %vm2676 = vcmp.eq.f32.partialorder %v2672, %v2675
    %v2677 = vsel %vm2676, %v63, 32
    %v2678 = vsel %vm1531, %v2677, 2147483647
    %v2679 = vand.u32 %v2678, 65535
    %v2680 = vshra.s32 %v2678, 16
    %v2681 = vcvt.s32.f32 %v2679
    %v2682 = vcvt.s32.f32 %v2680
    %2683 = vmin.xlane.f32.xlu0 %v2682
    %v2684 = vpop.xlane.xlu0 %2683
    %vm2685 = vcmp.eq.f32.partialorder %v2682, %v2684
    %v2686 = vsel %vm2685, %v2681, inf
    %2687 = vmin.xlane.f32.xlu0 %v2686
    %v2688 = vpop.xlane.xlu0 %2687
    %v2689 = vcvt.f32.s32 %v2688
    %v2690 = vcvt.f32.s32 %v2684
    %v2691 = vshll.u32 %v2690, 16
    %v2692 = vadd.s32 %v2691, %v2689
    %v2693 = vsel %vm2315, 2, %v2692
    %v2694 = vadd.s32 %v2313, 1
    %v2695 = vsel %vm2315, %v2313, %v2694
    %vm2696 = vcmp.eq.s32.totalorder %v2693, 2
    %vm2697 = vmor %vm2315, %vm2696
    %vm2698 = vcmask 25624
    %2699 = vst.msk [vmem:[#allocation3] sm:$0x3] %vm2698, %v2693
    %vm2700 = vcmp.eq.s32.totalorder %v2693, %v63
    %v2701 = vsel %vm2700, 1, 0
    %v2702 = vcvt.s32.f32 %v2701
    %v2703 = vpack.c.bf16 %v2702, %v2702
    %v2705 = vsel %vm95, %v2703, 0
    %2707 = vmatprep.subr.bf16.mxu0 0
    %2708 = vmatpush1.bf16.msra.mxu0 %v1108
    %2709 = vmatprep.subr.bf16.mxu0 0
    %2710 = vmatpush1.bf16.msra.mxu0 %v1109
    %2711 = vmatprep.subr.bf16.mxu0 0
    %2712 = vmatpush1.bf16.msra.mxu0 0
    %2713 = vmatprep.subr.bf16.mxu0 0
    %2714 = vmatpush1.bf16.msra.mxu0 0
    %2715 = vmatprep.subr.bf16.mxu0 0
    %2716 = vmatpush1.bf16.msra.mxu0 0
    %2717 = vmatprep.subr.bf16.mxu0 0
    %2718 = vmatpush1.bf16.msra.mxu0 0
    %2719 = vmatprep.subr.bf16.mxu0 0
    %2720 = vmatpush1.bf16.msra.mxu0 0
    %2721 = vmatprep.subr.bf16.mxu0 0
    %2722 = vmatpush1.bf16.msra.mxu0 0
    %2723 = vmatprep.subr.bf16.mxu0 0
    %2724 = vmatpush1.bf16.msra.mxu0 0
    %2725 = vmatprep.subr.bf16.mxu0 0
    %2726 = vmatpush1.bf16.msra.mxu0 0
    %2727 = vmatprep.subr.bf16.mxu0 0
    %2728 = vmatpush1.bf16.msra.mxu0 0
    %2729 = vmatprep.subr.bf16.mxu0 0
    %2730 = vmatpush1.bf16.msra.mxu0 0
    %2731 = vmatprep.subr.bf16.mxu0 0
    %2732 = vmatpush1.bf16.msra.mxu0 0
    %2733 = vmatprep.subr.bf16.mxu0 0
    %2734 = vmatpush1.bf16.msra.mxu0 0
    %2735 = vmatprep.subr.bf16.mxu0 0
    %2736 = vmatpush1.bf16.msra.mxu0 0
    %2737 = vmatprep.subr.bf16.mxu0 0
    %2738 = vmatpush1.bf16.msra.mxu0 0
    %2739 = vmatprep.mubr.bf16.mxu0 0
    %2740 = vmatmul.mubr.bf16.gmra.mrb[0].mxu0 %v2705
    %v2741 = vpop.f32.mrb[0].mxu0
    %v2742 = vadd.f32 0.0, %v2741
    %v2743 = vpop.f32.mrb[0].mxu0
    %v2744 = vpop.f32.mrb[0].mxu0
    %v2745 = vpop.f32.mrb[0].mxu0
    %2746 = vdwg.mxu0
    %2747 = vmatprep.subr.bf16.mxu0 0
    %2748 = vmatpush1.bf16.msra.mxu0 %v1174
    %2749 = vmatprep.subr.bf16.mxu0 0
    %2750 = vmatpush1.bf16.msra.mxu0 %v1175
    %2751 = vmatprep.subr.bf16.mxu0 0
    %2752 = vmatpush1.bf16.msra.mxu0 0
    %2753 = vmatprep.subr.bf16.mxu0 0
    %2754 = vmatpush1.bf16.msra.mxu0 0
    %2755 = vmatprep.subr.bf16.mxu0 0
    %2756 = vmatpush1.bf16.msra.mxu0 0
    %2757 = vmatprep.subr.bf16.mxu0 0
    %2758 = vmatpush1.bf16.msra.mxu0 0
    %2759 = vmatprep.subr.bf16.mxu0 0
    %2760 = vmatpush1.bf16.msra.mxu0 0
    %2761 = vmatprep.subr.bf16.mxu0 0
    %2762 = vmatpush1.bf16.msra.mxu0 0
    %2763 = vmatprep.subr.bf16.mxu0 0
    %2764 = vmatpush1.bf16.msra.mxu0 0
    %2765 = vmatprep.subr.bf16.mxu0 0
    %2766 = vmatpush1.bf16.msra.mxu0 0
    %2767 = vmatprep.subr.bf16.mxu0 0
    %2768 = vmatpush1.bf16.msra.mxu0 0
    %2769 = vmatprep.subr.bf16.mxu0 0
    %2770 = vmatpush1.bf16.msra.mxu0 0
    %2771 = vmatprep.subr.bf16.mxu0 0
    %2772 = vmatpush1.bf16.msra.mxu0 0
    %2773 = vmatprep.subr.bf16.mxu0 0
    %2774 = vmatpush1.bf16.msra.mxu0 0
    %2775 = vmatprep.subr.bf16.mxu0 0
    %2776 = vmatpush1.bf16.msra.mxu0 0
    %2777 = vmatprep.subr.bf16.mxu0 0
    %2778 = vmatpush1.bf16.msra.mxu0 0
    %2779 = vmatprep.mubr.bf16.mxu0 0
    %2780 = vmatmul.mubr.bf16.gmra.mrb[0].mxu0 %v2630
    %v2781 = vpop.f32.mrb[0].mxu0
    %v2782 = vadd.f32 %v1160, %v2781
    %v2783 = vpop.f32.mrb[0].mxu0
    %v2784 = vpop.f32.mrb[0].mxu0
    %v2785 = vpop.f32.mrb[0].mxu0
    %2786 = vdwg.mxu0
    %v2787 = vadd.f32 %v2742, %v2782
    %v2788 = vxor.u32 %v2787, 2147483648
    %v2789 = vmul.f32 %v2788, 1.442695
    %v2790 = vpow.pop %v2789
    %v2791 = vadd.f32 %v2790, 1.0
    %v2792 = vrcp.pop %v2791
    %v2793 = vmul.f32 1.0, %v2792
    %2795 = vrot.lane.b32.xlu0 %v2782, 64
    %v2796 = vpop.permute.xlu0 %2795
    %v2798 = vmul.f32 %v2793, %v2796
    %2800 = vrot.lane.b32.xlu0 %v2798, 64
    %v2801 = vpop.permute.xlu0 %2800
    %v2803 = vadd.f32 %v2742, %v2801
    %v2804 = vtanh.pop %v2803
    %v2805 = vsub.f32 1.0, %v2793
    %2807 = vrot.lane.b32.xlu0 %v2804, 96
    %v2808 = vpop.permute.xlu0 %2807
    %v2810 = vmul.f32 %v2805, %v2808
    %v2811 = vmul.f32 %v2793, %v2430
    %v2812 = vadd.f32 %v2810, %v2811
    %v2815 = vunpack.c.l.s4 1966171168
    %v2816 = vunpack.c.0.s8 %v2815
    %v2817 = vlaneseq
    %v2818 = vshrl.u32 %v2817, 7
    %v2819 = vsub.s32 %v2816, %v2818
    %v2820 = vrot.slane %v2812, %v2819
    %v2821 = vcombine.high %v2820, %v2820
    %v2823 = vunpack.c.l.s4 1966171168
    %v2824 = vunpack.c.0.s8 %v2823
    %v2825 = vlaneseq
    %v2826 = vshrl.u32 %v2825, 7
    %v2827 = vsub.s32 %v2824, %v2826
    %v2828 = vrot.slane %v2820, %v2827
    %v2830 = vunpack.c.l.s4 1966171168
    %v2831 = vunpack.c.0.s8 %v2830
    %v2832 = vlaneseq
    %v2833 = vshrl.u32 %v2832, 7
    %v2834 = vsub.s32 %v2831, %v2833
    %v2835 = vrot.slane %v2821, %v2834
    %v2836 = vlaneseq
    %v2837 = vshrl.u32 %v2836, 7
    %v2838 = vsub.s32 0, %v2837
    %v2839 = vrot.slane %v2828, %v2838
    %v2840 = vlaneseq
    %v2841 = vshrl.u32 %v2840, 7
    %v2842 = vsub.s32 0, %v2841
    %v2843 = vrot.slane %v2835, %v2842
    %v2846 = vmul.f32 %v2839, %v1285
    %v2847 = vmul.f32 %v2843, %v1287
    %2850 = vrot.lane.b32.xlu0 %v2846, 96
    %v2851 = vpop.permute.xlu0 %2850
    %2852 = vrot.lane.b32.xlu0 %v2847, 96
    %v2853 = vpop.permute.xlu0 %2852
    %v2856 = vsel %vm95, %v2851, 0.0
    %2857 = vadd.xlane.f32.xlu0 %v2856
    %v2858 = vpop.xlane.xlu0 %2857
    %v2859 = vsel %vm95, %v2853, 0.0
    %2860 = vadd.xlane.f32.xlu0 %v2859
    %v2861 = vpop.xlane.xlu0 %2860
    %v2864 = vlaneseq
    %v2865 = vshrl.u32 %v2864, 7
    %v2866 = vsub.s32 %v63, %v2865
    %v2867 = vrot.slane %v2858, %v2866
    %v2868 = vlaneseq
    %v2869 = vshrl.u32 %v2868, 7
    %v2870 = vsub.s32 %v63, %v2869
    %v2871 = vrot.slane %v2861, %v2870
    %v2872 = vsel %vm1316, %v2871, %v2867
    %v2874 = vsel %vm1319, %v2872, -inf
    %2875 = vmax.xlane.f32.xlu0 %v2874
    %v2876 = vpop.xlane.xlu0 %2875
    %v2878 = vlaneseq
    %v2879 = vshrl.u32 %v2878, 7
    %v2880 = vsub.s32 0, %v2879
    %v2881 = vrot.slane %v2876, %v2880
    %v2882 = vlaneseq
    %v2883 = vshrl.u32 %v2882, 7
    %v2884 = vsub.s32 1, %v2883
    %v2885 = vrot.slane %v2876, %v2884
    %v2888 = vsub.f32 %v2858, %v2881
    %v2889 = vsub.f32 %v2861, %v2885
    %v2890 = vmul.f32 %v2888, 1.442695
    %v2891 = vpow.pop %v2890
    %v2892 = vmul.f32 %v2889, 1.442695
    %v2893 = vpow.pop %v2892
    %2896 = vset.pattern.permute.xlu0 0
    %2897 = vperm.xlu0 %2896, %v2891
    %v2898 = vpop.permute.xlu0 %2897
    %2899 = vset.pattern.permute.xlu0 0
    %2900 = vperm.xlu0 %2899, %v2893
    %v2901 = vpop.permute.xlu0 %2900
    %v2902 = vlaneseq
    %v2903 = vshrl.u32 %v2902, 7
    %v2904 = vsub.s32 %v63, %v2903
    %v2905 = vrot.slane %v2898, %v2904
    %v2906 = vlaneseq
    %v2907 = vshrl.u32 %v2906, 7
    %v2908 = vsub.s32 %v63, %v2907
    %v2909 = vrot.slane %v2901, %v2908
    %v2910 = vsel %vm1316, %v2909, %v2905
    %v2912 = vsel %vm1319, %v2910, 0.0
    %2913 = vadd.xlane.f32.xlu0 %v2912
    %v2914 = vpop.xlane.xlu0 %2913
    %v2916 = vlaneseq
    %v2917 = vshrl.u32 %v2916, 7
    %v2918 = vsub.s32 0, %v2917
    %v2919 = vrot.slane %v2914, %v2918
    %v2920 = vlaneseq
    %v2921 = vshrl.u32 %v2920, 7
    %v2922 = vsub.s32 1, %v2921
    %v2923 = vrot.slane %v2914, %v2922
    %v2926 = vrcp.pop %v2919
    %v2927 = vmul.f32 %v2891, %v2926
    %v2928 = vrcp.pop %v2923
    %v2929 = vmul.f32 %v2893, %v2928
    %2931 = vset.pattern.permute.xlu0 0
    %2932 = vperm.xlu0 %2931, %v2927
    %v2933 = vpop.permute.xlu0 %2932
    %2936 = vset.pattern.permute.xlu0 0
    %2937 = vperm.xlu0 %2936, %v2929
    %v2938 = vpop.permute.xlu0 %2937
    %v2940 = vmul.f32 %v2933, %v1094
    %v2941 = vmul.f32 %v2938, %v1095
    %v2942 = vsel %vm95, %v2940, 0.0
    %v2943 = vrot.slane %v2942, 4
    %v2944 = vadd.f32 %v2942, %v2943
    %v2945 = vrot.slane %v2944, 2
    %v2946 = vadd.f32 %v2944, %v2945
    %v2947 = vrot.slane %v2946, 1
    %v2948 = vadd.f32 %v2946, %v2947
    %v2949 = vsel %vm95, %v2941, 0.0
    %v2950 = vrot.slane %v2949, 4
    %v2951 = vadd.f32 %v2949, %v2950
    %v2952 = vrot.slane %v2951, 2
    %v2953 = vadd.f32 %v2951, %v2952
    %v2954 = vrot.slane %v2953, 1
    %v2955 = vadd.f32 %v2953, %v2954
    %v2956 = vpack.c.bf16 %v2812, %v2812
    %v2957 = vpack.c.bf16 %v2948, %v2948
    %v2958 = vpack.c.bf16 %v2955, %v2955
    %v2961 = vunpack.c.l.b16 %v2957
    %v2962 = vunpack.c.l.b16 %v2958
    %v2963 = vsel %vm1316, %v2962, %v2961
    %v2964 = vpack.c.b16 %v2963, %v2963
    %v2966 = vsel %vm95, %v2964, 0
    %2968 = vmatprep.subr.bf16.mxu0 0
    %2969 = vmatpush1.bf16.msra.mxu0 %v1419
    %2970 = vmatprep.subr.bf16.mxu0 0
    %2971 = vmatpush1.bf16.msra.mxu0 %v1420
    %2972 = vmatprep.subr.bf16.mxu0 0
    %2973 = vmatpush1.bf16.msra.mxu0 0
    %2974 = vmatprep.subr.bf16.mxu0 0
    %2975 = vmatpush1.bf16.msra.mxu0 0
    %2976 = vmatprep.subr.bf16.mxu0 0
    %2977 = vmatpush1.bf16.msra.mxu0 0
    %2978 = vmatprep.subr.bf16.mxu0 0
    %2979 = vmatpush1.bf16.msra.mxu0 0
    %2980 = vmatprep.subr.bf16.mxu0 0
    %2981 = vmatpush1.bf16.msra.mxu0 0
    %2982 = vmatprep.subr.bf16.mxu0 0
    %2983 = vmatpush1.bf16.msra.mxu0 0
    %2984 = vmatprep.subr.bf16.mxu0 0
    %2985 = vmatpush1.bf16.msra.mxu0 0
    %2986 = vmatprep.subr.bf16.mxu0 0
    %2987 = vmatpush1.bf16.msra.mxu0 0
    %2988 = vmatprep.subr.bf16.mxu0 0
    %2989 = vmatpush1.bf16.msra.mxu0 0
    %2990 = vmatprep.subr.bf16.mxu0 0
    %2991 = vmatpush1.bf16.msra.mxu0 0
    %2992 = vmatprep.subr.bf16.mxu0 0
    %2993 = vmatpush1.bf16.msra.mxu0 0
    %2994 = vmatprep.subr.bf16.mxu0 0
    %2995 = vmatpush1.bf16.msra.mxu0 0
    %2996 = vmatprep.subr.bf16.mxu0 0
    %2997 = vmatpush1.bf16.msra.mxu0 0
    %2998 = vmatprep.subr.bf16.mxu0 0
    %2999 = vmatpush1.bf16.msra.mxu0 0
    %3000 = vmatprep.mubr.bf16.mxu0 0
    %3001 = vmatmul.mubr.bf16.gmra.mrb[0].mxu0 %v2966
    %v3002 = vpop.f32.mrb[0].mxu0
    %v3003 = vadd.f32 0.0, %v3002
    %v3004 = vpop.f32.mrb[0].mxu0
    %v3005 = vpop.f32.mrb[0].mxu0
    %v3006 = vpop.f32.mrb[0].mxu0
    %3007 = vdwg.mxu0
    %3009 = vrot.lane.b32.xlu0 %v2956, 96
    %v3010 = vpop.permute.xlu0 %3009
    %v3012 = vsel %vm95, %v3010, 0
    %3014 = vmatprep.subr.bf16.mxu0 0
    %3015 = vmatpush1.bf16.msra.mxu0 %v1477
    %3016 = vmatprep.subr.bf16.mxu0 0
    %3017 = vmatpush1.bf16.msra.mxu0 %v1478
    %3018 = vmatprep.subr.bf16.mxu0 0
    %3019 = vmatpush1.bf16.msra.mxu0 0
    %3020 = vmatprep.subr.bf16.mxu0 0
    %3021 = vmatpush1.bf16.msra.mxu0 0
    %3022 = vmatprep.subr.bf16.mxu0 0
    %3023 = vmatpush1.bf16.msra.mxu0 0
    %3024 = vmatprep.subr.bf16.mxu0 0
    %3025 = vmatpush1.bf16.msra.mxu0 0
    %3026 = vmatprep.subr.bf16.mxu0 0
    %3027 = vmatpush1.bf16.msra.mxu0 0
    %3028 = vmatprep.subr.bf16.mxu0 0
    %3029 = vmatpush1.bf16.msra.mxu0 0
    %3030 = vmatprep.subr.bf16.mxu0 0
    %3031 = vmatpush1.bf16.msra.mxu0 0
    %3032 = vmatprep.subr.bf16.mxu0 0
    %3033 = vmatpush1.bf16.msra.mxu0 0
    %3034 = vmatprep.subr.bf16.mxu0 0
    %3035 = vmatpush1.bf16.msra.mxu0 0
    %3036 = vmatprep.subr.bf16.mxu0 0
    %3037 = vmatpush1.bf16.msra.mxu0 0
    %3038 = vmatprep.subr.bf16.mxu0 0
    %3039 = vmatpush1.bf16.msra.mxu0 0
    %3040 = vmatprep.subr.bf16.mxu0 0
    %3041 = vmatpush1.bf16.msra.mxu0 0
    %3042 = vmatprep.subr.bf16.mxu0 0
    %3043 = vmatpush1.bf16.msra.mxu0 0
    %3044 = vmatprep.subr.bf16.mxu0 0
    %3045 = vmatpush1.bf16.msra.mxu0 0
    %3046 = vmatprep.mubr.bf16.mxu0 0
    %3047 = vmatmul.mubr.bf16.gmra.mrb[0].mxu0 %v3012
    %v3048 = vpop.f32.mrb[0].mxu0
    %v3049 = vadd.f32 %v3003, %v3048
    %v3050 = vpop.f32.mrb[0].mxu0
    %v3051 = vpop.f32.mrb[0].mxu0
    %v3052 = vpop.f32.mrb[0].mxu0
    %3053 = vdwg.mxu0
    %v3054 = vadd.f32 %v3049, %v1528
    %v3055 = vsel %vm1531, %v3054, -inf
    %3056 = vmax.xlane.f32.xlu0 %v3055
    %v3057 = vpop.xlane.xlu0 %3056
    %vm3058 = vcmp.eq.f32.partialorder %v3054, %v3057
    %v3059 = vsel %vm3058, %v63, 32
    %v3060 = vsel %vm1531, %v3059, 2147483647
    %v3061 = vand.u32 %v3060, 65535
    %v3062 = vshra.s32 %v3060, 16
    %v3063 = vcvt.s32.f32 %v3061
    %v3064 = vcvt.s32.f32 %v3062
    %3065 = vmin.xlane.f32.xlu0 %v3064
    %v3066 = vpop.xlane.xlu0 %3065
    %vm3067 = vcmp.eq.f32.partialorder %v3064, %v3066
    %v3068 = vsel %vm3067, %v3063, inf
    %3069 = vmin.xlane.f32.xlu0 %v3068
    %v3070 = vpop.xlane.xlu0 %3069
    %v3071 = vcvt.f32.s32 %v3070
    %v3072 = vcvt.f32.s32 %v3066
    %v3073 = vshll.u32 %v3072, 16
    %v3074 = vadd.s32 %v3073, %v3071
    %v3075 = vsel %vm2697, 2, %v3074
    %v3076 = vadd.s32 %v2695, 1
    %v3077 = vsel %vm2697, %v2695, %v3076
    %vm3078 = vcmp.eq.s32.totalorder %v3075, 2
    %vm3079 = vmor %vm2697, %vm3078
    %vm3080 = vcmask 33824
    %3081 = vst.msk [vmem:[#allocation3] sm:$0x3] %vm3080, %v3075
    %vm3082 = vcmp.eq.s32.totalorder %v3075, %v63
    %v3083 = vsel %vm3082, 1, 0
    %v3084 = vcvt.s32.f32 %v3083
    %v3085 = vpack.c.bf16 %v3084, %v3084
    %v3087 = vsel %vm95, %v3085, 0
    %3089 = vmatprep.subr.bf16.mxu0 0
    %3090 = vmatpush1.bf16.msra.mxu0 %v1108
    %3091 = vmatprep.subr.bf16.mxu0 0
    %3092 = vmatpush1.bf16.msra.mxu0 %v1109
    %3093 = vmatprep.subr.bf16.mxu0 0
    %3094 = vmatpush1.bf16.msra.mxu0 0
    %3095 = vmatprep.subr.bf16.mxu0 0
    %3096 = vmatpush1.bf16.msra.mxu0 0
    %3097 = vmatprep.subr.bf16.mxu0 0
    %3098 = vmatpush1.bf16.msra.mxu0 0
    %3099 = vmatprep.subr.bf16.mxu0 0
    %3100 = vmatpush1.bf16.msra.mxu0 0
    %3101 = vmatprep.subr.bf16.mxu0 0
    %3102 = vmatpush1.bf16.msra.mxu0 0
    %3103 = vmatprep.subr.bf16.mxu0 0
    %3104 = vmatpush1.bf16.msra.mxu0 0
    %3105 = vmatprep.subr.bf16.mxu0 0
    %3106 = vmatpush1.bf16.msra.mxu0 0
    %3107 = vmatprep.subr.bf16.mxu0 0
    %3108 = vmatpush1.bf16.msra.mxu0 0
    %3109 = vmatprep.subr.bf16.mxu0 0
    %3110 = vmatpush1.bf16.msra.mxu0 0
    %3111 = vmatprep.subr.bf16.mxu0 0
    %3112 = vmatpush1.bf16.msra.mxu0 0
    %3113 = vmatprep.subr.bf16.mxu0 0
    %3114 = vmatpush1.bf16.msra.mxu0 0
    %3115 = vmatprep.subr.bf16.mxu0 0
    %3116 = vmatpush1.bf16.msra.mxu0 0
    %3117 = vmatprep.subr.bf16.mxu0 0
    %3118 = vmatpush1.bf16.msra.mxu0 0
    %3119 = vmatprep.subr.bf16.mxu0 0
    %3120 = vmatpush1.bf16.msra.mxu0 0
    %3121 = vmatprep.mubr.bf16.mxu0 0
    %3122 = vmatmul.mubr.bf16.gmra.mrb[0].mxu0 %v3087
    %v3123 = vpop.f32.mrb[0].mxu0
    %v3124 = vadd.f32 0.0, %v3123
    %v3125 = vpop.f32.mrb[0].mxu0
    %v3126 = vpop.f32.mrb[0].mxu0
    %v3127 = vpop.f32.mrb[0].mxu0
    %3128 = vdwg.mxu0
    %3129 = vmatprep.subr.bf16.mxu0 0
    %3130 = vmatpush1.bf16.msra.mxu0 %v1174
    %3131 = vmatprep.subr.bf16.mxu0 0
    %3132 = vmatpush1.bf16.msra.mxu0 %v1175
    %3133 = vmatprep.subr.bf16.mxu0 0
    %3134 = vmatpush1.bf16.msra.mxu0 0
    %3135 = vmatprep.subr.bf16.mxu0 0
    %3136 = vmatpush1.bf16.msra.mxu0 0
    %3137 = vmatprep.subr.bf16.mxu0 0
    %3138 = vmatpush1.bf16.msra.mxu0 0
    %3139 = vmatprep.subr.bf16.mxu0 0
    %3140 = vmatpush1.bf16.msra.mxu0 0
    %3141 = vmatprep.subr.bf16.mxu0 0
    %3142 = vmatpush1.bf16.msra.mxu0 0
    %3143 = vmatprep.subr.bf16.mxu0 0
    %3144 = vmatpush1.bf16.msra.mxu0 0
    %3145 = vmatprep.subr.bf16.mxu0 0
    %3146 = vmatpush1.bf16.msra.mxu0 0
    %3147 = vmatprep.subr.bf16.mxu0 0
    %3148 = vmatpush1.bf16.msra.mxu0 0
    %3149 = vmatprep.subr.bf16.mxu0 0
    %3150 = vmatpush1.bf16.msra.mxu0 0
    %3151 = vmatprep.subr.bf16.mxu0 0
    %3152 = vmatpush1.bf16.msra.mxu0 0
    %3153 = vmatprep.subr.bf16.mxu0 0
    %3154 = vmatpush1.bf16.msra.mxu0 0
    %3155 = vmatprep.subr.bf16.mxu0 0
    %3156 = vmatpush1.bf16.msra.mxu0 0
    %3157 = vmatprep.subr.bf16.mxu0 0
    %3158 = vmatpush1.bf16.msra.mxu0 0
    %3159 = vmatprep.subr.bf16.mxu0 0
    %3160 = vmatpush1.bf16.msra.mxu0 0
    %3161 = vmatprep.mubr.bf16.mxu0 0
    %3162 = vmatmul.mubr.bf16.gmra.mrb[0].mxu0 %v3012
    %v3163 = vpop.f32.mrb[0].mxu0
    %v3164 = vadd.f32 %v1160, %v3163
    %v3165 = vpop.f32.mrb[0].mxu0
    %v3166 = vpop.f32.mrb[0].mxu0
    %v3167 = vpop.f32.mrb[0].mxu0
    %3168 = vdwg.mxu0
    %v3169 = vadd.f32 %v3124, %v3164
    %v3170 = vxor.u32 %v3169, 2147483648
    %v3171 = vmul.f32 %v3170, 1.442695
    %v3172 = vpow.pop %v3171
    %v3173 = vadd.f32 %v3172, 1.0
    %v3174 = vrcp.pop %v3173
    %v3175 = vmul.f32 1.0, %v3174
    %3177 = vrot.lane.b32.xlu0 %v3164, 64
    %v3178 = vpop.permute.xlu0 %3177
    %v3180 = vmul.f32 %v3175, %v3178
    %3182 = vrot.lane.b32.xlu0 %v3180, 64
    %v3183 = vpop.permute.xlu0 %3182
    %v3185 = vadd.f32 %v3124, %v3183
    %v3186 = vtanh.pop %v3185
    %v3187 = vsub.f32 1.0, %v3175
    %3189 = vrot.lane.b32.xlu0 %v3186, 96
    %v3190 = vpop.permute.xlu0 %3189
    %v3192 = vmul.f32 %v3187, %v3190
    %v3193 = vmul.f32 %v3175, %v2812
    %v3194 = vadd.f32 %v3192, %v3193
    %v3197 = vunpack.c.l.s4 1966171168
    %v3198 = vunpack.c.0.s8 %v3197
    %v3199 = vlaneseq
    %v3200 = vshrl.u32 %v3199, 7
    %v3201 = vsub.s32 %v3198, %v3200
    %v3202 = vrot.slane %v3194, %v3201
    %v3203 = vcombine.high %v3202, %v3202
    %v3205 = vunpack.c.l.s4 1966171168
    %v3206 = vunpack.c.0.s8 %v3205
    %v3207 = vlaneseq
    %v3208 = vshrl.u32 %v3207, 7
    %v3209 = vsub.s32 %v3206, %v3208
    %v3210 = vrot.slane %v3202, %v3209
    %v3212 = vunpack.c.l.s4 1966171168
    %v3213 = vunpack.c.0.s8 %v3212
    %v3214 = vlaneseq
    %v3215 = vshrl.u32 %v3214, 7
    %v3216 = vsub.s32 %v3213, %v3215
    %v3217 = vrot.slane %v3203, %v3216
    %v3218 = vlaneseq
    %v3219 = vshrl.u32 %v3218, 7
    %v3220 = vsub.s32 0, %v3219
    %v3221 = vrot.slane %v3210, %v3220
    %v3222 = vlaneseq
    %v3223 = vshrl.u32 %v3222, 7
    %v3224 = vsub.s32 0, %v3223
    %v3225 = vrot.slane %v3217, %v3224
    %v3228 = vmul.f32 %v3221, %v1285
    %v3229 = vmul.f32 %v3225, %v1287
    %3232 = vrot.lane.b32.xlu0 %v3228, 96
    %v3233 = vpop.permute.xlu0 %3232
    %3234 = vrot.lane.b32.xlu0 %v3229, 96
    %v3235 = vpop.permute.xlu0 %3234
    %v3238 = vsel %vm95, %v3233, 0.0
    %3239 = vadd.xlane.f32.xlu0 %v3238
    %v3240 = vpop.xlane.xlu0 %3239
    %v3241 = vsel %vm95, %v3235, 0.0
    %3242 = vadd.xlane.f32.xlu0 %v3241
    %v3243 = vpop.xlane.xlu0 %3242
    %v3246 = vlaneseq
    %v3247 = vshrl.u32 %v3246, 7
    %v3248 = vsub.s32 %v63, %v3247
    %v3249 = vrot.slane %v3240, %v3248
    %v3250 = vlaneseq
    %v3251 = vshrl.u32 %v3250, 7
    %v3252 = vsub.s32 %v63, %v3251
    %v3253 = vrot.slane %v3243, %v3252
    %v3254 = vsel %vm1316, %v3253, %v3249
    %v3256 = vsel %vm1319, %v3254, -inf
    %3257 = vmax.xlane.f32.xlu0 %v3256
    %v3258 = vpop.xlane.xlu0 %3257
    %v3260 = vlaneseq
    %v3261 = vshrl.u32 %v3260, 7
    %v3262 = vsub.s32 0, %v3261
    %v3263 = vrot.slane %v3258, %v3262
    %v3264 = vlaneseq
    %v3265 = vshrl.u32 %v3264, 7
    %v3266 = vsub.s32 1, %v3265
    %v3267 = vrot.slane %v3258, %v3266
    %v3270 = vsub.f32 %v3240, %v3263
    %v3271 = vsub.f32 %v3243, %v3267
    %v3272 = vmul.f32 %v3270, 1.442695
    %v3273 = vpow.pop %v3272
    %v3274 = vmul.f32 %v3271, 1.442695
    %v3275 = vpow.pop %v3274
    %3278 = vset.pattern.permute.xlu0 0
    %3279 = vperm.xlu0 %3278, %v3273
    %v3280 = vpop.permute.xlu0 %3279
    %3281 = vset.pattern.permute.xlu0 0
    %3282 = vperm.xlu0 %3281, %v3275
    %v3283 = vpop.permute.xlu0 %3282
    %v3284 = vlaneseq
    %v3285 = vshrl.u32 %v3284, 7
    %v3286 = vsub.s32 %v63, %v3285
    %v3287 = vrot.slane %v3280, %v3286
    %v3288 = vlaneseq
    %v3289 = vshrl.u32 %v3288, 7
    %v3290 = vsub.s32 %v63, %v3289
    %v3291 = vrot.slane %v3283, %v3290
    %v3292 = vsel %vm1316, %v3291, %v3287
    %v3294 = vsel %vm1319, %v3292, 0.0
    %3295 = vadd.xlane.f32.xlu0 %v3294
    %v3296 = vpop.xlane.xlu0 %3295
    %v3298 = vlaneseq
    %v3299 = vshrl.u32 %v3298, 7
    %v3300 = vsub.s32 0, %v3299
    %v3301 = vrot.slane %v3296, %v3300
    %v3302 = vlaneseq
    %v3303 = vshrl.u32 %v3302, 7
    %v3304 = vsub.s32 1, %v3303
    %v3305 = vrot.slane %v3296, %v3304
    %v3308 = vrcp.pop %v3301
    %v3309 = vmul.f32 %v3273, %v3308
    %v3310 = vrcp.pop %v3305
    %v3311 = vmul.f32 %v3275, %v3310
    %3313 = vset.pattern.permute.xlu0 0
    %3314 = vperm.xlu0 %3313, %v3309
    %v3315 = vpop.permute.xlu0 %3314
    %3318 = vset.pattern.permute.xlu0 0
    %3319 = vperm.xlu0 %3318, %v3311
    %v3320 = vpop.permute.xlu0 %3319
    %v3322 = vmul.f32 %v3315, %v1094
    %v3323 = vmul.f32 %v3320, %v1095
    %v3324 = vsel %vm95, %v3322, 0.0
    %v3325 = vrot.slane %v3324, 4
    %v3326 = vadd.f32 %v3324, %v3325
    %v3327 = vrot.slane %v3326, 2
    %v3328 = vadd.f32 %v3326, %v3327
    %v3329 = vrot.slane %v3328, 1
    %v3330 = vadd.f32 %v3328, %v3329
    %v3331 = vsel %vm95, %v3323, 0.0
    %v3332 = vrot.slane %v3331, 4
    %v3333 = vadd.f32 %v3331, %v3332
    %v3334 = vrot.slane %v3333, 2
    %v3335 = vadd.f32 %v3333, %v3334
    %v3336 = vrot.slane %v3335, 1
    %v3337 = vadd.f32 %v3335, %v3336
    %v3338 = vpack.c.bf16 %v3194, %v3194
    %v3339 = vpack.c.bf16 %v3330, %v3330
    %v3340 = vpack.c.bf16 %v3337, %v3337
    %v3343 = vunpack.c.l.b16 %v3339
    %v3344 = vunpack.c.l.b16 %v3340
    %v3345 = vsel %vm1316, %v3344, %v3343
    %v3346 = vpack.c.b16 %v3345, %v3345
    %v3348 = vsel %vm95, %v3346, 0
    %3350 = vmatprep.subr.bf16.mxu0 0
    %3351 = vmatpush1.bf16.msra.mxu0 %v1419
    %3352 = vmatprep.subr.bf16.mxu0 0
    %3353 = vmatpush1.bf16.msra.mxu0 %v1420
    %3354 = vmatprep.subr.bf16.mxu0 0
    %3355 = vmatpush1.bf16.msra.mxu0 0
    %3356 = vmatprep.subr.bf16.mxu0 0
    %3357 = vmatpush1.bf16.msra.mxu0 0
    %3358 = vmatprep.subr.bf16.mxu0 0
    %3359 = vmatpush1.bf16.msra.mxu0 0
    %3360 = vmatprep.subr.bf16.mxu0 0
    %3361 = vmatpush1.bf16.msra.mxu0 0
    %3362 = vmatprep.subr.bf16.mxu0 0
    %3363 = vmatpush1.bf16.msra.mxu0 0
    %3364 = vmatprep.subr.bf16.mxu0 0
    %3365 = vmatpush1.bf16.msra.mxu0 0
    %3366 = vmatprep.subr.bf16.mxu0 0
    %3367 = vmatpush1.bf16.msra.mxu0 0
    %3368 = vmatprep.subr.bf16.mxu0 0
    %3369 = vmatpush1.bf16.msra.mxu0 0
    %3370 = vmatprep.subr.bf16.mxu0 0
    %3371 = vmatpush1.bf16.msra.mxu0 0
    %3372 = vmatprep.subr.bf16.mxu0 0
    %3373 = vmatpush1.bf16.msra.mxu0 0
    %3374 = vmatprep.subr.bf16.mxu0 0
    %3375 = vmatpush1.bf16.msra.mxu0 0
    %3376 = vmatprep.subr.bf16.mxu0 0
    %3377 = vmatpush1.bf16.msra.mxu0 0
    %3378 = vmatprep.subr.bf16.mxu0 0
    %3379 = vmatpush1.bf16.msra.mxu0 0
    %3380 = vmatprep.subr.bf16.mxu0 0
    %3381 = vmatpush1.bf16.msra.mxu0 0
    %3382 = vmatprep.mubr.bf16.mxu0 0
    %3383 = vmatmul.mubr.bf16.gmra.mrb[0].mxu0 %v3348
    %v3384 = vpop.f32.mrb[0].mxu0
    %v3385 = vadd.f32 0.0, %v3384
    %v3386 = vpop.f32.mrb[0].mxu0
    %v3387 = vpop.f32.mrb[0].mxu0
    %v3388 = vpop.f32.mrb[0].mxu0
    %3389 = vdwg.mxu0
    %3391 = vrot.lane.b32.xlu0 %v3338, 96
    %v3392 = vpop.permute.xlu0 %3391
    %v3394 = vsel %vm95, %v3392, 0
    %3396 = vmatprep.subr.bf16.mxu0 0
    %3397 = vmatpush1.bf16.msra.mxu0 %v1477
    %3398 = vmatprep.subr.bf16.mxu0 0
    %3399 = vmatpush1.bf16.msra.mxu0 %v1478
    %3400 = vmatprep.subr.bf16.mxu0 0
    %3401 = vmatpush1.bf16.msra.mxu0 0
    %3402 = vmatprep.subr.bf16.mxu0 0
    %3403 = vmatpush1.bf16.msra.mxu0 0
    %3404 = vmatprep.subr.bf16.mxu0 0
    %3405 = vmatpush1.bf16.msra.mxu0 0
    %3406 = vmatprep.subr.bf16.mxu0 0
    %3407 = vmatpush1.bf16.msra.mxu0 0
    %3408 = vmatprep.subr.bf16.mxu0 0
    %3409 = vmatpush1.bf16.msra.mxu0 0
    %3410 = vmatprep.subr.bf16.mxu0 0
    %3411 = vmatpush1.bf16.msra.mxu0 0
    %3412 = vmatprep.subr.bf16.mxu0 0
    %3413 = vmatpush1.bf16.msra.mxu0 0
    %3414 = vmatprep.subr.bf16.mxu0 0
    %3415 = vmatpush1.bf16.msra.mxu0 0
    %3416 = vmatprep.subr.bf16.mxu0 0
    %3417 = vmatpush1.bf16.msra.mxu0 0
    %3418 = vmatprep.subr.bf16.mxu0 0
    %3419 = vmatpush1.bf16.msra.mxu0 0
    %3420 = vmatprep.subr.bf16.mxu0 0
    %3421 = vmatpush1.bf16.msra.mxu0 0
    %3422 = vmatprep.subr.bf16.mxu0 0
    %3423 = vmatpush1.bf16.msra.mxu0 0
    %3424 = vmatprep.subr.bf16.mxu0 0
    %3425 = vmatpush1.bf16.msra.mxu0 0
    %3426 = vmatprep.subr.bf16.mxu0 0
    %3427 = vmatpush1.bf16.msra.mxu0 0
    %3428 = vmatprep.mubr.bf16.mxu0 0
    %3429 = vmatmul.mubr.bf16.gmra.mrb[0].mxu0 %v3394
    %v3430 = vpop.f32.mrb[0].mxu0
    %v3431 = vadd.f32 %v3385, %v3430
    %v3432 = vpop.f32.mrb[0].mxu0
    %v3433 = vpop.f32.mrb[0].mxu0
    %v3434 = vpop.f32.mrb[0].mxu0
    %3435 = vdwg.mxu0
    %v3436 = vadd.f32 %v3431, %v1528
    %v3437 = vsel %vm1531, %v3436, -inf
    %3438 = vmax.xlane.f32.xlu0 %v3437
    %v3439 = vpop.xlane.xlu0 %3438
    %vm3440 = vcmp.eq.f32.partialorder %v3436, %v3439
    %v3441 = vsel %vm3440, %v63, 32
    %v3442 = vsel %vm1531, %v3441, 2147483647
    %v3443 = vand.u32 %v3442, 65535
    %v3444 = vshra.s32 %v3442, 16
    %v3445 = vcvt.s32.f32 %v3443
    %v3446 = vcvt.s32.f32 %v3444
    %3447 = vmin.xlane.f32.xlu0 %v3446
    %v3448 = vpop.xlane.xlu0 %3447
    %vm3449 = vcmp.eq.f32.partialorder %v3446, %v3448
    %v3450 = vsel %vm3449, %v3445, inf
    %3451 = vmin.xlane.f32.xlu0 %v3450
    %v3452 = vpop.xlane.xlu0 %3451
    %v3453 = vcvt.f32.s32 %v3452
    %v3454 = vcvt.f32.s32 %v3448
    %v3455 = vshll.u32 %v3454, 16
    %v3456 = vadd.s32 %v3455, %v3453
    %v3457 = vsel %vm3079, 2, %v3456
    %v3458 = vadd.s32 %v3077, 1
    %v3459 = vsel %vm3079, %v3077, %v3458
    %vm3460 = vcmp.eq.s32.totalorder %v3457, 2
    %vm3461 = vmor %vm3079, %vm3460
    %vm3462 = vcmask 42024
    %3463 = vst.msk [vmem:[#allocation3] sm:$0x3] %vm3462, %v3457
    %vm3464 = vcmp.eq.s32.totalorder %v3457, %v63
    %v3465 = vsel %vm3464, 1, 0
    %v3466 = vcvt.s32.f32 %v3465
    %v3467 = vpack.c.bf16 %v3466, %v3466
    %v3469 = vsel %vm95, %v3467, 0
    %3471 = vmatprep.subr.bf16.mxu0 0
    %3472 = vmatpush1.bf16.msra.mxu0 %v1108
    %3473 = vmatprep.subr.bf16.mxu0 0
    %3474 = vmatpush1.bf16.msra.mxu0 %v1109
    %3475 = vmatprep.subr.bf16.mxu0 0
    %3476 = vmatpush1.bf16.msra.mxu0 0
    %3477 = vmatprep.subr.bf16.mxu0 0
    %3478 = vmatpush1.bf16.msra.mxu0 0
    %3479 = vmatprep.subr.bf16.mxu0 0
    %3480 = vmatpush1.bf16.msra.mxu0 0
    %3481 = vmatprep.subr.bf16.mxu0 0
    %3482 = vmatpush1.bf16.msra.mxu0 0
    %3483 = vmatprep.subr.bf16.mxu0 0
    %3484 = vmatpush1.bf16.msra.mxu0 0
    %3485 = vmatprep.subr.bf16.mxu0 0
    %3486 = vmatpush1.bf16.msra.mxu0 0
    %3487 = vmatprep.subr.bf16.mxu0 0
    %3488 = vmatpush1.bf16.msra.mxu0 0
    %3489 = vmatprep.subr.bf16.mxu0 0
    %3490 = vmatpush1.bf16.msra.mxu0 0
    %3491 = vmatprep.subr.bf16.mxu0 0
    %3492 = vmatpush1.bf16.msra.mxu0 0
    %3493 = vmatprep.subr.bf16.mxu0 0
    %3494 = vmatpush1.bf16.msra.mxu0 0
    %3495 = vmatprep.subr.bf16.mxu0 0
    %3496 = vmatpush1.bf16.msra.mxu0 0
    %3497 = vmatprep.subr.bf16.mxu0 0
    %3498 = vmatpush1.bf16.msra.mxu0 0
    %3499 = vmatprep.subr.bf16.mxu0 0
    %3500 = vmatpush1.bf16.msra.mxu0 0
    %3501 = vmatprep.subr.bf16.mxu0 0
    %3502 = vmatpush1.bf16.msra.mxu0 0
    %3503 = vmatprep.mubr.bf16.mxu0 0
    %3504 = vmatmul.mubr.bf16.gmra.mrb[0].mxu0 %v3469
    %v3505 = vpop.f32.mrb[0].mxu0
    %v3506 = vadd.f32 0.0, %v3505
    %v3507 = vpop.f32.mrb[0].mxu0
    %v3508 = vpop.f32.mrb[0].mxu0
    %v3509 = vpop.f32.mrb[0].mxu0
    %3510 = vdwg.mxu0
    %3511 = vmatprep.subr.bf16.mxu0 0
    %3512 = vmatpush1.bf16.msra.mxu0 %v1174
    %3513 = vmatprep.subr.bf16.mxu0 0
    %3514 = vmatpush1.bf16.msra.mxu0 %v1175
    %3515 = vmatprep.subr.bf16.mxu0 0
    %3516 = vmatpush1.bf16.msra.mxu0 0
    %3517 = vmatprep.subr.bf16.mxu0 0
    %3518 = vmatpush1.bf16.msra.mxu0 0
    %3519 = vmatprep.subr.bf16.mxu0 0
    %3520 = vmatpush1.bf16.msra.mxu0 0
    %3521 = vmatprep.subr.bf16.mxu0 0
    %3522 = vmatpush1.bf16.msra.mxu0 0
    %3523 = vmatprep.subr.bf16.mxu0 0
    %3524 = vmatpush1.bf16.msra.mxu0 0
    %3525 = vmatprep.subr.bf16.mxu0 0
    %3526 = vmatpush1.bf16.msra.mxu0 0
    %3527 = vmatprep.subr.bf16.mxu0 0
    %3528 = vmatpush1.bf16.msra.mxu0 0
    %3529 = vmatprep.subr.bf16.mxu0 0
    %3530 = vmatpush1.bf16.msra.mxu0 0
    %3531 = vmatprep.subr.bf16.mxu0 0
    %3532 = vmatpush1.bf16.msra.mxu0 0
    %3533 = vmatprep.subr.bf16.mxu0 0
    %3534 = vmatpush1.bf16.msra.mxu0 0
    %3535 = vmatprep.subr.bf16.mxu0 0
    %3536 = vmatpush1.bf16.msra.mxu0 0
    %3537 = vmatprep.subr.bf16.mxu0 0
    %3538 = vmatpush1.bf16.msra.mxu0 0
    %3539 = vmatprep.subr.bf16.mxu0 0
    %3540 = vmatpush1.bf16.msra.mxu0 0
    %3541 = vmatprep.subr.bf16.mxu0 0
    %3542 = vmatpush1.bf16.msra.mxu0 0
    %3543 = vmatprep.mubr.bf16.mxu0 0
    %3544 = vmatmul.mubr.bf16.gmra.mrb[0].mxu0 %v3394
    %v3545 = vpop.f32.mrb[0].mxu0
    %v3546 = vadd.f32 %v1160, %v3545
    %v3547 = vpop.f32.mrb[0].mxu0
    %v3548 = vpop.f32.mrb[0].mxu0
    %v3549 = vpop.f32.mrb[0].mxu0
    %3550 = vdwg.mxu0
    %v3551 = vadd.f32 %v3506, %v3546
    %v3552 = vxor.u32 %v3551, 2147483648
    %v3553 = vmul.f32 %v3552, 1.442695
    %v3554 = vpow.pop %v3553
    %v3555 = vadd.f32 %v3554, 1.0
    %v3556 = vrcp.pop %v3555
    %v3557 = vmul.f32 1.0, %v3556
    %3559 = vrot.lane.b32.xlu0 %v3546, 64
    %v3560 = vpop.permute.xlu0 %3559
    %v3562 = vmul.f32 %v3557, %v3560
    %3564 = vrot.lane.b32.xlu0 %v3562, 64
    %v3565 = vpop.permute.xlu0 %3564
    %v3567 = vadd.f32 %v3506, %v3565
    %v3568 = vtanh.pop %v3567
    %v3569 = vsub.f32 1.0, %v3557
    %3571 = vrot.lane.b32.xlu0 %v3568, 96
    %v3572 = vpop.permute.xlu0 %3571
    %v3574 = vmul.f32 %v3569, %v3572
    %v3575 = vmul.f32 %v3557, %v3194
    %v3576 = vadd.f32 %v3574, %v3575
    %v3579 = vunpack.c.l.s4 1966171168
    %v3580 = vunpack.c.0.s8 %v3579
    %v3581 = vlaneseq
    %v3582 = vshrl.u32 %v3581, 7
    %v3583 = vsub.s32 %v3580, %v3582
    %v3584 = vrot.slane %v3576, %v3583
    %v3585 = vcombine.high %v3584, %v3584
    %v3587 = vunpack.c.l.s4 1966171168
    %v3588 = vunpack.c.0.s8 %v3587
    %v3589 = vlaneseq
    %v3590 = vshrl.u32 %v3589, 7
    %v3591 = vsub.s32 %v3588, %v3590
    %v3592 = vrot.slane %v3584, %v3591
    %v3594 = vunpack.c.l.s4 1966171168
    %v3595 = vunpack.c.0.s8 %v3594
    %v3596 = vlaneseq
    %v3597 = vshrl.u32 %v3596, 7
    %v3598 = vsub.s32 %v3595, %v3597
    %v3599 = vrot.slane %v3585, %v3598
    %v3600 = vlaneseq
    %v3601 = vshrl.u32 %v3600, 7
    %v3602 = vsub.s32 0, %v3601
    %v3603 = vrot.slane %v3592, %v3602
    %v3604 = vlaneseq
    %v3605 = vshrl.u32 %v3604, 7
    %v3606 = vsub.s32 0, %v3605
    %v3607 = vrot.slane %v3599, %v3606
    %v3610 = vmul.f32 %v3603, %v1285
    %v3611 = vmul.f32 %v3607, %v1287
    %3614 = vrot.lane.b32.xlu0 %v3610, 96
    %v3615 = vpop.permute.xlu0 %3614
    %3616 = vrot.lane.b32.xlu0 %v3611, 96
    %v3617 = vpop.permute.xlu0 %3616
    %v3620 = vsel %vm95, %v3615, 0.0
    %3621 = vadd.xlane.f32.xlu0 %v3620
    %v3622 = vpop.xlane.xlu0 %3621
    %v3623 = vsel %vm95, %v3617, 0.0
    %3624 = vadd.xlane.f32.xlu0 %v3623
    %v3625 = vpop.xlane.xlu0 %3624
    %v3628 = vlaneseq
    %v3629 = vshrl.u32 %v3628, 7
    %v3630 = vsub.s32 %v63, %v3629
    %v3631 = vrot.slane %v3622, %v3630
    %v3632 = vlaneseq
    %v3633 = vshrl.u32 %v3632, 7
    %v3634 = vsub.s32 %v63, %v3633
    %v3635 = vrot.slane %v3625, %v3634
    %v3636 = vsel %vm1316, %v3635, %v3631
    %v3638 = vsel %vm1319, %v3636, -inf
    %3639 = vmax.xlane.f32.xlu0 %v3638
    %v3640 = vpop.xlane.xlu0 %3639
    %v3642 = vlaneseq
    %v3643 = vshrl.u32 %v3642, 7
    %v3644 = vsub.s32 0, %v3643
    %v3645 = vrot.slane %v3640, %v3644
    %v3646 = vlaneseq
    %v3647 = vshrl.u32 %v3646, 7
    %v3648 = vsub.s32 1, %v3647
    %v3649 = vrot.slane %v3640, %v3648
    %v3652 = vsub.f32 %v3622, %v3645
    %v3653 = vsub.f32 %v3625, %v3649
    %v3654 = vmul.f32 %v3652, 1.442695
    %v3655 = vpow.pop %v3654
    %v3656 = vmul.f32 %v3653, 1.442695
    %v3657 = vpow.pop %v3656
    %3660 = vset.pattern.permute.xlu0 0
    %3661 = vperm.xlu0 %3660, %v3655
    %v3662 = vpop.permute.xlu0 %3661
    %3663 = vset.pattern.permute.xlu0 0
    %3664 = vperm.xlu0 %3663, %v3657
    %v3665 = vpop.permute.xlu0 %3664
    %v3666 = vlaneseq
    %v3667 = vshrl.u32 %v3666, 7
    %v3668 = vsub.s32 %v63, %v3667
    %v3669 = vrot.slane %v3662, %v3668
    %v3670 = vlaneseq
    %v3671 = vshrl.u32 %v3670, 7
    %v3672 = vsub.s32 %v63, %v3671
    %v3673 = vrot.slane %v3665, %v3672
    %v3674 = vsel %vm1316, %v3673, %v3669
    %v3676 = vsel %vm1319, %v3674, 0.0
    %3677 = vadd.xlane.f32.xlu0 %v3676
    %v3678 = vpop.xlane.xlu0 %3677
    %v3680 = vlaneseq
    %v3681 = vshrl.u32 %v3680, 7
    %v3682 = vsub.s32 0, %v3681
    %v3683 = vrot.slane %v3678, %v3682
    %v3684 = vlaneseq
    %v3685 = vshrl.u32 %v3684, 7
    %v3686 = vsub.s32 1, %v3685
    %v3687 = vrot.slane %v3678, %v3686
    %v3690 = vrcp.pop %v3683
    %v3691 = vmul.f32 %v3655, %v3690
    %v3692 = vrcp.pop %v3687
    %v3693 = vmul.f32 %v3657, %v3692
    %3695 = vset.pattern.permute.xlu0 0
    %3696 = vperm.xlu0 %3695, %v3691
    %v3697 = vpop.permute.xlu0 %3696
    %3700 = vset.pattern.permute.xlu0 0
    %3701 = vperm.xlu0 %3700, %v3693
    %v3702 = vpop.permute.xlu0 %3701
    %v3704 = vmul.f32 %v3697, %v1094
    %v3705 = vmul.f32 %v3702, %v1095
    %v3706 = vsel %vm95, %v3704, 0.0
    %v3707 = vrot.slane %v3706, 4
    %v3708 = vadd.f32 %v3706, %v3707
    %v3709 = vrot.slane %v3708, 2
    %v3710 = vadd.f32 %v3708, %v3709
    %v3711 = vrot.slane %v3710, 1
    %v3712 = vadd.f32 %v3710, %v3711
    %v3713 = vsel %vm95, %v3705, 0.0
    %v3714 = vrot.slane %v3713, 4
    %v3715 = vadd.f32 %v3713, %v3714
    %v3716 = vrot.slane %v3715, 2
    %v3717 = vadd.f32 %v3715, %v3716
    %v3718 = vrot.slane %v3717, 1
    %v3719 = vadd.f32 %v3717, %v3718
    %v3720 = vpack.c.bf16 %v3576, %v3576
    %v3721 = vpack.c.bf16 %v3712, %v3712
    %v3722 = vpack.c.bf16 %v3719, %v3719
    %v3725 = vunpack.c.l.b16 %v3721
    %v3726 = vunpack.c.l.b16 %v3722
    %v3727 = vsel %vm1316, %v3726, %v3725
    %v3728 = vpack.c.b16 %v3727, %v3727
    %v3730 = vsel %vm95, %v3728, 0
    %3732 = vmatprep.subr.bf16.mxu0 0
    %3733 = vmatpush1.bf16.msra.mxu0 %v1419
    %3734 = vmatprep.subr.bf16.mxu0 0
    %3735 = vmatpush1.bf16.msra.mxu0 %v1420
    %3736 = vmatprep.subr.bf16.mxu0 0
    %3737 = vmatpush1.bf16.msra.mxu0 0
    %3738 = vmatprep.subr.bf16.mxu0 0
    %3739 = vmatpush1.bf16.msra.mxu0 0
    %3740 = vmatprep.subr.bf16.mxu0 0
    %3741 = vmatpush1.bf16.msra.mxu0 0
    %3742 = vmatprep.subr.bf16.mxu0 0
    %3743 = vmatpush1.bf16.msra.mxu0 0
    %3744 = vmatprep.subr.bf16.mxu0 0
    %3745 = vmatpush1.bf16.msra.mxu0 0
    %3746 = vmatprep.subr.bf16.mxu0 0
    %3747 = vmatpush1.bf16.msra.mxu0 0
    %3748 = vmatprep.subr.bf16.mxu0 0
    %3749 = vmatpush1.bf16.msra.mxu0 0
    %3750 = vmatprep.subr.bf16.mxu0 0
    %3751 = vmatpush1.bf16.msra.mxu0 0
    %3752 = vmatprep.subr.bf16.mxu0 0
    %3753 = vmatpush1.bf16.msra.mxu0 0
    %3754 = vmatprep.subr.bf16.mxu0 0
    %3755 = vmatpush1.bf16.msra.mxu0 0
    %3756 = vmatprep.subr.bf16.mxu0 0
    %3757 = vmatpush1.bf16.msra.mxu0 0
    %3758 = vmatprep.subr.bf16.mxu0 0
    %3759 = vmatpush1.bf16.msra.mxu0 0
    %3760 = vmatprep.subr.bf16.mxu0 0
    %3761 = vmatpush1.bf16.msra.mxu0 0
    %3762 = vmatprep.subr.bf16.mxu0 0
    %3763 = vmatpush1.bf16.msra.mxu0 0
    %3764 = vmatprep.mubr.bf16.mxu0 0
    %3765 = vmatmul.mubr.bf16.gmra.mrb[0].mxu0 %v3730
    %v3766 = vpop.f32.mrb[0].mxu0
    %v3767 = vadd.f32 0.0, %v3766
    %v3768 = vpop.f32.mrb[0].mxu0
    %v3769 = vpop.f32.mrb[0].mxu0
    %v3770 = vpop.f32.mrb[0].mxu0
    %3771 = vdwg.mxu0
    %3773 = vrot.lane.b32.xlu0 %v3720, 96
    %v3774 = vpop.permute.xlu0 %3773
    %v3776 = vsel %vm95, %v3774, 0
    %3778 = vmatprep.subr.bf16.mxu0 0
    %3779 = vmatpush1.bf16.msra.mxu0 %v1477
    %3780 = vmatprep.subr.bf16.mxu0 0
    %3781 = vmatpush1.bf16.msra.mxu0 %v1478
    %3782 = vmatprep.subr.bf16.mxu0 0
    %3783 = vmatpush1.bf16.msra.mxu0 0
    %3784 = vmatprep.subr.bf16.mxu0 0
    %3785 = vmatpush1.bf16.msra.mxu0 0
    %3786 = vmatprep.subr.bf16.mxu0 0
    %3787 = vmatpush1.bf16.msra.mxu0 0
    %3788 = vmatprep.subr.bf16.mxu0 0
    %3789 = vmatpush1.bf16.msra.mxu0 0
    %3790 = vmatprep.subr.bf16.mxu0 0
    %3791 = vmatpush1.bf16.msra.mxu0 0
    %3792 = vmatprep.subr.bf16.mxu0 0
    %3793 = vmatpush1.bf16.msra.mxu0 0
    %3794 = vmatprep.subr.bf16.mxu0 0
    %3795 = vmatpush1.bf16.msra.mxu0 0
    %3796 = vmatprep.subr.bf16.mxu0 0
    %3797 = vmatpush1.bf16.msra.mxu0 0
    %3798 = vmatprep.subr.bf16.mxu0 0
    %3799 = vmatpush1.bf16.msra.mxu0 0
    %3800 = vmatprep.subr.bf16.mxu0 0
    %3801 = vmatpush1.bf16.msra.mxu0 0
    %3802 = vmatprep.subr.bf16.mxu0 0
    %3803 = vmatpush1.bf16.msra.mxu0 0
    %3804 = vmatprep.subr.bf16.mxu0 0
    %3805 = vmatpush1.bf16.msra.mxu0 0
    %3806 = vmatprep.subr.bf16.mxu0 0
    %3807 = vmatpush1.bf16.msra.mxu0 0
    %3808 = vmatprep.subr.bf16.mxu0 0
    %3809 = vmatpush1.bf16.msra.mxu0 0
    %3810 = vmatprep.mubr.bf16.mxu0 0
    %3811 = vmatmul.mubr.bf16.gmra.mrb[0].mxu0 %v3776
    %v3812 = vpop.f32.mrb[0].mxu0
    %v3813 = vadd.f32 %v3767, %v3812
    %v3814 = vpop.f32.mrb[0].mxu0
    %v3815 = vpop.f32.mrb[0].mxu0
    %v3816 = vpop.f32.mrb[0].mxu0
    %3817 = vdwg.mxu0
    %v3818 = vadd.f32 %v3813, %v1528
    %v3819 = vsel %vm1531, %v3818, -inf
    %3820 = vmax.xlane.f32.xlu0 %v3819
    %v3821 = vpop.xlane.xlu0 %3820
    %vm3822 = vcmp.eq.f32.partialorder %v3818, %v3821
    %v3823 = vsel %vm3822, %v63, 32
    %v3824 = vsel %vm1531, %v3823, 2147483647
    %v3825 = vand.u32 %v3824, 65535
    %v3826 = vshra.s32 %v3824, 16
    %v3827 = vcvt.s32.f32 %v3825
    %v3828 = vcvt.s32.f32 %v3826
    %3829 = vmin.xlane.f32.xlu0 %v3828
    %v3830 = vpop.xlane.xlu0 %3829
    %vm3831 = vcmp.eq.f32.partialorder %v3828, %v3830
    %v3832 = vsel %vm3831, %v3827, inf
    %3833 = vmin.xlane.f32.xlu0 %v3832
    %v3834 = vpop.xlane.xlu0 %3833
    %v3835 = vcvt.f32.s32 %v3834
    %v3836 = vcvt.f32.s32 %v3830
    %v3837 = vshll.u32 %v3836, 16
    %v3838 = vadd.s32 %v3837, %v3835
    %v3839 = vsel %vm3461, 2, %v3838
    %v3840 = vadd.s32 %v3459, 1
    %v3841 = vsel %vm3461, %v3459, %v3840
    %vm3842 = vcmp.eq.s32.totalorder %v3839, 2
    %vm3843 = vmor %vm3461, %vm3842
    %vm3844 = vcmask 50224
    %3845 = vst.msk [vmem:[#allocation3] sm:$0x3] %vm3844, %v3839
    %vm3846 = vcmp.eq.s32.totalorder %v3839, %v63
    %v3847 = vsel %vm3846, 1, 0
    %v3848 = vcvt.s32.f32 %v3847
    %v3849 = vpack.c.bf16 %v3848, %v3848
    %v3851 = vsel %vm95, %v3849, 0
    %3853 = vmatprep.subr.bf16.mxu0 0
    %3854 = vmatpush1.bf16.msra.mxu0 %v1108
    %3855 = vmatprep.subr.bf16.mxu0 0
    %3856 = vmatpush1.bf16.msra.mxu0 %v1109
    %3857 = vmatprep.subr.bf16.mxu0 0
    %3858 = vmatpush1.bf16.msra.mxu0 0
    %3859 = vmatprep.subr.bf16.mxu0 0
    %3860 = vmatpush1.bf16.msra.mxu0 0
    %3861 = vmatprep.subr.bf16.mxu0 0
    %3862 = vmatpush1.bf16.msra.mxu0 0
    %3863 = vmatprep.subr.bf16.mxu0 0
    %3864 = vmatpush1.bf16.msra.mxu0 0
    %3865 = vmatprep.subr.bf16.mxu0 0
    %3866 = vmatpush1.bf16.msra.mxu0 0
    %3867 = vmatprep.subr.bf16.mxu0 0
    %3868 = vmatpush1.bf16.msra.mxu0 0
    %3869 = vmatprep.subr.bf16.mxu0 0
    %3870 = vmatpush1.bf16.msra.mxu0 0
    %3871 = vmatprep.subr.bf16.mxu0 0
    %3872 = vmatpush1.bf16.msra.mxu0 0
    %3873 = vmatprep.subr.bf16.mxu0 0
    %3874 = vmatpush1.bf16.msra.mxu0 0
    %3875 = vmatprep.subr.bf16.mxu0 0
    %3876 = vmatpush1.bf16.msra.mxu0 0
    %3877 = vmatprep.subr.bf16.mxu0 0
    %3878 = vmatpush1.bf16.msra.mxu0 0
    %3879 = vmatprep.subr.bf16.mxu0 0
    %3880 = vmatpush1.bf16.msra.mxu0 0
    %3881 = vmatprep.subr.bf16.mxu0 0
    %3882 = vmatpush1.bf16.msra.mxu0 0
    %3883 = vmatprep.subr.bf16.mxu0 0
    %3884 = vmatpush1.bf16.msra.mxu0 0
    %3885 = vmatprep.mubr.bf16.mxu0 0
    %3886 = vmatmul.mubr.bf16.gmra.mrb[0].mxu0 %v3851
    %v3887 = vpop.f32.mrb[0].mxu0
    %v3888 = vadd.f32 0.0, %v3887
    %v3889 = vpop.f32.mrb[0].mxu0
    %v3890 = vpop.f32.mrb[0].mxu0
    %v3891 = vpop.f32.mrb[0].mxu0
    %3892 = vdwg.mxu0
    %3893 = vmatprep.subr.bf16.mxu0 0
    %3894 = vmatpush1.bf16.msra.mxu0 %v1174
    %3895 = vmatprep.subr.bf16.mxu0 0
    %3896 = vmatpush1.bf16.msra.mxu0 %v1175
    %3897 = vmatprep.subr.bf16.mxu0 0
    %3898 = vmatpush1.bf16.msra.mxu0 0
    %3899 = vmatprep.subr.bf16.mxu0 0
    %3900 = vmatpush1.bf16.msra.mxu0 0
    %3901 = vmatprep.subr.bf16.mxu0 0
    %3902 = vmatpush1.bf16.msra.mxu0 0
    %3903 = vmatprep.subr.bf16.mxu0 0
    %3904 = vmatpush1.bf16.msra.mxu0 0
    %3905 = vmatprep.subr.bf16.mxu0 0
    %3906 = vmatpush1.bf16.msra.mxu0 0
    %3907 = vmatprep.subr.bf16.mxu0 0
    %3908 = vmatpush1.bf16.msra.mxu0 0
    %3909 = vmatprep.subr.bf16.mxu0 0
    %3910 = vmatpush1.bf16.msra.mxu0 0
    %3911 = vmatprep.subr.bf16.mxu0 0
    %3912 = vmatpush1.bf16.msra.mxu0 0
    %3913 = vmatprep.subr.bf16.mxu0 0
    %3914 = vmatpush1.bf16.msra.mxu0 0
    %3915 = vmatprep.subr.bf16.mxu0 0
    %3916 = vmatpush1.bf16.msra.mxu0 0
    %3917 = vmatprep.subr.bf16.mxu0 0
    %3918 = vmatpush1.bf16.msra.mxu0 0
    %3919 = vmatprep.subr.bf16.mxu0 0
    %3920 = vmatpush1.bf16.msra.mxu0 0
    %3921 = vmatprep.subr.bf16.mxu0 0
    %3922 = vmatpush1.bf16.msra.mxu0 0
    %3923 = vmatprep.subr.bf16.mxu0 0
    %3924 = vmatpush1.bf16.msra.mxu0 0
    %3925 = vmatprep.mubr.bf16.mxu0 0
    %3926 = vmatmul.mubr.bf16.gmra.mrb[0].mxu0 %v3776
    %v3927 = vpop.f32.mrb[0].mxu0
    %v3928 = vadd.f32 %v1160, %v3927
    %v3929 = vpop.f32.mrb[0].mxu0
    %v3930 = vpop.f32.mrb[0].mxu0
    %v3931 = vpop.f32.mrb[0].mxu0
    %3932 = vdwg.mxu0
    %v3933 = vadd.f32 %v3888, %v3928
    %v3934 = vxor.u32 %v3933, 2147483648
    %v3935 = vmul.f32 %v3934, 1.442695
    %v3936 = vpow.pop %v3935
    %v3937 = vadd.f32 %v3936, 1.0
    %v3938 = vrcp.pop %v3937
    %v3939 = vmul.f32 1.0, %v3938
    %3941 = vrot.lane.b32.xlu0 %v3928, 64
    %v3942 = vpop.permute.xlu0 %3941
    %v3944 = vmul.f32 %v3939, %v3942
    %3946 = vrot.lane.b32.xlu0 %v3944, 64
    %v3947 = vpop.permute.xlu0 %3946
    %v3949 = vadd.f32 %v3888, %v3947
    %v3950 = vtanh.pop %v3949
    %v3951 = vsub.f32 1.0, %v3939
    %3953 = vrot.lane.b32.xlu0 %v3950, 96
    %v3954 = vpop.permute.xlu0 %3953
    %v3956 = vmul.f32 %v3951, %v3954
    %v3957 = vmul.f32 %v3939, %v3576
    %v3958 = vadd.f32 %v3956, %v3957
    %v3961 = vunpack.c.l.s4 1966171168
    %v3962 = vunpack.c.0.s8 %v3961
    %v3963 = vlaneseq
    %v3964 = vshrl.u32 %v3963, 7
    %v3965 = vsub.s32 %v3962, %v3964
    %v3966 = vrot.slane %v3958, %v3965
    %v3967 = vcombine.high %v3966, %v3966
    %v3969 = vunpack.c.l.s4 1966171168
    %v3970 = vunpack.c.0.s8 %v3969
    %v3971 = vlaneseq
    %v3972 = vshrl.u32 %v3971, 7
    %v3973 = vsub.s32 %v3970, %v3972
    %v3974 = vrot.slane %v3966, %v3973
    %v3976 = vunpack.c.l.s4 1966171168
    %v3977 = vunpack.c.0.s8 %v3976
    %v3978 = vlaneseq
    %v3979 = vshrl.u32 %v3978, 7
    %v3980 = vsub.s32 %v3977, %v3979
    %v3981 = vrot.slane %v3967, %v3980
    %v3982 = vlaneseq
    %v3983 = vshrl.u32 %v3982, 7
    %v3984 = vsub.s32 0, %v3983
    %v3985 = vrot.slane %v3974, %v3984
    %v3986 = vlaneseq
    %v3987 = vshrl.u32 %v3986, 7
    %v3988 = vsub.s32 0, %v3987
    %v3989 = vrot.slane %v3981, %v3988
    %v3992 = vmul.f32 %v3985, %v1285
    %v3993 = vmul.f32 %v3989, %v1287
    %3996 = vrot.lane.b32.xlu0 %v3992, 96
    %v3997 = vpop.permute.xlu0 %3996
    %3998 = vrot.lane.b32.xlu0 %v3993, 96
    %v3999 = vpop.permute.xlu0 %3998
    %v4002 = vsel %vm95, %v3997, 0.0
    %4003 = vadd.xlane.f32.xlu0 %v4002
    %v4004 = vpop.xlane.xlu0 %4003
    %v4005 = vsel %vm95, %v3999, 0.0
    %4006 = vadd.xlane.f32.xlu0 %v4005
    %v4007 = vpop.xlane.xlu0 %4006
    %v4010 = vlaneseq
    %v4011 = vshrl.u32 %v4010, 7
    %v4012 = vsub.s32 %v63, %v4011
    %v4013 = vrot.slane %v4004, %v4012
    %v4014 = vlaneseq
    %v4015 = vshrl.u32 %v4014, 7
    %v4016 = vsub.s32 %v63, %v4015
    %v4017 = vrot.slane %v4007, %v4016
    %v4018 = vsel %vm1316, %v4017, %v4013
    %v4020 = vsel %vm1319, %v4018, -inf
    %4021 = vmax.xlane.f32.xlu0 %v4020
    %v4022 = vpop.xlane.xlu0 %4021
    %v4024 = vlaneseq
    %v4025 = vshrl.u32 %v4024, 7
    %v4026 = vsub.s32 0, %v4025
    %v4027 = vrot.slane %v4022, %v4026
    %v4028 = vlaneseq
    %v4029 = vshrl.u32 %v4028, 7
    %v4030 = vsub.s32 1, %v4029
    %v4031 = vrot.slane %v4022, %v4030
    %v4034 = vsub.f32 %v4004, %v4027
    %v4035 = vsub.f32 %v4007, %v4031
    %v4036 = vmul.f32 %v4034, 1.442695
    %v4037 = vpow.pop %v4036
    %v4038 = vmul.f32 %v4035, 1.442695
    %v4039 = vpow.pop %v4038
    %4042 = vset.pattern.permute.xlu0 0
    %4043 = vperm.xlu0 %4042, %v4037
    %v4044 = vpop.permute.xlu0 %4043
    %4045 = vset.pattern.permute.xlu0 0
    %4046 = vperm.xlu0 %4045, %v4039
    %v4047 = vpop.permute.xlu0 %4046
    %v4048 = vlaneseq
    %v4049 = vshrl.u32 %v4048, 7
    %v4050 = vsub.s32 %v63, %v4049
    %v4051 = vrot.slane %v4044, %v4050
    %v4052 = vlaneseq
    %v4053 = vshrl.u32 %v4052, 7
    %v4054 = vsub.s32 %v63, %v4053
    %v4055 = vrot.slane %v4047, %v4054
    %v4056 = vsel %vm1316, %v4055, %v4051
    %v4058 = vsel %vm1319, %v4056, 0.0
    %4059 = vadd.xlane.f32.xlu0 %v4058
    %v4060 = vpop.xlane.xlu0 %4059
    %v4062 = vlaneseq
    %v4063 = vshrl.u32 %v4062, 7
    %v4064 = vsub.s32 0, %v4063
    %v4065 = vrot.slane %v4060, %v4064
    %v4066 = vlaneseq
    %v4067 = vshrl.u32 %v4066, 7
    %v4068 = vsub.s32 1, %v4067
    %v4069 = vrot.slane %v4060, %v4068
    %v4072 = vrcp.pop %v4065
    %v4073 = vmul.f32 %v4037, %v4072
    %v4074 = vrcp.pop %v4069
    %v4075 = vmul.f32 %v4039, %v4074
    %4077 = vset.pattern.permute.xlu0 0
    %4078 = vperm.xlu0 %4077, %v4073
    %v4079 = vpop.permute.xlu0 %4078
    %4082 = vset.pattern.permute.xlu0 0
    %4083 = vperm.xlu0 %4082, %v4075
    %v4084 = vpop.permute.xlu0 %4083
    %v4086 = vmul.f32 %v4079, %v1094
    %v4087 = vmul.f32 %v4084, %v1095
    %v4088 = vsel %vm95, %v4086, 0.0
    %v4089 = vrot.slane %v4088, 4
    %v4090 = vadd.f32 %v4088, %v4089
    %v4091 = vrot.slane %v4090, 2
    %v4092 = vadd.f32 %v4090, %v4091
    %v4093 = vrot.slane %v4092, 1
    %v4094 = vadd.f32 %v4092, %v4093
    %v4095 = vsel %vm95, %v4087, 0.0
    %v4096 = vrot.slane %v4095, 4
    %v4097 = vadd.f32 %v4095, %v4096
    %v4098 = vrot.slane %v4097, 2
    %v4099 = vadd.f32 %v4097, %v4098
    %v4100 = vrot.slane %v4099, 1
    %v4101 = vadd.f32 %v4099, %v4100
    %v4102 = vpack.c.bf16 %v3958, %v3958
    %v4103 = vpack.c.bf16 %v4094, %v4094
    %v4104 = vpack.c.bf16 %v4101, %v4101
    %v4107 = vunpack.c.l.b16 %v4103
    %v4108 = vunpack.c.l.b16 %v4104
    %v4109 = vsel %vm1316, %v4108, %v4107
    %v4110 = vpack.c.b16 %v4109, %v4109
    %v4112 = vsel %vm95, %v4110, 0
    %4114 = vmatprep.subr.bf16.mxu0 0
    %4115 = vmatpush1.bf16.msra.mxu0 %v1419
    %4116 = vmatprep.subr.bf16.mxu0 0
    %4117 = vmatpush1.bf16.msra.mxu0 %v1420
    %4118 = vmatprep.subr.bf16.mxu0 0
    %4119 = vmatpush1.bf16.msra.mxu0 0
    %4120 = vmatprep.subr.bf16.mxu0 0
    %4121 = vmatpush1.bf16.msra.mxu0 0
    %4122 = vmatprep.subr.bf16.mxu0 0
    %4123 = vmatpush1.bf16.msra.mxu0 0
    %4124 = vmatprep.subr.bf16.mxu0 0
    %4125 = vmatpush1.bf16.msra.mxu0 0
    %4126 = vmatprep.subr.bf16.mxu0 0
    %4127 = vmatpush1.bf16.msra.mxu0 0
    %4128 = vmatprep.subr.bf16.mxu0 0
    %4129 = vmatpush1.bf16.msra.mxu0 0
    %4130 = vmatprep.subr.bf16.mxu0 0
    %4131 = vmatpush1.bf16.msra.mxu0 0
    %4132 = vmatprep.subr.bf16.mxu0 0
    %4133 = vmatpush1.bf16.msra.mxu0 0
    %4134 = vmatprep.subr.bf16.mxu0 0
    %4135 = vmatpush1.bf16.msra.mxu0 0
    %4136 = vmatprep.subr.bf16.mxu0 0
    %4137 = vmatpush1.bf16.msra.mxu0 0
    %4138 = vmatprep.subr.bf16.mxu0 0
    %4139 = vmatpush1.bf16.msra.mxu0 0
    %4140 = vmatprep.subr.bf16.mxu0 0
    %4141 = vmatpush1.bf16.msra.mxu0 0
    %4142 = vmatprep.subr.bf16.mxu0 0
    %4143 = vmatpush1.bf16.msra.mxu0 0
    %4144 = vmatprep.subr.bf16.mxu0 0
    %4145 = vmatpush1.bf16.msra.mxu0 0
    %4146 = vmatprep.mubr.bf16.mxu0 0
    %4147 = vmatmul.mubr.bf16.gmra.mrb[0].mxu0 %v4112
    %v4148 = vpop.f32.mrb[0].mxu0
    %v4149 = vadd.f32 0.0, %v4148
    %v4150 = vpop.f32.mrb[0].mxu0
    %v4151 = vpop.f32.mrb[0].mxu0
    %v4152 = vpop.f32.mrb[0].mxu0
    %4153 = vdwg.mxu0
    %4155 = vrot.lane.b32.xlu0 %v4102, 96
    %v4156 = vpop.permute.xlu0 %4155
    %v4158 = vsel %vm95, %v4156, 0
    %4160 = vmatprep.subr.bf16.mxu0 0
    %4161 = vmatpush1.bf16.msra.mxu0 %v1477
    %4162 = vmatprep.subr.bf16.mxu0 0
    %4163 = vmatpush1.bf16.msra.mxu0 %v1478
    %4164 = vmatprep.subr.bf16.mxu0 0
    %4165 = vmatpush1.bf16.msra.mxu0 0
    %4166 = vmatprep.subr.bf16.mxu0 0
    %4167 = vmatpush1.bf16.msra.mxu0 0
    %4168 = vmatprep.subr.bf16.mxu0 0
    %4169 = vmatpush1.bf16.msra.mxu0 0
    %4170 = vmatprep.subr.bf16.mxu0 0
    %4171 = vmatpush1.bf16.msra.mxu0 0
    %4172 = vmatprep.subr.bf16.mxu0 0
    %4173 = vmatpush1.bf16.msra.mxu0 0
    %4174 = vmatprep.subr.bf16.mxu0 0
    %4175 = vmatpush1.bf16.msra.mxu0 0
    %4176 = vmatprep.subr.bf16.mxu0 0
    %4177 = vmatpush1.bf16.msra.mxu0 0
    %4178 = vmatprep.subr.bf16.mxu0 0
    %4179 = vmatpush1.bf16.msra.mxu0 0
    %4180 = vmatprep.subr.bf16.mxu0 0
    %4181 = vmatpush1.bf16.msra.mxu0 0
    %4182 = vmatprep.subr.bf16.mxu0 0
    %4183 = vmatpush1.bf16.msra.mxu0 0
    %4184 = vmatprep.subr.bf16.mxu0 0
    %4185 = vmatpush1.bf16.msra.mxu0 0
    %4186 = vmatprep.subr.bf16.mxu0 0
    %4187 = vmatpush1.bf16.msra.mxu0 0
    %4188 = vmatprep.subr.bf16.mxu0 0
    %4189 = vmatpush1.bf16.msra.mxu0 0
    %4190 = vmatprep.subr.bf16.mxu0 0
    %4191 = vmatpush1.bf16.msra.mxu0 0
    %4192 = vmatprep.mubr.bf16.mxu0 0
    %4193 = vmatmul.mubr.bf16.gmra.mrb[0].mxu0 %v4158
    %v4194 = vpop.f32.mrb[0].mxu0
    %v4195 = vadd.f32 %v4149, %v4194
    %v4196 = vpop.f32.mrb[0].mxu0
    %v4197 = vpop.f32.mrb[0].mxu0
    %v4198 = vpop.f32.mrb[0].mxu0
    %4199 = vdwg.mxu0
    %v4200 = vadd.f32 %v4195, %v1528
    %v4201 = vsel %vm1531, %v4200, -inf
    %4202 = vmax.xlane.f32.xlu0 %v4201
    %v4203 = vpop.xlane.xlu0 %4202
    %vm4204 = vcmp.eq.f32.partialorder %v4200, %v4203
    %v4205 = vsel %vm4204, %v63, 32
    %v4206 = vsel %vm1531, %v4205, 2147483647
    %v4207 = vand.u32 %v4206, 65535
    %v4208 = vshra.s32 %v4206, 16
    %v4209 = vcvt.s32.f32 %v4207
    %v4210 = vcvt.s32.f32 %v4208
    %4211 = vmin.xlane.f32.xlu0 %v4210
    %v4212 = vpop.xlane.xlu0 %4211
    %vm4213 = vcmp.eq.f32.partialorder %v4210, %v4212
    %v4214 = vsel %vm4213, %v4209, inf
    %4215 = vmin.xlane.f32.xlu0 %v4214
    %v4216 = vpop.xlane.xlu0 %4215
    %v4217 = vcvt.f32.s32 %v4216
    %v4218 = vcvt.f32.s32 %v4212
    %v4219 = vshll.u32 %v4218, 16
    %v4220 = vadd.s32 %v4219, %v4217
    %v4221 = vsel %vm3843, 2, %v4220
    %v4222 = vadd.s32 %v3841, 1
    %v4223 = vsel %vm3843, %v3841, %v4222
    %vm4224 = vcmp.eq.s32.totalorder %v4221, 2
    %vm4225 = vmor %vm3843, %vm4224
    %vm4226 = vcmask 58424
    %4227 = vst.msk [vmem:[#allocation3] sm:$0x3] %vm4226, %v4221
    %vm4228 = vcmp.eq.s32.totalorder %v4221, %v63
    %v4229 = vsel %vm4228, 1, 0
    %v4230 = vcvt.s32.f32 %v4229
    %v4231 = vpack.c.bf16 %v4230, %v4230
    %v4233 = vsel %vm95, %v4231, 0
    %4235 = vmatprep.subr.bf16.mxu0 0
    %4236 = vmatpush1.bf16.msra.mxu0 %v1108
    %4237 = vmatprep.subr.bf16.mxu0 0
    %4238 = vmatpush1.bf16.msra.mxu0 %v1109
    %4239 = vmatprep.subr.bf16.mxu0 0
    %4240 = vmatpush1.bf16.msra.mxu0 0
    %4241 = vmatprep.subr.bf16.mxu0 0
    %4242 = vmatpush1.bf16.msra.mxu0 0
    %4243 = vmatprep.subr.bf16.mxu0 0
    %4244 = vmatpush1.bf16.msra.mxu0 0
    %4245 = vmatprep.subr.bf16.mxu0 0
    %4246 = vmatpush1.bf16.msra.mxu0 0
    %4247 = vmatprep.subr.bf16.mxu0 0
    %4248 = vmatpush1.bf16.msra.mxu0 0
    %4249 = vmatprep.subr.bf16.mxu0 0
    %4250 = vmatpush1.bf16.msra.mxu0 0
    %4251 = vmatprep.subr.bf16.mxu0 0
    %4252 = vmatpush1.bf16.msra.mxu0 0
    %4253 = vmatprep.subr.bf16.mxu0 0
    %4254 = vmatpush1.bf16.msra.mxu0 0
    %4255 = vmatprep.subr.bf16.mxu0 0
    %4256 = vmatpush1.bf16.msra.mxu0 0
    %4257 = vmatprep.subr.bf16.mxu0 0
    %4258 = vmatpush1.bf16.msra.mxu0 0
    %4259 = vmatprep.subr.bf16.mxu0 0
    %4260 = vmatpush1.bf16.msra.mxu0 0
    %4261 = vmatprep.subr.bf16.mxu0 0
    %4262 = vmatpush1.bf16.msra.mxu0 0
    %4263 = vmatprep.subr.bf16.mxu0 0
    %4264 = vmatpush1.bf16.msra.mxu0 0
    %4265 = vmatprep.subr.bf16.mxu0 0
    %4266 = vmatpush1.bf16.msra.mxu0 0
    %4267 = vmatprep.mubr.bf16.mxu0 0
    %4268 = vmatmul.mubr.bf16.gmra.mrb[0].mxu0 %v4233
    %v4269 = vpop.f32.mrb[0].mxu0
    %v4270 = vadd.f32 0.0, %v4269
    %v4271 = vpop.f32.mrb[0].mxu0
    %v4272 = vpop.f32.mrb[0].mxu0
    %v4273 = vpop.f32.mrb[0].mxu0
    %4274 = vdwg.mxu0
    %4275 = vmatprep.subr.bf16.mxu0 0
    %4276 = vmatpush1.bf16.msra.mxu0 %v1174
    %4277 = vmatprep.subr.bf16.mxu0 0
    %4278 = vmatpush1.bf16.msra.mxu0 %v1175
    %4279 = vmatprep.subr.bf16.mxu0 0
    %4280 = vmatpush1.bf16.msra.mxu0 0
    %4281 = vmatprep.subr.bf16.mxu0 0
    %4282 = vmatpush1.bf16.msra.mxu0 0
    %4283 = vmatprep.subr.bf16.mxu0 0
    %4284 = vmatpush1.bf16.msra.mxu0 0
    %4285 = vmatprep.subr.bf16.mxu0 0
    %4286 = vmatpush1.bf16.msra.mxu0 0
    %4287 = vmatprep.subr.bf16.mxu0 0
    %4288 = vmatpush1.bf16.msra.mxu0 0
    %4289 = vmatprep.subr.bf16.mxu0 0
    %4290 = vmatpush1.bf16.msra.mxu0 0
    %4291 = vmatprep.subr.bf16.mxu0 0
    %4292 = vmatpush1.bf16.msra.mxu0 0
    %4293 = vmatprep.subr.bf16.mxu0 0
    %4294 = vmatpush1.bf16.msra.mxu0 0
    %4295 = vmatprep.subr.bf16.mxu0 0
    %4296 = vmatpush1.bf16.msra.mxu0 0
    %4297 = vmatprep.subr.bf16.mxu0 0
    %4298 = vmatpush1.bf16.msra.mxu0 0
    %4299 = vmatprep.subr.bf16.mxu0 0
    %4300 = vmatpush1.bf16.msra.mxu0 0
    %4301 = vmatprep.subr.bf16.mxu0 0
    %4302 = vmatpush1.bf16.msra.mxu0 0
    %4303 = vmatprep.subr.bf16.mxu0 0
    %4304 = vmatpush1.bf16.msra.mxu0 0
    %4305 = vmatprep.subr.bf16.mxu0 0
    %4306 = vmatpush1.bf16.msra.mxu0 0
    %4307 = vmatprep.mubr.bf16.mxu0 0
    %4308 = vmatmul.mubr.bf16.gmra.mrb[0].mxu0 %v4158
    %v4309 = vpop.f32.mrb[0].mxu0
    %v4310 = vadd.f32 %v1160, %v4309
    %v4311 = vpop.f32.mrb[0].mxu0
    %v4312 = vpop.f32.mrb[0].mxu0
    %v4313 = vpop.f32.mrb[0].mxu0
    %4314 = vdwg.mxu0
    %v4315 = vadd.f32 %v4270, %v4310
    %v4316 = vxor.u32 %v4315, 2147483648
    %v4317 = vmul.f32 %v4316, 1.442695
    %v4318 = vpow.pop %v4317
    %v4319 = vadd.f32 %v4318, 1.0
    %v4320 = vrcp.pop %v4319
    %v4321 = vmul.f32 1.0, %v4320
    %4323 = vrot.lane.b32.xlu0 %v4310, 64
    %v4324 = vpop.permute.xlu0 %4323
    %v4326 = vmul.f32 %v4321, %v4324
    %4328 = vrot.lane.b32.xlu0 %v4326, 64
    %v4329 = vpop.permute.xlu0 %4328
    %v4331 = vadd.f32 %v4270, %v4329
    %v4332 = vtanh.pop %v4331
    %v4333 = vsub.f32 1.0, %v4321
    %4335 = vrot.lane.b32.xlu0 %v4332, 96
    %v4336 = vpop.permute.xlu0 %4335
    %v4338 = vmul.f32 %v4333, %v4336
    %v4339 = vmul.f32 %v4321, %v3958
    %v4340 = vadd.f32 %v4338, %v4339
    %v4343 = vunpack.c.l.s4 1966171168
    %v4344 = vunpack.c.0.s8 %v4343
    %v4345 = vlaneseq
    %v4346 = vshrl.u32 %v4345, 7
    %v4347 = vsub.s32 %v4344, %v4346
    %v4348 = vrot.slane %v4340, %v4347
    %v4349 = vcombine.high %v4348, %v4348
    %v4351 = vunpack.c.l.s4 1966171168
    %v4352 = vunpack.c.0.s8 %v4351
    %v4353 = vlaneseq
    %v4354 = vshrl.u32 %v4353, 7
    %v4355 = vsub.s32 %v4352, %v4354
    %v4356 = vrot.slane %v4348, %v4355
    %v4358 = vunpack.c.l.s4 1966171168
    %v4359 = vunpack.c.0.s8 %v4358
    %v4360 = vlaneseq
    %v4361 = vshrl.u32 %v4360, 7
    %v4362 = vsub.s32 %v4359, %v4361
    %v4363 = vrot.slane %v4349, %v4362
    %v4364 = vlaneseq
    %v4365 = vshrl.u32 %v4364, 7
    %v4366 = vsub.s32 0, %v4365
    %v4367 = vrot.slane %v4356, %v4366
    %v4368 = vlaneseq
    %v4369 = vshrl.u32 %v4368, 7
    %v4370 = vsub.s32 0, %v4369
    %v4371 = vrot.slane %v4363, %v4370
    %v4374 = vmul.f32 %v4367, %v1285
    %v4375 = vmul.f32 %v4371, %v1287
    %4378 = vrot.lane.b32.xlu0 %v4374, 96
    %v4379 = vpop.permute.xlu0 %4378
    %4380 = vrot.lane.b32.xlu0 %v4375, 96
    %v4381 = vpop.permute.xlu0 %4380
    %v4384 = vsel %vm95, %v4379, 0.0
    %4385 = vadd.xlane.f32.xlu0 %v4384
    %v4386 = vpop.xlane.xlu0 %4385
    %v4387 = vsel %vm95, %v4381, 0.0
    %4388 = vadd.xlane.f32.xlu0 %v4387
    %v4389 = vpop.xlane.xlu0 %4388
    %v4392 = vlaneseq
    %v4393 = vshrl.u32 %v4392, 7
    %v4394 = vsub.s32 %v63, %v4393
    %v4395 = vrot.slane %v4386, %v4394
    %v4396 = vlaneseq
    %v4397 = vshrl.u32 %v4396, 7
    %v4398 = vsub.s32 %v63, %v4397
    %v4399 = vrot.slane %v4389, %v4398
    %v4400 = vsel %vm1316, %v4399, %v4395
    %v4402 = vsel %vm1319, %v4400, -inf
    %4403 = vmax.xlane.f32.xlu0 %v4402
    %v4404 = vpop.xlane.xlu0 %4403
    %v4406 = vlaneseq
    %v4407 = vshrl.u32 %v4406, 7
    %v4408 = vsub.s32 0, %v4407
    %v4409 = vrot.slane %v4404, %v4408
    %v4410 = vlaneseq
    %v4411 = vshrl.u32 %v4410, 7
    %v4412 = vsub.s32 1, %v4411
    %v4413 = vrot.slane %v4404, %v4412
    %v4416 = vsub.f32 %v4386, %v4409
    %v4417 = vsub.f32 %v4389, %v4413
    %v4418 = vmul.f32 %v4416, 1.442695
    %v4419 = vpow.pop %v4418
    %v4420 = vmul.f32 %v4417, 1.442695
    %v4421 = vpow.pop %v4420
    %4424 = vset.pattern.permute.xlu0 0
    %4425 = vperm.xlu0 %4424, %v4419
    %v4426 = vpop.permute.xlu0 %4425
    %4427 = vset.pattern.permute.xlu0 0
    %4428 = vperm.xlu0 %4427, %v4421
    %v4429 = vpop.permute.xlu0 %4428
    %v4430 = vlaneseq
    %v4431 = vshrl.u32 %v4430, 7
    %v4432 = vsub.s32 %v63, %v4431
    %v4433 = vrot.slane %v4426, %v4432
    %v4434 = vlaneseq
    %v4435 = vshrl.u32 %v4434, 7
    %v4436 = vsub.s32 %v63, %v4435
    %v4437 = vrot.slane %v4429, %v4436
    %v4438 = vsel %vm1316, %v4437, %v4433
    %v4440 = vsel %vm1319, %v4438, 0.0
    %4441 = vadd.xlane.f32.xlu0 %v4440
    %v4442 = vpop.xlane.xlu0 %4441
    %v4444 = vlaneseq
    %v4445 = vshrl.u32 %v4444, 7
    %v4446 = vsub.s32 0, %v4445
    %v4447 = vrot.slane %v4442, %v4446
    %v4448 = vlaneseq
    %v4449 = vshrl.u32 %v4448, 7
    %v4450 = vsub.s32 1, %v4449
    %v4451 = vrot.slane %v4442, %v4450
    %v4454 = vrcp.pop %v4447
    %v4455 = vmul.f32 %v4419, %v4454
    %v4456 = vrcp.pop %v4451
    %v4457 = vmul.f32 %v4421, %v4456
    %4459 = vset.pattern.permute.xlu0 0
    %4460 = vperm.xlu0 %4459, %v4455
    %v4461 = vpop.permute.xlu0 %4460
    %4464 = vset.pattern.permute.xlu0 0
    %4465 = vperm.xlu0 %4464, %v4457
    %v4466 = vpop.permute.xlu0 %4465
    %v4468 = vmul.f32 %v4461, %v1094
    %v4469 = vmul.f32 %v4466, %v1095
    %v4470 = vsel %vm95, %v4468, 0.0
    %v4471 = vrot.slane %v4470, 4
    %v4472 = vadd.f32 %v4470, %v4471
    %v4473 = vrot.slane %v4472, 2
    %v4474 = vadd.f32 %v4472, %v4473
    %v4475 = vrot.slane %v4474, 1
    %v4476 = vadd.f32 %v4474, %v4475
    %v4477 = vsel %vm95, %v4469, 0.0
    %v4478 = vrot.slane %v4477, 4
    %v4479 = vadd.f32 %v4477, %v4478
    %v4480 = vrot.slane %v4479, 2
    %v4481 = vadd.f32 %v4479, %v4480
    %v4482 = vrot.slane %v4481, 1
    %v4483 = vadd.f32 %v4481, %v4482
    %v4484 = vpack.c.bf16 %v4340, %v4340
    %v4485 = vpack.c.bf16 %v4476, %v4476
    %v4486 = vpack.c.bf16 %v4483, %v4483
    %v4489 = vunpack.c.l.b16 %v4485
    %v4490 = vunpack.c.l.b16 %v4486
    %v4491 = vsel %vm1316, %v4490, %v4489
    %v4492 = vpack.c.b16 %v4491, %v4491
    %v4494 = vsel %vm95, %v4492, 0
    %4496 = vmatprep.subr.bf16.mxu0 0
    %4497 = vmatpush1.bf16.msra.mxu0 %v1419
    %4498 = vmatprep.subr.bf16.mxu0 0
    %4499 = vmatpush1.bf16.msra.mxu0 %v1420
    %4500 = vmatprep.subr.bf16.mxu0 0
    %4501 = vmatpush1.bf16.msra.mxu0 0
    %4502 = vmatprep.subr.bf16.mxu0 0
    %4503 = vmatpush1.bf16.msra.mxu0 0
    %4504 = vmatprep.subr.bf16.mxu0 0
    %4505 = vmatpush1.bf16.msra.mxu0 0
    %4506 = vmatprep.subr.bf16.mxu0 0
    %4507 = vmatpush1.bf16.msra.mxu0 0
    %4508 = vmatprep.subr.bf16.mxu0 0
    %4509 = vmatpush1.bf16.msra.mxu0 0
    %4510 = vmatprep.subr.bf16.mxu0 0
    %4511 = vmatpush1.bf16.msra.mxu0 0
    %4512 = vmatprep.subr.bf16.mxu0 0
    %4513 = vmatpush1.bf16.msra.mxu0 0
    %4514 = vmatprep.subr.bf16.mxu0 0
    %4515 = vmatpush1.bf16.msra.mxu0 0
    %4516 = vmatprep.subr.bf16.mxu0 0
    %4517 = vmatpush1.bf16.msra.mxu0 0
    %4518 = vmatprep.subr.bf16.mxu0 0
    %4519 = vmatpush1.bf16.msra.mxu0 0
    %4520 = vmatprep.subr.bf16.mxu0 0
    %4521 = vmatpush1.bf16.msra.mxu0 0
    %4522 = vmatprep.subr.bf16.mxu0 0
    %4523 = vmatpush1.bf16.msra.mxu0 0
    %4524 = vmatprep.subr.bf16.mxu0 0
    %4525 = vmatpush1.bf16.msra.mxu0 0
    %4526 = vmatprep.subr.bf16.mxu0 0
    %4527 = vmatpush1.bf16.msra.mxu0 0
    %4528 = vmatprep.mubr.bf16.mxu0 0
    %4529 = vmatmul.mubr.bf16.gmra.mrb[0].mxu0 %v4494
    %v4530 = vpop.f32.mrb[0].mxu0
    %v4531 = vadd.f32 0.0, %v4530
    %v4532 = vpop.f32.mrb[0].mxu0
    %v4533 = vpop.f32.mrb[0].mxu0
    %v4534 = vpop.f32.mrb[0].mxu0
    %4535 = vdwg.mxu0
    %4537 = vrot.lane.b32.xlu0 %v4484, 96
    %v4538 = vpop.permute.xlu0 %4537
    %v4540 = vsel %vm95, %v4538, 0
    %4542 = vmatprep.subr.bf16.mxu0 0
    %4543 = vmatpush1.bf16.msra.mxu0 %v1477
    %4544 = vmatprep.subr.bf16.mxu0 0
    %4545 = vmatpush1.bf16.msra.mxu0 %v1478
    %4546 = vmatprep.subr.bf16.mxu0 0
    %4547 = vmatpush1.bf16.msra.mxu0 0
    %4548 = vmatprep.subr.bf16.mxu0 0
    %4549 = vmatpush1.bf16.msra.mxu0 0
    %4550 = vmatprep.subr.bf16.mxu0 0
    %4551 = vmatpush1.bf16.msra.mxu0 0
    %4552 = vmatprep.subr.bf16.mxu0 0
    %4553 = vmatpush1.bf16.msra.mxu0 0
    %4554 = vmatprep.subr.bf16.mxu0 0
    %4555 = vmatpush1.bf16.msra.mxu0 0
    %4556 = vmatprep.subr.bf16.mxu0 0
    %4557 = vmatpush1.bf16.msra.mxu0 0
    %4558 = vmatprep.subr.bf16.mxu0 0
    %4559 = vmatpush1.bf16.msra.mxu0 0
    %4560 = vmatprep.subr.bf16.mxu0 0
    %4561 = vmatpush1.bf16.msra.mxu0 0
    %4562 = vmatprep.subr.bf16.mxu0 0
    %4563 = vmatpush1.bf16.msra.mxu0 0
    %4564 = vmatprep.subr.bf16.mxu0 0
    %4565 = vmatpush1.bf16.msra.mxu0 0
    %4566 = vmatprep.subr.bf16.mxu0 0
    %4567 = vmatpush1.bf16.msra.mxu0 0
    %4568 = vmatprep.subr.bf16.mxu0 0
    %4569 = vmatpush1.bf16.msra.mxu0 0
    %4570 = vmatprep.subr.bf16.mxu0 0
    %4571 = vmatpush1.bf16.msra.mxu0 0
    %4572 = vmatprep.subr.bf16.mxu0 0
    %4573 = vmatpush1.bf16.msra.mxu0 0
    %4574 = vmatprep.mubr.bf16.mxu0 0
    %4575 = vmatmul.mubr.bf16.gmra.mrb[0].mxu0 %v4540
    %v4576 = vpop.f32.mrb[0].mxu0
    %v4577 = vadd.f32 %v4531, %v4576
    %v4578 = vpop.f32.mrb[0].mxu0
    %v4579 = vpop.f32.mrb[0].mxu0
    %v4580 = vpop.f32.mrb[0].mxu0
    %4581 = vdwg.mxu0
    %v4582 = vadd.f32 %v4577, %v1528
    %v4583 = vsel %vm1531, %v4582, -inf
    %4584 = vmax.xlane.f32.xlu0 %v4583
    %v4585 = vpop.xlane.xlu0 %4584
    %vm4586 = vcmp.eq.f32.partialorder %v4582, %v4585
    %v4587 = vsel %vm4586, %v63, 32
    %v4588 = vsel %vm1531, %v4587, 2147483647
    %v4589 = vand.u32 %v4588, 65535
    %v4590 = vshra.s32 %v4588, 16
    %v4591 = vcvt.s32.f32 %v4589
    %v4592 = vcvt.s32.f32 %v4590
    %4593 = vmin.xlane.f32.xlu0 %v4592
    %v4594 = vpop.xlane.xlu0 %4593
    %vm4595 = vcmp.eq.f32.partialorder %v4592, %v4594
    %v4596 = vsel %vm4595, %v4591, inf
    %4597 = vmin.xlane.f32.xlu0 %v4596
    %v4598 = vpop.xlane.xlu0 %4597
    %v4599 = vcvt.f32.s32 %v4598
    %v4600 = vcvt.f32.s32 %v4594
    %v4601 = vshll.u32 %v4600, 16
    %v4602 = vadd.s32 %v4601, %v4599
    %v4603 = vsel %vm4225, 2, %v4602
    %v4604 = vadd.s32 %v4223, 1
    %v4605 = vsel %vm4225, %v4223, %v4604
    %vm4606 = vcmp.eq.s32.totalorder %v4603, 2
    %vm4607 = vmor %vm4225, %vm4606
    %vm4608 = vcmask 66624
    %4609 = vst.msk [vmem:[#allocation3] sm:$0x3] %vm4608, %v4603
    %vm4610 = vcmp.eq.s32.totalorder %v4603, %v63
    %v4611 = vsel %vm4610, 1, 0
    %v4612 = vcvt.s32.f32 %v4611
    %v4613 = vpack.c.bf16 %v4612, %v4612
    %v4615 = vsel %vm95, %v4613, 0
    %4617 = vmatprep.subr.bf16.mxu0 0
    %4618 = vmatpush1.bf16.msra.mxu0 %v1108
    %4619 = vmatprep.subr.bf16.mxu0 0
    %4620 = vmatpush1.bf16.msra.mxu0 %v1109
    %4621 = vmatprep.subr.bf16.mxu0 0
    %4622 = vmatpush1.bf16.msra.mxu0 0
    %4623 = vmatprep.subr.bf16.mxu0 0
    %4624 = vmatpush1.bf16.msra.mxu0 0
    %4625 = vmatprep.subr.bf16.mxu0 0
    %4626 = vmatpush1.bf16.msra.mxu0 0
    %4627 = vmatprep.subr.bf16.mxu0 0
    %4628 = vmatpush1.bf16.msra.mxu0 0
    %4629 = vmatprep.subr.bf16.mxu0 0
    %4630 = vmatpush1.bf16.msra.mxu0 0
    %4631 = vmatprep.subr.bf16.mxu0 0
    %4632 = vmatpush1.bf16.msra.mxu0 0
    %4633 = vmatprep.subr.bf16.mxu0 0
    %4634 = vmatpush1.bf16.msra.mxu0 0
    %4635 = vmatprep.subr.bf16.mxu0 0
    %4636 = vmatpush1.bf16.msra.mxu0 0
    %4637 = vmatprep.subr.bf16.mxu0 0
    %4638 = vmatpush1.bf16.msra.mxu0 0
    %4639 = vmatprep.subr.bf16.mxu0 0
    %4640 = vmatpush1.bf16.msra.mxu0 0
    %4641 = vmatprep.subr.bf16.mxu0 0
    %4642 = vmatpush1.bf16.msra.mxu0 0
    %4643 = vmatprep.subr.bf16.mxu0 0
    %4644 = vmatpush1.bf16.msra.mxu0 0
    %4645 = vmatprep.subr.bf16.mxu0 0
    %4646 = vmatpush1.bf16.msra.mxu0 0
    %4647 = vmatprep.subr.bf16.mxu0 0
    %4648 = vmatpush1.bf16.msra.mxu0 0
    %4649 = vmatprep.mubr.bf16.mxu0 0
    %4650 = vmatmul.mubr.bf16.gmra.mrb[0].mxu0 %v4615
    %v4651 = vpop.f32.mrb[0].mxu0
    %v4652 = vadd.f32 0.0, %v4651
    %v4653 = vpop.f32.mrb[0].mxu0
    %v4654 = vpop.f32.mrb[0].mxu0
    %v4655 = vpop.f32.mrb[0].mxu0
    %4656 = vdwg.mxu0
    %4657 = vmatprep.subr.bf16.mxu0 0
    %4658 = vmatpush1.bf16.msra.mxu0 %v1174
    %4659 = vmatprep.subr.bf16.mxu0 0
    %4660 = vmatpush1.bf16.msra.mxu0 %v1175
    %4661 = vmatprep.subr.bf16.mxu0 0
    %4662 = vmatpush1.bf16.msra.mxu0 0
    %4663 = vmatprep.subr.bf16.mxu0 0
    %4664 = vmatpush1.bf16.msra.mxu0 0
    %4665 = vmatprep.subr.bf16.mxu0 0
    %4666 = vmatpush1.bf16.msra.mxu0 0
    %4667 = vmatprep.subr.bf16.mxu0 0
    %4668 = vmatpush1.bf16.msra.mxu0 0
    %4669 = vmatprep.subr.bf16.mxu0 0
    %4670 = vmatpush1.bf16.msra.mxu0 0
    %4671 = vmatprep.subr.bf16.mxu0 0
    %4672 = vmatpush1.bf16.msra.mxu0 0
    %4673 = vmatprep.subr.bf16.mxu0 0
    %4674 = vmatpush1.bf16.msra.mxu0 0
    %4675 = vmatprep.subr.bf16.mxu0 0
    %4676 = vmatpush1.bf16.msra.mxu0 0
    %4677 = vmatprep.subr.bf16.mxu0 0
    %4678 = vmatpush1.bf16.msra.mxu0 0
    %4679 = vmatprep.subr.bf16.mxu0 0
    %4680 = vmatpush1.bf16.msra.mxu0 0
    %4681 = vmatprep.subr.bf16.mxu0 0
    %4682 = vmatpush1.bf16.msra.mxu0 0
    %4683 = vmatprep.subr.bf16.mxu0 0
    %4684 = vmatpush1.bf16.msra.mxu0 0
    %4685 = vmatprep.subr.bf16.mxu0 0
    %4686 = vmatpush1.bf16.msra.mxu0 0
    %4687 = vmatprep.subr.bf16.mxu0 0
    %4688 = vmatpush1.bf16.msra.mxu0 0
    %4689 = vmatprep.mubr.bf16.mxu0 0
    %4690 = vmatmul.mubr.bf16.gmra.mrb[0].mxu0 %v4540
    %v4691 = vpop.f32.mrb[0].mxu0
    %v4692 = vadd.f32 %v1160, %v4691
    %v4693 = vpop.f32.mrb[0].mxu0
    %v4694 = vpop.f32.mrb[0].mxu0
    %v4695 = vpop.f32.mrb[0].mxu0
    %4696 = vdwg.mxu0
    %v4697 = vadd.f32 %v4652, %v4692
    %v4698 = vxor.u32 %v4697, 2147483648
    %v4699 = vmul.f32 %v4698, 1.442695
    %v4700 = vpow.pop %v4699
    %v4701 = vadd.f32 %v4700, 1.0
    %v4702 = vrcp.pop %v4701
    %v4703 = vmul.f32 1.0, %v4702
    %4705 = vrot.lane.b32.xlu0 %v4692, 64
    %v4706 = vpop.permute.xlu0 %4705
    %v4708 = vmul.f32 %v4703, %v4706
    %4710 = vrot.lane.b32.xlu0 %v4708, 64
    %v4711 = vpop.permute.xlu0 %4710
    %v4713 = vadd.f32 %v4652, %v4711
    %v4714 = vtanh.pop %v4713
    %v4715 = vsub.f32 1.0, %v4703
    %4717 = vrot.lane.b32.xlu0 %v4714, 96
    %v4718 = vpop.permute.xlu0 %4717
    %v4720 = vmul.f32 %v4715, %v4718
    %v4721 = vmul.f32 %v4703, %v4340
    %v4722 = vadd.f32 %v4720, %v4721
    %v4725 = vunpack.c.l.s4 1966171168
    %v4726 = vunpack.c.0.s8 %v4725
    %v4727 = vlaneseq
    %v4728 = vshrl.u32 %v4727, 7
    %v4729 = vsub.s32 %v4726, %v4728
    %v4730 = vrot.slane %v4722, %v4729
    %v4731 = vcombine.high %v4730, %v4730
    %v4733 = vunpack.c.l.s4 1966171168
    %v4734 = vunpack.c.0.s8 %v4733
    %v4735 = vlaneseq
    %v4736 = vshrl.u32 %v4735, 7
    %v4737 = vsub.s32 %v4734, %v4736
    %v4738 = vrot.slane %v4730, %v4737
    %v4740 = vunpack.c.l.s4 1966171168
    %v4741 = vunpack.c.0.s8 %v4740
    %v4742 = vlaneseq
    %v4743 = vshrl.u32 %v4742, 7
    %v4744 = vsub.s32 %v4741, %v4743
    %v4745 = vrot.slane %v4731, %v4744
    %v4746 = vlaneseq
    %v4747 = vshrl.u32 %v4746, 7
    %v4748 = vsub.s32 0, %v4747
    %v4749 = vrot.slane %v4738, %v4748
    %v4750 = vlaneseq
    %v4751 = vshrl.u32 %v4750, 7
    %v4752 = vsub.s32 0, %v4751
    %v4753 = vrot.slane %v4745, %v4752
    %v4756 = vmul.f32 %v4749, %v1285
    %v4757 = vmul.f32 %v4753, %v1287
    %4760 = vrot.lane.b32.xlu0 %v4756, 96
    %v4761 = vpop.permute.xlu0 %4760
    %4762 = vrot.lane.b32.xlu0 %v4757, 96
    %v4763 = vpop.permute.xlu0 %4762
    %v4766 = vsel %vm95, %v4761, 0.0
    %4767 = vadd.xlane.f32.xlu0 %v4766
    %v4768 = vpop.xlane.xlu0 %4767
    %v4769 = vsel %vm95, %v4763, 0.0
    %4770 = vadd.xlane.f32.xlu0 %v4769
    %v4771 = vpop.xlane.xlu0 %4770
    %v4774 = vlaneseq
    %v4775 = vshrl.u32 %v4774, 7
    %v4776 = vsub.s32 %v63, %v4775
    %v4777 = vrot.slane %v4768, %v4776
    %v4778 = vlaneseq
    %v4779 = vshrl.u32 %v4778, 7
    %v4780 = vsub.s32 %v63, %v4779
    %v4781 = vrot.slane %v4771, %v4780
    %v4782 = vsel %vm1316, %v4781, %v4777
    %v4784 = vsel %vm1319, %v4782, -inf
    %4785 = vmax.xlane.f32.xlu0 %v4784
    %v4786 = vpop.xlane.xlu0 %4785
    %v4788 = vlaneseq
    %v4789 = vshrl.u32 %v4788, 7
    %v4790 = vsub.s32 0, %v4789
    %v4791 = vrot.slane %v4786, %v4790
    %v4792 = vlaneseq
    %v4793 = vshrl.u32 %v4792, 7
    %v4794 = vsub.s32 1, %v4793
    %v4795 = vrot.slane %v4786, %v4794
    %v4798 = vsub.f32 %v4768, %v4791
    %v4799 = vsub.f32 %v4771, %v4795
    %v4800 = vmul.f32 %v4798, 1.442695
    %v4801 = vpow.pop %v4800
    %v4802 = vmul.f32 %v4799, 1.442695
    %v4803 = vpow.pop %v4802
    %4806 = vset.pattern.permute.xlu0 0
    %4807 = vperm.xlu0 %4806, %v4801
    %v4808 = vpop.permute.xlu0 %4807
    %4809 = vset.pattern.permute.xlu0 0
    %4810 = vperm.xlu0 %4809, %v4803
    %v4811 = vpop.permute.xlu0 %4810
    %v4812 = vlaneseq
    %v4813 = vshrl.u32 %v4812, 7
    %v4814 = vsub.s32 %v63, %v4813
    %v4815 = vrot.slane %v4808, %v4814
    %v4816 = vlaneseq
    %v4817 = vshrl.u32 %v4816, 7
    %v4818 = vsub.s32 %v63, %v4817
    %v4819 = vrot.slane %v4811, %v4818
    %v4820 = vsel %vm1316, %v4819, %v4815
    %v4822 = vsel %vm1319, %v4820, 0.0
    %4823 = vadd.xlane.f32.xlu0 %v4822
    %v4824 = vpop.xlane.xlu0 %4823
    %v4826 = vlaneseq
    %v4827 = vshrl.u32 %v4826, 7
    %v4828 = vsub.s32 0, %v4827
    %v4829 = vrot.slane %v4824, %v4828
    %v4830 = vlaneseq
    %v4831 = vshrl.u32 %v4830, 7
    %v4832 = vsub.s32 1, %v4831
    %v4833 = vrot.slane %v4824, %v4832
    %v4836 = vrcp.pop %v4829
    %v4837 = vmul.f32 %v4801, %v4836
    %v4838 = vrcp.pop %v4833
    %v4839 = vmul.f32 %v4803, %v4838
    %4841 = vset.pattern.permute.xlu0 0
    %4842 = vperm.xlu0 %4841, %v4837
    %v4843 = vpop.permute.xlu0 %4842
    %4846 = vset.pattern.permute.xlu0 0
    %4847 = vperm.xlu0 %4846, %v4839
    %v4848 = vpop.permute.xlu0 %4847
    %v4850 = vmul.f32 %v4843, %v1094
    %v4851 = vmul.f32 %v4848, %v1095
    %v4852 = vsel %vm95, %v4850, 0.0
    %v4853 = vrot.slane %v4852, 4
    %v4854 = vadd.f32 %v4852, %v4853
    %v4855 = vrot.slane %v4854, 2
    %v4856 = vadd.f32 %v4854, %v4855
    %v4857 = vrot.slane %v4856, 1
    %v4858 = vadd.f32 %v4856, %v4857
    %v4859 = vsel %vm95, %v4851, 0.0
    %v4860 = vrot.slane %v4859, 4
    %v4861 = vadd.f32 %v4859, %v4860
    %v4862 = vrot.slane %v4861, 2
    %v4863 = vadd.f32 %v4861, %v4862
    %v4864 = vrot.slane %v4863, 1
    %v4865 = vadd.f32 %v4863, %v4864
    %v4866 = vpack.c.bf16 %v4722, %v4722
    %v4867 = vpack.c.bf16 %v4858, %v4858
    %v4868 = vpack.c.bf16 %v4865, %v4865
    %v4871 = vunpack.c.l.b16 %v4867
    %v4872 = vunpack.c.l.b16 %v4868
    %v4873 = vsel %vm1316, %v4872, %v4871
    %v4874 = vpack.c.b16 %v4873, %v4873
    %v4876 = vsel %vm95, %v4874, 0
    %4878 = vmatprep.subr.bf16.mxu0 0
    %4879 = vmatpush1.bf16.msra.mxu0 %v1419
    %4880 = vmatprep.subr.bf16.mxu0 0
    %4881 = vmatpush1.bf16.msra.mxu0 %v1420
    %4882 = vmatprep.subr.bf16.mxu0 0
    %4883 = vmatpush1.bf16.msra.mxu0 0
    %4884 = vmatprep.subr.bf16.mxu0 0
    %4885 = vmatpush1.bf16.msra.mxu0 0
    %4886 = vmatprep.subr.bf16.mxu0 0
    %4887 = vmatpush1.bf16.msra.mxu0 0
    %4888 = vmatprep.subr.bf16.mxu0 0
    %4889 = vmatpush1.bf16.msra.mxu0 0
    %4890 = vmatprep.subr.bf16.mxu0 0
    %4891 = vmatpush1.bf16.msra.mxu0 0
    %4892 = vmatprep.subr.bf16.mxu0 0
    %4893 = vmatpush1.bf16.msra.mxu0 0
    %4894 = vmatprep.subr.bf16.mxu0 0
    %4895 = vmatpush1.bf16.msra.mxu0 0
    %4896 = vmatprep.subr.bf16.mxu0 0
    %4897 = vmatpush1.bf16.msra.mxu0 0
    %4898 = vmatprep.subr.bf16.mxu0 0
    %4899 = vmatpush1.bf16.msra.mxu0 0
    %4900 = vmatprep.subr.bf16.mxu0 0
    %4901 = vmatpush1.bf16.msra.mxu0 0
    %4902 = vmatprep.subr.bf16.mxu0 0
    %4903 = vmatpush1.bf16.msra.mxu0 0
    %4904 = vmatprep.subr.bf16.mxu0 0
    %4905 = vmatpush1.bf16.msra.mxu0 0
    %4906 = vmatprep.subr.bf16.mxu0 0
    %4907 = vmatpush1.bf16.msra.mxu0 0
    %4908 = vmatprep.subr.bf16.mxu0 0
    %4909 = vmatpush1.bf16.msra.mxu0 0
    %4910 = vmatprep.mubr.bf16.mxu0 0
    %4911 = vmatmul.mubr.bf16.gmra.mrb[0].mxu0 %v4876
    %v4912 = vpop.f32.mrb[0].mxu0
    %v4913 = vadd.f32 0.0, %v4912
    %v4914 = vpop.f32.mrb[0].mxu0
    %v4915 = vpop.f32.mrb[0].mxu0
    %v4916 = vpop.f32.mrb[0].mxu0
    %4917 = vdwg.mxu0
    %4919 = vrot.lane.b32.xlu0 %v4866, 96
    %v4920 = vpop.permute.xlu0 %4919
    %v4922 = vsel %vm95, %v4920, 0
    %4924 = vmatprep.subr.bf16.mxu0 0
    %4925 = vmatpush1.bf16.msra.mxu0 %v1477
    %4926 = vmatprep.subr.bf16.mxu0 0
    %4927 = vmatpush1.bf16.msra.mxu0 %v1478
    %4928 = vmatprep.subr.bf16.mxu0 0
    %4929 = vmatpush1.bf16.msra.mxu0 0
    %4930 = vmatprep.subr.bf16.mxu0 0
    %4931 = vmatpush1.bf16.msra.mxu0 0
    %4932 = vmatprep.subr.bf16.mxu0 0
    %4933 = vmatpush1.bf16.msra.mxu0 0
    %4934 = vmatprep.subr.bf16.mxu0 0
    %4935 = vmatpush1.bf16.msra.mxu0 0
    %4936 = vmatprep.subr.bf16.mxu0 0
    %4937 = vmatpush1.bf16.msra.mxu0 0
    %4938 = vmatprep.subr.bf16.mxu0 0
    %4939 = vmatpush1.bf16.msra.mxu0 0
    %4940 = vmatprep.subr.bf16.mxu0 0
    %4941 = vmatpush1.bf16.msra.mxu0 0
    %4942 = vmatprep.subr.bf16.mxu0 0
    %4943 = vmatpush1.bf16.msra.mxu0 0
    %4944 = vmatprep.subr.bf16.mxu0 0
    %4945 = vmatpush1.bf16.msra.mxu0 0
    %4946 = vmatprep.subr.bf16.mxu0 0
    %4947 = vmatpush1.bf16.msra.mxu0 0
    %4948 = vmatprep.subr.bf16.mxu0 0
    %4949 = vmatpush1.bf16.msra.mxu0 0
    %4950 = vmatprep.subr.bf16.mxu0 0
    %4951 = vmatpush1.bf16.msra.mxu0 0
    %4952 = vmatprep.subr.bf16.mxu0 0
    %4953 = vmatpush1.bf16.msra.mxu0 0
    %4954 = vmatprep.subr.bf16.mxu0 0
    %4955 = vmatpush1.bf16.msra.mxu0 0
    %4956 = vmatprep.mubr.bf16.mxu0 0
    %4957 = vmatmul.mubr.bf16.gmra.mrb[0].mxu0 %v4922
    %v4958 = vpop.f32.mrb[0].mxu0
    %v4959 = vadd.f32 %v4913, %v4958
    %v4960 = vpop.f32.mrb[0].mxu0
    %v4961 = vpop.f32.mrb[0].mxu0
    %v4962 = vpop.f32.mrb[0].mxu0
    %4963 = vdwg.mxu0
    %v4964 = vadd.f32 %v4959, %v1528
    %v4965 = vsel %vm1531, %v4964, -inf
    %4966 = vmax.xlane.f32.xlu0 %v4965
    %v4967 = vpop.xlane.xlu0 %4966
    %vm4968 = vcmp.eq.f32.partialorder %v4964, %v4967
    %v4969 = vsel %vm4968, %v63, 32
    %v4970 = vsel %vm1531, %v4969, 2147483647
    %v4971 = vand.u32 %v4970, 65535
    %v4972 = vshra.s32 %v4970, 16
    %v4973 = vcvt.s32.f32 %v4971
    %v4974 = vcvt.s32.f32 %v4972
    %4975 = vmin.xlane.f32.xlu0 %v4974
    %v4976 = vpop.xlane.xlu0 %4975
    %vm4977 = vcmp.eq.f32.partialorder %v4974, %v4976
    %v4978 = vsel %vm4977, %v4973, inf
    %4979 = vmin.xlane.f32.xlu0 %v4978
    %v4980 = vpop.xlane.xlu0 %4979
    %v4981 = vcvt.f32.s32 %v4980
    %v4982 = vcvt.f32.s32 %v4976
    %v4983 = vshll.u32 %v4982, 16
    %v4984 = vadd.s32 %v4983, %v4981
    %v4985 = vsel %vm4607, 2, %v4984
    %v4986 = vadd.s32 %v4605, 1
    %v4987 = vsel %vm4607, %v4605, %v4986
    %vm4988 = vcmask 74824
    %4989 = vst.msk [vmem:[#allocation3] sm:$0x3] %vm4988, %v4985
    %4990 = vst.msk [vmem:[%s11] sm:$0x3] %vm1553, %v4987
    // Predicated region
    $region42: #{seq2seq_predict.1} parent=1 // pred_check
      _
    $region43: #{seq2seq_predict.1} parent=1 // pred_check_branch
      %4992 = sbr.rel (0) target = $region45
    $region44: #{seq2seq_predict.1} parent=1 // pred_region
      %s4994 = ssub.s32 32, 32
      %4995 = vsyncadd [#allocation4], %s4994
      %s4997 = sshll.u32 [#allocation3], 4
      %s4998 = int_to_ptr.vmem [resolvable:$true] %s4997
      %5000 = dma.vmem_to_hbm [thread:$0]  %s4998, 32, %s10, [#allocation4]
    $region45: #{seq2seq_predict.1} parent=1 // pred_fallthru
      _
    // Predicated region
    $region46: #{seq2seq_predict.1} parent=1 // pred_check
      _
    $region47: #{seq2seq_predict.1} parent=1 // pred_check_branch
      %5002 = sbr.rel (0) target = $region49
    $region48: #{seq2seq_predict.1} parent=1 // pred_region
      _
    $region49: #{seq2seq_predict.1} parent=1 // pred_fallthru
      _
    // Predicated region
    $region50: #{seq2seq_predict.1} parent=1 // pred_check
      _
    $region51: #{seq2seq_predict.1} parent=1 // pred_check_branch
      %5004 = sbr.rel (0) target = $region53
    $region52: #{seq2seq_predict.1} parent=1 // pred_region
      %5005 = dma.done [#allocation4], 32
    $region53: #{seq2seq_predict.1} parent=1 // pred_fallthru
      _
    // Predicated region
    $region54: #{seq2seq_predict.1} parent=1 // pred_check
      _
    $region55: #{seq2seq_predict.1} parent=1 // pred_check_branch
      %5007 = sbr.rel (0) target = $region57
    $region56: #{seq2seq_predict.1} parent=1 // pred_region
      _
    $region57: #{seq2seq_predict.1} parent=1 // pred_fallthru
      _
    %5008 = vsyncpa [#allocation4], 1

</llo_original>
